<compile_context>
chip_gen: v7x
topology: tpu7x:2x2x1
jax: 0.10.0
libtpu: 0.0.40
codegen_flags: <defaults>
</compile_context>

<pallas_src>
import functools

import jax
import jax.numpy as jnp
from jax.experimental import pallas as pl
from jax.experimental.pallas import tpu as pltpu

BN_EPS = 1e-5

# Packed-vector row layout (rows of the single (16, W) f32 parameter array):
#   0: b1   1: gamma1  2: beta1
#   3: b2   4: gamma2  5: beta2
#   6: b3
#   7: b4   8: gamma4  9: beta4
#  10: b5  11: gamma5 12: beta5
#  13: b6
_VEC_ROWS = 16


def _round_up(n, m):
    return ((n + m - 1) // m) * m


def autoencoder_kernel(x_ref,
                       w1_ref, w2_ref, w3_ref, w4_ref, w5_ref, w6_ref,
                       vec_ref, o_ref):
    B = x_ref.shape[0]
    inv_b = 1.0 / float(B)

    def dense(h, w_ref, bias_row):
        n = w_ref.shape[1]
        w = w_ref[...].astype(jnp.float32)          # bf16 storage, f32 compute
        b = vec_ref[bias_row:bias_row + 1, 0:n]
        return jnp.dot(h, w, preferred_element_type=jnp.float32) + b

    def bn_train(h, gamma_row, beta_row):
        # Training-mode BatchNorm1d: batch mean, biased batch variance.
        # Single-pass stats: var = E[x^2] - mean^2 (clamped at 0).
        n = h.shape[1]
        gamma = vec_ref[gamma_row:gamma_row + 1, 0:n]
        beta = vec_ref[beta_row:beta_row + 1, 0:n]
        s = jnp.sum(h, axis=0, keepdims=True)
        ss = jnp.sum(h * h, axis=0, keepdims=True)
        mean = s * inv_b
        var = jnp.maximum(ss * inv_b - mean * mean, 0.0)
        a = gamma * jax.lax.rsqrt(var + BN_EPS)      # (1, n) folded scale
        c = beta - mean * a                          # (1, n) folded shift
        return h * a + c

    x = x_ref[...]

    # ---------------- encoder ----------------
    h = jnp.maximum(dense(x, w1_ref, 0), 0.0)
    h = bn_train(h, 1, 2)

    h = jnp.maximum(dense(h, w2_ref, 3), 0.0)
    h = bn_train(h, 4, 5)

    z = jnp.maximum(dense(h, w3_ref, 6), 0.0)      # bottleneck (lane-padded)

    # ---------------- decoder ----------------
    h = jnp.maximum(dense(z, w4_ref, 7), 0.0)
    h = bn_train(h, 8, 9)

    h = jnp.maximum(dense(h, w5_ref, 10), 0.0)
    h = bn_train(h, 11, 12)

    y = dense(h, w6_ref, 13)
    # Sigmoid: exp on EUP, approx reciprocal on EUP (frees VALU slots).
    o_ref[...] = pl.reciprocal(1.0 + jnp.exp(-y), approx=True)


def init_params(key, input_shape, encoding_dim):
    """PyTorch-style uniform(+-1/sqrt(fan_in)) init.

    Returns:
      weights: tuple of 6 bf16 matrices, pre-transposed to (in, out), with the
               encoding dimension zero-padded to a multiple of 128.
      vecs:    one packed (16, W) f32 array holding every bias / BN vector.
    """
    D = 1
    for s in input_shape:
        D *= s
    enc_p = _round_up(encoding_dim, 128)
    W = _round_up(max(1024, D, enc_p), 128)

    # (fan_in, fan_out, pad_in, pad_out, has_bn)
    dims = [
        (D, 1024, D, 1024, True),
        (1024, 512, 1024, 512, True),
        (512, encoding_dim, 512, enc_p, False),   # pad output cols with zeros
        (encoding_dim, 512, enc_p, 512, True),    # pad input rows with zeros
        (512, 1024, 512, 1024, True),
        (1024, D, 1024, D, False),
    ]

    weights = []
    vecs = jnp.zeros((_VEC_ROWS, W), jnp.float32)
    row = 0
    for (fan_in, fan_out, pad_in, pad_out, has_bn) in dims:
        key, kw, kb = jax.random.split(key, 3)
        bound = 1.0 / jnp.sqrt(float(fan_in))
        w = jax.random.uniform(kw, (fan_in, fan_out), jnp.float32, -bound, bound)
        b = jax.random.uniform(kb, (fan_out,), jnp.float32, -bound, bound)

        # Zero-pad to lane-dense sizes (mathematically identical network).
        if pad_in != fan_in or pad_out != fan_out:
            w = jnp.zeros((pad_in, pad_out), jnp.float32).at[:fan_in, :fan_out].set(w)
        weights.append(w.astype(jnp.bfloat16))

        vecs = vecs.at[row, :fan_out].set(b)
        row += 1
        if has_bn:
            vecs = vecs.at[row, :fan_out].set(jnp.ones((fan_out,), jnp.float32))
            row += 1
            # beta row stays zero.
            row += 1

    assert row == 14
    return tuple(weights), vecs


@functools.partial(jax.jit, static_argnames=("input_shape",))
def autoencoder_forward(x_nchw, weights, vecs, input_shape):
    B = x_nchw.shape[0]
    D = 1
    for s in input_shape:
        D *= s
    x2d = x_nchw.reshape(B, D).astype(jnp.float32)        # nn.Flatten (glue)

    vmem_spec = pl.BlockSpec(memory_space=pltpu.MemorySpace.VMEM)
    n_in = 1 + len(weights) + 1

    out2d = pl.pallas_call(
        autoencoder_kernel,
        out_shape=jax.ShapeDtypeStruct((B, D), jnp.float32),
        in_specs=[vmem_spec] * n_in,
        out_specs=vmem_spec,
        compiler_params=pltpu.CompilerParams(vmem_limit_bytes=48 << 20),
    )(x2d, *weights, vecs)

    return out2d.reshape((B,) + tuple(input_shape))       # nn.Unflatten (glue)


if __name__ == "__main__":
    input_shape = (4, 16, 16)   # C, H, W  -> prod = 1024
    encoding_dim = 32
    batch = 2

    key = jax.random.PRNGKey(0)
    k_x, k_p = jax.random.split(key)
    x = jax.random.uniform(k_x, (batch,) + input_shape, jnp.float32)  # NCHW

    weights, vecs = init_params(k_p, input_shape, encoding_dim)

    out = autoencoder_forward(x, weights, vecs, input_shape)
    jax.block_until_ready(out)

    assert out.shape == (batch,) + input_shape, out.shape
    assert bool(jnp.all(jnp.isfinite(out)))
    assert bool(jnp.all((out >= 0.0) & (out <= 1.0)))      # sigmoid range
    print("KERNEL_OK")
</pallas_src>

<mosaic_0001>
module attributes {stable_mosaic.version = 11 : i64} {
  func.func @autoencoder_kernel(%arg0: memref<2x1024xf32, #tpu.memory_space<vmem>>, %arg1: memref<1024x1024xbf16, #tpu.memory_space<vmem>>, %arg2: memref<1024x512xbf16, #tpu.memory_space<vmem>>, %arg3: memref<512x128xbf16, #tpu.memory_space<vmem>>, %arg4: memref<128x512xbf16, #tpu.memory_space<vmem>>, %arg5: memref<512x1024xbf16, #tpu.memory_space<vmem>>, %arg6: memref<1024x1024xbf16, #tpu.memory_space<vmem>>, %arg7: memref<16x1024xf32, #tpu.memory_space<vmem>>, %arg8: memref<2x1024xf32, #tpu.memory_space<vmem>>) attributes {dimension_semantics = [], scalar_prefetch = 0 : i64, scratch_operands = 0 : i64, tpu.core_type = #tpu.core_type<tc>} {
    %c0 = arith.constant 0 : index
    %c0_0 = arith.constant 0 : index
    %0 = vector.load %arg0[%c0, %c0_0] : memref<2x1024xf32, #tpu.memory_space<vmem>>, vector<2x1024xf32>
    %c0_1 = arith.constant 0 : index
    %c0_2 = arith.constant 0 : index
    %1 = vector.load %arg1[%c0_1, %c0_2] : memref<1024x1024xbf16, #tpu.memory_space<vmem>>, vector<1024x1024xbf16>
    %2 = arith.extf %1 : vector<1024x1024xbf16> to vector<1024x1024xf32>
    %c0_3 = arith.constant 0 : index
    %c0_4 = arith.constant 0 : index
    %3 = vector.load %arg7[%c0_3, %c0_4] : memref<16x1024xf32, #tpu.memory_space<vmem>>, vector<1x1024xf32>
    %cst = arith.constant dense<0.000000e+00> : vector<2x1024xf32>
    %4 = tpu.matmul %0, %2, %cst {dimension_numbers = #tpu.dot_dimension_numbers<[1], [0], [0], [1], [0, 0, 1, 1], [], []>} : vector<2x1024xf32>, vector<1024x1024xf32>, vector<2x1024xf32> -> vector<2x1024xf32>
    %5 = vector.broadcast %3 : vector<1x1024xf32> to vector<2x1024xf32>
    %6 = arith.addf %4, %5 : vector<2x1024xf32>
    %cst_5 = arith.constant 0.000000e+00 : f32
    %7 = vector.broadcast %cst_5 : f32 to vector<2x1024xf32>
    %8 = arith.maximumf %6, %7 : vector<2x1024xf32>
    %c1 = arith.constant 1 : index
    %c0_6 = arith.constant 0 : index
    %9 = vector.load %arg7[%c1, %c0_6] : memref<16x1024xf32, #tpu.memory_space<vmem>>, vector<1x1024xf32>
    %c2 = arith.constant 2 : index
    %c0_7 = arith.constant 0 : index
    %10 = vector.load %arg7[%c2, %c0_7] : memref<16x1024xf32, #tpu.memory_space<vmem>>, vector<1x1024xf32>
    %cst_8 = arith.constant dense<0.000000e+00> : vector<1024xf32>
    %11 = vector.multi_reduction <add>, %8, %cst_8 [0] : vector<2x1024xf32> to vector<1024xf32>
    %12 = vector.shape_cast %11 : vector<1024xf32> to vector<1x1024xf32>
    %13 = arith.mulf %8, %8 : vector<2x1024xf32>
    %cst_9 = arith.constant dense<0.000000e+00> : vector<1024xf32>
    %14 = vector.multi_reduction <add>, %13, %cst_9 [0] : vector<2x1024xf32> to vector<1024xf32>
    %15 = vector.shape_cast %14 : vector<1024xf32> to vector<1x1024xf32>
    %cst_10 = arith.constant 5.000000e-01 : f32
    %16 = vector.broadcast %cst_10 : f32 to vector<1x1024xf32>
    %17 = arith.mulf %12, %16 : vector<1x1024xf32>
    %cst_11 = arith.constant 5.000000e-01 : f32
    %18 = vector.broadcast %cst_11 : f32 to vector<1x1024xf32>
    %19 = arith.mulf %15, %18 : vector<1x1024xf32>
    %20 = arith.mulf %17, %17 : vector<1x1024xf32>
    %21 = arith.subf %19, %20 : vector<1x1024xf32>
    %cst_12 = arith.constant 0.000000e+00 : f32
    %22 = vector.broadcast %cst_12 : f32 to vector<1x1024xf32>
    %23 = arith.maximumf %21, %22 : vector<1x1024xf32>
    %cst_13 = arith.constant 9.99999974E-6 : f32
    %24 = vector.broadcast %cst_13 : f32 to vector<1x1024xf32>
    %25 = arith.addf %23, %24 : vector<1x1024xf32>
    %26 = math.rsqrt %25 : vector<1x1024xf32>
    %27 = arith.mulf %9, %26 : vector<1x1024xf32>
    %28 = arith.mulf %17, %27 : vector<1x1024xf32>
    %29 = arith.subf %10, %28 : vector<1x1024xf32>
    %30 = vector.broadcast %27 : vector<1x1024xf32> to vector<2x1024xf32>
    %31 = arith.mulf %8, %30 : vector<2x1024xf32>
    %32 = vector.broadcast %29 : vector<1x1024xf32> to vector<2x1024xf32>
    %33 = arith.addf %31, %32 : vector<2x1024xf32>
    %c0_14 = arith.constant 0 : index
    %c0_15 = arith.constant 0 : index
    %34 = vector.load %arg2[%c0_14, %c0_15] : memref<1024x512xbf16, #tpu.memory_space<vmem>>, vector<1024x512xbf16>
    %35 = arith.extf %34 : vector<1024x512xbf16> to vector<1024x512xf32>
    %c3 = arith.constant 3 : index
    %c0_16 = arith.constant 0 : index
    %36 = vector.load %arg7[%c3, %c0_16] : memref<16x1024xf32, #tpu.memory_space<vmem>>, vector<1x512xf32>
    %cst_17 = arith.constant dense<0.000000e+00> : vector<2x512xf32>
    %37 = tpu.matmul %33, %35, %cst_17 {dimension_numbers = #tpu.dot_dimension_numbers<[1], [0], [0], [1], [0, 0, 1, 1], [], []>} : vector<2x1024xf32>, vector<1024x512xf32>, vector<2x512xf32> -> vector<2x512xf32>
    %38 = vector.broadcast %36 : vector<1x512xf32> to vector<2x512xf32>
    %39 = arith.addf %37, %38 : vector<2x512xf32>
    %cst_18 = arith.constant 0.000000e+00 : f32
    %40 = vector.broadcast %cst_18 : f32 to vector<2x512xf32>
    %41 = arith.maximumf %39, %40 : vector<2x512xf32>
    %c4 = arith.constant 4 : index
    %c0_19 = arith.constant 0 : index
    %42 = vector.load %arg7[%c4, %c0_19] : memref<16x1024xf32, #tpu.memory_space<vmem>>, vector<1x512xf32>
    %c5 = arith.constant 5 : index
    %c0_20 = arith.constant 0 : index
    %43 = vector.load %arg7[%c5, %c0_20] : memref<16x1024xf32, #tpu.memory_space<vmem>>, vector<1x512xf32>
    %cst_21 = arith.constant dense<0.000000e+00> : vector<512xf32>
    %44 = vector.multi_reduction <add>, %41, %cst_21 [0] : vector<2x512xf32> to vector<512xf32>
    %45 = vector.shape_cast %44 : vector<512xf32> to vector<1x512xf32>
    %46 = arith.mulf %41, %41 : vector<2x512xf32>
    %cst_22 = arith.constant dense<0.000000e+00> : vector<512xf32>
    %47 = vector.multi_reduction <add>, %46, %cst_22 [0] : vector<2x512xf32> to vector<512xf32>
    %48 = vector.shape_cast %47 : vector<512xf32> to vector<1x512xf32>
    %cst_23 = arith.constant 5.000000e-01 : f32
    %49 = vector.broadcast %cst_23 : f32 to vector<1x512xf32>
    %50 = arith.mulf %45, %49 : vector<1x512xf32>
    %cst_24 = arith.constant 5.000000e-01 : f32
    %51 = vector.broadcast %cst_24 : f32 to vector<1x512xf32>
    %52 = arith.mulf %48, %51 : vector<1x512xf32>
    %53 = arith.mulf %50, %50 : vector<1x512xf32>
    %54 = arith.subf %52, %53 : vector<1x512xf32>
    %cst_25 = arith.constant 0.000000e+00 : f32
    %55 = vector.broadcast %cst_25 : f32 to vector<1x512xf32>
    %56 = arith.maximumf %54, %55 : vector<1x512xf32>
    %cst_26 = arith.constant 9.99999974E-6 : f32
    %57 = vector.broadcast %cst_26 : f32 to vector<1x512xf32>
    %58 = arith.addf %56, %57 : vector<1x512xf32>
    %59 = math.rsqrt %58 : vector<1x512xf32>
    %60 = arith.mulf %42, %59 : vector<1x512xf32>
    %61 = arith.mulf %50, %60 : vector<1x512xf32>
    %62 = arith.subf %43, %61 : vector<1x512xf32>
    %63 = vector.broadcast %60 : vector<1x512xf32> to vector<2x512xf32>
    %64 = arith.mulf %41, %63 : vector<2x512xf32>
    %65 = vector.broadcast %62 : vector<1x512xf32> to vector<2x512xf32>
    %66 = arith.addf %64, %65 : vector<2x512xf32>
    %c0_27 = arith.constant 0 : index
    %c0_28 = arith.constant 0 : index
    %67 = vector.load %arg3[%c0_27, %c0_28] : memref<512x128xbf16, #tpu.memory_space<vmem>>, vector<512x128xbf16>
    %68 = arith.extf %67 : vector<512x128xbf16> to vector<512x128xf32>
    %c6 = arith.constant 6 : index
    %c0_29 = arith.constant 0 : index
    %69 = vector.load %arg7[%c6, %c0_29] : memref<16x1024xf32, #tpu.memory_space<vmem>>, vector<1x128xf32>
    %cst_30 = arith.constant dense<0.000000e+00> : vector<2x128xf32>
    %70 = tpu.matmul %66, %68, %cst_30 {dimension_numbers = #tpu.dot_dimension_numbers<[1], [0], [0], [1], [0, 0, 1, 1], [], []>} : vector<2x512xf32>, vector<512x128xf32>, vector<2x128xf32> -> vector<2x128xf32>
    %71 = vector.broadcast %69 : vector<1x128xf32> to vector<2x128xf32>
    %72 = arith.addf %70, %71 : vector<2x128xf32>
    %cst_31 = arith.constant 0.000000e+00 : f32
    %73 = vector.broadcast %cst_31 : f32 to vector<2x128xf32>
    %74 = arith.maximumf %72, %73 : vector<2x128xf32>
    %c0_32 = arith.constant 0 : index
    %c0_33 = arith.constant 0 : index
    %75 = vector.load %arg4[%c0_32, %c0_33] : memref<128x512xbf16, #tpu.memory_space<vmem>>, vector<128x512xbf16>
    %76 = arith.extf %75 : vector<128x512xbf16> to vector<128x512xf32>
    %c7 = arith.constant 7 : index
    %c0_34 = arith.constant 0 : index
    %77 = vector.load %arg7[%c7, %c0_34] : memref<16x1024xf32, #tpu.memory_space<vmem>>, vector<1x512xf32>
    %cst_35 = arith.constant dense<0.000000e+00> : vector<2x512xf32>
    %78 = tpu.matmul %74, %76, %cst_35 {dimension_numbers = #tpu.dot_dimension_numbers<[1], [0], [0], [1], [0, 0, 1, 1], [], []>} : vector<2x128xf32>, vector<128x512xf32>, vector<2x512xf32> -> vector<2x512xf32>
    %79 = vector.broadcast %77 : vector<1x512xf32> to vector<2x512xf32>
    %80 = arith.addf %78, %79 : vector<2x512xf32>
    %cst_36 = arith.constant 0.000000e+00 : f32
    %81 = vector.broadcast %cst_36 : f32 to vector<2x512xf32>
    %82 = arith.maximumf %80, %81 : vector<2x512xf32>
    %c8 = arith.constant 8 : index
    %c0_37 = arith.constant 0 : index
    %83 = vector.load %arg7[%c8, %c0_37] : memref<16x1024xf32, #tpu.memory_space<vmem>>, vector<1x512xf32>
    %c9 = arith.constant 9 : index
    %c0_38 = arith.constant 0 : index
    %84 = vector.load %arg7[%c9, %c0_38] : memref<16x1024xf32, #tpu.memory_space<vmem>>, vector<1x512xf32>
    %cst_39 = arith.constant dense<0.000000e+00> : vector<512xf32>
    %85 = vector.multi_reduction <add>, %82, %cst_39 [0] : vector<2x512xf32> to vector<512xf32>
    %86 = vector.shape_cast %85 : vector<512xf32> to vector<1x512xf32>
    %87 = arith.mulf %82, %82 : vector<2x512xf32>
    %cst_40 = arith.constant dense<0.000000e+00> : vector<512xf32>
    %88 = vector.multi_reduction <add>, %87, %cst_40 [0] : vector<2x512xf32> to vector<512xf32>
    %89 = vector.shape_cast %88 : vector<512xf32> to vector<1x512xf32>
    %cst_41 = arith.constant 5.000000e-01 : f32
    %90 = vector.broadcast %cst_41 : f32 to vector<1x512xf32>
    %91 = arith.mulf %86, %90 : vector<1x512xf32>
    %cst_42 = arith.constant 5.000000e-01 : f32
    %92 = vector.broadcast %cst_42 : f32 to vector<1x512xf32>
    %93 = arith.mulf %89, %92 : vector<1x512xf32>
    %94 = arith.mulf %91, %91 : vector<1x512xf32>
    %95 = arith.subf %93, %94 : vector<1x512xf32>
    %cst_43 = arith.constant 0.000000e+00 : f32
    %96 = vector.broadcast %cst_43 : f32 to vector<1x512xf32>
    %97 = arith.maximumf %95, %96 : vector<1x512xf32>
    %cst_44 = arith.constant 9.99999974E-6 : f32
    %98 = vector.broadcast %cst_44 : f32 to vector<1x512xf32>
    %99 = arith.addf %97, %98 : vector<1x512xf32>
    %100 = math.rsqrt %99 : vector<1x512xf32>
    %101 = arith.mulf %83, %100 : vector<1x512xf32>
    %102 = arith.mulf %91, %101 : vector<1x512xf32>
    %103 = arith.subf %84, %102 : vector<1x512xf32>
    %104 = vector.broadcast %101 : vector<1x512xf32> to vector<2x512xf32>
    %105 = arith.mulf %82, %104 : vector<2x512xf32>
    %106 = vector.broadcast %103 : vector<1x512xf32> to vector<2x512xf32>
    %107 = arith.addf %105, %106 : vector<2x512xf32>
    %c0_45 = arith.constant 0 : index
    %c0_46 = arith.constant 0 : index
    %108 = vector.load %arg5[%c0_45, %c0_46] : memref<512x1024xbf16, #tpu.memory_space<vmem>>, vector<512x1024xbf16>
    %109 = arith.extf %108 : vector<512x1024xbf16> to vector<512x1024xf32>
    %c10 = arith.constant 10 : index
    %c0_47 = arith.constant 0 : index
    %110 = vector.load %arg7[%c10, %c0_47] : memref<16x1024xf32, #tpu.memory_space<vmem>>, vector<1x1024xf32>
    %cst_48 = arith.constant dense<0.000000e+00> : vector<2x1024xf32>
    %111 = tpu.matmul %107, %109, %cst_48 {dimension_numbers = #tpu.dot_dimension_numbers<[1], [0], [0], [1], [0, 0, 1, 1], [], []>} : vector<2x512xf32>, vector<512x1024xf32>, vector<2x1024xf32> -> vector<2x1024xf32>
    %112 = vector.broadcast %110 : vector<1x1024xf32> to vector<2x1024xf32>
    %113 = arith.addf %111, %112 : vector<2x1024xf32>
    %cst_49 = arith.constant 0.000000e+00 : f32
    %114 = vector.broadcast %cst_49 : f32 to vector<2x1024xf32>
    %115 = arith.maximumf %113, %114 : vector<2x1024xf32>
    %c11 = arith.constant 11 : index
    %c0_50 = arith.constant 0 : index
    %116 = vector.load %arg7[%c11, %c0_50] : memref<16x1024xf32, #tpu.memory_space<vmem>>, vector<1x1024xf32>
    %c12 = arith.constant 12 : index
    %c0_51 = arith.constant 0 : index
    %117 = vector.load %arg7[%c12, %c0_51] : memref<16x1024xf32, #tpu.memory_space<vmem>>, vector<1x1024xf32>
    %cst_52 = arith.constant dense<0.000000e+00> : vector<1024xf32>
    %118 = vector.multi_reduction <add>, %115, %cst_52 [0] : vector<2x1024xf32> to vector<1024xf32>
    %119 = vector.shape_cast %118 : vector<1024xf32> to vector<1x1024xf32>
    %120 = arith.mulf %115, %115 : vector<2x1024xf32>
    %cst_53 = arith.constant dense<0.000000e+00> : vector<1024xf32>
    %121 = vector.multi_reduction <add>, %120, %cst_53 [0] : vector<2x1024xf32> to vector<1024xf32>
    %122 = vector.shape_cast %121 : vector<1024xf32> to vector<1x1024xf32>
    %cst_54 = arith.constant 5.000000e-01 : f32
    %123 = vector.broadcast %cst_54 : f32 to vector<1x1024xf32>
    %124 = arith.mulf %119, %123 : vector<1x1024xf32>
    %cst_55 = arith.constant 5.000000e-01 : f32
    %125 = vector.broadcast %cst_55 : f32 to vector<1x1024xf32>
    %126 = arith.mulf %122, %125 : vector<1x1024xf32>
    %127 = arith.mulf %124, %124 : vector<1x1024xf32>
    %128 = arith.subf %126, %127 : vector<1x1024xf32>
    %cst_56 = arith.constant 0.000000e+00 : f32
    %129 = vector.broadcast %cst_56 : f32 to vector<1x1024xf32>
    %130 = arith.maximumf %128, %129 : vector<1x1024xf32>
    %cst_57 = arith.constant 9.99999974E-6 : f32
    %131 = vector.broadcast %cst_57 : f32 to vector<1x1024xf32>
    %132 = arith.addf %130, %131 : vector<1x1024xf32>
    %133 = math.rsqrt %132 : vector<1x1024xf32>
    %134 = arith.mulf %116, %133 : vector<1x1024xf32>
    %135 = arith.mulf %124, %134 : vector<1x1024xf32>
    %136 = arith.subf %117, %135 : vector<1x1024xf32>
    %137 = vector.broadcast %134 : vector<1x1024xf32> to vector<2x1024xf32>
    %138 = arith.mulf %115, %137 : vector<2x1024xf32>
    %139 = vector.broadcast %136 : vector<1x1024xf32> to vector<2x1024xf32>
    %140 = arith.addf %138, %139 : vector<2x1024xf32>
    %c0_58 = arith.constant 0 : index
    %c0_59 = arith.constant 0 : index
    %141 = vector.load %arg6[%c0_58, %c0_59] : memref<1024x1024xbf16, #tpu.memory_space<vmem>>, vector<1024x1024xbf16>
    %142 = arith.extf %141 : vector<1024x1024xbf16> to vector<1024x1024xf32>
    %c13 = arith.constant 13 : index
    %c0_60 = arith.constant 0 : index
    %143 = vector.load %arg7[%c13, %c0_60] : memref<16x1024xf32, #tpu.memory_space<vmem>>, vector<1x1024xf32>
    %cst_61 = arith.constant dense<0.000000e+00> : vector<2x1024xf32>
    %144 = tpu.matmul %140, %142, %cst_61 {dimension_numbers = #tpu.dot_dimension_numbers<[1], [0], [0], [1], [0, 0, 1, 1], [], []>} : vector<2x1024xf32>, vector<1024x1024xf32>, vector<2x1024xf32> -> vector<2x1024xf32>
    %145 = vector.broadcast %143 : vector<1x1024xf32> to vector<2x1024xf32>
    %146 = arith.addf %144, %145 : vector<2x1024xf32>
    %cst_62 = arith.constant 0.000000e+00 : f32
    %147 = vector.broadcast %cst_62 : f32 to vector<2x1024xf32>
    %148 = arith.subf %147, %146 : vector<2x1024xf32>
    %149 = math.exp %148 : vector<2x1024xf32>
    %cst_63 = arith.constant 1.000000e+00 : f32
    %150 = vector.broadcast %cst_63 : f32 to vector<2x1024xf32>
    %151 = arith.addf %150, %149 : vector<2x1024xf32>
    %152 = tpu.reciprocal %151 {approx = true} : vector<2x1024xf32> -> vector<2x1024xf32>
    %c0_64 = arith.constant 0 : index
    %c0_65 = arith.constant 0 : index
    %153 = vector.load %arg8[%c0_64, %c0_65] : memref<2x1024xf32, #tpu.memory_space<vmem>>, vector<2x1024xf32>
    tpu.vector_store %arg8[%c0_64, %c0_65], %152 {strides = array<i32>} : memref<2x1024xf32, #tpu.memory_space<vmem>>, vector<2x1024xf32>,
    return
  }
}

</mosaic_0001>

<llo_original>
// kernel: autoencoder_forward.1
$region0: #{autoencoder_forward.1}
  #allocation0 [shape = 'u32[]', space=smem, size = 0x4, offset = 0x4, fixed_abs, tag = 'smem constant byte address 0x4 - core index']
  #allocation1 [shape = 'u32[144,128]{1,0:T(1,128)}', space=vmem, size = 0x12000, scoped, tag = 'internal scratch']
  %s0 = inlined_call_operand.vmem [shape: f32[2,1024], index: 0, kind: input, shape index: {}]
  %s1 = inlined_call_operand.hbm [shape: bf16[1024,1024], index: 1, kind: input, shape index: {}]
  %s2 = inlined_call_operand.hbm [shape: bf16[1024,512], index: 2, kind: input, shape index: {}]
  %s3 = inlined_call_operand.hbm [shape: bf16[512,128], index: 3, kind: input, shape index: {}]
  %s4 = inlined_call_operand.hbm [shape: bf16[128,512], index: 4, kind: input, shape index: {}]
  %s5 = inlined_call_operand.hbm [shape: bf16[512,1024], index: 5, kind: input, shape index: {}]
  %s6 = inlined_call_operand.hbm [shape: bf16[1024,1024], index: 6, kind: input, shape index: {}]
  %s7 = inlined_call_operand.hbm [shape: f32[16,1024], index: 7, kind: input, shape index: {}]
  %s8 = inlined_call_operand.vmem [shape: f32[2,1024], index: 8, kind: output, shape index: {}]
  %s9 = sld [smem:[#allocation0]]
  $region70: #{autoencoder_forward.1} parent=0
    _
  %s11 = ssub.s32 1, %s9
  %s12 = scalar_select 0, %s11, %s9
  $region1: #{autoencoder_forward.1} parent=0
    #allocation2 [shape = 'u8[2097152]{0}', space=vmem, size = 0x200000, scoped, tag = 'input window, operand 1, single buffered']
    #allocation3 [shape = 's32[1]{0}', space=sflag, size = 0x4, scoped, tag = 'scoped memory for autoencoder_forward.1']
    #allocation4 [shape = 'u8[1048576]{0}', space=vmem, size = 0x100000, scoped, tag = 'input window, operand 2, single buffered']
    #allocation5 [shape = 's32[1]{0}', space=sflag, size = 0x4, scoped, tag = 'scoped memory for autoencoder_forward.1']
    #allocation6 [shape = 'u8[131072]{0}', space=vmem, size = 0x20000, scoped, tag = 'input window, operand 3, single buffered']
    #allocation7 [shape = 'u8[131072]{0}', space=vmem, size = 0x20000, scoped, tag = 'input window, operand 4, single buffered']
    #allocation8 [shape = 's32[1]{0}', space=sflag, size = 0x4, scoped, tag = 'scoped memory for autoencoder_forward.1']
    #allocation9 [shape = 'u8[1048576]{0}', space=vmem, size = 0x100000, scoped, tag = 'input window, operand 5, single buffered']
    #allocation10 [shape = 'u8[2097152]{0}', space=vmem, size = 0x200000, scoped, tag = 'input window, operand 6, single buffered']
    #allocation11 [shape = 's32[1]{0}', space=sflag, size = 0x4, scoped, tag = 'scoped memory for autoencoder_forward.1']
    #allocation12 [shape = 'u8[65536]{0}', space=vmem, size = 0x10000, scoped, tag = 'input window, operand 7, single buffered']
    %13 = vsyncpa [#allocation3], 0
    %14 = vsyncpa [#allocation5], 0
    %15 = vsyncpa [#allocation8], 0
    %16 = vsyncpa [#allocation11], 0
    // Predicated region
    $region2: #{autoencoder_forward.1} parent=1 // pred_check
      _
    $region3: #{autoencoder_forward.1} parent=1 // pred_check_branch
      %18 = sbr.rel (0) target = $region5
    $region4: #{autoencoder_forward.1} parent=1 // pred_region
      _
    $region5: #{autoencoder_forward.1} parent=1 // pred_fallthru
      _
    // Predicated region
    $region6: #{autoencoder_forward.1} parent=1 // pred_check
      _
    $region7: #{autoencoder_forward.1} parent=1 // pred_check_branch
      %20 = sbr.rel (0) target = $region9
    $region8: #{autoencoder_forward.1} parent=1 // pred_region
      %s22 = ssub.s32 65536, 65536
      %23 = vsyncadd [#allocation3], %s22
      %s24 = sshll.u32 [#allocation2], 4
      %s25 = int_to_ptr.vmem [resolvable:$true] %s24
      %30 = dma.hbm_to_vmem [thread:$0]  %s1, 65536, %s25, [#allocation3], 512, 512, 32
    $region9: #{autoencoder_forward.1} parent=1 // pred_fallthru
      _
    // Predicated region
    $region10: #{autoencoder_forward.1} parent=1 // pred_check
      _
    $region11: #{autoencoder_forward.1} parent=1 // pred_check_branch
      %32 = sbr.rel (0) target = $region13
    $region12: #{autoencoder_forward.1} parent=1 // pred_region
      %s34 = ssub.s32 32768, 32768
      %35 = vsyncadd [#allocation5], %s34
      %s36 = sshll.u32 [#allocation4], 4
      %s37 = int_to_ptr.vmem [resolvable:$true] %s36
      %42 = dma.hbm_to_vmem [thread:$0]  %s2, 32768, %s37, [#allocation5], 256, 256, 16
    $region13: #{autoencoder_forward.1} parent=1 // pred_fallthru
      _
    // Predicated region
    $region14: #{autoencoder_forward.1} parent=1 // pred_check
      _
    $region15: #{autoencoder_forward.1} parent=1 // pred_check_branch
      %44 = sbr.rel (0) target = $region17
    $region16: #{autoencoder_forward.1} parent=1 // pred_region
      %s46 = ssub.s32 4096, 4096
      %47 = vsyncadd [#allocation5], %s46
      %s48 = sshll.u32 [#allocation6], 4
      %s49 = int_to_ptr.vmem [resolvable:$true] %s48
      %54 = dma.hbm_to_vmem [thread:$0]  %s3, 4096, %s49, [#allocation5], 64, 64, 4
    $region17: #{autoencoder_forward.1} parent=1 // pred_fallthru
      _
    // Predicated region
    $region18: #{autoencoder_forward.1} parent=1 // pred_check
      _
    $region19: #{autoencoder_forward.1} parent=1 // pred_check_branch
      %56 = sbr.rel (0) target = $region21
    $region20: #{autoencoder_forward.1} parent=1 // pred_region
      %s58 = ssub.s32 4096, 4096
      %59 = vsyncadd [#allocation8], %s58
      %s60 = sshll.u32 [#allocation7], 4
      %s61 = int_to_ptr.vmem [resolvable:$true] %s60
      %66 = dma.hbm_to_vmem [thread:$0]  %s4, 4096, %s61, [#allocation8], 256, 256, 16
    $region21: #{autoencoder_forward.1} parent=1 // pred_fallthru
      _
    // Predicated region
    $region22: #{autoencoder_forward.1} parent=1 // pred_check
      _
    $region23: #{autoencoder_forward.1} parent=1 // pred_check_branch
      %68 = sbr.rel (0) target = $region25
    $region24: #{autoencoder_forward.1} parent=1 // pred_region
      %s70 = ssub.s32 32768, 32768
      %71 = vsyncadd [#allocation8], %s70
      %s72 = sshll.u32 [#allocation9], 4
      %s73 = int_to_ptr.vmem [resolvable:$true] %s72
      %78 = dma.hbm_to_vmem [thread:$0]  %s5, 32768, %s73, [#allocation8], 512, 512, 32
    $region25: #{autoencoder_forward.1} parent=1 // pred_fallthru
      _
    // Predicated region
    $region26: #{autoencoder_forward.1} parent=1 // pred_check
      _
    $region27: #{autoencoder_forward.1} parent=1 // pred_check_branch
      %80 = sbr.rel (0) target = $region29
    $region28: #{autoencoder_forward.1} parent=1 // pred_region
      %s82 = ssub.s32 65536, 65536
      %83 = vsyncadd [#allocation11], %s82
      %s84 = sshll.u32 [#allocation10], 4
      %s85 = int_to_ptr.vmem [resolvable:$true] %s84
      %90 = dma.hbm_to_vmem [thread:$0]  %s6, 65536, %s85, [#allocation11], 512, 512, 32
    $region29: #{autoencoder_forward.1} parent=1 // pred_fallthru
      _
    // Predicated region
    $region30: #{autoencoder_forward.1} parent=1 // pred_check
      _
    $region31: #{autoencoder_forward.1} parent=1 // pred_check_branch
      %92 = sbr.rel (0) target = $region33
    $region32: #{autoencoder_forward.1} parent=1 // pred_region
      %s94 = ssub.s32 2048, 2048
      %95 = vsyncadd [#allocation11], %s94
      %s96 = sshll.u32 [#allocation12], 4
      %s97 = int_to_ptr.vmem [resolvable:$true] %s96
      %102 = dma.hbm_to_vmem [thread:$0]  %s7, 2048, %s97, [#allocation11], 1024, 1024, 64
    $region33: #{autoencoder_forward.1} parent=1 // pred_fallthru
      _
    // Predicated region
    $region34: #{autoencoder_forward.1} parent=1 // pred_check
      _
    $region35: #{autoencoder_forward.1} parent=1 // pred_check_branch
      %104 = sbr.rel (0) target = $region37
    $region36: #{autoencoder_forward.1} parent=1 // pred_region
      %105 = dma.done [#allocation3], 65536
    $region37: #{autoencoder_forward.1} parent=1 // pred_fallthru
      _
    // Predicated region
    $region38: #{autoencoder_forward.1} parent=1 // pred_check
      _
    $region39: #{autoencoder_forward.1} parent=1 // pred_check_branch
      %107 = sbr.rel (0) target = $region41
    $region40: #{autoencoder_forward.1} parent=1 // pred_region
      %108 = dma.done [#allocation5], 32768
    $region41: #{autoencoder_forward.1} parent=1 // pred_fallthru
      _
    // Predicated region
    $region42: #{autoencoder_forward.1} parent=1 // pred_check
      _
    $region43: #{autoencoder_forward.1} parent=1 // pred_check_branch
      %110 = sbr.rel (0) target = $region45
    $region44: #{autoencoder_forward.1} parent=1 // pred_region
      %111 = dma.done [#allocation5], 4096
    $region45: #{autoencoder_forward.1} parent=1 // pred_fallthru
      _
    // Predicated region
    $region46: #{autoencoder_forward.1} parent=1 // pred_check
      _
    $region47: #{autoencoder_forward.1} parent=1 // pred_check_branch
      %113 = sbr.rel (0) target = $region49
    $region48: #{autoencoder_forward.1} parent=1 // pred_region
      %114 = dma.done [#allocation8], 4096
    $region49: #{autoencoder_forward.1} parent=1 // pred_fallthru
      _
    // Predicated region
    $region50: #{autoencoder_forward.1} parent=1 // pred_check
      _
    $region51: #{autoencoder_forward.1} parent=1 // pred_check_branch
      %116 = sbr.rel (0) target = $region53
    $region52: #{autoencoder_forward.1} parent=1 // pred_region
      %117 = dma.done [#allocation8], 32768
    $region53: #{autoencoder_forward.1} parent=1 // pred_fallthru
      _
    // Predicated region
    $region54: #{autoencoder_forward.1} parent=1 // pred_check
      _
    $region55: #{autoencoder_forward.1} parent=1 // pred_check_branch
      %119 = sbr.rel (0) target = $region57
    $region56: #{autoencoder_forward.1} parent=1 // pred_region
      %120 = dma.done [#allocation11], 65536
    $region57: #{autoencoder_forward.1} parent=1 // pred_fallthru
      _
    // Predicated region
    $region58: #{autoencoder_forward.1} parent=1 // pred_check
      _
    $region59: #{autoencoder_forward.1} parent=1 // pred_check_branch
      %122 = sbr.rel (0) target = $region61
    $region60: #{autoencoder_forward.1} parent=1 // pred_region
      %123 = dma.done [#allocation11], 2048
    $region61: #{autoencoder_forward.1} parent=1 // pred_fallthru
      _
    %v124 = vld [vmem:[%s0] sm:$0xff]
    %v125 = vld [vmem:[%s0 + $0x8] sm:$0xff]
    %v126 = vld [vmem:[#allocation2] sm:$0xff]
    %v127 = vld [vmem:[#allocation2 + $0x8] sm:$0xff]
    %v128 = vld [vmem:[#allocation2 + $0x10] sm:$0xff]
    %v129 = vld [vmem:[#allocation2 + $0x18] sm:$0xff]
    %v130 = vld [vmem:[#allocation2 + $0x20] sm:$0xff]
    %v131 = vld [vmem:[#allocation2 + $0x28] sm:$0xff]
    %v132 = vld [vmem:[#allocation2 + $0x30] sm:$0xff]
    %v133 = vld [vmem:[#allocation2 + $0x38] sm:$0xff]
    %v134 = vld [vmem:[#allocation2 + $0x40] sm:$0xff]
    %v135 = vld [vmem:[#allocation2 + $0x48] sm:$0xff]
    %v136 = vld [vmem:[#allocation2 + $0x50] sm:$0xff]
    %v137 = vld [vmem:[#allocation2 + $0x58] sm:$0xff]
    %v138 = vld [vmem:[#allocation2 + $0x60] sm:$0xff]
    %v139 = vld [vmem:[#allocation2 + $0x68] sm:$0xff]
    %v140 = vld [vmem:[#allocation2 + $0x70] sm:$0xff]
    %v141 = vld [vmem:[#allocation2 + $0x78] sm:$0xff]
    %v142 = vld [vmem:[#allocation2 + $0x80] sm:$0xff]
    %v143 = vld [vmem:[#allocation2 + $0x88] sm:$0xff]
    %v144 = vld [vmem:[#allocation2 + $0x90] sm:$0xff]
    %v145 = vld [vmem:[#allocation2 + $0x98] sm:$0xff]
    %v146 = vld [vmem:[#allocation2 + $0xa0] sm:$0xff]
    %v147 = vld [vmem:[#allocation2 + $0xa8] sm:$0xff]
    %v148 = vld [vmem:[#allocation2 + $0xb0] sm:$0xff]
    %v149 = vld [vmem:[#allocation2 + $0xb8] sm:$0xff]
    %v150 = vld [vmem:[#allocation2 + $0xc0] sm:$0xff]
    %v151 = vld [vmem:[#allocation2 + $0xc8] sm:$0xff]
    %v152 = vld [vmem:[#allocation2 + $0xd0] sm:$0xff]
    %v153 = vld [vmem:[#allocation2 + $0xd8] sm:$0xff]
    %v154 = vld [vmem:[#allocation2 + $0xe0] sm:$0xff]
    %v155 = vld [vmem:[#allocation2 + $0xe8] sm:$0xff]
    %v156 = vld [vmem:[#allocation2 + $0xf0] sm:$0xff]
    %v157 = vld [vmem:[#allocation2 + $0xf8] sm:$0xff]
    %v158 = vld [vmem:[#allocation2 + $0x100] sm:$0xff]
    %v159 = vld [vmem:[#allocation2 + $0x108] sm:$0xff]
    %v160 = vld [vmem:[#allocation2 + $0x110] sm:$0xff]
    %v161 = vld [vmem:[#allocation2 + $0x118] sm:$0xff]
    %v162 = vld [vmem:[#allocation2 + $0x120] sm:$0xff]
    %v163 = vld [vmem:[#allocation2 + $0x128] sm:$0xff]
    %v164 = vld [vmem:[#allocation2 + $0x130] sm:$0xff]
    %v165 = vld [vmem:[#allocation2 + $0x138] sm:$0xff]
    %v166 = vld [vmem:[#allocation2 + $0x140] sm:$0xff]
    %v167 = vld [vmem:[#allocation2 + $0x148] sm:$0xff]
    %v168 = vld [vmem:[#allocation2 + $0x150] sm:$0xff]
    %v169 = vld [vmem:[#allocation2 + $0x158] sm:$0xff]
    %v170 = vld [vmem:[#allocation2 + $0x160] sm:$0xff]
    %v171 = vld [vmem:[#allocation2 + $0x168] sm:$0xff]
    %v172 = vld [vmem:[#allocation2 + $0x170] sm:$0xff]
    %v173 = vld [vmem:[#allocation2 + $0x178] sm:$0xff]
    %v174 = vld [vmem:[#allocation2 + $0x180] sm:$0xff]
    %v175 = vld [vmem:[#allocation2 + $0x188] sm:$0xff]
    %v176 = vld [vmem:[#allocation2 + $0x190] sm:$0xff]
    %v177 = vld [vmem:[#allocation2 + $0x198] sm:$0xff]
    %v178 = vld [vmem:[#allocation2 + $0x1a0] sm:$0xff]
    %v179 = vld [vmem:[#allocation2 + $0x1a8] sm:$0xff]
    %v180 = vld [vmem:[#allocation2 + $0x1b0] sm:$0xff]
    %v181 = vld [vmem:[#allocation2 + $0x1b8] sm:$0xff]
    %v182 = vld [vmem:[#allocation2 + $0x1c0] sm:$0xff]
    %v183 = vld [vmem:[#allocation2 + $0x1c8] sm:$0xff]
    %v184 = vld [vmem:[#allocation2 + $0x1d0] sm:$0xff]
    %v185 = vld [vmem:[#allocation2 + $0x1d8] sm:$0xff]
    %v186 = vld [vmem:[#allocation2 + $0x1e0] sm:$0xff]
    %v187 = vld [vmem:[#allocation2 + $0x1e8] sm:$0xff]
    %v188 = vld [vmem:[#allocation2 + $0x1f0] sm:$0xff]
    %v189 = vld [vmem:[#allocation2 + $0x1f8] sm:$0xff]
    %v190 = vld [vmem:[#allocation2 + $0x200] sm:$0xff]
    %v191 = vld [vmem:[#allocation2 + $0x208] sm:$0xff]
    %v192 = vld [vmem:[#allocation2 + $0x210] sm:$0xff]
    %v193 = vld [vmem:[#allocation2 + $0x218] sm:$0xff]
    %v194 = vld [vmem:[#allocation2 + $0x220] sm:$0xff]
    %v195 = vld [vmem:[#allocation2 + $0x228] sm:$0xff]
    %v196 = vld [vmem:[#allocation2 + $0x230] sm:$0xff]
    %v197 = vld [vmem:[#allocation2 + $0x238] sm:$0xff]
    %v198 = vld [vmem:[#allocation2 + $0x240] sm:$0xff]
    %v199 = vld [vmem:[#allocation2 + $0x248] sm:$0xff]
    %v200 = vld [vmem:[#allocation2 + $0x250] sm:$0xff]
    %v201 = vld [vmem:[#allocation2 + $0x258] sm:$0xff]
    %v202 = vld [vmem:[#allocation2 + $0x260] sm:$0xff]
    %v203 = vld [vmem:[#allocation2 + $0x268] sm:$0xff]
    %v204 = vld [vmem:[#allocation2 + $0x270] sm:$0xff]
    %v205 = vld [vmem:[#allocation2 + $0x278] sm:$0xff]
    %v206 = vld [vmem:[#allocation2 + $0x280] sm:$0xff]
    %v207 = vld [vmem:[#allocation2 + $0x288] sm:$0xff]
    %v208 = vld [vmem:[#allocation2 + $0x290] sm:$0xff]
    %v209 = vld [vmem:[#allocation2 + $0x298] sm:$0xff]
    %v210 = vld [vmem:[#allocation2 + $0x2a0] sm:$0xff]
    %v211 = vld [vmem:[#allocation2 + $0x2a8] sm:$0xff]
    %v212 = vld [vmem:[#allocation2 + $0x2b0] sm:$0xff]
    %v213 = vld [vmem:[#allocation2 + $0x2b8] sm:$0xff]
    %v214 = vld [vmem:[#allocation2 + $0x2c0] sm:$0xff]
    %v215 = vld [vmem:[#allocation2 + $0x2c8] sm:$0xff]
    %v216 = vld [vmem:[#allocation2 + $0x2d0] sm:$0xff]
    %v217 = vld [vmem:[#allocation2 + $0x2d8] sm:$0xff]
    %v218 = vld [vmem:[#allocation2 + $0x2e0] sm:$0xff]
    %v219 = vld [vmem:[#allocation2 + $0x2e8] sm:$0xff]
    %v220 = vld [vmem:[#allocation2 + $0x2f0] sm:$0xff]
    %v221 = vld [vmem:[#allocation2 + $0x2f8] sm:$0xff]
    %v222 = vld [vmem:[#allocation2 + $0x300] sm:$0xff]
    %v223 = vld [vmem:[#allocation2 + $0x308] sm:$0xff]
    %v224 = vld [vmem:[#allocation2 + $0x310] sm:$0xff]
    %v225 = vld [vmem:[#allocation2 + $0x318] sm:$0xff]
    %v226 = vld [vmem:[#allocation2 + $0x320] sm:$0xff]
    %v227 = vld [vmem:[#allocation2 + $0x328] sm:$0xff]
    %v228 = vld [vmem:[#allocation2 + $0x330] sm:$0xff]
    %v229 = vld [vmem:[#allocation2 + $0x338] sm:$0xff]
    %v230 = vld [vmem:[#allocation2 + $0x340] sm:$0xff]
    %v231 = vld [vmem:[#allocation2 + $0x348] sm:$0xff]
    %v232 = vld [vmem:[#allocation2 + $0x350] sm:$0xff]
    %v233 = vld [vmem:[#allocation2 + $0x358] sm:$0xff]
    %v234 = vld [vmem:[#allocation2 + $0x360] sm:$0xff]
    %v235 = vld [vmem:[#allocation2 + $0x368] sm:$0xff]
    %v236 = vld [vmem:[#allocation2 + $0x370] sm:$0xff]
    %v237 = vld [vmem:[#allocation2 + $0x378] sm:$0xff]
    %v238 = vld [vmem:[#allocation2 + $0x380] sm:$0xff]
    %v239 = vld [vmem:[#allocation2 + $0x388] sm:$0xff]
    %v240 = vld [vmem:[#allocation2 + $0x390] sm:$0xff]
    %v241 = vld [vmem:[#allocation2 + $0x398] sm:$0xff]
    %v242 = vld [vmem:[#allocation2 + $0x3a0] sm:$0xff]
    %v243 = vld [vmem:[#allocation2 + $0x3a8] sm:$0xff]
    %v244 = vld [vmem:[#allocation2 + $0x3b0] sm:$0xff]
    %v245 = vld [vmem:[#allocation2 + $0x3b8] sm:$0xff]
    %v246 = vld [vmem:[#allocation2 + $0x3c0] sm:$0xff]
    %v247 = vld [vmem:[#allocation2 + $0x3c8] sm:$0xff]
    %v248 = vld [vmem:[#allocation2 + $0x3d0] sm:$0xff]
    %v249 = vld [vmem:[#allocation2 + $0x3d8] sm:$0xff]
    %v250 = vld [vmem:[#allocation2 + $0x3e0] sm:$0xff]
    %v251 = vld [vmem:[#allocation2 + $0x3e8] sm:$0xff]
    %v252 = vld [vmem:[#allocation2 + $0x3f0] sm:$0xff]
    %v253 = vld [vmem:[#allocation2 + $0x3f8] sm:$0xff]
    %v254 = vld [vmem:[#allocation2 + $0x400] sm:$0xff]
    %v255 = vld [vmem:[#allocation2 + $0x408] sm:$0xff]
    %v256 = vld [vmem:[#allocation2 + $0x410] sm:$0xff]
    %v257 = vld [vmem:[#allocation2 + $0x418] sm:$0xff]
    %v258 = vld [vmem:[#allocation2 + $0x420] sm:$0xff]
    %v259 = vld [vmem:[#allocation2 + $0x428] sm:$0xff]
    %v260 = vld [vmem:[#allocation2 + $0x430] sm:$0xff]
    %v261 = vld [vmem:[#allocation2 + $0x438] sm:$0xff]
    %v262 = vld [vmem:[#allocation2 + $0x440] sm:$0xff]
    %v263 = vld [vmem:[#allocation2 + $0x448] sm:$0xff]
    %v264 = vld [vmem:[#allocation2 + $0x450] sm:$0xff]
    %v265 = vld [vmem:[#allocation2 + $0x458] sm:$0xff]
    %v266 = vld [vmem:[#allocation2 + $0x460] sm:$0xff]
    %v267 = vld [vmem:[#allocation2 + $0x468] sm:$0xff]
    %v268 = vld [vmem:[#allocation2 + $0x470] sm:$0xff]
    %v269 = vld [vmem:[#allocation2 + $0x478] sm:$0xff]
    %v270 = vld [vmem:[#allocation2 + $0x480] sm:$0xff]
    %v271 = vld [vmem:[#allocation2 + $0x488] sm:$0xff]
    %v272 = vld [vmem:[#allocation2 + $0x490] sm:$0xff]
    %v273 = vld [vmem:[#allocation2 + $0x498] sm:$0xff]
    %v274 = vld [vmem:[#allocation2 + $0x4a0] sm:$0xff]
    %v275 = vld [vmem:[#allocation2 + $0x4a8] sm:$0xff]
    %v276 = vld [vmem:[#allocation2 + $0x4b0] sm:$0xff]
    %v277 = vld [vmem:[#allocation2 + $0x4b8] sm:$0xff]
    %v278 = vld [vmem:[#allocation2 + $0x4c0] sm:$0xff]
    %v279 = vld [vmem:[#allocation2 + $0x4c8] sm:$0xff]
    %v280 = vld [vmem:[#allocation2 + $0x4d0] sm:$0xff]
    %v281 = vld [vmem:[#allocation2 + $0x4d8] sm:$0xff]
    %v282 = vld [vmem:[#allocation2 + $0x4e0] sm:$0xff]
    %v283 = vld [vmem:[#allocation2 + $0x4e8] sm:$0xff]
    %v284 = vld [vmem:[#allocation2 + $0x4f0] sm:$0xff]
    %v285 = vld [vmem:[#allocation2 + $0x4f8] sm:$0xff]
    %v286 = vld [vmem:[#allocation2 + $0x500] sm:$0xff]
    %v287 = vld [vmem:[#allocation2 + $0x508] sm:$0xff]
    %v288 = vld [vmem:[#allocation2 + $0x510] sm:$0xff]
    %v289 = vld [vmem:[#allocation2 + $0x518] sm:$0xff]
    %v290 = vld [vmem:[#allocation2 + $0x520] sm:$0xff]
    %v291 = vld [vmem:[#allocation2 + $0x528] sm:$0xff]
    %v292 = vld [vmem:[#allocation2 + $0x530] sm:$0xff]
    %v293 = vld [vmem:[#allocation2 + $0x538] sm:$0xff]
    %v294 = vld [vmem:[#allocation2 + $0x540] sm:$0xff]
    %v295 = vld [vmem:[#allocation2 + $0x548] sm:$0xff]
    %v296 = vld [vmem:[#allocation2 + $0x550] sm:$0xff]
    %v297 = vld [vmem:[#allocation2 + $0x558] sm:$0xff]
    %v298 = vld [vmem:[#allocation2 + $0x560] sm:$0xff]
    %v299 = vld [vmem:[#allocation2 + $0x568] sm:$0xff]
    %v300 = vld [vmem:[#allocation2 + $0x570] sm:$0xff]
    %v301 = vld [vmem:[#allocation2 + $0x578] sm:$0xff]
    %v302 = vld [vmem:[#allocation2 + $0x580] sm:$0xff]
    %v303 = vld [vmem:[#allocation2 + $0x588] sm:$0xff]
    %v304 = vld [vmem:[#allocation2 + $0x590] sm:$0xff]
    %v305 = vld [vmem:[#allocation2 + $0x598] sm:$0xff]
    %v306 = vld [vmem:[#allocation2 + $0x5a0] sm:$0xff]
    %v307 = vld [vmem:[#allocation2 + $0x5a8] sm:$0xff]
    %v308 = vld [vmem:[#allocation2 + $0x5b0] sm:$0xff]
    %v309 = vld [vmem:[#allocation2 + $0x5b8] sm:$0xff]
    %v310 = vld [vmem:[#allocation2 + $0x5c0] sm:$0xff]
    %v311 = vld [vmem:[#allocation2 + $0x5c8] sm:$0xff]
    %v312 = vld [vmem:[#allocation2 + $0x5d0] sm:$0xff]
    %v313 = vld [vmem:[#allocation2 + $0x5d8] sm:$0xff]
    %v314 = vld [vmem:[#allocation2 + $0x5e0] sm:$0xff]
    %v315 = vld [vmem:[#allocation2 + $0x5e8] sm:$0xff]
    %v316 = vld [vmem:[#allocation2 + $0x5f0] sm:$0xff]
    %v317 = vld [vmem:[#allocation2 + $0x5f8] sm:$0xff]
    %v318 = vld [vmem:[#allocation2 + $0x600] sm:$0xff]
    %v319 = vld [vmem:[#allocation2 + $0x608] sm:$0xff]
    %v320 = vld [vmem:[#allocation2 + $0x610] sm:$0xff]
    %v321 = vld [vmem:[#allocation2 + $0x618] sm:$0xff]
    %v322 = vld [vmem:[#allocation2 + $0x620] sm:$0xff]
    %v323 = vld [vmem:[#allocation2 + $0x628] sm:$0xff]
    %v324 = vld [vmem:[#allocation2 + $0x630] sm:$0xff]
    %v325 = vld [vmem:[#allocation2 + $0x638] sm:$0xff]
    %v326 = vld [vmem:[#allocation2 + $0x640] sm:$0xff]
    %v327 = vld [vmem:[#allocation2 + $0x648] sm:$0xff]
    %v328 = vld [vmem:[#allocation2 + $0x650] sm:$0xff]
    %v329 = vld [vmem:[#allocation2 + $0x658] sm:$0xff]
    %v330 = vld [vmem:[#allocation2 + $0x660] sm:$0xff]
    %v331 = vld [vmem:[#allocation2 + $0x668] sm:$0xff]
    %v332 = vld [vmem:[#allocation2 + $0x670] sm:$0xff]
    %v333 = vld [vmem:[#allocation2 + $0x678] sm:$0xff]
    %v334 = vld [vmem:[#allocation2 + $0x680] sm:$0xff]
    %v335 = vld [vmem:[#allocation2 + $0x688] sm:$0xff]
    %v336 = vld [vmem:[#allocation2 + $0x690] sm:$0xff]
    %v337 = vld [vmem:[#allocation2 + $0x698] sm:$0xff]
    %v338 = vld [vmem:[#allocation2 + $0x6a0] sm:$0xff]
    %v339 = vld [vmem:[#allocation2 + $0x6a8] sm:$0xff]
    %v340 = vld [vmem:[#allocation2 + $0x6b0] sm:$0xff]
    %v341 = vld [vmem:[#allocation2 + $0x6b8] sm:$0xff]
    %v342 = vld [vmem:[#allocation2 + $0x6c0] sm:$0xff]
    %v343 = vld [vmem:[#allocation2 + $0x6c8] sm:$0xff]
    %v344 = vld [vmem:[#allocation2 + $0x6d0] sm:$0xff]
    %v345 = vld [vmem:[#allocation2 + $0x6d8] sm:$0xff]
    %v346 = vld [vmem:[#allocation2 + $0x6e0] sm:$0xff]
    %v347 = vld [vmem:[#allocation2 + $0x6e8] sm:$0xff]
    %v348 = vld [vmem:[#allocation2 + $0x6f0] sm:$0xff]
    %v349 = vld [vmem:[#allocation2 + $0x6f8] sm:$0xff]
    %v350 = vld [vmem:[#allocation2 + $0x700] sm:$0xff]
    %v351 = vld [vmem:[#allocation2 + $0x708] sm:$0xff]
    %v352 = vld [vmem:[#allocation2 + $0x710] sm:$0xff]
    %v353 = vld [vmem:[#allocation2 + $0x718] sm:$0xff]
    %v354 = vld [vmem:[#allocation2 + $0x720] sm:$0xff]
    %v355 = vld [vmem:[#allocation2 + $0x728] sm:$0xff]
    %v356 = vld [vmem:[#allocation2 + $0x730] sm:$0xff]
    %v357 = vld [vmem:[#allocation2 + $0x738] sm:$0xff]
    %v358 = vld [vmem:[#allocation2 + $0x740] sm:$0xff]
    %v359 = vld [vmem:[#allocation2 + $0x748] sm:$0xff]
    %v360 = vld [vmem:[#allocation2 + $0x750] sm:$0xff]
    %v361 = vld [vmem:[#allocation2 + $0x758] sm:$0xff]
    %v362 = vld [vmem:[#allocation2 + $0x760] sm:$0xff]
    %v363 = vld [vmem:[#allocation2 + $0x768] sm:$0xff]
    %v364 = vld [vmem:[#allocation2 + $0x770] sm:$0xff]
    %v365 = vld [vmem:[#allocation2 + $0x778] sm:$0xff]
    %v366 = vld [vmem:[#allocation2 + $0x780] sm:$0xff]
    %v367 = vld [vmem:[#allocation2 + $0x788] sm:$0xff]
    %v368 = vld [vmem:[#allocation2 + $0x790] sm:$0xff]
    %v369 = vld [vmem:[#allocation2 + $0x798] sm:$0xff]
    %v370 = vld [vmem:[#allocation2 + $0x7a0] sm:$0xff]
    %v371 = vld [vmem:[#allocation2 + $0x7a8] sm:$0xff]
    %v372 = vld [vmem:[#allocation2 + $0x7b0] sm:$0xff]
    %v373 = vld [vmem:[#allocation2 + $0x7b8] sm:$0xff]
    %v374 = vld [vmem:[#allocation2 + $0x7c0] sm:$0xff]
    %v375 = vld [vmem:[#allocation2 + $0x7c8] sm:$0xff]
    %v376 = vld [vmem:[#allocation2 + $0x7d0] sm:$0xff]
    %v377 = vld [vmem:[#allocation2 + $0x7d8] sm:$0xff]
    %v378 = vld [vmem:[#allocation2 + $0x7e0] sm:$0xff]
    %v379 = vld [vmem:[#allocation2 + $0x7e8] sm:$0xff]
    %v380 = vld [vmem:[#allocation2 + $0x7f0] sm:$0xff]
    %v381 = vld [vmem:[#allocation2 + $0x7f8] sm:$0xff]
    %v382 = vld [vmem:[#allocation2 + $0x800] sm:$0xff]
    %v383 = vld [vmem:[#allocation2 + $0x808] sm:$0xff]
    %v384 = vld [vmem:[#allocation2 + $0x810] sm:$0xff]
    %v385 = vld [vmem:[#allocation2 + $0x818] sm:$0xff]
    %v386 = vld [vmem:[#allocation2 + $0x820] sm:$0xff]
    %v387 = vld [vmem:[#allocation2 + $0x828] sm:$0xff]
    %v388 = vld [vmem:[#allocation2 + $0x830] sm:$0xff]
    %v389 = vld [vmem:[#allocation2 + $0x838] sm:$0xff]
    %v390 = vld [vmem:[#allocation2 + $0x840] sm:$0xff]
    %v391 = vld [vmem:[#allocation2 + $0x848] sm:$0xff]
    %v392 = vld [vmem:[#allocation2 + $0x850] sm:$0xff]
    %v393 = vld [vmem:[#allocation2 + $0x858] sm:$0xff]
    %v394 = vld [vmem:[#allocation2 + $0x860] sm:$0xff]
    %v395 = vld [vmem:[#allocation2 + $0x868] sm:$0xff]
    %v396 = vld [vmem:[#allocation2 + $0x870] sm:$0xff]
    %v397 = vld [vmem:[#allocation2 + $0x878] sm:$0xff]
    %v398 = vld [vmem:[#allocation2 + $0x880] sm:$0xff]
    %v399 = vld [vmem:[#allocation2 + $0x888] sm:$0xff]
    %v400 = vld [vmem:[#allocation2 + $0x890] sm:$0xff]
    %v401 = vld [vmem:[#allocation2 + $0x898] sm:$0xff]
    %v402 = vld [vmem:[#allocation2 + $0x8a0] sm:$0xff]
    %v403 = vld [vmem:[#allocation2 + $0x8a8] sm:$0xff]
    %v404 = vld [vmem:[#allocation2 + $0x8b0] sm:$0xff]
    %v405 = vld [vmem:[#allocation2 + $0x8b8] sm:$0xff]
    %v406 = vld [vmem:[#allocation2 + $0x8c0] sm:$0xff]
    %v407 = vld [vmem:[#allocation2 + $0x8c8] sm:$0xff]
    %v408 = vld [vmem:[#allocation2 + $0x8d0] sm:$0xff]
    %v409 = vld [vmem:[#allocation2 + $0x8d8] sm:$0xff]
    %v410 = vld [vmem:[#allocation2 + $0x8e0] sm:$0xff]
    %v411 = vld [vmem:[#allocation2 + $0x8e8] sm:$0xff]
    %v412 = vld [vmem:[#allocation2 + $0x8f0] sm:$0xff]
    %v413 = vld [vmem:[#allocation2 + $0x8f8] sm:$0xff]
    %v414 = vld [vmem:[#allocation2 + $0x900] sm:$0xff]
    %v415 = vld [vmem:[#allocation2 + $0x908] sm:$0xff]
    %v416 = vld [vmem:[#allocation2 + $0x910] sm:$0xff]
    %v417 = vld [vmem:[#allocation2 + $0x918] sm:$0xff]
    %v418 = vld [vmem:[#allocation2 + $0x920] sm:$0xff]
    %v419 = vld [vmem:[#allocation2 + $0x928] sm:$0xff]
    %v420 = vld [vmem:[#allocation2 + $0x930] sm:$0xff]
    %v421 = vld [vmem:[#allocation2 + $0x938] sm:$0xff]
    %v422 = vld [vmem:[#allocation2 + $0x940] sm:$0xff]
    %v423 = vld [vmem:[#allocation2 + $0x948] sm:$0xff]
    %v424 = vld [vmem:[#allocation2 + $0x950] sm:$0xff]
    %v425 = vld [vmem:[#allocation2 + $0x958] sm:$0xff]
    %v426 = vld [vmem:[#allocation2 + $0x960] sm:$0xff]
    %v427 = vld [vmem:[#allocation2 + $0x968] sm:$0xff]
    %v428 = vld [vmem:[#allocation2 + $0x970] sm:$0xff]
    %v429 = vld [vmem:[#allocation2 + $0x978] sm:$0xff]
    %v430 = vld [vmem:[#allocation2 + $0x980] sm:$0xff]
    %v431 = vld [vmem:[#allocation2 + $0x988] sm:$0xff]
    %v432 = vld [vmem:[#allocation2 + $0x990] sm:$0xff]
    %v433 = vld [vmem:[#allocation2 + $0x998] sm:$0xff]
    %v434 = vld [vmem:[#allocation2 + $0x9a0] sm:$0xff]
    %v435 = vld [vmem:[#allocation2 + $0x9a8] sm:$0xff]
    %v436 = vld [vmem:[#allocation2 + $0x9b0] sm:$0xff]
    %v437 = vld [vmem:[#allocation2 + $0x9b8] sm:$0xff]
    %v438 = vld [vmem:[#allocation2 + $0x9c0] sm:$0xff]
    %v439 = vld [vmem:[#allocation2 + $0x9c8] sm:$0xff]
    %v440 = vld [vmem:[#allocation2 + $0x9d0] sm:$0xff]
    %v441 = vld [vmem:[#allocation2 + $0x9d8] sm:$0xff]
    %v442 = vld [vmem:[#allocation2 + $0x9e0] sm:$0xff]
    %v443 = vld [vmem:[#allocation2 + $0x9e8] sm:$0xff]
    %v444 = vld [vmem:[#allocation2 + $0x9f0] sm:$0xff]
    %v445 = vld [vmem:[#allocation2 + $0x9f8] sm:$0xff]
    %v446 = vld [vmem:[#allocation2 + $0xa00] sm:$0xff]
    %v447 = vld [vmem:[#allocation2 + $0xa08] sm:$0xff]
    %v448 = vld [vmem:[#allocation2 + $0xa10] sm:$0xff]
    %v449 = vld [vmem:[#allocation2 + $0xa18] sm:$0xff]
    %v450 = vld [vmem:[#allocation2 + $0xa20] sm:$0xff]
    %v451 = vld [vmem:[#allocation2 + $0xa28] sm:$0xff]
    %v452 = vld [vmem:[#allocation2 + $0xa30] sm:$0xff]
    %v453 = vld [vmem:[#allocation2 + $0xa38] sm:$0xff]
    %v454 = vld [vmem:[#allocation2 + $0xa40] sm:$0xff]
    %v455 = vld [vmem:[#allocation2 + $0xa48] sm:$0xff]
    %v456 = vld [vmem:[#allocation2 + $0xa50] sm:$0xff]
    %v457 = vld [vmem:[#allocation2 + $0xa58] sm:$0xff]
    %v458 = vld [vmem:[#allocation2 + $0xa60] sm:$0xff]
    %v459 = vld [vmem:[#allocation2 + $0xa68] sm:$0xff]
    %v460 = vld [vmem:[#allocation2 + $0xa70] sm:$0xff]
    %v461 = vld [vmem:[#allocation2 + $0xa78] sm:$0xff]
    %v462 = vld [vmem:[#allocation2 + $0xa80] sm:$0xff]
    %v463 = vld [vmem:[#allocation2 + $0xa88] sm:$0xff]
    %v464 = vld [vmem:[#allocation2 + $0xa90] sm:$0xff]
    %v465 = vld [vmem:[#allocation2 + $0xa98] sm:$0xff]
    %v466 = vld [vmem:[#allocation2 + $0xaa0] sm:$0xff]
    %v467 = vld [vmem:[#allocation2 + $0xaa8] sm:$0xff]
    %v468 = vld [vmem:[#allocation2 + $0xab0] sm:$0xff]
    %v469 = vld [vmem:[#allocation2 + $0xab8] sm:$0xff]
    %v470 = vld [vmem:[#allocation2 + $0xac0] sm:$0xff]
    %v471 = vld [vmem:[#allocation2 + $0xac8] sm:$0xff]
    %v472 = vld [vmem:[#allocation2 + $0xad0] sm:$0xff]
    %v473 = vld [vmem:[#allocation2 + $0xad8] sm:$0xff]
    %v474 = vld [vmem:[#allocation2 + $0xae0] sm:$0xff]
    %v475 = vld [vmem:[#allocation2 + $0xae8] sm:$0xff]
    %v476 = vld [vmem:[#allocation2 + $0xaf0] sm:$0xff]
    %v477 = vld [vmem:[#allocation2 + $0xaf8] sm:$0xff]
    %v478 = vld [vmem:[#allocation2 + $0xb00] sm:$0xff]
    %v479 = vld [vmem:[#allocation2 + $0xb08] sm:$0xff]
    %v480 = vld [vmem:[#allocation2 + $0xb10] sm:$0xff]
    %v481 = vld [vmem:[#allocation2 + $0xb18] sm:$0xff]
    %v482 = vld [vmem:[#allocation2 + $0xb20] sm:$0xff]
    %v483 = vld [vmem:[#allocation2 + $0xb28] sm:$0xff]
    %v484 = vld [vmem:[#allocation2 + $0xb30] sm:$0xff]
    %v485 = vld [vmem:[#allocation2 + $0xb38] sm:$0xff]
    %v486 = vld [vmem:[#allocation2 + $0xb40] sm:$0xff]
    %v487 = vld [vmem:[#allocation2 + $0xb48] sm:$0xff]
    %v488 = vld [vmem:[#allocation2 + $0xb50] sm:$0xff]
    %v489 = vld [vmem:[#allocation2 + $0xb58] sm:$0xff]
    %v490 = vld [vmem:[#allocation2 + $0xb60] sm:$0xff]
    %v491 = vld [vmem:[#allocation2 + $0xb68] sm:$0xff]
    %v492 = vld [vmem:[#allocation2 + $0xb70] sm:$0xff]
    %v493 = vld [vmem:[#allocation2 + $0xb78] sm:$0xff]
    %v494 = vld [vmem:[#allocation2 + $0xb80] sm:$0xff]
    %v495 = vld [vmem:[#allocation2 + $0xb88] sm:$0xff]
    %v496 = vld [vmem:[#allocation2 + $0xb90] sm:$0xff]
    %v497 = vld [vmem:[#allocation2 + $0xb98] sm:$0xff]
    %v498 = vld [vmem:[#allocation2 + $0xba0] sm:$0xff]
    %v499 = vld [vmem:[#allocation2 + $0xba8] sm:$0xff]
    %v500 = vld [vmem:[#allocation2 + $0xbb0] sm:$0xff]
    %v501 = vld [vmem:[#allocation2 + $0xbb8] sm:$0xff]
    %v502 = vld [vmem:[#allocation2 + $0xbc0] sm:$0xff]
    %v503 = vld [vmem:[#allocation2 + $0xbc8] sm:$0xff]
    %v504 = vld [vmem:[#allocation2 + $0xbd0] sm:$0xff]
    %v505 = vld [vmem:[#allocation2 + $0xbd8] sm:$0xff]
    %v506 = vld [vmem:[#allocation2 + $0xbe0] sm:$0xff]
    %v507 = vld [vmem:[#allocation2 + $0xbe8] sm:$0xff]
    %v508 = vld [vmem:[#allocation2 + $0xbf0] sm:$0xff]
    %v509 = vld [vmem:[#allocation2 + $0xbf8] sm:$0xff]
    %v510 = vld [vmem:[#allocation2 + $0xc00] sm:$0xff]
    %v511 = vld [vmem:[#allocation2 + $0xc08] sm:$0xff]
    %v512 = vld [vmem:[#allocation2 + $0xc10] sm:$0xff]
    %v513 = vld [vmem:[#allocation2 + $0xc18] sm:$0xff]
    %v514 = vld [vmem:[#allocation2 + $0xc20] sm:$0xff]
    %v515 = vld [vmem:[#allocation2 + $0xc28] sm:$0xff]
    %v516 = vld [vmem:[#allocation2 + $0xc30] sm:$0xff]
    %v517 = vld [vmem:[#allocation2 + $0xc38] sm:$0xff]
    %v518 = vld [vmem:[#allocation2 + $0xc40] sm:$0xff]
    %v519 = vld [vmem:[#allocation2 + $0xc48] sm:$0xff]
    %v520 = vld [vmem:[#allocation2 + $0xc50] sm:$0xff]
    %v521 = vld [vmem:[#allocation2 + $0xc58] sm:$0xff]
    %v522 = vld [vmem:[#allocation2 + $0xc60] sm:$0xff]
    %v523 = vld [vmem:[#allocation2 + $0xc68] sm:$0xff]
    %v524 = vld [vmem:[#allocation2 + $0xc70] sm:$0xff]
    %v525 = vld [vmem:[#allocation2 + $0xc78] sm:$0xff]
    %v526 = vld [vmem:[#allocation2 + $0xc80] sm:$0xff]
    %v527 = vld [vmem:[#allocation2 + $0xc88] sm:$0xff]
    %v528 = vld [vmem:[#allocation2 + $0xc90] sm:$0xff]
    %v529 = vld [vmem:[#allocation2 + $0xc98] sm:$0xff]
    %v530 = vld [vmem:[#allocation2 + $0xca0] sm:$0xff]
    %v531 = vld [vmem:[#allocation2 + $0xca8] sm:$0xff]
    %v532 = vld [vmem:[#allocation2 + $0xcb0] sm:$0xff]
    %v533 = vld [vmem:[#allocation2 + $0xcb8] sm:$0xff]
    %v534 = vld [vmem:[#allocation2 + $0xcc0] sm:$0xff]
    %v535 = vld [vmem:[#allocation2 + $0xcc8] sm:$0xff]
    %v536 = vld [vmem:[#allocation2 + $0xcd0] sm:$0xff]
    %v537 = vld [vmem:[#allocation2 + $0xcd8] sm:$0xff]
    %v538 = vld [vmem:[#allocation2 + $0xce0] sm:$0xff]
    %v539 = vld [vmem:[#allocation2 + $0xce8] sm:$0xff]
    %v540 = vld [vmem:[#allocation2 + $0xcf0] sm:$0xff]
    %v541 = vld [vmem:[#allocation2 + $0xcf8] sm:$0xff]
    %v542 = vld [vmem:[#allocation2 + $0xd00] sm:$0xff]
    %v543 = vld [vmem:[#allocation2 + $0xd08] sm:$0xff]
    %v544 = vld [vmem:[#allocation2 + $0xd10] sm:$0xff]
    %v545 = vld [vmem:[#allocation2 + $0xd18] sm:$0xff]
    %v546 = vld [vmem:[#allocation2 + $0xd20] sm:$0xff]
    %v547 = vld [vmem:[#allocation2 + $0xd28] sm:$0xff]
    %v548 = vld [vmem:[#allocation2 + $0xd30] sm:$0xff]
    %v549 = vld [vmem:[#allocation2 + $0xd38] sm:$0xff]
    %v550 = vld [vmem:[#allocation2 + $0xd40] sm:$0xff]
    %v551 = vld [vmem:[#allocation2 + $0xd48] sm:$0xff]
    %v552 = vld [vmem:[#allocation2 + $0xd50] sm:$0xff]
    %v553 = vld [vmem:[#allocation2 + $0xd58] sm:$0xff]
    %v554 = vld [vmem:[#allocation2 + $0xd60] sm:$0xff]
    %v555 = vld [vmem:[#allocation2 + $0xd68] sm:$0xff]
    %v556 = vld [vmem:[#allocation2 + $0xd70] sm:$0xff]
    %v557 = vld [vmem:[#allocation2 + $0xd78] sm:$0xff]
    %v558 = vld [vmem:[#allocation2 + $0xd80] sm:$0xff]
    %v559 = vld [vmem:[#allocation2 + $0xd88] sm:$0xff]
    %v560 = vld [vmem:[#allocation2 + $0xd90] sm:$0xff]
    %v561 = vld [vmem:[#allocation2 + $0xd98] sm:$0xff]
    %v562 = vld [vmem:[#allocation2 + $0xda0] sm:$0xff]
    %v563 = vld [vmem:[#allocation2 + $0xda8] sm:$0xff]
    %v564 = vld [vmem:[#allocation2 + $0xdb0] sm:$0xff]
    %v565 = vld [vmem:[#allocation2 + $0xdb8] sm:$0xff]
    %v566 = vld [vmem:[#allocation2 + $0xdc0] sm:$0xff]
    %v567 = vld [vmem:[#allocation2 + $0xdc8] sm:$0xff]
    %v568 = vld [vmem:[#allocation2 + $0xdd0] sm:$0xff]
    %v569 = vld [vmem:[#allocation2 + $0xdd8] sm:$0xff]
    %v570 = vld [vmem:[#allocation2 + $0xde0] sm:$0xff]
    %v571 = vld [vmem:[#allocation2 + $0xde8] sm:$0xff]
    %v572 = vld [vmem:[#allocation2 + $0xdf0] sm:$0xff]
    %v573 = vld [vmem:[#allocation2 + $0xdf8] sm:$0xff]
    %v574 = vld [vmem:[#allocation2 + $0xe00] sm:$0xff]
    %v575 = vld [vmem:[#allocation2 + $0xe08] sm:$0xff]
    %v576 = vld [vmem:[#allocation2 + $0xe10] sm:$0xff]
    %v577 = vld [vmem:[#allocation2 + $0xe18] sm:$0xff]
    %v578 = vld [vmem:[#allocation2 + $0xe20] sm:$0xff]
    %v579 = vld [vmem:[#allocation2 + $0xe28] sm:$0xff]
    %v580 = vld [vmem:[#allocation2 + $0xe30] sm:$0xff]
    %v581 = vld [vmem:[#allocation2 + $0xe38] sm:$0xff]
    %v582 = vld [vmem:[#allocation2 + $0xe40] sm:$0xff]
    %v583 = vld [vmem:[#allocation2 + $0xe48] sm:$0xff]
    %v584 = vld [vmem:[#allocation2 + $0xe50] sm:$0xff]
    %v585 = vld [vmem:[#allocation2 + $0xe58] sm:$0xff]
    %v586 = vld [vmem:[#allocation2 + $0xe60] sm:$0xff]
    %v587 = vld [vmem:[#allocation2 + $0xe68] sm:$0xff]
    %v588 = vld [vmem:[#allocation2 + $0xe70] sm:$0xff]
    %v589 = vld [vmem:[#allocation2 + $0xe78] sm:$0xff]
    %v590 = vld [vmem:[#allocation2 + $0xe80] sm:$0xff]
    %v591 = vld [vmem:[#allocation2 + $0xe88] sm:$0xff]
    %v592 = vld [vmem:[#allocation2 + $0xe90] sm:$0xff]
    %v593 = vld [vmem:[#allocation2 + $0xe98] sm:$0xff]
    %v594 = vld [vmem:[#allocation2 + $0xea0] sm:$0xff]
    %v595 = vld [vmem:[#allocation2 + $0xea8] sm:$0xff]
    %v596 = vld [vmem:[#allocation2 + $0xeb0] sm:$0xff]
    %v597 = vld [vmem:[#allocation2 + $0xeb8] sm:$0xff]
    %v598 = vld [vmem:[#allocation2 + $0xec0] sm:$0xff]
    %v599 = vld [vmem:[#allocation2 + $0xec8] sm:$0xff]
    %v600 = vld [vmem:[#allocation2 + $0xed0] sm:$0xff]
    %v601 = vld [vmem:[#allocation2 + $0xed8] sm:$0xff]
    %v602 = vld [vmem:[#allocation2 + $0xee0] sm:$0xff]
    %v603 = vld [vmem:[#allocation2 + $0xee8] sm:$0xff]
    %v604 = vld [vmem:[#allocation2 + $0xef0] sm:$0xff]
    %v605 = vld [vmem:[#allocation2 + $0xef8] sm:$0xff]
    %v606 = vld [vmem:[#allocation2 + $0xf00] sm:$0xff]
    %v607 = vld [vmem:[#allocation2 + $0xf08] sm:$0xff]
    %v608 = vld [vmem:[#allocation2 + $0xf10] sm:$0xff]
    %v609 = vld [vmem:[#allocation2 + $0xf18] sm:$0xff]
    %v610 = vld [vmem:[#allocation2 + $0xf20] sm:$0xff]
    %v611 = vld [vmem:[#allocation2 + $0xf28] sm:$0xff]
    %v612 = vld [vmem:[#allocation2 + $0xf30] sm:$0xff]
    %v613 = vld [vmem:[#allocation2 + $0xf38] sm:$0xff]
    %v614 = vld [vmem:[#allocation2 + $0xf40] sm:$0xff]
    %v615 = vld [vmem:[#allocation2 + $0xf48] sm:$0xff]
    %v616 = vld [vmem:[#allocation2 + $0xf50] sm:$0xff]
    %v617 = vld [vmem:[#allocation2 + $0xf58] sm:$0xff]
    %v618 = vld [vmem:[#allocation2 + $0xf60] sm:$0xff]
    %v619 = vld [vmem:[#allocation2 + $0xf68] sm:$0xff]
    %v620 = vld [vmem:[#allocation2 + $0xf70] sm:$0xff]
    %v621 = vld [vmem:[#allocation2 + $0xf78] sm:$0xff]
    %v622 = vld [vmem:[#allocation2 + $0xf80] sm:$0xff]
    %v623 = vld [vmem:[#allocation2 + $0xf88] sm:$0xff]
    %v624 = vld [vmem:[#allocation2 + $0xf90] sm:$0xff]
    %v625 = vld [vmem:[#allocation2 + $0xf98] sm:$0xff]
    %v626 = vld [vmem:[#allocation2 + $0xfa0] sm:$0xff]
    %v627 = vld [vmem:[#allocation2 + $0xfa8] sm:$0xff]
    %v628 = vld [vmem:[#allocation2 + $0xfb0] sm:$0xff]
    %v629 = vld [vmem:[#allocation2 + $0xfb8] sm:$0xff]
    %v630 = vld [vmem:[#allocation2 + $0xfc0] sm:$0xff]
    %v631 = vld [vmem:[#allocation2 + $0xfc8] sm:$0xff]
    %v632 = vld [vmem:[#allocation2 + $0xfd0] sm:$0xff]
    %v633 = vld [vmem:[#allocation2 + $0xfd8] sm:$0xff]
    %v634 = vld [vmem:[#allocation2 + $0xfe0] sm:$0xff]
    %v635 = vld [vmem:[#allocation2 + $0xfe8] sm:$0xff]
    %v636 = vld [vmem:[#allocation2 + $0xff0] sm:$0xff]
    %v637 = vld [vmem:[#allocation2 + $0xff8] sm:$0xff]
    %v638 = vunpack.c.l.bf16 %v126
    %v639 = vunpack.c.h.bf16 %v126
    %v640 = vunpack.c.l.bf16 %v127
    %v641 = vunpack.c.h.bf16 %v127
    %v642 = vunpack.c.l.bf16 %v128
    %v643 = vunpack.c.h.bf16 %v128
    %v644 = vunpack.c.l.bf16 %v129
    %v645 = vunpack.c.h.bf16 %v129
    %v646 = vunpack.c.l.bf16 %v130
    %v647 = vunpack.c.h.bf16 %v130
    %v648 = vunpack.c.l.bf16 %v131
    %v649 = vunpack.c.h.bf16 %v131
    %v650 = vunpack.c.l.bf16 %v132
    %v651 = vunpack.c.h.bf16 %v132
    %v652 = vunpack.c.l.bf16 %v133
    %v653 = vunpack.c.h.bf16 %v133
    %v654 = vunpack.c.l.bf16 %v134
    %v655 = vunpack.c.h.bf16 %v134
    %v656 = vunpack.c.l.bf16 %v135
    %v657 = vunpack.c.h.bf16 %v135
    %v658 = vunpack.c.l.bf16 %v136
    %v659 = vunpack.c.h.bf16 %v136
    %v660 = vunpack.c.l.bf16 %v137
    %v661 = vunpack.c.h.bf16 %v137
    %v662 = vunpack.c.l.bf16 %v138
    %v663 = vunpack.c.h.bf16 %v138
    %v664 = vunpack.c.l.bf16 %v139
    %v665 = vunpack.c.h.bf16 %v139
    %v666 = vunpack.c.l.bf16 %v140
    %v667 = vunpack.c.h.bf16 %v140
    %v668 = vunpack.c.l.bf16 %v141
    %v669 = vunpack.c.h.bf16 %v141
    %v670 = vunpack.c.l.bf16 %v142
    %v671 = vunpack.c.h.bf16 %v142
    %v672 = vunpack.c.l.bf16 %v143
    %v673 = vunpack.c.h.bf16 %v143
    %v674 = vunpack.c.l.bf16 %v144
    %v675 = vunpack.c.h.bf16 %v144
    %v676 = vunpack.c.l.bf16 %v145
    %v677 = vunpack.c.h.bf16 %v145
    %v678 = vunpack.c.l.bf16 %v146
    %v679 = vunpack.c.h.bf16 %v146
    %v680 = vunpack.c.l.bf16 %v147
    %v681 = vunpack.c.h.bf16 %v147
    %v682 = vunpack.c.l.bf16 %v148
    %v683 = vunpack.c.h.bf16 %v148
    %v684 = vunpack.c.l.bf16 %v149
    %v685 = vunpack.c.h.bf16 %v149
    %v686 = vunpack.c.l.bf16 %v150
    %v687 = vunpack.c.h.bf16 %v150
    %v688 = vunpack.c.l.bf16 %v151
    %v689 = vunpack.c.h.bf16 %v151
    %v690 = vunpack.c.l.bf16 %v152
    %v691 = vunpack.c.h.bf16 %v152
    %v692 = vunpack.c.l.bf16 %v153
    %v693 = vunpack.c.h.bf16 %v153
    %v694 = vunpack.c.l.bf16 %v154
    %v695 = vunpack.c.h.bf16 %v154
    %v696 = vunpack.c.l.bf16 %v155
    %v697 = vunpack.c.h.bf16 %v155
    %v698 = vunpack.c.l.bf16 %v156
    %v699 = vunpack.c.h.bf16 %v156
    %v700 = vunpack.c.l.bf16 %v157
    %v701 = vunpack.c.h.bf16 %v157
    %v702 = vunpack.c.l.bf16 %v158
    %v703 = vunpack.c.h.bf16 %v158
    %v704 = vunpack.c.l.bf16 %v159
    %v705 = vunpack.c.h.bf16 %v159
    %v706 = vunpack.c.l.bf16 %v160
    %v707 = vunpack.c.h.bf16 %v160
    %v708 = vunpack.c.l.bf16 %v161
    %v709 = vunpack.c.h.bf16 %v161
    %v710 = vunpack.c.l.bf16 %v162
    %v711 = vunpack.c.h.bf16 %v162
    %v712 = vunpack.c.l.bf16 %v163
    %v713 = vunpack.c.h.bf16 %v163
    %v714 = vunpack.c.l.bf16 %v164
    %v715 = vunpack.c.h.bf16 %v164
    %v716 = vunpack.c.l.bf16 %v165
    %v717 = vunpack.c.h.bf16 %v165
    %v718 = vunpack.c.l.bf16 %v166
    %v719 = vunpack.c.h.bf16 %v166
    %v720 = vunpack.c.l.bf16 %v167
    %v721 = vunpack.c.h.bf16 %v167
    %v722 = vunpack.c.l.bf16 %v168
    %v723 = vunpack.c.h.bf16 %v168
    %v724 = vunpack.c.l.bf16 %v169
    %v725 = vunpack.c.h.bf16 %v169
    %v726 = vunpack.c.l.bf16 %v170
    %v727 = vunpack.c.h.bf16 %v170
    %v728 = vunpack.c.l.bf16 %v171
    %v729 = vunpack.c.h.bf16 %v171
    %v730 = vunpack.c.l.bf16 %v172
    %v731 = vunpack.c.h.bf16 %v172
    %v732 = vunpack.c.l.bf16 %v173
    %v733 = vunpack.c.h.bf16 %v173
    %v734 = vunpack.c.l.bf16 %v174
    %v735 = vunpack.c.h.bf16 %v174
    %v736 = vunpack.c.l.bf16 %v175
    %v737 = vunpack.c.h.bf16 %v175
    %v738 = vunpack.c.l.bf16 %v176
    %v739 = vunpack.c.h.bf16 %v176
    %v740 = vunpack.c.l.bf16 %v177
    %v741 = vunpack.c.h.bf16 %v177
    %v742 = vunpack.c.l.bf16 %v178
    %v743 = vunpack.c.h.bf16 %v178
    %v744 = vunpack.c.l.bf16 %v179
    %v745 = vunpack.c.h.bf16 %v179
    %v746 = vunpack.c.l.bf16 %v180
    %v747 = vunpack.c.h.bf16 %v180
    %v748 = vunpack.c.l.bf16 %v181
    %v749 = vunpack.c.h.bf16 %v181
    %v750 = vunpack.c.l.bf16 %v182
    %v751 = vunpack.c.h.bf16 %v182
    %v752 = vunpack.c.l.bf16 %v183
    %v753 = vunpack.c.h.bf16 %v183
    %v754 = vunpack.c.l.bf16 %v184
    %v755 = vunpack.c.h.bf16 %v184
    %v756 = vunpack.c.l.bf16 %v185
    %v757 = vunpack.c.h.bf16 %v185
    %v758 = vunpack.c.l.bf16 %v186
    %v759 = vunpack.c.h.bf16 %v186
    %v760 = vunpack.c.l.bf16 %v187
    %v761 = vunpack.c.h.bf16 %v187
    %v762 = vunpack.c.l.bf16 %v188
    %v763 = vunpack.c.h.bf16 %v188
    %v764 = vunpack.c.l.bf16 %v189
    %v765 = vunpack.c.h.bf16 %v189
    %v766 = vunpack.c.l.bf16 %v190
    %v767 = vunpack.c.h.bf16 %v190
    %v768 = vunpack.c.l.bf16 %v191
    %v769 = vunpack.c.h.bf16 %v191
    %v770 = vunpack.c.l.bf16 %v192
    %v771 = vunpack.c.h.bf16 %v192
    %v772 = vunpack.c.l.bf16 %v193
    %v773 = vunpack.c.h.bf16 %v193
    %v774 = vunpack.c.l.bf16 %v194
    %v775 = vunpack.c.h.bf16 %v194
    %v776 = vunpack.c.l.bf16 %v195
    %v777 = vunpack.c.h.bf16 %v195
    %v778 = vunpack.c.l.bf16 %v196
    %v779 = vunpack.c.h.bf16 %v196
    %v780 = vunpack.c.l.bf16 %v197
    %v781 = vunpack.c.h.bf16 %v197
    %v782 = vunpack.c.l.bf16 %v198
    %v783 = vunpack.c.h.bf16 %v198
    %v784 = vunpack.c.l.bf16 %v199
    %v785 = vunpack.c.h.bf16 %v199
    %v786 = vunpack.c.l.bf16 %v200
    %v787 = vunpack.c.h.bf16 %v200
    %v788 = vunpack.c.l.bf16 %v201
    %v789 = vunpack.c.h.bf16 %v201
    %v790 = vunpack.c.l.bf16 %v202
    %v791 = vunpack.c.h.bf16 %v202
    %v792 = vunpack.c.l.bf16 %v203
    %v793 = vunpack.c.h.bf16 %v203
    %v794 = vunpack.c.l.bf16 %v204
    %v795 = vunpack.c.h.bf16 %v204
    %v796 = vunpack.c.l.bf16 %v205
    %v797 = vunpack.c.h.bf16 %v205
    %v798 = vunpack.c.l.bf16 %v206
    %v799 = vunpack.c.h.bf16 %v206
    %v800 = vunpack.c.l.bf16 %v207
    %v801 = vunpack.c.h.bf16 %v207
    %v802 = vunpack.c.l.bf16 %v208
    %v803 = vunpack.c.h.bf16 %v208
    %v804 = vunpack.c.l.bf16 %v209
    %v805 = vunpack.c.h.bf16 %v209
    %v806 = vunpack.c.l.bf16 %v210
    %v807 = vunpack.c.h.bf16 %v210
    %v808 = vunpack.c.l.bf16 %v211
    %v809 = vunpack.c.h.bf16 %v211
    %v810 = vunpack.c.l.bf16 %v212
    %v811 = vunpack.c.h.bf16 %v212
    %v812 = vunpack.c.l.bf16 %v213
    %v813 = vunpack.c.h.bf16 %v213
    %v814 = vunpack.c.l.bf16 %v214
    %v815 = vunpack.c.h.bf16 %v214
    %v816 = vunpack.c.l.bf16 %v215
    %v817 = vunpack.c.h.bf16 %v215
    %v818 = vunpack.c.l.bf16 %v216
    %v819 = vunpack.c.h.bf16 %v216
    %v820 = vunpack.c.l.bf16 %v217
    %v821 = vunpack.c.h.bf16 %v217
    %v822 = vunpack.c.l.bf16 %v218
    %v823 = vunpack.c.h.bf16 %v218
    %v824 = vunpack.c.l.bf16 %v219
    %v825 = vunpack.c.h.bf16 %v219
    %v826 = vunpack.c.l.bf16 %v220
    %v827 = vunpack.c.h.bf16 %v220
    %v828 = vunpack.c.l.bf16 %v221
    %v829 = vunpack.c.h.bf16 %v221
    %v830 = vunpack.c.l.bf16 %v222
    %v831 = vunpack.c.h.bf16 %v222
    %v832 = vunpack.c.l.bf16 %v223
    %v833 = vunpack.c.h.bf16 %v223
    %v834 = vunpack.c.l.bf16 %v224
    %v835 = vunpack.c.h.bf16 %v224
    %v836 = vunpack.c.l.bf16 %v225
    %v837 = vunpack.c.h.bf16 %v225
    %v838 = vunpack.c.l.bf16 %v226
    %v839 = vunpack.c.h.bf16 %v226
    %v840 = vunpack.c.l.bf16 %v227
    %v841 = vunpack.c.h.bf16 %v227
    %v842 = vunpack.c.l.bf16 %v228
    %v843 = vunpack.c.h.bf16 %v228
    %v844 = vunpack.c.l.bf16 %v229
    %v845 = vunpack.c.h.bf16 %v229
    %v846 = vunpack.c.l.bf16 %v230
    %v847 = vunpack.c.h.bf16 %v230
    %v848 = vunpack.c.l.bf16 %v231
    %v849 = vunpack.c.h.bf16 %v231
    %v850 = vunpack.c.l.bf16 %v232
    %v851 = vunpack.c.h.bf16 %v232
    %v852 = vunpack.c.l.bf16 %v233
    %v853 = vunpack.c.h.bf16 %v233
    %v854 = vunpack.c.l.bf16 %v234
    %v855 = vunpack.c.h.bf16 %v234
    %v856 = vunpack.c.l.bf16 %v235
    %v857 = vunpack.c.h.bf16 %v235
    %v858 = vunpack.c.l.bf16 %v236
    %v859 = vunpack.c.h.bf16 %v236
    %v860 = vunpack.c.l.bf16 %v237
    %v861 = vunpack.c.h.bf16 %v237
    %v862 = vunpack.c.l.bf16 %v238
    %v863 = vunpack.c.h.bf16 %v238
    %v864 = vunpack.c.l.bf16 %v239
    %v865 = vunpack.c.h.bf16 %v239
    %v866 = vunpack.c.l.bf16 %v240
    %v867 = vunpack.c.h.bf16 %v240
    %v868 = vunpack.c.l.bf16 %v241
    %v869 = vunpack.c.h.bf16 %v241
    %v870 = vunpack.c.l.bf16 %v242
    %v871 = vunpack.c.h.bf16 %v242
    %v872 = vunpack.c.l.bf16 %v243
    %v873 = vunpack.c.h.bf16 %v243
    %v874 = vunpack.c.l.bf16 %v244
    %v875 = vunpack.c.h.bf16 %v244
    %v876 = vunpack.c.l.bf16 %v245
    %v877 = vunpack.c.h.bf16 %v245
    %v878 = vunpack.c.l.bf16 %v246
    %v879 = vunpack.c.h.bf16 %v246
    %v880 = vunpack.c.l.bf16 %v247
    %v881 = vunpack.c.h.bf16 %v247
    %v882 = vunpack.c.l.bf16 %v248
    %v883 = vunpack.c.h.bf16 %v248
    %v884 = vunpack.c.l.bf16 %v249
    %v885 = vunpack.c.h.bf16 %v249
    %v886 = vunpack.c.l.bf16 %v250
    %v887 = vunpack.c.h.bf16 %v250
    %v888 = vunpack.c.l.bf16 %v251
    %v889 = vunpack.c.h.bf16 %v251
    %v890 = vunpack.c.l.bf16 %v252
    %v891 = vunpack.c.h.bf16 %v252
    %v892 = vunpack.c.l.bf16 %v253
    %v893 = vunpack.c.h.bf16 %v253
    %v894 = vunpack.c.l.bf16 %v254
    %v895 = vunpack.c.h.bf16 %v254
    %v896 = vunpack.c.l.bf16 %v255
    %v897 = vunpack.c.h.bf16 %v255
    %v898 = vunpack.c.l.bf16 %v256
    %v899 = vunpack.c.h.bf16 %v256
    %v900 = vunpack.c.l.bf16 %v257
    %v901 = vunpack.c.h.bf16 %v257
    %v902 = vunpack.c.l.bf16 %v258
    %v903 = vunpack.c.h.bf16 %v258
    %v904 = vunpack.c.l.bf16 %v259
    %v905 = vunpack.c.h.bf16 %v259
    %v906 = vunpack.c.l.bf16 %v260
    %v907 = vunpack.c.h.bf16 %v260
    %v908 = vunpack.c.l.bf16 %v261
    %v909 = vunpack.c.h.bf16 %v261
    %v910 = vunpack.c.l.bf16 %v262
    %v911 = vunpack.c.h.bf16 %v262
    %v912 = vunpack.c.l.bf16 %v263
    %v913 = vunpack.c.h.bf16 %v263
    %v914 = vunpack.c.l.bf16 %v264
    %v915 = vunpack.c.h.bf16 %v264
    %v916 = vunpack.c.l.bf16 %v265
    %v917 = vunpack.c.h.bf16 %v265
    %v918 = vunpack.c.l.bf16 %v266
    %v919 = vunpack.c.h.bf16 %v266
    %v920 = vunpack.c.l.bf16 %v267
    %v921 = vunpack.c.h.bf16 %v267
    %v922 = vunpack.c.l.bf16 %v268
    %v923 = vunpack.c.h.bf16 %v268
    %v924 = vunpack.c.l.bf16 %v269
    %v925 = vunpack.c.h.bf16 %v269
    %v926 = vunpack.c.l.bf16 %v270
    %v927 = vunpack.c.h.bf16 %v270
    %v928 = vunpack.c.l.bf16 %v271
    %v929 = vunpack.c.h.bf16 %v271
    %v930 = vunpack.c.l.bf16 %v272
    %v931 = vunpack.c.h.bf16 %v272
    %v932 = vunpack.c.l.bf16 %v273
    %v933 = vunpack.c.h.bf16 %v273
    %v934 = vunpack.c.l.bf16 %v274
    %v935 = vunpack.c.h.bf16 %v274
    %v936 = vunpack.c.l.bf16 %v275
    %v937 = vunpack.c.h.bf16 %v275
    %v938 = vunpack.c.l.bf16 %v276
    %v939 = vunpack.c.h.bf16 %v276
    %v940 = vunpack.c.l.bf16 %v277
    %v941 = vunpack.c.h.bf16 %v277
    %v942 = vunpack.c.l.bf16 %v278
    %v943 = vunpack.c.h.bf16 %v278
    %v944 = vunpack.c.l.bf16 %v279
    %v945 = vunpack.c.h.bf16 %v279
    %v946 = vunpack.c.l.bf16 %v280
    %v947 = vunpack.c.h.bf16 %v280
    %v948 = vunpack.c.l.bf16 %v281
    %v949 = vunpack.c.h.bf16 %v281
    %v950 = vunpack.c.l.bf16 %v282
    %v951 = vunpack.c.h.bf16 %v282
    %v952 = vunpack.c.l.bf16 %v283
    %v953 = vunpack.c.h.bf16 %v283
    %v954 = vunpack.c.l.bf16 %v284
    %v955 = vunpack.c.h.bf16 %v284
    %v956 = vunpack.c.l.bf16 %v285
    %v957 = vunpack.c.h.bf16 %v285
    %v958 = vunpack.c.l.bf16 %v286
    %v959 = vunpack.c.h.bf16 %v286
    %v960 = vunpack.c.l.bf16 %v287
    %v961 = vunpack.c.h.bf16 %v287
    %v962 = vunpack.c.l.bf16 %v288
    %v963 = vunpack.c.h.bf16 %v288
    %v964 = vunpack.c.l.bf16 %v289
    %v965 = vunpack.c.h.bf16 %v289
    %v966 = vunpack.c.l.bf16 %v290
    %v967 = vunpack.c.h.bf16 %v290
    %v968 = vunpack.c.l.bf16 %v291
    %v969 = vunpack.c.h.bf16 %v291
    %v970 = vunpack.c.l.bf16 %v292
    %v971 = vunpack.c.h.bf16 %v292
    %v972 = vunpack.c.l.bf16 %v293
    %v973 = vunpack.c.h.bf16 %v293
    %v974 = vunpack.c.l.bf16 %v294
    %v975 = vunpack.c.h.bf16 %v294
    %v976 = vunpack.c.l.bf16 %v295
    %v977 = vunpack.c.h.bf16 %v295
    %v978 = vunpack.c.l.bf16 %v296
    %v979 = vunpack.c.h.bf16 %v296
    %v980 = vunpack.c.l.bf16 %v297
    %v981 = vunpack.c.h.bf16 %v297
    %v982 = vunpack.c.l.bf16 %v298
    %v983 = vunpack.c.h.bf16 %v298
    %v984 = vunpack.c.l.bf16 %v299
    %v985 = vunpack.c.h.bf16 %v299
    %v986 = vunpack.c.l.bf16 %v300
    %v987 = vunpack.c.h.bf16 %v300
    %v988 = vunpack.c.l.bf16 %v301
    %v989 = vunpack.c.h.bf16 %v301
    %v990 = vunpack.c.l.bf16 %v302
    %v991 = vunpack.c.h.bf16 %v302
    %v992 = vunpack.c.l.bf16 %v303
    %v993 = vunpack.c.h.bf16 %v303
    %v994 = vunpack.c.l.bf16 %v304
    %v995 = vunpack.c.h.bf16 %v304
    %v996 = vunpack.c.l.bf16 %v305
    %v997 = vunpack.c.h.bf16 %v305
    %v998 = vunpack.c.l.bf16 %v306
    %v999 = vunpack.c.h.bf16 %v306
    %v1000 = vunpack.c.l.bf16 %v307
    %v1001 = vunpack.c.h.bf16 %v307
    %v1002 = vunpack.c.l.bf16 %v308
    %v1003 = vunpack.c.h.bf16 %v308
    %v1004 = vunpack.c.l.bf16 %v309
    %v1005 = vunpack.c.h.bf16 %v309
    %v1006 = vunpack.c.l.bf16 %v310
    %v1007 = vunpack.c.h.bf16 %v310
    %v1008 = vunpack.c.l.bf16 %v311
    %v1009 = vunpack.c.h.bf16 %v311
    %v1010 = vunpack.c.l.bf16 %v312
    %v1011 = vunpack.c.h.bf16 %v312
    %v1012 = vunpack.c.l.bf16 %v313
    %v1013 = vunpack.c.h.bf16 %v313
    %v1014 = vunpack.c.l.bf16 %v314
    %v1015 = vunpack.c.h.bf16 %v314
    %v1016 = vunpack.c.l.bf16 %v315
    %v1017 = vunpack.c.h.bf16 %v315
    %v1018 = vunpack.c.l.bf16 %v316
    %v1019 = vunpack.c.h.bf16 %v316
    %v1020 = vunpack.c.l.bf16 %v317
    %v1021 = vunpack.c.h.bf16 %v317
    %v1022 = vunpack.c.l.bf16 %v318
    %v1023 = vunpack.c.h.bf16 %v318
    %v1024 = vunpack.c.l.bf16 %v319
    %v1025 = vunpack.c.h.bf16 %v319
    %v1026 = vunpack.c.l.bf16 %v320
    %v1027 = vunpack.c.h.bf16 %v320
    %v1028 = vunpack.c.l.bf16 %v321
    %v1029 = vunpack.c.h.bf16 %v321
    %v1030 = vunpack.c.l.bf16 %v322
    %v1031 = vunpack.c.h.bf16 %v322
    %v1032 = vunpack.c.l.bf16 %v323
    %v1033 = vunpack.c.h.bf16 %v323
    %v1034 = vunpack.c.l.bf16 %v324
    %v1035 = vunpack.c.h.bf16 %v324
    %v1036 = vunpack.c.l.bf16 %v325
    %v1037 = vunpack.c.h.bf16 %v325
    %v1038 = vunpack.c.l.bf16 %v326
    %v1039 = vunpack.c.h.bf16 %v326
    %v1040 = vunpack.c.l.bf16 %v327
    %v1041 = vunpack.c.h.bf16 %v327
    %v1042 = vunpack.c.l.bf16 %v328
    %v1043 = vunpack.c.h.bf16 %v328
    %v1044 = vunpack.c.l.bf16 %v329
    %v1045 = vunpack.c.h.bf16 %v329
    %v1046 = vunpack.c.l.bf16 %v330
    %v1047 = vunpack.c.h.bf16 %v330
    %v1048 = vunpack.c.l.bf16 %v331
    %v1049 = vunpack.c.h.bf16 %v331
    %v1050 = vunpack.c.l.bf16 %v332
    %v1051 = vunpack.c.h.bf16 %v332
    %v1052 = vunpack.c.l.bf16 %v333
    %v1053 = vunpack.c.h.bf16 %v333
    %v1054 = vunpack.c.l.bf16 %v334
    %v1055 = vunpack.c.h.bf16 %v334
    %v1056 = vunpack.c.l.bf16 %v335
    %v1057 = vunpack.c.h.bf16 %v335
    %v1058 = vunpack.c.l.bf16 %v336
    %v1059 = vunpack.c.h.bf16 %v336
    %v1060 = vunpack.c.l.bf16 %v337
    %v1061 = vunpack.c.h.bf16 %v337
    %v1062 = vunpack.c.l.bf16 %v338
    %v1063 = vunpack.c.h.bf16 %v338
    %v1064 = vunpack.c.l.bf16 %v339
    %v1065 = vunpack.c.h.bf16 %v339
    %v1066 = vunpack.c.l.bf16 %v340
    %v1067 = vunpack.c.h.bf16 %v340
    %v1068 = vunpack.c.l.bf16 %v341
    %v1069 = vunpack.c.h.bf16 %v341
    %v1070 = vunpack.c.l.bf16 %v342
    %v1071 = vunpack.c.h.bf16 %v342
    %v1072 = vunpack.c.l.bf16 %v343
    %v1073 = vunpack.c.h.bf16 %v343
    %v1074 = vunpack.c.l.bf16 %v344
    %v1075 = vunpack.c.h.bf16 %v344
    %v1076 = vunpack.c.l.bf16 %v345
    %v1077 = vunpack.c.h.bf16 %v345
    %v1078 = vunpack.c.l.bf16 %v346
    %v1079 = vunpack.c.h.bf16 %v346
    %v1080 = vunpack.c.l.bf16 %v347
    %v1081 = vunpack.c.h.bf16 %v347
    %v1082 = vunpack.c.l.bf16 %v348
    %v1083 = vunpack.c.h.bf16 %v348
    %v1084 = vunpack.c.l.bf16 %v349
    %v1085 = vunpack.c.h.bf16 %v349
    %v1086 = vunpack.c.l.bf16 %v350
    %v1087 = vunpack.c.h.bf16 %v350
    %v1088 = vunpack.c.l.bf16 %v351
    %v1089 = vunpack.c.h.bf16 %v351
    %v1090 = vunpack.c.l.bf16 %v352
    %v1091 = vunpack.c.h.bf16 %v352
    %v1092 = vunpack.c.l.bf16 %v353
    %v1093 = vunpack.c.h.bf16 %v353
    %v1094 = vunpack.c.l.bf16 %v354
    %v1095 = vunpack.c.h.bf16 %v354
    %v1096 = vunpack.c.l.bf16 %v355
    %v1097 = vunpack.c.h.bf16 %v355
    %v1098 = vunpack.c.l.bf16 %v356
    %v1099 = vunpack.c.h.bf16 %v356
    %v1100 = vunpack.c.l.bf16 %v357
    %v1101 = vunpack.c.h.bf16 %v357
    %v1102 = vunpack.c.l.bf16 %v358
    %v1103 = vunpack.c.h.bf16 %v358
    %v1104 = vunpack.c.l.bf16 %v359
    %v1105 = vunpack.c.h.bf16 %v359
    %v1106 = vunpack.c.l.bf16 %v360
    %v1107 = vunpack.c.h.bf16 %v360
    %v1108 = vunpack.c.l.bf16 %v361
    %v1109 = vunpack.c.h.bf16 %v361
    %v1110 = vunpack.c.l.bf16 %v362
    %v1111 = vunpack.c.h.bf16 %v362
    %v1112 = vunpack.c.l.bf16 %v363
    %v1113 = vunpack.c.h.bf16 %v363
    %v1114 = vunpack.c.l.bf16 %v364
    %v1115 = vunpack.c.h.bf16 %v364
    %v1116 = vunpack.c.l.bf16 %v365
    %v1117 = vunpack.c.h.bf16 %v365
    %v1118 = vunpack.c.l.bf16 %v366
    %v1119 = vunpack.c.h.bf16 %v366
    %v1120 = vunpack.c.l.bf16 %v367
    %v1121 = vunpack.c.h.bf16 %v367
    %v1122 = vunpack.c.l.bf16 %v368
    %v1123 = vunpack.c.h.bf16 %v368
    %v1124 = vunpack.c.l.bf16 %v369
    %v1125 = vunpack.c.h.bf16 %v369
    %v1126 = vunpack.c.l.bf16 %v370
    %v1127 = vunpack.c.h.bf16 %v370
    %v1128 = vunpack.c.l.bf16 %v371
    %v1129 = vunpack.c.h.bf16 %v371
    %v1130 = vunpack.c.l.bf16 %v372
    %v1131 = vunpack.c.h.bf16 %v372
    %v1132 = vunpack.c.l.bf16 %v373
    %v1133 = vunpack.c.h.bf16 %v373
    %v1134 = vunpack.c.l.bf16 %v374
    %v1135 = vunpack.c.h.bf16 %v374
    %v1136 = vunpack.c.l.bf16 %v375
    %v1137 = vunpack.c.h.bf16 %v375
    %v1138 = vunpack.c.l.bf16 %v376
    %v1139 = vunpack.c.h.bf16 %v376
    %v1140 = vunpack.c.l.bf16 %v377
    %v1141 = vunpack.c.h.bf16 %v377
    %v1142 = vunpack.c.l.bf16 %v378
    %v1143 = vunpack.c.h.bf16 %v378
    %v1144 = vunpack.c.l.bf16 %v379
    %v1145 = vunpack.c.h.bf16 %v379
    %v1146 = vunpack.c.l.bf16 %v380
    %v1147 = vunpack.c.h.bf16 %v380
    %v1148 = vunpack.c.l.bf16 %v381
    %v1149 = vunpack.c.h.bf16 %v381
    %v1150 = vunpack.c.l.bf16 %v382
    %v1151 = vunpack.c.h.bf16 %v382
    %v1152 = vunpack.c.l.bf16 %v383
    %v1153 = vunpack.c.h.bf16 %v383
    %v1154 = vunpack.c.l.bf16 %v384
    %v1155 = vunpack.c.h.bf16 %v384
    %v1156 = vunpack.c.l.bf16 %v385
    %v1157 = vunpack.c.h.bf16 %v385
    %v1158 = vunpack.c.l.bf16 %v386
    %v1159 = vunpack.c.h.bf16 %v386
    %v1160 = vunpack.c.l.bf16 %v387
    %v1161 = vunpack.c.h.bf16 %v387
    %v1162 = vunpack.c.l.bf16 %v388
    %v1163 = vunpack.c.h.bf16 %v388
    %v1164 = vunpack.c.l.bf16 %v389
    %v1165 = vunpack.c.h.bf16 %v389
    %v1166 = vunpack.c.l.bf16 %v390
    %v1167 = vunpack.c.h.bf16 %v390
    %v1168 = vunpack.c.l.bf16 %v391
    %v1169 = vunpack.c.h.bf16 %v391
    %v1170 = vunpack.c.l.bf16 %v392
    %v1171 = vunpack.c.h.bf16 %v392
    %v1172 = vunpack.c.l.bf16 %v393
    %v1173 = vunpack.c.h.bf16 %v393
    %v1174 = vunpack.c.l.bf16 %v394
    %v1175 = vunpack.c.h.bf16 %v394
    %v1176 = vunpack.c.l.bf16 %v395
    %v1177 = vunpack.c.h.bf16 %v395
    %v1178 = vunpack.c.l.bf16 %v396
    %v1179 = vunpack.c.h.bf16 %v396
    %v1180 = vunpack.c.l.bf16 %v397
    %v1181 = vunpack.c.h.bf16 %v397
    %v1182 = vunpack.c.l.bf16 %v398
    %v1183 = vunpack.c.h.bf16 %v398
    %v1184 = vunpack.c.l.bf16 %v399
    %v1185 = vunpack.c.h.bf16 %v399
    %v1186 = vunpack.c.l.bf16 %v400
    %v1187 = vunpack.c.h.bf16 %v400
    %v1188 = vunpack.c.l.bf16 %v401
    %v1189 = vunpack.c.h.bf16 %v401
    %v1190 = vunpack.c.l.bf16 %v402
    %v1191 = vunpack.c.h.bf16 %v402
    %v1192 = vunpack.c.l.bf16 %v403
    %v1193 = vunpack.c.h.bf16 %v403
    %v1194 = vunpack.c.l.bf16 %v404
    %v1195 = vunpack.c.h.bf16 %v404
    %v1196 = vunpack.c.l.bf16 %v405
    %v1197 = vunpack.c.h.bf16 %v405
    %v1198 = vunpack.c.l.bf16 %v406
    %v1199 = vunpack.c.h.bf16 %v406
    %v1200 = vunpack.c.l.bf16 %v407
    %v1201 = vunpack.c.h.bf16 %v407
    %v1202 = vunpack.c.l.bf16 %v408
    %v1203 = vunpack.c.h.bf16 %v408
    %v1204 = vunpack.c.l.bf16 %v409
    %v1205 = vunpack.c.h.bf16 %v409
    %v1206 = vunpack.c.l.bf16 %v410
    %v1207 = vunpack.c.h.bf16 %v410
    %v1208 = vunpack.c.l.bf16 %v411
    %v1209 = vunpack.c.h.bf16 %v411
    %v1210 = vunpack.c.l.bf16 %v412
    %v1211 = vunpack.c.h.bf16 %v412
    %v1212 = vunpack.c.l.bf16 %v413
    %v1213 = vunpack.c.h.bf16 %v413
    %v1214 = vunpack.c.l.bf16 %v414
    %v1215 = vunpack.c.h.bf16 %v414
    %v1216 = vunpack.c.l.bf16 %v415
    %v1217 = vunpack.c.h.bf16 %v415
    %v1218 = vunpack.c.l.bf16 %v416
    %v1219 = vunpack.c.h.bf16 %v416
    %v1220 = vunpack.c.l.bf16 %v417
    %v1221 = vunpack.c.h.bf16 %v417
    %v1222 = vunpack.c.l.bf16 %v418
    %v1223 = vunpack.c.h.bf16 %v418
    %v1224 = vunpack.c.l.bf16 %v419
    %v1225 = vunpack.c.h.bf16 %v419
    %v1226 = vunpack.c.l.bf16 %v420
    %v1227 = vunpack.c.h.bf16 %v420
    %v1228 = vunpack.c.l.bf16 %v421
    %v1229 = vunpack.c.h.bf16 %v421
    %v1230 = vunpack.c.l.bf16 %v422
    %v1231 = vunpack.c.h.bf16 %v422
    %v1232 = vunpack.c.l.bf16 %v423
    %v1233 = vunpack.c.h.bf16 %v423
    %v1234 = vunpack.c.l.bf16 %v424
    %v1235 = vunpack.c.h.bf16 %v424
    %v1236 = vunpack.c.l.bf16 %v425
    %v1237 = vunpack.c.h.bf16 %v425
    %v1238 = vunpack.c.l.bf16 %v426
    %v1239 = vunpack.c.h.bf16 %v426
    %v1240 = vunpack.c.l.bf16 %v427
    %v1241 = vunpack.c.h.bf16 %v427
    %v1242 = vunpack.c.l.bf16 %v428
    %v1243 = vunpack.c.h.bf16 %v428
    %v1244 = vunpack.c.l.bf16 %v429
    %v1245 = vunpack.c.h.bf16 %v429
    %v1246 = vunpack.c.l.bf16 %v430
    %v1247 = vunpack.c.h.bf16 %v430
    %v1248 = vunpack.c.l.bf16 %v431
    %v1249 = vunpack.c.h.bf16 %v431
    %v1250 = vunpack.c.l.bf16 %v432
    %v1251 = vunpack.c.h.bf16 %v432
    %v1252 = vunpack.c.l.bf16 %v433
    %v1253 = vunpack.c.h.bf16 %v433
    %v1254 = vunpack.c.l.bf16 %v434
    %v1255 = vunpack.c.h.bf16 %v434
    %v1256 = vunpack.c.l.bf16 %v435
    %v1257 = vunpack.c.h.bf16 %v435
    %v1258 = vunpack.c.l.bf16 %v436
    %v1259 = vunpack.c.h.bf16 %v436
    %v1260 = vunpack.c.l.bf16 %v437
    %v1261 = vunpack.c.h.bf16 %v437
    %v1262 = vunpack.c.l.bf16 %v438
    %v1263 = vunpack.c.h.bf16 %v438
    %v1264 = vunpack.c.l.bf16 %v439
    %v1265 = vunpack.c.h.bf16 %v439
    %v1266 = vunpack.c.l.bf16 %v440
    %v1267 = vunpack.c.h.bf16 %v440
    %v1268 = vunpack.c.l.bf16 %v441
    %v1269 = vunpack.c.h.bf16 %v441
    %v1270 = vunpack.c.l.bf16 %v442
    %v1271 = vunpack.c.h.bf16 %v442
    %v1272 = vunpack.c.l.bf16 %v443
    %v1273 = vunpack.c.h.bf16 %v443
    %v1274 = vunpack.c.l.bf16 %v444
    %v1275 = vunpack.c.h.bf16 %v444
    %v1276 = vunpack.c.l.bf16 %v445
    %v1277 = vunpack.c.h.bf16 %v445
    %v1278 = vunpack.c.l.bf16 %v446
    %v1279 = vunpack.c.h.bf16 %v446
    %v1280 = vunpack.c.l.bf16 %v447
    %v1281 = vunpack.c.h.bf16 %v447
    %v1282 = vunpack.c.l.bf16 %v448
    %v1283 = vunpack.c.h.bf16 %v448
    %v1284 = vunpack.c.l.bf16 %v449
    %v1285 = vunpack.c.h.bf16 %v449
    %v1286 = vunpack.c.l.bf16 %v450
    %v1287 = vunpack.c.h.bf16 %v450
    %v1288 = vunpack.c.l.bf16 %v451
    %v1289 = vunpack.c.h.bf16 %v451
    %v1290 = vunpack.c.l.bf16 %v452
    %v1291 = vunpack.c.h.bf16 %v452
    %v1292 = vunpack.c.l.bf16 %v453
    %v1293 = vunpack.c.h.bf16 %v453
    %v1294 = vunpack.c.l.bf16 %v454
    %v1295 = vunpack.c.h.bf16 %v454
    %v1296 = vunpack.c.l.bf16 %v455
    %v1297 = vunpack.c.h.bf16 %v455
    %v1298 = vunpack.c.l.bf16 %v456
    %v1299 = vunpack.c.h.bf16 %v456
    %v1300 = vunpack.c.l.bf16 %v457
    %v1301 = vunpack.c.h.bf16 %v457
    %v1302 = vunpack.c.l.bf16 %v458
    %v1303 = vunpack.c.h.bf16 %v458
    %v1304 = vunpack.c.l.bf16 %v459
    %v1305 = vunpack.c.h.bf16 %v459
    %v1306 = vunpack.c.l.bf16 %v460
    %v1307 = vunpack.c.h.bf16 %v460
    %v1308 = vunpack.c.l.bf16 %v461
    %v1309 = vunpack.c.h.bf16 %v461
    %v1310 = vunpack.c.l.bf16 %v462
    %v1311 = vunpack.c.h.bf16 %v462
    %v1312 = vunpack.c.l.bf16 %v463
    %v1313 = vunpack.c.h.bf16 %v463
    %v1314 = vunpack.c.l.bf16 %v464
    %v1315 = vunpack.c.h.bf16 %v464
    %v1316 = vunpack.c.l.bf16 %v465
    %v1317 = vunpack.c.h.bf16 %v465
    %v1318 = vunpack.c.l.bf16 %v466
    %v1319 = vunpack.c.h.bf16 %v466
    %v1320 = vunpack.c.l.bf16 %v467
    %v1321 = vunpack.c.h.bf16 %v467
    %v1322 = vunpack.c.l.bf16 %v468
    %v1323 = vunpack.c.h.bf16 %v468
    %v1324 = vunpack.c.l.bf16 %v469
    %v1325 = vunpack.c.h.bf16 %v469
    %v1326 = vunpack.c.l.bf16 %v470
    %v1327 = vunpack.c.h.bf16 %v470
    %v1328 = vunpack.c.l.bf16 %v471
    %v1329 = vunpack.c.h.bf16 %v471
    %v1330 = vunpack.c.l.bf16 %v472
    %v1331 = vunpack.c.h.bf16 %v472
    %v1332 = vunpack.c.l.bf16 %v473
    %v1333 = vunpack.c.h.bf16 %v473
    %v1334 = vunpack.c.l.bf16 %v474
    %v1335 = vunpack.c.h.bf16 %v474
    %v1336 = vunpack.c.l.bf16 %v475
    %v1337 = vunpack.c.h.bf16 %v475
    %v1338 = vunpack.c.l.bf16 %v476
    %v1339 = vunpack.c.h.bf16 %v476
    %v1340 = vunpack.c.l.bf16 %v477
    %v1341 = vunpack.c.h.bf16 %v477
    %v1342 = vunpack.c.l.bf16 %v478
    %v1343 = vunpack.c.h.bf16 %v478
    %v1344 = vunpack.c.l.bf16 %v479
    %v1345 = vunpack.c.h.bf16 %v479
    %v1346 = vunpack.c.l.bf16 %v480
    %v1347 = vunpack.c.h.bf16 %v480
    %v1348 = vunpack.c.l.bf16 %v481
    %v1349 = vunpack.c.h.bf16 %v481
    %v1350 = vunpack.c.l.bf16 %v482
    %v1351 = vunpack.c.h.bf16 %v482
    %v1352 = vunpack.c.l.bf16 %v483
    %v1353 = vunpack.c.h.bf16 %v483
    %v1354 = vunpack.c.l.bf16 %v484
    %v1355 = vunpack.c.h.bf16 %v484
    %v1356 = vunpack.c.l.bf16 %v485
    %v1357 = vunpack.c.h.bf16 %v485
    %v1358 = vunpack.c.l.bf16 %v486
    %v1359 = vunpack.c.h.bf16 %v486
    %v1360 = vunpack.c.l.bf16 %v487
    %v1361 = vunpack.c.h.bf16 %v487
    %v1362 = vunpack.c.l.bf16 %v488
    %v1363 = vunpack.c.h.bf16 %v488
    %v1364 = vunpack.c.l.bf16 %v489
    %v1365 = vunpack.c.h.bf16 %v489
    %v1366 = vunpack.c.l.bf16 %v490
    %v1367 = vunpack.c.h.bf16 %v490
    %v1368 = vunpack.c.l.bf16 %v491
    %v1369 = vunpack.c.h.bf16 %v491
    %v1370 = vunpack.c.l.bf16 %v492
    %v1371 = vunpack.c.h.bf16 %v492
    %v1372 = vunpack.c.l.bf16 %v493
    %v1373 = vunpack.c.h.bf16 %v493
    %v1374 = vunpack.c.l.bf16 %v494
    %v1375 = vunpack.c.h.bf16 %v494
    %v1376 = vunpack.c.l.bf16 %v495
    %v1377 = vunpack.c.h.bf16 %v495
    %v1378 = vunpack.c.l.bf16 %v496
    %v1379 = vunpack.c.h.bf16 %v496
    %v1380 = vunpack.c.l.bf16 %v497
    %v1381 = vunpack.c.h.bf16 %v497
    %v1382 = vunpack.c.l.bf16 %v498
    %v1383 = vunpack.c.h.bf16 %v498
    %v1384 = vunpack.c.l.bf16 %v499
    %v1385 = vunpack.c.h.bf16 %v499
    %v1386 = vunpack.c.l.bf16 %v500
    %v1387 = vunpack.c.h.bf16 %v500
    %v1388 = vunpack.c.l.bf16 %v501
    %v1389 = vunpack.c.h.bf16 %v501
    %v1390 = vunpack.c.l.bf16 %v502
    %v1391 = vunpack.c.h.bf16 %v502
    %v1392 = vunpack.c.l.bf16 %v503
    %v1393 = vunpack.c.h.bf16 %v503
    %v1394 = vunpack.c.l.bf16 %v504
    %v1395 = vunpack.c.h.bf16 %v504
    %v1396 = vunpack.c.l.bf16 %v505
    %v1397 = vunpack.c.h.bf16 %v505
    %v1398 = vunpack.c.l.bf16 %v506
    %v1399 = vunpack.c.h.bf16 %v506
    %v1400 = vunpack.c.l.bf16 %v507
    %v1401 = vunpack.c.h.bf16 %v507
    %v1402 = vunpack.c.l.bf16 %v508
    %v1403 = vunpack.c.h.bf16 %v508
    %v1404 = vunpack.c.l.bf16 %v509
    %v1405 = vunpack.c.h.bf16 %v509
    %v1406 = vunpack.c.l.bf16 %v510
    %v1407 = vunpack.c.h.bf16 %v510
    %v1408 = vunpack.c.l.bf16 %v511
    %v1409 = vunpack.c.h.bf16 %v511
    %v1410 = vunpack.c.l.bf16 %v512
    %v1411 = vunpack.c.h.bf16 %v512
    %v1412 = vunpack.c.l.bf16 %v513
    %v1413 = vunpack.c.h.bf16 %v513
    %v1414 = vunpack.c.l.bf16 %v514
    %v1415 = vunpack.c.h.bf16 %v514
    %v1416 = vunpack.c.l.bf16 %v515
    %v1417 = vunpack.c.h.bf16 %v515
    %v1418 = vunpack.c.l.bf16 %v516
    %v1419 = vunpack.c.h.bf16 %v516
    %v1420 = vunpack.c.l.bf16 %v517
    %v1421 = vunpack.c.h.bf16 %v517
    %v1422 = vunpack.c.l.bf16 %v518
    %v1423 = vunpack.c.h.bf16 %v518
    %v1424 = vunpack.c.l.bf16 %v519
    %v1425 = vunpack.c.h.bf16 %v519
    %v1426 = vunpack.c.l.bf16 %v520
    %v1427 = vunpack.c.h.bf16 %v520
    %v1428 = vunpack.c.l.bf16 %v521
    %v1429 = vunpack.c.h.bf16 %v521
    %v1430 = vunpack.c.l.bf16 %v522
    %v1431 = vunpack.c.h.bf16 %v522
    %v1432 = vunpack.c.l.bf16 %v523
    %v1433 = vunpack.c.h.bf16 %v523
    %v1434 = vunpack.c.l.bf16 %v524
    %v1435 = vunpack.c.h.bf16 %v524
    %v1436 = vunpack.c.l.bf16 %v525
    %v1437 = vunpack.c.h.bf16 %v525
    %v1438 = vunpack.c.l.bf16 %v526
    %v1439 = vunpack.c.h.bf16 %v526
    %v1440 = vunpack.c.l.bf16 %v527
    %v1441 = vunpack.c.h.bf16 %v527
    %v1442 = vunpack.c.l.bf16 %v528
    %v1443 = vunpack.c.h.bf16 %v528
    %v1444 = vunpack.c.l.bf16 %v529
    %v1445 = vunpack.c.h.bf16 %v529
    %v1446 = vunpack.c.l.bf16 %v530
    %v1447 = vunpack.c.h.bf16 %v530
    %v1448 = vunpack.c.l.bf16 %v531
    %v1449 = vunpack.c.h.bf16 %v531
    %v1450 = vunpack.c.l.bf16 %v532
    %v1451 = vunpack.c.h.bf16 %v532
    %v1452 = vunpack.c.l.bf16 %v533
    %v1453 = vunpack.c.h.bf16 %v533
    %v1454 = vunpack.c.l.bf16 %v534
    %v1455 = vunpack.c.h.bf16 %v534
    %v1456 = vunpack.c.l.bf16 %v535
    %v1457 = vunpack.c.h.bf16 %v535
    %v1458 = vunpack.c.l.bf16 %v536
    %v1459 = vunpack.c.h.bf16 %v536
    %v1460 = vunpack.c.l.bf16 %v537
    %v1461 = vunpack.c.h.bf16 %v537
    %v1462 = vunpack.c.l.bf16 %v538
    %v1463 = vunpack.c.h.bf16 %v538
    %v1464 = vunpack.c.l.bf16 %v539
    %v1465 = vunpack.c.h.bf16 %v539
    %v1466 = vunpack.c.l.bf16 %v540
    %v1467 = vunpack.c.h.bf16 %v540
    %v1468 = vunpack.c.l.bf16 %v541
    %v1469 = vunpack.c.h.bf16 %v541
    %v1470 = vunpack.c.l.bf16 %v542
    %v1471 = vunpack.c.h.bf16 %v542
    %v1472 = vunpack.c.l.bf16 %v543
    %v1473 = vunpack.c.h.bf16 %v543
    %v1474 = vunpack.c.l.bf16 %v544
    %v1475 = vunpack.c.h.bf16 %v544
    %v1476 = vunpack.c.l.bf16 %v545
    %v1477 = vunpack.c.h.bf16 %v545
    %v1478 = vunpack.c.l.bf16 %v546
    %v1479 = vunpack.c.h.bf16 %v546
    %v1480 = vunpack.c.l.bf16 %v547
    %v1481 = vunpack.c.h.bf16 %v547
    %v1482 = vunpack.c.l.bf16 %v548
    %v1483 = vunpack.c.h.bf16 %v548
    %v1484 = vunpack.c.l.bf16 %v549
    %v1485 = vunpack.c.h.bf16 %v549
    %v1486 = vunpack.c.l.bf16 %v550
    %v1487 = vunpack.c.h.bf16 %v550
    %v1488 = vunpack.c.l.bf16 %v551
    %v1489 = vunpack.c.h.bf16 %v551
    %v1490 = vunpack.c.l.bf16 %v552
    %v1491 = vunpack.c.h.bf16 %v552
    %v1492 = vunpack.c.l.bf16 %v553
    %v1493 = vunpack.c.h.bf16 %v553
    %v1494 = vunpack.c.l.bf16 %v554
    %v1495 = vunpack.c.h.bf16 %v554
    %v1496 = vunpack.c.l.bf16 %v555
    %v1497 = vunpack.c.h.bf16 %v555
    %v1498 = vunpack.c.l.bf16 %v556
    %v1499 = vunpack.c.h.bf16 %v556
    %v1500 = vunpack.c.l.bf16 %v557
    %v1501 = vunpack.c.h.bf16 %v557
    %v1502 = vunpack.c.l.bf16 %v558
    %v1503 = vunpack.c.h.bf16 %v558
    %v1504 = vunpack.c.l.bf16 %v559
    %v1505 = vunpack.c.h.bf16 %v559
    %v1506 = vunpack.c.l.bf16 %v560
    %v1507 = vunpack.c.h.bf16 %v560
    %v1508 = vunpack.c.l.bf16 %v561
    %v1509 = vunpack.c.h.bf16 %v561
    %v1510 = vunpack.c.l.bf16 %v562
    %v1511 = vunpack.c.h.bf16 %v562
    %v1512 = vunpack.c.l.bf16 %v563
    %v1513 = vunpack.c.h.bf16 %v563
    %v1514 = vunpack.c.l.bf16 %v564
    %v1515 = vunpack.c.h.bf16 %v564
    %v1516 = vunpack.c.l.bf16 %v565
    %v1517 = vunpack.c.h.bf16 %v565
    %v1518 = vunpack.c.l.bf16 %v566
    %v1519 = vunpack.c.h.bf16 %v566
    %v1520 = vunpack.c.l.bf16 %v567
    %v1521 = vunpack.c.h.bf16 %v567
    %v1522 = vunpack.c.l.bf16 %v568
    %v1523 = vunpack.c.h.bf16 %v568
    %v1524 = vunpack.c.l.bf16 %v569
    %v1525 = vunpack.c.h.bf16 %v569
    %v1526 = vunpack.c.l.bf16 %v570
    %v1527 = vunpack.c.h.bf16 %v570
    %v1528 = vunpack.c.l.bf16 %v571
    %v1529 = vunpack.c.h.bf16 %v571
    %v1530 = vunpack.c.l.bf16 %v572
    %v1531 = vunpack.c.h.bf16 %v572
    %v1532 = vunpack.c.l.bf16 %v573
    %v1533 = vunpack.c.h.bf16 %v573
    %v1534 = vunpack.c.l.bf16 %v574
    %v1535 = vunpack.c.h.bf16 %v574
    %v1536 = vunpack.c.l.bf16 %v575
    %v1537 = vunpack.c.h.bf16 %v575
    %v1538 = vunpack.c.l.bf16 %v576
    %v1539 = vunpack.c.h.bf16 %v576
    %v1540 = vunpack.c.l.bf16 %v577
    %v1541 = vunpack.c.h.bf16 %v577
    %v1542 = vunpack.c.l.bf16 %v578
    %v1543 = vunpack.c.h.bf16 %v578
    %v1544 = vunpack.c.l.bf16 %v579
    %v1545 = vunpack.c.h.bf16 %v579
    %v1546 = vunpack.c.l.bf16 %v580
    %v1547 = vunpack.c.h.bf16 %v580
    %v1548 = vunpack.c.l.bf16 %v581
    %v1549 = vunpack.c.h.bf16 %v581
    %v1550 = vunpack.c.l.bf16 %v582
    %v1551 = vunpack.c.h.bf16 %v582
    %v1552 = vunpack.c.l.bf16 %v583
    %v1553 = vunpack.c.h.bf16 %v583
    %v1554 = vunpack.c.l.bf16 %v584
    %v1555 = vunpack.c.h.bf16 %v584
    %v1556 = vunpack.c.l.bf16 %v585
    %v1557 = vunpack.c.h.bf16 %v585
    %v1558 = vunpack.c.l.bf16 %v586
    %v1559 = vunpack.c.h.bf16 %v586
    %v1560 = vunpack.c.l.bf16 %v587
    %v1561 = vunpack.c.h.bf16 %v587
    %v1562 = vunpack.c.l.bf16 %v588
    %v1563 = vunpack.c.h.bf16 %v588
    %v1564 = vunpack.c.l.bf16 %v589
    %v1565 = vunpack.c.h.bf16 %v589
    %v1566 = vunpack.c.l.bf16 %v590
    %v1567 = vunpack.c.h.bf16 %v590
    %v1568 = vunpack.c.l.bf16 %v591
    %v1569 = vunpack.c.h.bf16 %v591
    %v1570 = vunpack.c.l.bf16 %v592
    %v1571 = vunpack.c.h.bf16 %v592
    %v1572 = vunpack.c.l.bf16 %v593
    %v1573 = vunpack.c.h.bf16 %v593
    %v1574 = vunpack.c.l.bf16 %v594
    %v1575 = vunpack.c.h.bf16 %v594
    %v1576 = vunpack.c.l.bf16 %v595
    %v1577 = vunpack.c.h.bf16 %v595
    %v1578 = vunpack.c.l.bf16 %v596
    %v1579 = vunpack.c.h.bf16 %v596
    %v1580 = vunpack.c.l.bf16 %v597
    %v1581 = vunpack.c.h.bf16 %v597
    %v1582 = vunpack.c.l.bf16 %v598
    %v1583 = vunpack.c.h.bf16 %v598
    %v1584 = vunpack.c.l.bf16 %v599
    %v1585 = vunpack.c.h.bf16 %v599
    %v1586 = vunpack.c.l.bf16 %v600
    %v1587 = vunpack.c.h.bf16 %v600
    %v1588 = vunpack.c.l.bf16 %v601
    %v1589 = vunpack.c.h.bf16 %v601
    %v1590 = vunpack.c.l.bf16 %v602
    %v1591 = vunpack.c.h.bf16 %v602
    %v1592 = vunpack.c.l.bf16 %v603
    %v1593 = vunpack.c.h.bf16 %v603
    %v1594 = vunpack.c.l.bf16 %v604
    %v1595 = vunpack.c.h.bf16 %v604
    %v1596 = vunpack.c.l.bf16 %v605
    %v1597 = vunpack.c.h.bf16 %v605
    %v1598 = vunpack.c.l.bf16 %v606
    %v1599 = vunpack.c.h.bf16 %v606
    %v1600 = vunpack.c.l.bf16 %v607
    %v1601 = vunpack.c.h.bf16 %v607
    %v1602 = vunpack.c.l.bf16 %v608
    %v1603 = vunpack.c.h.bf16 %v608
    %v1604 = vunpack.c.l.bf16 %v609
    %v1605 = vunpack.c.h.bf16 %v609
    %v1606 = vunpack.c.l.bf16 %v610
    %v1607 = vunpack.c.h.bf16 %v610
    %v1608 = vunpack.c.l.bf16 %v611
    %v1609 = vunpack.c.h.bf16 %v611
    %v1610 = vunpack.c.l.bf16 %v612
    %v1611 = vunpack.c.h.bf16 %v612
    %v1612 = vunpack.c.l.bf16 %v613
    %v1613 = vunpack.c.h.bf16 %v613
    %v1614 = vunpack.c.l.bf16 %v614
    %v1615 = vunpack.c.h.bf16 %v614
    %v1616 = vunpack.c.l.bf16 %v615
    %v1617 = vunpack.c.h.bf16 %v615
    %v1618 = vunpack.c.l.bf16 %v616
    %v1619 = vunpack.c.h.bf16 %v616
    %v1620 = vunpack.c.l.bf16 %v617
    %v1621 = vunpack.c.h.bf16 %v617
    %v1622 = vunpack.c.l.bf16 %v618
    %v1623 = vunpack.c.h.bf16 %v618
    %v1624 = vunpack.c.l.bf16 %v619
    %v1625 = vunpack.c.h.bf16 %v619
    %v1626 = vunpack.c.l.bf16 %v620
    %v1627 = vunpack.c.h.bf16 %v620
    %v1628 = vunpack.c.l.bf16 %v621
    %v1629 = vunpack.c.h.bf16 %v621
    %v1630 = vunpack.c.l.bf16 %v622
    %v1631 = vunpack.c.h.bf16 %v622
    %v1632 = vunpack.c.l.bf16 %v623
    %v1633 = vunpack.c.h.bf16 %v623
    %v1634 = vunpack.c.l.bf16 %v624
    %v1635 = vunpack.c.h.bf16 %v624
    %v1636 = vunpack.c.l.bf16 %v625
    %v1637 = vunpack.c.h.bf16 %v625
    %v1638 = vunpack.c.l.bf16 %v626
    %v1639 = vunpack.c.h.bf16 %v626
    %v1640 = vunpack.c.l.bf16 %v627
    %v1641 = vunpack.c.h.bf16 %v627
    %v1642 = vunpack.c.l.bf16 %v628
    %v1643 = vunpack.c.h.bf16 %v628
    %v1644 = vunpack.c.l.bf16 %v629
    %v1645 = vunpack.c.h.bf16 %v629
    %v1646 = vunpack.c.l.bf16 %v630
    %v1647 = vunpack.c.h.bf16 %v630
    %v1648 = vunpack.c.l.bf16 %v631
    %v1649 = vunpack.c.h.bf16 %v631
    %v1650 = vunpack.c.l.bf16 %v632
    %v1651 = vunpack.c.h.bf16 %v632
    %v1652 = vunpack.c.l.bf16 %v633
    %v1653 = vunpack.c.h.bf16 %v633
    %v1654 = vunpack.c.l.bf16 %v634
    %v1655 = vunpack.c.h.bf16 %v634
    %v1656 = vunpack.c.l.bf16 %v635
    %v1657 = vunpack.c.h.bf16 %v635
    %v1658 = vunpack.c.l.bf16 %v636
    %v1659 = vunpack.c.h.bf16 %v636
    %v1660 = vunpack.c.l.bf16 %v637
    %v1661 = vunpack.c.h.bf16 %v637
    %v1662 = vld [vmem:[#allocation12] ss:$8 sm:$0xf]
    %v1663 = vld [vmem:[#allocation12] ss:$8 sm:$0xf0]
    %v1664 = vor.u32 %v1662, %v1663
    %v1666 = vlaneseq
    %v1667 = vshrl.u32 %v1666, 7
    %v1668 = vsub.s32 0, %v1667
    %v1669 = vrot.slane %v1664, %v1668
    %v1670 = vlaneseq
    %v1671 = vshrl.u32 %v1670, 7
    %v1672 = vsub.s32 1, %v1671
    %v1673 = vrot.slane %v1664, %v1672
    %v1674 = vlaneseq
    %v1675 = vshrl.u32 %v1674, 7
    %v1676 = vsub.s32 2, %v1675
    %v1677 = vrot.slane %v1664, %v1676
    %v1678 = vlaneseq
    %v1679 = vshrl.u32 %v1678, 7
    %v1680 = vsub.s32 3, %v1679
    %v1681 = vrot.slane %v1664, %v1680
    %v1682 = vlaneseq
    %v1683 = vshrl.u32 %v1682, 7
    %v1684 = vsub.s32 4, %v1683
    %v1685 = vrot.slane %v1664, %v1684
    %v1686 = vlaneseq
    %v1687 = vshrl.u32 %v1686, 7
    %v1688 = vsub.s32 5, %v1687
    %v1689 = vrot.slane %v1664, %v1688
    %v1690 = vlaneseq
    %v1691 = vshrl.u32 %v1690, 7
    %v1692 = vsub.s32 6, %v1691
    %v1693 = vrot.slane %v1664, %v1692
    %v1694 = vlaneseq
    %v1695 = vshrl.u32 %v1694, 7
    %v1696 = vsub.s32 7, %v1695
    %v1697 = vrot.slane %v1664, %v1696
    %v1708 = vcombine.high %v124, %v124
    %v1710 = vunpack.c.l.s4 1983009808
    %v1711 = vunpack.c.0.s8 %v1710
    %v1712 = vlaneseq
    %v1713 = vshrl.u32 %v1712, 7
    %v1714 = vsub.s32 %v1711, %v1713
    %v1715 = vrot.slane %v124, %v1714
    %v1717 = vunpack.c.l.s4 1983009808
    %v1718 = vunpack.c.0.s8 %v1717
    %v1719 = vlaneseq
    %v1720 = vshrl.u32 %v1719, 7
    %v1721 = vsub.s32 %v1718, %v1720
    %v1722 = vrot.slane %v1708, %v1721
    %v1723 = vcombine.high %v1715, %v1715
    %v1724 = vcombine.high %v1722, %v1722
    %v1725 = vcombine.high %v125, %v125
    %v1727 = vunpack.c.l.s4 1983009808
    %v1728 = vunpack.c.0.s8 %v1727
    %v1729 = vlaneseq
    %v1730 = vshrl.u32 %v1729, 7
    %v1731 = vsub.s32 %v1728, %v1730
    %v1732 = vrot.slane %v125, %v1731
    %v1734 = vunpack.c.l.s4 1983009808
    %v1735 = vunpack.c.0.s8 %v1734
    %v1736 = vlaneseq
    %v1737 = vshrl.u32 %v1736, 7
    %v1738 = vsub.s32 %v1735, %v1737
    %v1739 = vrot.slane %v1725, %v1738
    %v1740 = vcombine.high %v1732, %v1732
    %v1741 = vcombine.high %v1739, %v1739
    %1750 = vmatprep.subr.mxu0 %v639
    %1751 = vmatpush1.msra.mxu0 %v638
    %1752 = vmatprep.subr.mxu0 %v647
    %1753 = vmatpush1.msra.mxu0 %v646
    %1754 = vmatprep.subr.mxu0 %v655
    %1755 = vmatpush1.msra.mxu0 %v654
    %1756 = vmatprep.subr.mxu0 %v663
    %1757 = vmatpush1.msra.mxu0 %v662
    %1758 = vmatprep.subr.mxu0 %v671
    %1759 = vmatpush1.msra.mxu0 %v670
    %1760 = vmatprep.subr.mxu0 %v679
    %1761 = vmatpush1.msra.mxu0 %v678
    %1762 = vmatprep.subr.mxu0 %v687
    %1763 = vmatpush1.msra.mxu0 %v686
    %1764 = vmatprep.subr.mxu0 %v695
    %1765 = vmatpush1.msra.mxu0 %v694
    %1766 = vmatprep.subr.mxu0 %v703
    %1767 = vmatpush1.msra.mxu0 %v702
    %1768 = vmatprep.subr.mxu0 %v711
    %1769 = vmatpush1.msra.mxu0 %v710
    %1770 = vmatprep.subr.mxu0 %v719
    %1771 = vmatpush1.msra.mxu0 %v718
    %1772 = vmatprep.subr.mxu0 %v727
    %1773 = vmatpush1.msra.mxu0 %v726
    %1774 = vmatprep.subr.mxu0 %v735
    %1775 = vmatpush1.msra.mxu0 %v734
    %1776 = vmatprep.subr.mxu0 %v743
    %1777 = vmatpush1.msra.mxu0 %v742
    %1778 = vmatprep.subr.mxu0 %v751
    %1779 = vmatpush1.msra.mxu0 %v750
    %1780 = vmatprep.subr.mxu0 %v759
    %1781 = vmatpush1.msra.mxu0 %v758
    %1782 = vmatprep.subr.mxu0 %v767
    %1783 = vmatpush1.msra.mxu0 %v766
    %1784 = vmatprep.subr.mxu0 %v775
    %1785 = vmatpush1.msra.mxu0 %v774
    %1786 = vmatprep.subr.mxu0 %v783
    %1787 = vmatpush1.msra.mxu0 %v782
    %1788 = vmatprep.subr.mxu0 %v791
    %1789 = vmatpush1.msra.mxu0 %v790
    %1790 = vmatprep.subr.mxu0 %v799
    %1791 = vmatpush1.msra.mxu0 %v798
    %1792 = vmatprep.subr.mxu0 %v807
    %1793 = vmatpush1.msra.mxu0 %v806
    %1794 = vmatprep.subr.mxu0 %v815
    %1795 = vmatpush1.msra.mxu0 %v814
    %1796 = vmatprep.subr.mxu0 %v823
    %1797 = vmatpush1.msra.mxu0 %v822
    %1798 = vmatprep.subr.mxu0 %v831
    %1799 = vmatpush1.msra.mxu0 %v830
    %1800 = vmatprep.subr.mxu0 %v839
    %1801 = vmatpush1.msra.mxu0 %v838
    %1802 = vmatprep.subr.mxu0 %v847
    %1803 = vmatpush1.msra.mxu0 %v846
    %1804 = vmatprep.subr.mxu0 %v855
    %1805 = vmatpush1.msra.mxu0 %v854
    %1806 = vmatprep.subr.mxu0 %v863
    %1807 = vmatpush1.msra.mxu0 %v862
    %1808 = vmatprep.subr.mxu0 %v871
    %1809 = vmatpush1.msra.mxu0 %v870
    %1810 = vmatprep.subr.mxu0 %v879
    %1811 = vmatpush1.msra.mxu0 %v878
    %1812 = vmatprep.subr.mxu0 %v887
    %1813 = vmatpush1.msra.mxu0 %v886
    %1814 = vmatprep.mubr.f32.mxu0 %v1723
    %1815 = vmatmul.mubr.f32.gmra.mrb[0].mxu0 %v1715
    %v1816 = vpop.f32.mrb[0].mxu0
    %v1817 = vadd.f32 %v1669, %v1816
    %v1818 = vpop.f32.mrb[0].mxu0
    %v1819 = vadd.f32 %v1673, %v1818
    %1820 = vdwg.mxu0
    %1821 = vmatprep.subr.mxu0 %v895
    %1822 = vmatpush1.msra.mxu0 %v894
    %1823 = vmatprep.subr.mxu0 %v903
    %1824 = vmatpush1.msra.mxu0 %v902
    %1825 = vmatprep.subr.mxu0 %v911
    %1826 = vmatpush1.msra.mxu0 %v910
    %1827 = vmatprep.subr.mxu0 %v919
    %1828 = vmatpush1.msra.mxu0 %v918
    %1829 = vmatprep.subr.mxu0 %v927
    %1830 = vmatpush1.msra.mxu0 %v926
    %1831 = vmatprep.subr.mxu0 %v935
    %1832 = vmatpush1.msra.mxu0 %v934
    %1833 = vmatprep.subr.mxu0 %v943
    %1834 = vmatpush1.msra.mxu0 %v942
    %1835 = vmatprep.subr.mxu0 %v951
    %1836 = vmatpush1.msra.mxu0 %v950
    %1837 = vmatprep.subr.mxu0 %v959
    %1838 = vmatpush1.msra.mxu0 %v958
    %1839 = vmatprep.subr.mxu0 %v967
    %1840 = vmatpush1.msra.mxu0 %v966
    %1841 = vmatprep.subr.mxu0 %v975
    %1842 = vmatpush1.msra.mxu0 %v974
    %1843 = vmatprep.subr.mxu0 %v983
    %1844 = vmatpush1.msra.mxu0 %v982
    %1845 = vmatprep.subr.mxu0 %v991
    %1846 = vmatpush1.msra.mxu0 %v990
    %1847 = vmatprep.subr.mxu0 %v999
    %1848 = vmatpush1.msra.mxu0 %v998
    %1849 = vmatprep.subr.mxu0 %v1007
    %1850 = vmatpush1.msra.mxu0 %v1006
    %1851 = vmatprep.subr.mxu0 %v1015
    %1852 = vmatpush1.msra.mxu0 %v1014
    %1853 = vmatprep.subr.mxu0 %v1023
    %1854 = vmatpush1.msra.mxu0 %v1022
    %1855 = vmatprep.subr.mxu0 %v1031
    %1856 = vmatpush1.msra.mxu0 %v1030
    %1857 = vmatprep.subr.mxu0 %v1039
    %1858 = vmatpush1.msra.mxu0 %v1038
    %1859 = vmatprep.subr.mxu0 %v1047
    %1860 = vmatpush1.msra.mxu0 %v1046
    %1861 = vmatprep.subr.mxu0 %v1055
    %1862 = vmatpush1.msra.mxu0 %v1054
    %1863 = vmatprep.subr.mxu0 %v1063
    %1864 = vmatpush1.msra.mxu0 %v1062
    %1865 = vmatprep.subr.mxu0 %v1071
    %1866 = vmatpush1.msra.mxu0 %v1070
    %1867 = vmatprep.subr.mxu0 %v1079
    %1868 = vmatpush1.msra.mxu0 %v1078
    %1869 = vmatprep.subr.mxu0 %v1087
    %1870 = vmatpush1.msra.mxu0 %v1086
    %1871 = vmatprep.subr.mxu0 %v1095
    %1872 = vmatpush1.msra.mxu0 %v1094
    %1873 = vmatprep.subr.mxu0 %v1103
    %1874 = vmatpush1.msra.mxu0 %v1102
    %1875 = vmatprep.subr.mxu0 %v1111
    %1876 = vmatpush1.msra.mxu0 %v1110
    %1877 = vmatprep.subr.mxu0 %v1119
    %1878 = vmatpush1.msra.mxu0 %v1118
    %1879 = vmatprep.subr.mxu0 %v1127
    %1880 = vmatpush1.msra.mxu0 %v1126
    %1881 = vmatprep.subr.mxu0 %v1135
    %1882 = vmatpush1.msra.mxu0 %v1134
    %1883 = vmatprep.subr.mxu0 %v1143
    %1884 = vmatpush1.msra.mxu0 %v1142
    %1885 = vmatprep.mubr.f32.mxu0 %v1724
    %1886 = vmatmul.mubr.f32.gmra.mrb[0].mxu0 %v1722
    %v1887 = vpop.f32.mrb[0].mxu0
    %v1888 = vadd.f32 %v1817, %v1887
    %v1889 = vpop.f32.mrb[0].mxu0
    %v1890 = vadd.f32 %v1819, %v1889
    %1891 = vdwg.mxu0
    %1892 = vmatprep.subr.mxu0 %v1151
    %1893 = vmatpush1.msra.mxu0 %v1150
    %1894 = vmatprep.subr.mxu0 %v1159
    %1895 = vmatpush1.msra.mxu0 %v1158
    %1896 = vmatprep.subr.mxu0 %v1167
    %1897 = vmatpush1.msra.mxu0 %v1166
    %1898 = vmatprep.subr.mxu0 %v1175
    %1899 = vmatpush1.msra.mxu0 %v1174
    %1900 = vmatprep.subr.mxu0 %v1183
    %1901 = vmatpush1.msra.mxu0 %v1182
    %1902 = vmatprep.subr.mxu0 %v1191
    %1903 = vmatpush1.msra.mxu0 %v1190
    %1904 = vmatprep.subr.mxu0 %v1199
    %1905 = vmatpush1.msra.mxu0 %v1198
    %1906 = vmatprep.subr.mxu0 %v1207
    %1907 = vmatpush1.msra.mxu0 %v1206
    %1908 = vmatprep.subr.mxu0 %v1215
    %1909 = vmatpush1.msra.mxu0 %v1214
    %1910 = vmatprep.subr.mxu0 %v1223
    %1911 = vmatpush1.msra.mxu0 %v1222
    %1912 = vmatprep.subr.mxu0 %v1231
    %1913 = vmatpush1.msra.mxu0 %v1230
    %1914 = vmatprep.subr.mxu0 %v1239
    %1915 = vmatpush1.msra.mxu0 %v1238
    %1916 = vmatprep.subr.mxu0 %v1247
    %1917 = vmatpush1.msra.mxu0 %v1246
    %1918 = vmatprep.subr.mxu0 %v1255
    %1919 = vmatpush1.msra.mxu0 %v1254
    %1920 = vmatprep.subr.mxu0 %v1263
    %1921 = vmatpush1.msra.mxu0 %v1262
    %1922 = vmatprep.subr.mxu0 %v1271
    %1923 = vmatpush1.msra.mxu0 %v1270
    %1924 = vmatprep.subr.mxu0 %v1279
    %1925 = vmatpush1.msra.mxu0 %v1278
    %1926 = vmatprep.subr.mxu0 %v1287
    %1927 = vmatpush1.msra.mxu0 %v1286
    %1928 = vmatprep.subr.mxu0 %v1295
    %1929 = vmatpush1.msra.mxu0 %v1294
    %1930 = vmatprep.subr.mxu0 %v1303
    %1931 = vmatpush1.msra.mxu0 %v1302
    %1932 = vmatprep.subr.mxu0 %v1311
    %1933 = vmatpush1.msra.mxu0 %v1310
    %1934 = vmatprep.subr.mxu0 %v1319
    %1935 = vmatpush1.msra.mxu0 %v1318
    %1936 = vmatprep.subr.mxu0 %v1327
    %1937 = vmatpush1.msra.mxu0 %v1326
    %1938 = vmatprep.subr.mxu0 %v1335
    %1939 = vmatpush1.msra.mxu0 %v1334
    %1940 = vmatprep.subr.mxu0 %v1343
    %1941 = vmatpush1.msra.mxu0 %v1342
    %1942 = vmatprep.subr.mxu0 %v1351
    %1943 = vmatpush1.msra.mxu0 %v1350
    %1944 = vmatprep.subr.mxu0 %v1359
    %1945 = vmatpush1.msra.mxu0 %v1358
    %1946 = vmatprep.subr.mxu0 %v1367
    %1947 = vmatpush1.msra.mxu0 %v1366
    %1948 = vmatprep.subr.mxu0 %v1375
    %1949 = vmatpush1.msra.mxu0 %v1374
    %1950 = vmatprep.subr.mxu0 %v1383
    %1951 = vmatpush1.msra.mxu0 %v1382
    %1952 = vmatprep.subr.mxu0 %v1391
    %1953 = vmatpush1.msra.mxu0 %v1390
    %1954 = vmatprep.subr.mxu0 %v1399
    %1955 = vmatpush1.msra.mxu0 %v1398
    %1956 = vmatprep.mubr.f32.mxu0 %v1740
    %1957 = vmatmul.mubr.f32.gmra.mrb[0].mxu0 %v1732
    %v1958 = vpop.f32.mrb[0].mxu0
    %v1959 = vadd.f32 %v1888, %v1958
    %v1960 = vpop.f32.mrb[0].mxu0
    %v1961 = vadd.f32 %v1890, %v1960
    %1962 = vdwg.mxu0
    %1963 = vmatprep.subr.mxu0 %v1407
    %1964 = vmatpush1.msra.mxu0 %v1406
    %1965 = vmatprep.subr.mxu0 %v1415
    %1966 = vmatpush1.msra.mxu0 %v1414
    %1967 = vmatprep.subr.mxu0 %v1423
    %1968 = vmatpush1.msra.mxu0 %v1422
    %1969 = vmatprep.subr.mxu0 %v1431
    %1970 = vmatpush1.msra.mxu0 %v1430
    %1971 = vmatprep.subr.mxu0 %v1439
    %1972 = vmatpush1.msra.mxu0 %v1438
    %1973 = vmatprep.subr.mxu0 %v1447
    %1974 = vmatpush1.msra.mxu0 %v1446
    %1975 = vmatprep.subr.mxu0 %v1455
    %1976 = vmatpush1.msra.mxu0 %v1454
    %1977 = vmatprep.subr.mxu0 %v1463
    %1978 = vmatpush1.msra.mxu0 %v1462
    %1979 = vmatprep.subr.mxu0 %v1471
    %1980 = vmatpush1.msra.mxu0 %v1470
    %1981 = vmatprep.subr.mxu0 %v1479
    %1982 = vmatpush1.msra.mxu0 %v1478
    %1983 = vmatprep.subr.mxu0 %v1487
    %1984 = vmatpush1.msra.mxu0 %v1486
    %1985 = vmatprep.subr.mxu0 %v1495
    %1986 = vmatpush1.msra.mxu0 %v1494
    %1987 = vmatprep.subr.mxu0 %v1503
    %1988 = vmatpush1.msra.mxu0 %v1502
    %1989 = vmatprep.subr.mxu0 %v1511
    %1990 = vmatpush1.msra.mxu0 %v1510
    %1991 = vmatprep.subr.mxu0 %v1519
    %1992 = vmatpush1.msra.mxu0 %v1518
    %1993 = vmatprep.subr.mxu0 %v1527
    %1994 = vmatpush1.msra.mxu0 %v1526
    %1995 = vmatprep.subr.mxu0 %v1535
    %1996 = vmatpush1.msra.mxu0 %v1534
    %1997 = vmatprep.subr.mxu0 %v1543
    %1998 = vmatpush1.msra.mxu0 %v1542
    %1999 = vmatprep.subr.mxu0 %v1551
    %2000 = vmatpush1.msra.mxu0 %v1550
    %2001 = vmatprep.subr.mxu0 %v1559
    %2002 = vmatpush1.msra.mxu0 %v1558
    %2003 = vmatprep.subr.mxu0 %v1567
    %2004 = vmatpush1.msra.mxu0 %v1566
    %2005 = vmatprep.subr.mxu0 %v1575
    %2006 = vmatpush1.msra.mxu0 %v1574
    %2007 = vmatprep.subr.mxu0 %v1583
    %2008 = vmatpush1.msra.mxu0 %v1582
    %2009 = vmatprep.subr.mxu0 %v1591
    %2010 = vmatpush1.msra.mxu0 %v1590
    %2011 = vmatprep.subr.mxu0 %v1599
    %2012 = vmatpush1.msra.mxu0 %v1598
    %2013 = vmatprep.subr.mxu0 %v1607
    %2014 = vmatpush1.msra.mxu0 %v1606
    %2015 = vmatprep.subr.mxu0 %v1615
    %2016 = vmatpush1.msra.mxu0 %v1614
    %2017 = vmatprep.subr.mxu0 %v1623
    %2018 = vmatpush1.msra.mxu0 %v1622
    %2019 = vmatprep.subr.mxu0 %v1631
    %2020 = vmatpush1.msra.mxu0 %v1630
    %2021 = vmatprep.subr.mxu0 %v1639
    %2022 = vmatpush1.msra.mxu0 %v1638
    %2023 = vmatprep.subr.mxu0 %v1647
    %2024 = vmatpush1.msra.mxu0 %v1646
    %2025 = vmatprep.subr.mxu0 %v1655
    %2026 = vmatpush1.msra.mxu0 %v1654
    %2027 = vmatprep.mubr.f32.mxu0 %v1741
    %2028 = vmatmul.mubr.f32.gmra.mrb[0].mxu0 %v1739
    %v2029 = vpop.f32.mrb[0].mxu0
    %v2030 = vadd.f32 %v1959, %v2029
    %v2031 = vpop.f32.mrb[0].mxu0
    %v2032 = vadd.f32 %v1961, %v2031
    %2033 = vdwg.mxu0
    %2034 = vmatprep.subr.mxu0 %v641
    %2035 = vmatpush1.msra.mxu0 %v640
    %2036 = vmatprep.subr.mxu0 %v649
    %2037 = vmatpush1.msra.mxu0 %v648
    %2038 = vmatprep.subr.mxu0 %v657
    %2039 = vmatpush1.msra.mxu0 %v656
    %2040 = vmatprep.subr.mxu0 %v665
    %2041 = vmatpush1.msra.mxu0 %v664
    %2042 = vmatprep.subr.mxu0 %v673
    %2043 = vmatpush1.msra.mxu0 %v672
    %2044 = vmatprep.subr.mxu0 %v681
    %2045 = vmatpush1.msra.mxu0 %v680
    %2046 = vmatprep.subr.mxu0 %v689
    %2047 = vmatpush1.msra.mxu0 %v688
    %2048 = vmatprep.subr.mxu0 %v697
    %2049 = vmatpush1.msra.mxu0 %v696
    %2050 = vmatprep.subr.mxu0 %v705
    %2051 = vmatpush1.msra.mxu0 %v704
    %2052 = vmatprep.subr.mxu0 %v713
    %2053 = vmatpush1.msra.mxu0 %v712
    %2054 = vmatprep.subr.mxu0 %v721
    %2055 = vmatpush1.msra.mxu0 %v720
    %2056 = vmatprep.subr.mxu0 %v729
    %2057 = vmatpush1.msra.mxu0 %v728
    %2058 = vmatprep.subr.mxu0 %v737
    %2059 = vmatpush1.msra.mxu0 %v736
    %2060 = vmatprep.subr.mxu0 %v745
    %2061 = vmatpush1.msra.mxu0 %v744
    %2062 = vmatprep.subr.mxu0 %v753
    %2063 = vmatpush1.msra.mxu0 %v752
    %2064 = vmatprep.subr.mxu0 %v761
    %2065 = vmatpush1.msra.mxu0 %v760
    %2066 = vmatprep.subr.mxu0 %v769
    %2067 = vmatpush1.msra.mxu0 %v768
    %2068 = vmatprep.subr.mxu0 %v777
    %2069 = vmatpush1.msra.mxu0 %v776
    %2070 = vmatprep.subr.mxu0 %v785
    %2071 = vmatpush1.msra.mxu0 %v784
    %2072 = vmatprep.subr.mxu0 %v793
    %2073 = vmatpush1.msra.mxu0 %v792
    %2074 = vmatprep.subr.mxu0 %v801
    %2075 = vmatpush1.msra.mxu0 %v800
    %2076 = vmatprep.subr.mxu0 %v809
    %2077 = vmatpush1.msra.mxu0 %v808
    %2078 = vmatprep.subr.mxu0 %v817
    %2079 = vmatpush1.msra.mxu0 %v816
    %2080 = vmatprep.subr.mxu0 %v825
    %2081 = vmatpush1.msra.mxu0 %v824
    %2082 = vmatprep.subr.mxu0 %v833
    %2083 = vmatpush1.msra.mxu0 %v832
    %2084 = vmatprep.subr.mxu0 %v841
    %2085 = vmatpush1.msra.mxu0 %v840
    %2086 = vmatprep.subr.mxu0 %v849
    %2087 = vmatpush1.msra.mxu0 %v848
    %2088 = vmatprep.subr.mxu0 %v857
    %2089 = vmatpush1.msra.mxu0 %v856
    %2090 = vmatprep.subr.mxu0 %v865
    %2091 = vmatpush1.msra.mxu0 %v864
    %2092 = vmatprep.subr.mxu0 %v873
    %2093 = vmatpush1.msra.mxu0 %v872
    %2094 = vmatprep.subr.mxu0 %v881
    %2095 = vmatpush1.msra.mxu0 %v880
    %2096 = vmatprep.subr.mxu0 %v889
    %2097 = vmatpush1.msra.mxu0 %v888
    %2098 = vmatprep.mubr.f32.mxu0 %v1723
    %2099 = vmatmul.mubr.f32.gmra.mrb[0].mxu0 %v1715
    %v2100 = vpop.f32.mrb[0].mxu0
    %v2101 = vadd.f32 %v1677, %v2100
    %v2102 = vpop.f32.mrb[0].mxu0
    %v2103 = vadd.f32 %v1681, %v2102
    %2104 = vdwg.mxu0
    %2105 = vmatprep.subr.mxu0 %v897
    %2106 = vmatpush1.msra.mxu0 %v896
    %2107 = vmatprep.subr.mxu0 %v905
    %2108 = vmatpush1.msra.mxu0 %v904
    %2109 = vmatprep.subr.mxu0 %v913
    %2110 = vmatpush1.msra.mxu0 %v912
    %2111 = vmatprep.subr.mxu0 %v921
    %2112 = vmatpush1.msra.mxu0 %v920
    %2113 = vmatprep.subr.mxu0 %v929
    %2114 = vmatpush1.msra.mxu0 %v928
    %2115 = vmatprep.subr.mxu0 %v937
    %2116 = vmatpush1.msra.mxu0 %v936
    %2117 = vmatprep.subr.mxu0 %v945
    %2118 = vmatpush1.msra.mxu0 %v944
    %2119 = vmatprep.subr.mxu0 %v953
    %2120 = vmatpush1.msra.mxu0 %v952
    %2121 = vmatprep.subr.mxu0 %v961
    %2122 = vmatpush1.msra.mxu0 %v960
    %2123 = vmatprep.subr.mxu0 %v969
    %2124 = vmatpush1.msra.mxu0 %v968
    %2125 = vmatprep.subr.mxu0 %v977
    %2126 = vmatpush1.msra.mxu0 %v976
    %2127 = vmatprep.subr.mxu0 %v985
    %2128 = vmatpush1.msra.mxu0 %v984
    %2129 = vmatprep.subr.mxu0 %v993
    %2130 = vmatpush1.msra.mxu0 %v992
    %2131 = vmatprep.subr.mxu0 %v1001
    %2132 = vmatpush1.msra.mxu0 %v1000
    %2133 = vmatprep.subr.mxu0 %v1009
    %2134 = vmatpush1.msra.mxu0 %v1008
    %2135 = vmatprep.subr.mxu0 %v1017
    %2136 = vmatpush1.msra.mxu0 %v1016
    %2137 = vmatprep.subr.mxu0 %v1025
    %2138 = vmatpush1.msra.mxu0 %v1024
    %2139 = vmatprep.subr.mxu0 %v1033
    %2140 = vmatpush1.msra.mxu0 %v1032
    %2141 = vmatprep.subr.mxu0 %v1041
    %2142 = vmatpush1.msra.mxu0 %v1040
    %2143 = vmatprep.subr.mxu0 %v1049
    %2144 = vmatpush1.msra.mxu0 %v1048
    %2145 = vmatprep.subr.mxu0 %v1057
    %2146 = vmatpush1.msra.mxu0 %v1056
    %2147 = vmatprep.subr.mxu0 %v1065
    %2148 = vmatpush1.msra.mxu0 %v1064
    %2149 = vmatprep.subr.mxu0 %v1073
    %2150 = vmatpush1.msra.mxu0 %v1072
    %2151 = vmatprep.subr.mxu0 %v1081
    %2152 = vmatpush1.msra.mxu0 %v1080
    %2153 = vmatprep.subr.mxu0 %v1089
    %2154 = vmatpush1.msra.mxu0 %v1088
    %2155 = vmatprep.subr.mxu0 %v1097
    %2156 = vmatpush1.msra.mxu0 %v1096
    %2157 = vmatprep.subr.mxu0 %v1105
    %2158 = vmatpush1.msra.mxu0 %v1104
    %2159 = vmatprep.subr.mxu0 %v1113
    %2160 = vmatpush1.msra.mxu0 %v1112
    %2161 = vmatprep.subr.mxu0 %v1121
    %2162 = vmatpush1.msra.mxu0 %v1120
    %2163 = vmatprep.subr.mxu0 %v1129
    %2164 = vmatpush1.msra.mxu0 %v1128
    %2165 = vmatprep.subr.mxu0 %v1137
    %2166 = vmatpush1.msra.mxu0 %v1136
    %2167 = vmatprep.subr.mxu0 %v1145
    %2168 = vmatpush1.msra.mxu0 %v1144
    %2169 = vmatprep.mubr.f32.mxu0 %v1724
    %2170 = vmatmul.mubr.f32.gmra.mrb[0].mxu0 %v1722
    %v2171 = vpop.f32.mrb[0].mxu0
    %v2172 = vadd.f32 %v2101, %v2171
    %v2173 = vpop.f32.mrb[0].mxu0
    %v2174 = vadd.f32 %v2103, %v2173
    %2175 = vdwg.mxu0
    %2176 = vmatprep.subr.mxu0 %v1153
    %2177 = vmatpush1.msra.mxu0 %v1152
    %2178 = vmatprep.subr.mxu0 %v1161
    %2179 = vmatpush1.msra.mxu0 %v1160
    %2180 = vmatprep.subr.mxu0 %v1169
    %2181 = vmatpush1.msra.mxu0 %v1168
    %2182 = vmatprep.subr.mxu0 %v1177
    %2183 = vmatpush1.msra.mxu0 %v1176
    %2184 = vmatprep.subr.mxu0 %v1185
    %2185 = vmatpush1.msra.mxu0 %v1184
    %2186 = vmatprep.subr.mxu0 %v1193
    %2187 = vmatpush1.msra.mxu0 %v1192
    %2188 = vmatprep.subr.mxu0 %v1201
    %2189 = vmatpush1.msra.mxu0 %v1200
    %2190 = vmatprep.subr.mxu0 %v1209
    %2191 = vmatpush1.msra.mxu0 %v1208
    %2192 = vmatprep.subr.mxu0 %v1217
    %2193 = vmatpush1.msra.mxu0 %v1216
    %2194 = vmatprep.subr.mxu0 %v1225
    %2195 = vmatpush1.msra.mxu0 %v1224
    %2196 = vmatprep.subr.mxu0 %v1233
    %2197 = vmatpush1.msra.mxu0 %v1232
    %2198 = vmatprep.subr.mxu0 %v1241
    %2199 = vmatpush1.msra.mxu0 %v1240
    %2200 = vmatprep.subr.mxu0 %v1249
    %2201 = vmatpush1.msra.mxu0 %v1248
    %2202 = vmatprep.subr.mxu0 %v1257
    %2203 = vmatpush1.msra.mxu0 %v1256
    %2204 = vmatprep.subr.mxu0 %v1265
    %2205 = vmatpush1.msra.mxu0 %v1264
    %2206 = vmatprep.subr.mxu0 %v1273
    %2207 = vmatpush1.msra.mxu0 %v1272
    %2208 = vmatprep.subr.mxu0 %v1281
    %2209 = vmatpush1.msra.mxu0 %v1280
    %2210 = vmatprep.subr.mxu0 %v1289
    %2211 = vmatpush1.msra.mxu0 %v1288
    %2212 = vmatprep.subr.mxu0 %v1297
    %2213 = vmatpush1.msra.mxu0 %v1296
    %2214 = vmatprep.subr.mxu0 %v1305
    %2215 = vmatpush1.msra.mxu0 %v1304
    %2216 = vmatprep.subr.mxu0 %v1313
    %2217 = vmatpush1.msra.mxu0 %v1312
    %2218 = vmatprep.subr.mxu0 %v1321
    %2219 = vmatpush1.msra.mxu0 %v1320
    %2220 = vmatprep.subr.mxu0 %v1329
    %2221 = vmatpush1.msra.mxu0 %v1328
    %2222 = vmatprep.subr.mxu0 %v1337
    %2223 = vmatpush1.msra.mxu0 %v1336
    %2224 = vmatprep.subr.mxu0 %v1345
    %2225 = vmatpush1.msra.mxu0 %v1344
    %2226 = vmatprep.subr.mxu0 %v1353
    %2227 = vmatpush1.msra.mxu0 %v1352
    %2228 = vmatprep.subr.mxu0 %v1361
    %2229 = vmatpush1.msra.mxu0 %v1360
    %2230 = vmatprep.subr.mxu0 %v1369
    %2231 = vmatpush1.msra.mxu0 %v1368
    %2232 = vmatprep.subr.mxu0 %v1377
    %2233 = vmatpush1.msra.mxu0 %v1376
    %2234 = vmatprep.subr.mxu0 %v1385
    %2235 = vmatpush1.msra.mxu0 %v1384
    %2236 = vmatprep.subr.mxu0 %v1393
    %2237 = vmatpush1.msra.mxu0 %v1392
    %2238 = vmatprep.subr.mxu0 %v1401
    %2239 = vmatpush1.msra.mxu0 %v1400
    %2240 = vmatprep.mubr.f32.mxu0 %v1740
    %2241 = vmatmul.mubr.f32.gmra.mrb[0].mxu0 %v1732
    %v2242 = vpop.f32.mrb[0].mxu0
    %v2243 = vadd.f32 %v2172, %v2242
    %v2244 = vpop.f32.mrb[0].mxu0
    %v2245 = vadd.f32 %v2174, %v2244
    %2246 = vdwg.mxu0
    %2247 = vmatprep.subr.mxu0 %v1409
    %2248 = vmatpush1.msra.mxu0 %v1408
    %2249 = vmatprep.subr.mxu0 %v1417
    %2250 = vmatpush1.msra.mxu0 %v1416
    %2251 = vmatprep.subr.mxu0 %v1425
    %2252 = vmatpush1.msra.mxu0 %v1424
    %2253 = vmatprep.subr.mxu0 %v1433
    %2254 = vmatpush1.msra.mxu0 %v1432
    %2255 = vmatprep.subr.mxu0 %v1441
    %2256 = vmatpush1.msra.mxu0 %v1440
    %2257 = vmatprep.subr.mxu0 %v1449
    %2258 = vmatpush1.msra.mxu0 %v1448
    %2259 = vmatprep.subr.mxu0 %v1457
    %2260 = vmatpush1.msra.mxu0 %v1456
    %2261 = vmatprep.subr.mxu0 %v1465
    %2262 = vmatpush1.msra.mxu0 %v1464
    %2263 = vmatprep.subr.mxu0 %v1473
    %2264 = vmatpush1.msra.mxu0 %v1472
    %2265 = vmatprep.subr.mxu0 %v1481
    %2266 = vmatpush1.msra.mxu0 %v1480
    %2267 = vmatprep.subr.mxu0 %v1489
    %2268 = vmatpush1.msra.mxu0 %v1488
    %2269 = vmatprep.subr.mxu0 %v1497
    %2270 = vmatpush1.msra.mxu0 %v1496
    %2271 = vmatprep.subr.mxu0 %v1505
    %2272 = vmatpush1.msra.mxu0 %v1504
    %2273 = vmatprep.subr.mxu0 %v1513
    %2274 = vmatpush1.msra.mxu0 %v1512
    %2275 = vmatprep.subr.mxu0 %v1521
    %2276 = vmatpush1.msra.mxu0 %v1520
    %2277 = vmatprep.subr.mxu0 %v1529
    %2278 = vmatpush1.msra.mxu0 %v1528
    %2279 = vmatprep.subr.mxu0 %v1537
    %2280 = vmatpush1.msra.mxu0 %v1536
    %2281 = vmatprep.subr.mxu0 %v1545
    %2282 = vmatpush1.msra.mxu0 %v1544
    %2283 = vmatprep.subr.mxu0 %v1553
    %2284 = vmatpush1.msra.mxu0 %v1552
    %2285 = vmatprep.subr.mxu0 %v1561
    %2286 = vmatpush1.msra.mxu0 %v1560
    %2287 = vmatprep.subr.mxu0 %v1569
    %2288 = vmatpush1.msra.mxu0 %v1568
    %2289 = vmatprep.subr.mxu0 %v1577
    %2290 = vmatpush1.msra.mxu0 %v1576
    %2291 = vmatprep.subr.mxu0 %v1585
    %2292 = vmatpush1.msra.mxu0 %v1584
    %2293 = vmatprep.subr.mxu0 %v1593
    %2294 = vmatpush1.msra.mxu0 %v1592
    %2295 = vmatprep.subr.mxu0 %v1601
    %2296 = vmatpush1.msra.mxu0 %v1600
    %2297 = vmatprep.subr.mxu0 %v1609
    %2298 = vmatpush1.msra.mxu0 %v1608
    %2299 = vmatprep.subr.mxu0 %v1617
    %2300 = vmatpush1.msra.mxu0 %v1616
    %2301 = vmatprep.subr.mxu0 %v1625
    %2302 = vmatpush1.msra.mxu0 %v1624
    %2303 = vmatprep.subr.mxu0 %v1633
    %2304 = vmatpush1.msra.mxu0 %v1632
    %2305 = vmatprep.subr.mxu0 %v1641
    %2306 = vmatpush1.msra.mxu0 %v1640
    %2307 = vmatprep.subr.mxu0 %v1649
    %2308 = vmatpush1.msra.mxu0 %v1648
    %2309 = vmatprep.subr.mxu0 %v1657
    %2310 = vmatpush1.msra.mxu0 %v1656
    %2311 = vmatprep.mubr.f32.mxu0 %v1741
    %2312 = vmatmul.mubr.f32.gmra.mrb[0].mxu0 %v1739
    %v2313 = vpop.f32.mrb[0].mxu0
    %v2314 = vadd.f32 %v2243, %v2313
    %v2315 = vpop.f32.mrb[0].mxu0
    %v2316 = vadd.f32 %v2245, %v2315
    %2317 = vdwg.mxu0
    %2318 = vmatprep.subr.mxu0 %v643
    %2319 = vmatpush1.msra.mxu0 %v642
    %2320 = vmatprep.subr.mxu0 %v651
    %2321 = vmatpush1.msra.mxu0 %v650
    %2322 = vmatprep.subr.mxu0 %v659
    %2323 = vmatpush1.msra.mxu0 %v658
    %2324 = vmatprep.subr.mxu0 %v667
    %2325 = vmatpush1.msra.mxu0 %v666
    %2326 = vmatprep.subr.mxu0 %v675
    %2327 = vmatpush1.msra.mxu0 %v674
    %2328 = vmatprep.subr.mxu0 %v683
    %2329 = vmatpush1.msra.mxu0 %v682
    %2330 = vmatprep.subr.mxu0 %v691
    %2331 = vmatpush1.msra.mxu0 %v690
    %2332 = vmatprep.subr.mxu0 %v699
    %2333 = vmatpush1.msra.mxu0 %v698
    %2334 = vmatprep.subr.mxu0 %v707
    %2335 = vmatpush1.msra.mxu0 %v706
    %2336 = vmatprep.subr.mxu0 %v715
    %2337 = vmatpush1.msra.mxu0 %v714
    %2338 = vmatprep.subr.mxu0 %v723
    %2339 = vmatpush1.msra.mxu0 %v722
    %2340 = vmatprep.subr.mxu0 %v731
    %2341 = vmatpush1.msra.mxu0 %v730
    %2342 = vmatprep.subr.mxu0 %v739
    %2343 = vmatpush1.msra.mxu0 %v738
    %2344 = vmatprep.subr.mxu0 %v747
    %2345 = vmatpush1.msra.mxu0 %v746
    %2346 = vmatprep.subr.mxu0 %v755
    %2347 = vmatpush1.msra.mxu0 %v754
    %2348 = vmatprep.subr.mxu0 %v763
    %2349 = vmatpush1.msra.mxu0 %v762
    %2350 = vmatprep.subr.mxu0 %v771
    %2351 = vmatpush1.msra.mxu0 %v770
    %2352 = vmatprep.subr.mxu0 %v779
    %2353 = vmatpush1.msra.mxu0 %v778
    %2354 = vmatprep.subr.mxu0 %v787
    %2355 = vmatpush1.msra.mxu0 %v786
    %2356 = vmatprep.subr.mxu0 %v795
    %2357 = vmatpush1.msra.mxu0 %v794
    %2358 = vmatprep.subr.mxu0 %v803
    %2359 = vmatpush1.msra.mxu0 %v802
    %2360 = vmatprep.subr.mxu0 %v811
    %2361 = vmatpush1.msra.mxu0 %v810
    %2362 = vmatprep.subr.mxu0 %v819
    %2363 = vmatpush1.msra.mxu0 %v818
    %2364 = vmatprep.subr.mxu0 %v827
    %2365 = vmatpush1.msra.mxu0 %v826
    %2366 = vmatprep.subr.mxu0 %v835
    %2367 = vmatpush1.msra.mxu0 %v834
    %2368 = vmatprep.subr.mxu0 %v843
    %2369 = vmatpush1.msra.mxu0 %v842
    %2370 = vmatprep.subr.mxu0 %v851
    %2371 = vmatpush1.msra.mxu0 %v850
    %2372 = vmatprep.subr.mxu0 %v859
    %2373 = vmatpush1.msra.mxu0 %v858
    %2374 = vmatprep.subr.mxu0 %v867
    %2375 = vmatpush1.msra.mxu0 %v866
    %2376 = vmatprep.subr.mxu0 %v875
    %2377 = vmatpush1.msra.mxu0 %v874
    %2378 = vmatprep.subr.mxu0 %v883
    %2379 = vmatpush1.msra.mxu0 %v882
    %2380 = vmatprep.subr.mxu0 %v891
    %2381 = vmatpush1.msra.mxu0 %v890
    %2382 = vmatprep.mubr.f32.mxu0 %v1723
    %2383 = vmatmul.mubr.f32.gmra.mrb[0].mxu0 %v1715
    %v2384 = vpop.f32.mrb[0].mxu0
    %v2385 = vadd.f32 %v1685, %v2384
    %v2386 = vpop.f32.mrb[0].mxu0
    %v2387 = vadd.f32 %v1689, %v2386
    %2388 = vdwg.mxu0
    %2389 = vmatprep.subr.mxu0 %v899
    %2390 = vmatpush1.msra.mxu0 %v898
    %2391 = vmatprep.subr.mxu0 %v907
    %2392 = vmatpush1.msra.mxu0 %v906
    %2393 = vmatprep.subr.mxu0 %v915
    %2394 = vmatpush1.msra.mxu0 %v914
    %2395 = vmatprep.subr.mxu0 %v923
    %2396 = vmatpush1.msra.mxu0 %v922
    %2397 = vmatprep.subr.mxu0 %v931
    %2398 = vmatpush1.msra.mxu0 %v930
    %2399 = vmatprep.subr.mxu0 %v939
    %2400 = vmatpush1.msra.mxu0 %v938
    %2401 = vmatprep.subr.mxu0 %v947
    %2402 = vmatpush1.msra.mxu0 %v946
    %2403 = vmatprep.subr.mxu0 %v955
    %2404 = vmatpush1.msra.mxu0 %v954
    %2405 = vmatprep.subr.mxu0 %v963
    %2406 = vmatpush1.msra.mxu0 %v962
    %2407 = vmatprep.subr.mxu0 %v971
    %2408 = vmatpush1.msra.mxu0 %v970
    %2409 = vmatprep.subr.mxu0 %v979
    %2410 = vmatpush1.msra.mxu0 %v978
    %2411 = vmatprep.subr.mxu0 %v987
    %2412 = vmatpush1.msra.mxu0 %v986
    %2413 = vmatprep.subr.mxu0 %v995
    %2414 = vmatpush1.msra.mxu0 %v994
    %2415 = vmatprep.subr.mxu0 %v1003
    %2416 = vmatpush1.msra.mxu0 %v1002
    %2417 = vmatprep.subr.mxu0 %v1011
    %2418 = vmatpush1.msra.mxu0 %v1010
    %2419 = vmatprep.subr.mxu0 %v1019
    %2420 = vmatpush1.msra.mxu0 %v1018
    %2421 = vmatprep.subr.mxu0 %v1027
    %2422 = vmatpush1.msra.mxu0 %v1026
    %2423 = vmatprep.subr.mxu0 %v1035
    %2424 = vmatpush1.msra.mxu0 %v1034
    %2425 = vmatprep.subr.mxu0 %v1043
    %2426 = vmatpush1.msra.mxu0 %v1042
    %2427 = vmatprep.subr.mxu0 %v1051
    %2428 = vmatpush1.msra.mxu0 %v1050
    %2429 = vmatprep.subr.mxu0 %v1059
    %2430 = vmatpush1.msra.mxu0 %v1058
    %2431 = vmatprep.subr.mxu0 %v1067
    %2432 = vmatpush1.msra.mxu0 %v1066
    %2433 = vmatprep.subr.mxu0 %v1075
    %2434 = vmatpush1.msra.mxu0 %v1074
    %2435 = vmatprep.subr.mxu0 %v1083
    %2436 = vmatpush1.msra.mxu0 %v1082
    %2437 = vmatprep.subr.mxu0 %v1091
    %2438 = vmatpush1.msra.mxu0 %v1090
    %2439 = vmatprep.subr.mxu0 %v1099
    %2440 = vmatpush1.msra.mxu0 %v1098
    %2441 = vmatprep.subr.mxu0 %v1107
    %2442 = vmatpush1.msra.mxu0 %v1106
    %2443 = vmatprep.subr.mxu0 %v1115
    %2444 = vmatpush1.msra.mxu0 %v1114
    %2445 = vmatprep.subr.mxu0 %v1123
    %2446 = vmatpush1.msra.mxu0 %v1122
    %2447 = vmatprep.subr.mxu0 %v1131
    %2448 = vmatpush1.msra.mxu0 %v1130
    %2449 = vmatprep.subr.mxu0 %v1139
    %2450 = vmatpush1.msra.mxu0 %v1138
    %2451 = vmatprep.subr.mxu0 %v1147
    %2452 = vmatpush1.msra.mxu0 %v1146
    %2453 = vmatprep.mubr.f32.mxu0 %v1724
    %2454 = vmatmul.mubr.f32.gmra.mrb[0].mxu0 %v1722
    %v2455 = vpop.f32.mrb[0].mxu0
    %v2456 = vadd.f32 %v2385, %v2455
    %v2457 = vpop.f32.mrb[0].mxu0
    %v2458 = vadd.f32 %v2387, %v2457
    %2459 = vdwg.mxu0
    %2460 = vmatprep.subr.mxu0 %v1155
    %2461 = vmatpush1.msra.mxu0 %v1154
    %2462 = vmatprep.subr.mxu0 %v1163
    %2463 = vmatpush1.msra.mxu0 %v1162
    %2464 = vmatprep.subr.mxu0 %v1171
    %2465 = vmatpush1.msra.mxu0 %v1170
    %2466 = vmatprep.subr.mxu0 %v1179
    %2467 = vmatpush1.msra.mxu0 %v1178
    %2468 = vmatprep.subr.mxu0 %v1187
    %2469 = vmatpush1.msra.mxu0 %v1186
    %2470 = vmatprep.subr.mxu0 %v1195
    %2471 = vmatpush1.msra.mxu0 %v1194
    %2472 = vmatprep.subr.mxu0 %v1203
    %2473 = vmatpush1.msra.mxu0 %v1202
    %2474 = vmatprep.subr.mxu0 %v1211
    %2475 = vmatpush1.msra.mxu0 %v1210
    %2476 = vmatprep.subr.mxu0 %v1219
    %2477 = vmatpush1.msra.mxu0 %v1218
    %2478 = vmatprep.subr.mxu0 %v1227
    %2479 = vmatpush1.msra.mxu0 %v1226
    %2480 = vmatprep.subr.mxu0 %v1235
    %2481 = vmatpush1.msra.mxu0 %v1234
    %2482 = vmatprep.subr.mxu0 %v1243
    %2483 = vmatpush1.msra.mxu0 %v1242
    %2484 = vmatprep.subr.mxu0 %v1251
    %2485 = vmatpush1.msra.mxu0 %v1250
    %2486 = vmatprep.subr.mxu0 %v1259
    %2487 = vmatpush1.msra.mxu0 %v1258
    %2488 = vmatprep.subr.mxu0 %v1267
    %2489 = vmatpush1.msra.mxu0 %v1266
    %2490 = vmatprep.subr.mxu0 %v1275
    %2491 = vmatpush1.msra.mxu0 %v1274
    %2492 = vmatprep.subr.mxu0 %v1283
    %2493 = vmatpush1.msra.mxu0 %v1282
    %2494 = vmatprep.subr.mxu0 %v1291
    %2495 = vmatpush1.msra.mxu0 %v1290
    %2496 = vmatprep.subr.mxu0 %v1299
    %2497 = vmatpush1.msra.mxu0 %v1298
    %2498 = vmatprep.subr.mxu0 %v1307
    %2499 = vmatpush1.msra.mxu0 %v1306
    %2500 = vmatprep.subr.mxu0 %v1315
    %2501 = vmatpush1.msra.mxu0 %v1314
    %2502 = vmatprep.subr.mxu0 %v1323
    %2503 = vmatpush1.msra.mxu0 %v1322
    %2504 = vmatprep.subr.mxu0 %v1331
    %2505 = vmatpush1.msra.mxu0 %v1330
    %2506 = vmatprep.subr.mxu0 %v1339
    %2507 = vmatpush1.msra.mxu0 %v1338
    %2508 = vmatprep.subr.mxu0 %v1347
    %2509 = vmatpush1.msra.mxu0 %v1346
    %2510 = vmatprep.subr.mxu0 %v1355
    %2511 = vmatpush1.msra.mxu0 %v1354
    %2512 = vmatprep.subr.mxu0 %v1363
    %2513 = vmatpush1.msra.mxu0 %v1362
    %2514 = vmatprep.subr.mxu0 %v1371
    %2515 = vmatpush1.msra.mxu0 %v1370
    %2516 = vmatprep.subr.mxu0 %v1379
    %2517 = vmatpush1.msra.mxu0 %v1378
    %2518 = vmatprep.subr.mxu0 %v1387
    %2519 = vmatpush1.msra.mxu0 %v1386
    %2520 = vmatprep.subr.mxu0 %v1395
    %2521 = vmatpush1.msra.mxu0 %v1394
    %2522 = vmatprep.subr.mxu0 %v1403
    %2523 = vmatpush1.msra.mxu0 %v1402
    %2524 = vmatprep.mubr.f32.mxu0 %v1740
    %2525 = vmatmul.mubr.f32.gmra.mrb[0].mxu0 %v1732
    %v2526 = vpop.f32.mrb[0].mxu0
    %v2527 = vadd.f32 %v2456, %v2526
    %v2528 = vpop.f32.mrb[0].mxu0
    %v2529 = vadd.f32 %v2458, %v2528
    %2530 = vdwg.mxu0
    %2531 = vmatprep.subr.mxu0 %v1411
    %2532 = vmatpush1.msra.mxu0 %v1410
    %2533 = vmatprep.subr.mxu0 %v1419
    %2534 = vmatpush1.msra.mxu0 %v1418
    %2535 = vmatprep.subr.mxu0 %v1427
    %2536 = vmatpush1.msra.mxu0 %v1426
    %2537 = vmatprep.subr.mxu0 %v1435
    %2538 = vmatpush1.msra.mxu0 %v1434
    %2539 = vmatprep.subr.mxu0 %v1443
    %2540 = vmatpush1.msra.mxu0 %v1442
    %2541 = vmatprep.subr.mxu0 %v1451
    %2542 = vmatpush1.msra.mxu0 %v1450
    %2543 = vmatprep.subr.mxu0 %v1459
    %2544 = vmatpush1.msra.mxu0 %v1458
    %2545 = vmatprep.subr.mxu0 %v1467
    %2546 = vmatpush1.msra.mxu0 %v1466
    %2547 = vmatprep.subr.mxu0 %v1475
    %2548 = vmatpush1.msra.mxu0 %v1474
    %2549 = vmatprep.subr.mxu0 %v1483
    %2550 = vmatpush1.msra.mxu0 %v1482
    %2551 = vmatprep.subr.mxu0 %v1491
    %2552 = vmatpush1.msra.mxu0 %v1490
    %2553 = vmatprep.subr.mxu0 %v1499
    %2554 = vmatpush1.msra.mxu0 %v1498
    %2555 = vmatprep.subr.mxu0 %v1507
    %2556 = vmatpush1.msra.mxu0 %v1506
    %2557 = vmatprep.subr.mxu0 %v1515
    %2558 = vmatpush1.msra.mxu0 %v1514
    %2559 = vmatprep.subr.mxu0 %v1523
    %2560 = vmatpush1.msra.mxu0 %v1522
    %2561 = vmatprep.subr.mxu0 %v1531
    %2562 = vmatpush1.msra.mxu0 %v1530
    %2563 = vmatprep.subr.mxu0 %v1539
    %2564 = vmatpush1.msra.mxu0 %v1538
    %2565 = vmatprep.subr.mxu0 %v1547
    %2566 = vmatpush1.msra.mxu0 %v1546
    %2567 = vmatprep.subr.mxu0 %v1555
    %2568 = vmatpush1.msra.mxu0 %v1554
    %2569 = vmatprep.subr.mxu0 %v1563
    %2570 = vmatpush1.msra.mxu0 %v1562
    %2571 = vmatprep.subr.mxu0 %v1571
    %2572 = vmatpush1.msra.mxu0 %v1570
    %2573 = vmatprep.subr.mxu0 %v1579
    %2574 = vmatpush1.msra.mxu0 %v1578
    %2575 = vmatprep.subr.mxu0 %v1587
    %2576 = vmatpush1.msra.mxu0 %v1586
    %2577 = vmatprep.subr.mxu0 %v1595
    %2578 = vmatpush1.msra.mxu0 %v1594
    %2579 = vmatprep.subr.mxu0 %v1603
    %2580 = vmatpush1.msra.mxu0 %v1602
    %2581 = vmatprep.subr.mxu0 %v1611
    %2582 = vmatpush1.msra.mxu0 %v1610
    %2583 = vmatprep.subr.mxu0 %v1619
    %2584 = vmatpush1.msra.mxu0 %v1618
    %2585 = vmatprep.subr.mxu0 %v1627
    %2586 = vmatpush1.msra.mxu0 %v1626
    %2587 = vmatprep.subr.mxu0 %v1635
    %2588 = vmatpush1.msra.mxu0 %v1634
    %2589 = vmatprep.subr.mxu0 %v1643
    %2590 = vmatpush1.msra.mxu0 %v1642
    %2591 = vmatprep.subr.mxu0 %v1651
    %2592 = vmatpush1.msra.mxu0 %v1650
    %2593 = vmatprep.subr.mxu0 %v1659
    %2594 = vmatpush1.msra.mxu0 %v1658
    %2595 = vmatprep.mubr.f32.mxu0 %v1741
    %2596 = vmatmul.mubr.f32.gmra.mrb[0].mxu0 %v1739
    %v2597 = vpop.f32.mrb[0].mxu0
    %v2598 = vadd.f32 %v2527, %v2597
    %v2599 = vpop.f32.mrb[0].mxu0
    %v2600 = vadd.f32 %v2529, %v2599
    %2601 = vdwg.mxu0
    %2602 = vmatprep.subr.mxu0 %v645
    %2603 = vmatpush1.msra.mxu0 %v644
    %2604 = vmatprep.subr.mxu0 %v653
    %2605 = vmatpush1.msra.mxu0 %v652
    %2606 = vmatprep.subr.mxu0 %v661
    %2607 = vmatpush1.msra.mxu0 %v660
    %2608 = vmatprep.subr.mxu0 %v669
    %2609 = vmatpush1.msra.mxu0 %v668
    %2610 = vmatprep.subr.mxu0 %v677
    %2611 = vmatpush1.msra.mxu0 %v676
    %2612 = vmatprep.subr.mxu0 %v685
    %2613 = vmatpush1.msra.mxu0 %v684
    %2614 = vmatprep.subr.mxu0 %v693
    %2615 = vmatpush1.msra.mxu0 %v692
    %2616 = vmatprep.subr.mxu0 %v701
    %2617 = vmatpush1.msra.mxu0 %v700
    %2618 = vmatprep.subr.mxu0 %v709
    %2619 = vmatpush1.msra.mxu0 %v708
    %2620 = vmatprep.subr.mxu0 %v717
    %2621 = vmatpush1.msra.mxu0 %v716
    %2622 = vmatprep.subr.mxu0 %v725
    %2623 = vmatpush1.msra.mxu0 %v724
    %2624 = vmatprep.subr.mxu0 %v733
    %2625 = vmatpush1.msra.mxu0 %v732
    %2626 = vmatprep.subr.mxu0 %v741
    %2627 = vmatpush1.msra.mxu0 %v740
    %2628 = vmatprep.subr.mxu0 %v749
    %2629 = vmatpush1.msra.mxu0 %v748
    %2630 = vmatprep.subr.mxu0 %v757
    %2631 = vmatpush1.msra.mxu0 %v756
    %2632 = vmatprep.subr.mxu0 %v765
    %2633 = vmatpush1.msra.mxu0 %v764
    %2634 = vmatprep.subr.mxu0 %v773
    %2635 = vmatpush1.msra.mxu0 %v772
    %2636 = vmatprep.subr.mxu0 %v781
    %2637 = vmatpush1.msra.mxu0 %v780
    %2638 = vmatprep.subr.mxu0 %v789
    %2639 = vmatpush1.msra.mxu0 %v788
    %2640 = vmatprep.subr.mxu0 %v797
    %2641 = vmatpush1.msra.mxu0 %v796
    %2642 = vmatprep.subr.mxu0 %v805
    %2643 = vmatpush1.msra.mxu0 %v804
    %2644 = vmatprep.subr.mxu0 %v813
    %2645 = vmatpush1.msra.mxu0 %v812
    %2646 = vmatprep.subr.mxu0 %v821
    %2647 = vmatpush1.msra.mxu0 %v820
    %2648 = vmatprep.subr.mxu0 %v829
    %2649 = vmatpush1.msra.mxu0 %v828
    %2650 = vmatprep.subr.mxu0 %v837
    %2651 = vmatpush1.msra.mxu0 %v836
    %2652 = vmatprep.subr.mxu0 %v845
    %2653 = vmatpush1.msra.mxu0 %v844
    %2654 = vmatprep.subr.mxu0 %v853
    %2655 = vmatpush1.msra.mxu0 %v852
    %2656 = vmatprep.subr.mxu0 %v861
    %2657 = vmatpush1.msra.mxu0 %v860
    %2658 = vmatprep.subr.mxu0 %v869
    %2659 = vmatpush1.msra.mxu0 %v868
    %2660 = vmatprep.subr.mxu0 %v877
    %2661 = vmatpush1.msra.mxu0 %v876
    %2662 = vmatprep.subr.mxu0 %v885
    %2663 = vmatpush1.msra.mxu0 %v884
    %2664 = vmatprep.subr.mxu0 %v893
    %2665 = vmatpush1.msra.mxu0 %v892
    %2666 = vmatprep.mubr.f32.mxu0 %v1723
    %2667 = vmatmul.mubr.f32.gmra.mrb[0].mxu0 %v1715
    %v2668 = vpop.f32.mrb[0].mxu0
    %v2669 = vadd.f32 %v1693, %v2668
    %v2670 = vpop.f32.mrb[0].mxu0
    %v2671 = vadd.f32 %v1697, %v2670
    %2672 = vdwg.mxu0
    %2673 = vmatprep.subr.mxu0 %v901
    %2674 = vmatpush1.msra.mxu0 %v900
    %2675 = vmatprep.subr.mxu0 %v909
    %2676 = vmatpush1.msra.mxu0 %v908
    %2677 = vmatprep.subr.mxu0 %v917
    %2678 = vmatpush1.msra.mxu0 %v916
    %2679 = vmatprep.subr.mxu0 %v925
    %2680 = vmatpush1.msra.mxu0 %v924
    %2681 = vmatprep.subr.mxu0 %v933
    %2682 = vmatpush1.msra.mxu0 %v932
    %2683 = vmatprep.subr.mxu0 %v941
    %2684 = vmatpush1.msra.mxu0 %v940
    %2685 = vmatprep.subr.mxu0 %v949
    %2686 = vmatpush1.msra.mxu0 %v948
    %2687 = vmatprep.subr.mxu0 %v957
    %2688 = vmatpush1.msra.mxu0 %v956
    %2689 = vmatprep.subr.mxu0 %v965
    %2690 = vmatpush1.msra.mxu0 %v964
    %2691 = vmatprep.subr.mxu0 %v973
    %2692 = vmatpush1.msra.mxu0 %v972
    %2693 = vmatprep.subr.mxu0 %v981
    %2694 = vmatpush1.msra.mxu0 %v980
    %2695 = vmatprep.subr.mxu0 %v989
    %2696 = vmatpush1.msra.mxu0 %v988
    %2697 = vmatprep.subr.mxu0 %v997
    %2698 = vmatpush1.msra.mxu0 %v996
    %2699 = vmatprep.subr.mxu0 %v1005
    %2700 = vmatpush1.msra.mxu0 %v1004
    %2701 = vmatprep.subr.mxu0 %v1013
    %2702 = vmatpush1.msra.mxu0 %v1012
    %2703 = vmatprep.subr.mxu0 %v1021
    %2704 = vmatpush1.msra.mxu0 %v1020
    %2705 = vmatprep.subr.mxu0 %v1029
    %2706 = vmatpush1.msra.mxu0 %v1028
    %2707 = vmatprep.subr.mxu0 %v1037
    %2708 = vmatpush1.msra.mxu0 %v1036
    %2709 = vmatprep.subr.mxu0 %v1045
    %2710 = vmatpush1.msra.mxu0 %v1044
    %2711 = vmatprep.subr.mxu0 %v1053
    %2712 = vmatpush1.msra.mxu0 %v1052
    %2713 = vmatprep.subr.mxu0 %v1061
    %2714 = vmatpush1.msra.mxu0 %v1060
    %2715 = vmatprep.subr.mxu0 %v1069
    %2716 = vmatpush1.msra.mxu0 %v1068
    %2717 = vmatprep.subr.mxu0 %v1077
    %2718 = vmatpush1.msra.mxu0 %v1076
    %2719 = vmatprep.subr.mxu0 %v1085
    %2720 = vmatpush1.msra.mxu0 %v1084
    %2721 = vmatprep.subr.mxu0 %v1093
    %2722 = vmatpush1.msra.mxu0 %v1092
    %2723 = vmatprep.subr.mxu0 %v1101
    %2724 = vmatpush1.msra.mxu0 %v1100
    %2725 = vmatprep.subr.mxu0 %v1109
    %2726 = vmatpush1.msra.mxu0 %v1108
    %2727 = vmatprep.subr.mxu0 %v1117
    %2728 = vmatpush1.msra.mxu0 %v1116
    %2729 = vmatprep.subr.mxu0 %v1125
    %2730 = vmatpush1.msra.mxu0 %v1124
    %2731 = vmatprep.subr.mxu0 %v1133
    %2732 = vmatpush1.msra.mxu0 %v1132
    %2733 = vmatprep.subr.mxu0 %v1141
    %2734 = vmatpush1.msra.mxu0 %v1140
    %2735 = vmatprep.subr.mxu0 %v1149
    %2736 = vmatpush1.msra.mxu0 %v1148
    %2737 = vmatprep.mubr.f32.mxu0 %v1724
    %2738 = vmatmul.mubr.f32.gmra.mrb[0].mxu0 %v1722
    %v2739 = vpop.f32.mrb[0].mxu0
    %v2740 = vadd.f32 %v2669, %v2739
    %v2741 = vpop.f32.mrb[0].mxu0
    %v2742 = vadd.f32 %v2671, %v2741
    %2743 = vdwg.mxu0
    %2744 = vmatprep.subr.mxu0 %v1157
    %2745 = vmatpush1.msra.mxu0 %v1156
    %2746 = vmatprep.subr.mxu0 %v1165
    %2747 = vmatpush1.msra.mxu0 %v1164
    %2748 = vmatprep.subr.mxu0 %v1173
    %2749 = vmatpush1.msra.mxu0 %v1172
    %2750 = vmatprep.subr.mxu0 %v1181
    %2751 = vmatpush1.msra.mxu0 %v1180
    %2752 = vmatprep.subr.mxu0 %v1189
    %2753 = vmatpush1.msra.mxu0 %v1188
    %2754 = vmatprep.subr.mxu0 %v1197
    %2755 = vmatpush1.msra.mxu0 %v1196
    %2756 = vmatprep.subr.mxu0 %v1205
    %2757 = vmatpush1.msra.mxu0 %v1204
    %2758 = vmatprep.subr.mxu0 %v1213
    %2759 = vmatpush1.msra.mxu0 %v1212
    %2760 = vmatprep.subr.mxu0 %v1221
    %2761 = vmatpush1.msra.mxu0 %v1220
    %2762 = vmatprep.subr.mxu0 %v1229
    %2763 = vmatpush1.msra.mxu0 %v1228
    %2764 = vmatprep.subr.mxu0 %v1237
    %2765 = vmatpush1.msra.mxu0 %v1236
    %2766 = vmatprep.subr.mxu0 %v1245
    %2767 = vmatpush1.msra.mxu0 %v1244
    %2768 = vmatprep.subr.mxu0 %v1253
    %2769 = vmatpush1.msra.mxu0 %v1252
    %2770 = vmatprep.subr.mxu0 %v1261
    %2771 = vmatpush1.msra.mxu0 %v1260
    %2772 = vmatprep.subr.mxu0 %v1269
    %2773 = vmatpush1.msra.mxu0 %v1268
    %2774 = vmatprep.subr.mxu0 %v1277
    %2775 = vmatpush1.msra.mxu0 %v1276
    %2776 = vmatprep.subr.mxu0 %v1285
    %2777 = vmatpush1.msra.mxu0 %v1284
    %2778 = vmatprep.subr.mxu0 %v1293
    %2779 = vmatpush1.msra.mxu0 %v1292
    %2780 = vmatprep.subr.mxu0 %v1301
    %2781 = vmatpush1.msra.mxu0 %v1300
    %2782 = vmatprep.subr.mxu0 %v1309
    %2783 = vmatpush1.msra.mxu0 %v1308
    %2784 = vmatprep.subr.mxu0 %v1317
    %2785 = vmatpush1.msra.mxu0 %v1316
    %2786 = vmatprep.subr.mxu0 %v1325
    %2787 = vmatpush1.msra.mxu0 %v1324
    %2788 = vmatprep.subr.mxu0 %v1333
    %2789 = vmatpush1.msra.mxu0 %v1332
    %2790 = vmatprep.subr.mxu0 %v1341
    %2791 = vmatpush1.msra.mxu0 %v1340
    %2792 = vmatprep.subr.mxu0 %v1349
    %2793 = vmatpush1.msra.mxu0 %v1348
    %2794 = vmatprep.subr.mxu0 %v1357
    %2795 = vmatpush1.msra.mxu0 %v1356
    %2796 = vmatprep.subr.mxu0 %v1365
    %2797 = vmatpush1.msra.mxu0 %v1364
    %2798 = vmatprep.subr.mxu0 %v1373
    %2799 = vmatpush1.msra.mxu0 %v1372
    %2800 = vmatprep.subr.mxu0 %v1381
    %2801 = vmatpush1.msra.mxu0 %v1380
    %2802 = vmatprep.subr.mxu0 %v1389
    %2803 = vmatpush1.msra.mxu0 %v1388
    %2804 = vmatprep.subr.mxu0 %v1397
    %2805 = vmatpush1.msra.mxu0 %v1396
    %2806 = vmatprep.subr.mxu0 %v1405
    %2807 = vmatpush1.msra.mxu0 %v1404
    %2808 = vmatprep.mubr.f32.mxu0 %v1740
    %2809 = vmatmul.mubr.f32.gmra.mrb[0].mxu0 %v1732
    %v2810 = vpop.f32.mrb[0].mxu0
    %v2811 = vadd.f32 %v2740, %v2810
    %v2812 = vpop.f32.mrb[0].mxu0
    %v2813 = vadd.f32 %v2742, %v2812
    %2814 = vdwg.mxu0
    %2815 = vmatprep.subr.mxu0 %v1413
    %2816 = vmatpush1.msra.mxu0 %v1412
    %2817 = vmatprep.subr.mxu0 %v1421
    %2818 = vmatpush1.msra.mxu0 %v1420
    %2819 = vmatprep.subr.mxu0 %v1429
    %2820 = vmatpush1.msra.mxu0 %v1428
    %2821 = vmatprep.subr.mxu0 %v1437
    %2822 = vmatpush1.msra.mxu0 %v1436
    %2823 = vmatprep.subr.mxu0 %v1445
    %2824 = vmatpush1.msra.mxu0 %v1444
    %2825 = vmatprep.subr.mxu0 %v1453
    %2826 = vmatpush1.msra.mxu0 %v1452
    %2827 = vmatprep.subr.mxu0 %v1461
    %2828 = vmatpush1.msra.mxu0 %v1460
    %2829 = vmatprep.subr.mxu0 %v1469
    %2830 = vmatpush1.msra.mxu0 %v1468
    %2831 = vmatprep.subr.mxu0 %v1477
    %2832 = vmatpush1.msra.mxu0 %v1476
    %2833 = vmatprep.subr.mxu0 %v1485
    %2834 = vmatpush1.msra.mxu0 %v1484
    %2835 = vmatprep.subr.mxu0 %v1493
    %2836 = vmatpush1.msra.mxu0 %v1492
    %2837 = vmatprep.subr.mxu0 %v1501
    %2838 = vmatpush1.msra.mxu0 %v1500
    %2839 = vmatprep.subr.mxu0 %v1509
    %2840 = vmatpush1.msra.mxu0 %v1508
    %2841 = vmatprep.subr.mxu0 %v1517
    %2842 = vmatpush1.msra.mxu0 %v1516
    %2843 = vmatprep.subr.mxu0 %v1525
    %2844 = vmatpush1.msra.mxu0 %v1524
    %2845 = vmatprep.subr.mxu0 %v1533
    %2846 = vmatpush1.msra.mxu0 %v1532
    %2847 = vmatprep.subr.mxu0 %v1541
    %2848 = vmatpush1.msra.mxu0 %v1540
    %2849 = vmatprep.subr.mxu0 %v1549
    %2850 = vmatpush1.msra.mxu0 %v1548
    %2851 = vmatprep.subr.mxu0 %v1557
    %2852 = vmatpush1.msra.mxu0 %v1556
    %2853 = vmatprep.subr.mxu0 %v1565
    %2854 = vmatpush1.msra.mxu0 %v1564
    %2855 = vmatprep.subr.mxu0 %v1573
    %2856 = vmatpush1.msra.mxu0 %v1572
    %2857 = vmatprep.subr.mxu0 %v1581
    %2858 = vmatpush1.msra.mxu0 %v1580
    %2859 = vmatprep.subr.mxu0 %v1589
    %2860 = vmatpush1.msra.mxu0 %v1588
    %2861 = vmatprep.subr.mxu0 %v1597
    %2862 = vmatpush1.msra.mxu0 %v1596
    %2863 = vmatprep.subr.mxu0 %v1605
    %2864 = vmatpush1.msra.mxu0 %v1604
    %2865 = vmatprep.subr.mxu0 %v1613
    %2866 = vmatpush1.msra.mxu0 %v1612
    %2867 = vmatprep.subr.mxu0 %v1621
    %2868 = vmatpush1.msra.mxu0 %v1620
    %2869 = vmatprep.subr.mxu0 %v1629
    %2870 = vmatpush1.msra.mxu0 %v1628
    %2871 = vmatprep.subr.mxu0 %v1637
    %2872 = vmatpush1.msra.mxu0 %v1636
    %2873 = vmatprep.subr.mxu0 %v1645
    %2874 = vmatpush1.msra.mxu0 %v1644
    %2875 = vmatprep.subr.mxu0 %v1653
    %2876 = vmatpush1.msra.mxu0 %v1652
    %2877 = vmatprep.subr.mxu0 %v1661
    %2878 = vmatpush1.msra.mxu0 %v1660
    %2879 = vmatprep.mubr.f32.mxu0 %v1741
    %2880 = vmatmul.mubr.f32.gmra.mrb[0].mxu0 %v1739
    %v2881 = vpop.f32.mrb[0].mxu0
    %v2882 = vadd.f32 %v2811, %v2881
    %v2883 = vpop.f32.mrb[0].mxu0
    %v2884 = vadd.f32 %v2813, %v2883
    %2885 = vdwg.mxu0
    %v2886 = vmax.f32 %v2030, 0.0
    %v2887 = vmax.f32 %v2032, 0.0
    %v2888 = vmax.f32 %v2314, 0.0
    %v2889 = vmax.f32 %v2316, 0.0
    %v2890 = vmax.f32 %v2598, 0.0
    %v2891 = vmax.f32 %v2600, 0.0
    %v2892 = vmax.f32 %v2882, 0.0
    %v2893 = vmax.f32 %v2884, 0.0
    %s2894 = scalar_lea.vmem [#allocation12], 1
    %v2895 = vld [vmem:[%s2894] ss:$8 sm:$0xf]
    %v2896 = vld [vmem:[%s2894] ss:$8 sm:$0xf0]
    %v2897 = vor.u32 %v2895, %v2896
    %s2898 = scalar_lea.vmem [#allocation12], 2
    %v2899 = vld [vmem:[%s2898] ss:$8 sm:$0xf]
    %v2900 = vld [vmem:[%s2898] ss:$8 sm:$0xf0]
    %v2901 = vor.u32 %v2899, %v2900
    %vm2902 = vcmask 1041408
    %v2903 = vsel %vm2902, %v2886, 0.0
    %v2904 = vrot.slane %v2903, 4
    %v2905 = vadd.f32 %v2903, %v2904
    %v2906 = vrot.slane %v2905, 2
    %v2907 = vadd.f32 %v2905, %v2906
    %v2908 = vrot.slane %v2907, 1
    %v2909 = vadd.f32 %v2907, %v2908
    %v2910 = vsel %vm2902, %v2887, 0.0
    %v2911 = vrot.slane %v2910, 4
    %v2912 = vadd.f32 %v2910, %v2911
    %v2913 = vrot.slane %v2912, 2
    %v2914 = vadd.f32 %v2912, %v2913
    %v2915 = vrot.slane %v2914, 1
    %v2916 = vadd.f32 %v2914, %v2915
    %v2917 = vsel %vm2902, %v2888, 0.0
    %v2918 = vrot.slane %v2917, 4
    %v2919 = vadd.f32 %v2917, %v2918
    %v2920 = vrot.slane %v2919, 2
    %v2921 = vadd.f32 %v2919, %v2920
    %v2922 = vrot.slane %v2921, 1
    %v2923 = vadd.f32 %v2921, %v2922
    %v2924 = vsel %vm2902, %v2889, 0.0
    %v2925 = vrot.slane %v2924, 4
    %v2926 = vadd.f32 %v2924, %v2925
    %v2927 = vrot.slane %v2926, 2
    %v2928 = vadd.f32 %v2926, %v2927
    %v2929 = vrot.slane %v2928, 1
    %v2930 = vadd.f32 %v2928, %v2929
    %v2931 = vsel %vm2902, %v2890, 0.0
    %v2932 = vrot.slane %v2931, 4
    %v2933 = vadd.f32 %v2931, %v2932
    %v2934 = vrot.slane %v2933, 2
    %v2935 = vadd.f32 %v2933, %v2934
    %v2936 = vrot.slane %v2935, 1
    %v2937 = vadd.f32 %v2935, %v2936
    %v2938 = vsel %vm2902, %v2891, 0.0
    %v2939 = vrot.slane %v2938, 4
    %v2940 = vadd.f32 %v2938, %v2939
    %v2941 = vrot.slane %v2940, 2
    %v2942 = vadd.f32 %v2940, %v2941
    %v2943 = vrot.slane %v2942, 1
    %v2944 = vadd.f32 %v2942, %v2943
    %v2945 = vsel %vm2902, %v2892, 0.0
    %v2946 = vrot.slane %v2945, 4
    %v2947 = vadd.f32 %v2945, %v2946
    %v2948 = vrot.slane %v2947, 2
    %v2949 = vadd.f32 %v2947, %v2948
    %v2950 = vrot.slane %v2949, 1
    %v2951 = vadd.f32 %v2949, %v2950
    %v2952 = vsel %vm2902, %v2893, 0.0
    %v2953 = vrot.slane %v2952, 4
    %v2954 = vadd.f32 %v2952, %v2953
    %v2955 = vrot.slane %v2954, 2
    %v2956 = vadd.f32 %v2954, %v2955
    %v2957 = vrot.slane %v2956, 1
    %v2958 = vadd.f32 %v2956, %v2957
    %v2959 = vmul.f32 %v2886, %v2886
    %v2960 = vmul.f32 %v2887, %v2887
    %v2961 = vmul.f32 %v2888, %v2888
    %v2962 = vmul.f32 %v2889, %v2889
    %v2963 = vmul.f32 %v2890, %v2890
    %v2964 = vmul.f32 %v2891, %v2891
    %v2965 = vmul.f32 %v2892, %v2892
    %v2966 = vmul.f32 %v2893, %v2893
    %v2967 = vsel %vm2902, %v2959, 0.0
    %v2968 = vrot.slane %v2967, 4
    %v2969 = vadd.f32 %v2967, %v2968
    %v2970 = vrot.slane %v2969, 2
    %v2971 = vadd.f32 %v2969, %v2970
    %v2972 = vrot.slane %v2971, 1
    %v2973 = vadd.f32 %v2971, %v2972
    %v2974 = vsel %vm2902, %v2960, 0.0
    %v2975 = vrot.slane %v2974, 4
    %v2976 = vadd.f32 %v2974, %v2975
    %v2977 = vrot.slane %v2976, 2
    %v2978 = vadd.f32 %v2976, %v2977
    %v2979 = vrot.slane %v2978, 1
    %v2980 = vadd.f32 %v2978, %v2979
    %v2981 = vsel %vm2902, %v2961, 0.0
    %v2982 = vrot.slane %v2981, 4
    %v2983 = vadd.f32 %v2981, %v2982
    %v2984 = vrot.slane %v2983, 2
    %v2985 = vadd.f32 %v2983, %v2984
    %v2986 = vrot.slane %v2985, 1
    %v2987 = vadd.f32 %v2985, %v2986
    %v2988 = vsel %vm2902, %v2962, 0.0
    %v2989 = vrot.slane %v2988, 4
    %v2990 = vadd.f32 %v2988, %v2989
    %v2991 = vrot.slane %v2990, 2
    %v2992 = vadd.f32 %v2990, %v2991
    %v2993 = vrot.slane %v2992, 1
    %v2994 = vadd.f32 %v2992, %v2993
    %v2995 = vsel %vm2902, %v2963, 0.0
    %v2996 = vrot.slane %v2995, 4
    %v2997 = vadd.f32 %v2995, %v2996
    %v2998 = vrot.slane %v2997, 2
    %v2999 = vadd.f32 %v2997, %v2998
    %v3000 = vrot.slane %v2999, 1
    %v3001 = vadd.f32 %v2999, %v3000
    %v3002 = vsel %vm2902, %v2964, 0.0
    %v3003 = vrot.slane %v3002, 4
    %v3004 = vadd.f32 %v3002, %v3003
    %v3005 = vrot.slane %v3004, 2
    %v3006 = vadd.f32 %v3004, %v3005
    %v3007 = vrot.slane %v3006, 1
    %v3008 = vadd.f32 %v3006, %v3007
    %v3009 = vsel %vm2902, %v2965, 0.0
    %v3010 = vrot.slane %v3009, 4
    %v3011 = vadd.f32 %v3009, %v3010
    %v3012 = vrot.slane %v3011, 2
    %v3013 = vadd.f32 %v3011, %v3012
    %v3014 = vrot.slane %v3013, 1
    %v3015 = vadd.f32 %v3013, %v3014
    %v3016 = vsel %vm2902, %v2966, 0.0
    %v3017 = vrot.slane %v3016, 4
    %v3018 = vadd.f32 %v3016, %v3017
    %v3019 = vrot.slane %v3018, 2
    %v3020 = vadd.f32 %v3018, %v3019
    %v3021 = vrot.slane %v3020, 1
    %v3022 = vadd.f32 %v3020, %v3021
    %v3023 = vmul.f32 %v2909, 0.5
    %v3024 = vmul.f32 %v2916, 0.5
    %v3025 = vmul.f32 %v2923, 0.5
    %v3026 = vmul.f32 %v2930, 0.5
    %v3027 = vmul.f32 %v2937, 0.5
    %v3028 = vmul.f32 %v2944, 0.5
    %v3029 = vmul.f32 %v2951, 0.5
    %v3030 = vmul.f32 %v2958, 0.5
    %v3031 = vmul.f32 %v2973, 0.5
    %v3032 = vmul.f32 %v2980, 0.5
    %v3033 = vmul.f32 %v2987, 0.5
    %v3034 = vmul.f32 %v2994, 0.5
    %v3035 = vmul.f32 %v3001, 0.5
    %v3036 = vmul.f32 %v3008, 0.5
    %v3037 = vmul.f32 %v3015, 0.5
    %v3038 = vmul.f32 %v3022, 0.5
    %v3039 = vmul.f32 %v3023, %v3023
    %v3040 = vmul.f32 %v3024, %v3024
    %v3041 = vmul.f32 %v3025, %v3025
    %v3042 = vmul.f32 %v3026, %v3026
    %v3043 = vmul.f32 %v3027, %v3027
    %v3044 = vmul.f32 %v3028, %v3028
    %v3045 = vmul.f32 %v3029, %v3029
    %v3046 = vmul.f32 %v3030, %v3030
    %v3047 = vsub.f32 %v3031, %v3039
    %v3048 = vsub.f32 %v3032, %v3040
    %v3049 = vsub.f32 %v3033, %v3041
    %v3050 = vsub.f32 %v3034, %v3042
    %v3051 = vsub.f32 %v3035, %v3043
    %v3052 = vsub.f32 %v3036, %v3044
    %v3053 = vsub.f32 %v3037, %v3045
    %v3054 = vsub.f32 %v3038, %v3046
    %v3055 = vmax.f32 %v3047, 0.0
    %v3056 = vmax.f32 %v3048, 0.0
    %v3057 = vmax.f32 %v3049, 0.0
    %v3058 = vmax.f32 %v3050, 0.0
    %v3059 = vmax.f32 %v3051, 0.0
    %v3060 = vmax.f32 %v3052, 0.0
    %v3061 = vmax.f32 %v3053, 0.0
    %v3062 = vmax.f32 %v3054, 0.0
    %v3063 = vadd.f32 %v3055, 1e-05
    %v3064 = vadd.f32 %v3056, 1e-05
    %v3065 = vadd.f32 %v3057, 1e-05
    %v3066 = vadd.f32 %v3058, 1e-05
    %v3067 = vadd.f32 %v3059, 1e-05
    %v3068 = vadd.f32 %v3060, 1e-05
    %v3069 = vadd.f32 %v3061, 1e-05
    %v3070 = vadd.f32 %v3062, 1e-05
    %v3071 = vrsqrt.pop %v3063
    %v3072 = vrsqrt.pop %v3064
    %v3073 = vrsqrt.pop %v3065
    %v3074 = vrsqrt.pop %v3066
    %v3075 = vrsqrt.pop %v3067
    %v3076 = vrsqrt.pop %v3068
    %v3077 = vrsqrt.pop %v3069
    %v3078 = vrsqrt.pop %v3070
    %v3087 = vcombine.low %v3071, %v3072
    %v3088 = vcombine.low %v3073, %v3074
    %v3089 = vcombine.low %v3075, %v3076
    %v3090 = vcombine.low %v3077, %v3078
    %v3092 = vunpack.c.l.s4 1966171168
    %v3093 = vunpack.c.0.s8 %v3092
    %v3094 = vlaneseq
    %v3095 = vshrl.u32 %v3094, 7
    %v3096 = vsub.s32 %v3093, %v3095
    %v3097 = vrot.slane %v3087, %v3096
    %v3099 = vunpack.c.l.s4 1966171168
    %v3100 = vunpack.c.0.s8 %v3099
    %v3101 = vlaneseq
    %v3102 = vshrl.u32 %v3101, 7
    %v3103 = vsub.s32 %v3100, %v3102
    %v3104 = vrot.slane %v3088, %v3103
    %v3106 = vunpack.c.l.s4 1966171168
    %v3107 = vunpack.c.0.s8 %v3106
    %v3108 = vlaneseq
    %v3109 = vshrl.u32 %v3108, 7
    %v3110 = vsub.s32 %v3107, %v3109
    %v3111 = vrot.slane %v3089, %v3110
    %v3113 = vunpack.c.l.s4 1966171168
    %v3114 = vunpack.c.0.s8 %v3113
    %v3115 = vlaneseq
    %v3116 = vshrl.u32 %v3115, 7
    %v3117 = vsub.s32 %v3114, %v3116
    %v3118 = vrot.slane %v3090, %v3117
    %v3119 = vcombine.low %v3097, %v3104
    %v3120 = vcombine.low %v3111, %v3118
    %v3122 = vunpack.c.l.s4 1966171168
    %v3123 = vunpack.c.0.s8 %v3122
    %v3124 = vlaneseq
    %v3125 = vshrl.u32 %v3124, 7
    %v3126 = vsub.s32 %v3123, %v3125
    %v3127 = vrot.slane %v3119, %v3126
    %v3129 = vunpack.c.l.s4 1966171168
    %v3130 = vunpack.c.0.s8 %v3129
    %v3131 = vlaneseq
    %v3132 = vshrl.u32 %v3131, 7
    %v3133 = vsub.s32 %v3130, %v3132
    %v3134 = vrot.slane %v3120, %v3133
    %v3135 = vcombine.low %v3127, %v3134
    %v3137 = vmul.f32 %v2897, %v3135
    %v3139 = vlaneseq
    %v3140 = vshrl.u32 %v3139, 7
    %v3141 = vsub.s32 0, %v3140
    %v3142 = vrot.slane %v3137, %v3141
    %v3143 = vlaneseq
    %v3144 = vshrl.u32 %v3143, 7
    %v3145 = vsub.s32 1, %v3144
    %v3146 = vrot.slane %v3137, %v3145
    %v3147 = vlaneseq
    %v3148 = vshrl.u32 %v3147, 7
    %v3149 = vsub.s32 2, %v3148
    %v3150 = vrot.slane %v3137, %v3149
    %v3151 = vlaneseq
    %v3152 = vshrl.u32 %v3151, 7
    %v3153 = vsub.s32 3, %v3152
    %v3154 = vrot.slane %v3137, %v3153
    %v3155 = vlaneseq
    %v3156 = vshrl.u32 %v3155, 7
    %v3157 = vsub.s32 4, %v3156
    %v3158 = vrot.slane %v3137, %v3157
    %v3159 = vlaneseq
    %v3160 = vshrl.u32 %v3159, 7
    %v3161 = vsub.s32 5, %v3160
    %v3162 = vrot.slane %v3137, %v3161
    %v3163 = vlaneseq
    %v3164 = vshrl.u32 %v3163, 7
    %v3165 = vsub.s32 6, %v3164
    %v3166 = vrot.slane %v3137, %v3165
    %v3167 = vlaneseq
    %v3168 = vshrl.u32 %v3167, 7
    %v3169 = vsub.s32 7, %v3168
    %v3170 = vrot.slane %v3137, %v3169
    %v3179 = vmul.f32 %v3023, %v3142
    %v3180 = vmul.f32 %v3024, %v3146
    %v3181 = vmul.f32 %v3025, %v3150
    %v3182 = vmul.f32 %v3026, %v3154
    %v3183 = vmul.f32 %v3027, %v3158
    %v3184 = vmul.f32 %v3028, %v3162
    %v3185 = vmul.f32 %v3029, %v3166
    %v3186 = vmul.f32 %v3030, %v3170
    %v3195 = vcombine.low %v3179, %v3180
    %v3196 = vcombine.low %v3181, %v3182
    %v3197 = vcombine.low %v3183, %v3184
    %v3198 = vcombine.low %v3185, %v3186
    %v3200 = vunpack.c.l.s4 1966171168
    %v3201 = vunpack.c.0.s8 %v3200
    %v3202 = vlaneseq
    %v3203 = vshrl.u32 %v3202, 7
    %v3204 = vsub.s32 %v3201, %v3203
    %v3205 = vrot.slane %v3195, %v3204
    %v3207 = vunpack.c.l.s4 1966171168
    %v3208 = vunpack.c.0.s8 %v3207
    %v3209 = vlaneseq
    %v3210 = vshrl.u32 %v3209, 7
    %v3211 = vsub.s32 %v3208, %v3210
    %v3212 = vrot.slane %v3196, %v3211
    %v3214 = vunpack.c.l.s4 1966171168
    %v3215 = vunpack.c.0.s8 %v3214
    %v3216 = vlaneseq
    %v3217 = vshrl.u32 %v3216, 7
    %v3218 = vsub.s32 %v3215, %v3217
    %v3219 = vrot.slane %v3197, %v3218
    %v3221 = vunpack.c.l.s4 1966171168
    %v3222 = vunpack.c.0.s8 %v3221
    %v3223 = vlaneseq
    %v3224 = vshrl.u32 %v3223, 7
    %v3225 = vsub.s32 %v3222, %v3224
    %v3226 = vrot.slane %v3198, %v3225
    %v3227 = vcombine.low %v3205, %v3212
    %v3228 = vcombine.low %v3219, %v3226
    %v3230 = vunpack.c.l.s4 1966171168
    %v3231 = vunpack.c.0.s8 %v3230
    %v3232 = vlaneseq
    %v3233 = vshrl.u32 %v3232, 7
    %v3234 = vsub.s32 %v3231, %v3233
    %v3235 = vrot.slane %v3227, %v3234
    %v3237 = vunpack.c.l.s4 1966171168
    %v3238 = vunpack.c.0.s8 %v3237
    %v3239 = vlaneseq
    %v3240 = vshrl.u32 %v3239, 7
    %v3241 = vsub.s32 %v3238, %v3240
    %v3242 = vrot.slane %v3228, %v3241
    %v3243 = vcombine.low %v3235, %v3242
    %v3245 = vsub.f32 %v2901, %v3243
    %v3246 = vmul.f32 %v2886, %v3142
    %v3247 = vmul.f32 %v2887, %v3146
    %v3248 = vmul.f32 %v2888, %v3150
    %v3249 = vmul.f32 %v2889, %v3154
    %v3250 = vmul.f32 %v2890, %v3158
    %v3251 = vmul.f32 %v2891, %v3162
    %v3252 = vmul.f32 %v2892, %v3166
    %v3253 = vmul.f32 %v2893, %v3170
    %v3255 = vlaneseq
    %v3256 = vshrl.u32 %v3255, 7
    %v3257 = vsub.s32 0, %v3256
    %v3258 = vrot.slane %v3245, %v3257
    %v3259 = vlaneseq
    %v3260 = vshrl.u32 %v3259, 7
    %v3261 = vsub.s32 1, %v3260
    %v3262 = vrot.slane %v3245, %v3261
    %v3263 = vlaneseq
    %v3264 = vshrl.u32 %v3263, 7
    %v3265 = vsub.s32 2, %v3264
    %v3266 = vrot.slane %v3245, %v3265
    %v3267 = vlaneseq
    %v3268 = vshrl.u32 %v3267, 7
    %v3269 = vsub.s32 3, %v3268
    %v3270 = vrot.slane %v3245, %v3269
    %v3271 = vlaneseq
    %v3272 = vshrl.u32 %v3271, 7
    %v3273 = vsub.s32 4, %v3272
    %v3274 = vrot.slane %v3245, %v3273
    %v3275 = vlaneseq
    %v3276 = vshrl.u32 %v3275, 7
    %v3277 = vsub.s32 5, %v3276
    %v3278 = vrot.slane %v3245, %v3277
    %v3279 = vlaneseq
    %v3280 = vshrl.u32 %v3279, 7
    %v3281 = vsub.s32 6, %v3280
    %v3282 = vrot.slane %v3245, %v3281
    %v3283 = vlaneseq
    %v3284 = vshrl.u32 %v3283, 7
    %v3285 = vsub.s32 7, %v3284
    %v3286 = vrot.slane %v3245, %v3285
    %v3295 = vadd.f32 %v3246, %v3258
    %v3296 = vadd.f32 %v3247, %v3262
    %v3297 = vadd.f32 %v3248, %v3266
    %v3298 = vadd.f32 %v3249, %v3270
    %v3299 = vadd.f32 %v3250, %v3274
    %v3300 = vadd.f32 %v3251, %v3278
    %v3301 = vadd.f32 %v3252, %v3282
    %v3302 = vadd.f32 %v3253, %v3286
    %v3303 = vld [vmem:[#allocation4] sm:$0xff]
    %v3304 = vld [vmem:[#allocation4 + $0x8] sm:$0xff]
    %v3305 = vld [vmem:[#allocation4 + $0x10] sm:$0xff]
    %v3306 = vld [vmem:[#allocation4 + $0x18] sm:$0xff]
    %v3307 = vld [vmem:[#allocation4 + $0x20] sm:$0xff]
    %v3308 = vld [vmem:[#allocation4 + $0x28] sm:$0xff]
    %v3309 = vld [vmem:[#allocation4 + $0x30] sm:$0xff]
    %v3310 = vld [vmem:[#allocation4 + $0x38] sm:$0xff]
    %v3311 = vld [vmem:[#allocation4 + $0x40] sm:$0xff]
    %v3312 = vld [vmem:[#allocation4 + $0x48] sm:$0xff]
    %v3313 = vld [vmem:[#allocation4 + $0x50] sm:$0xff]
    %v3314 = vld [vmem:[#allocation4 + $0x58] sm:$0xff]
    %v3315 = vld [vmem:[#allocation4 + $0x60] sm:$0xff]
    %v3316 = vld [vmem:[#allocation4 + $0x68] sm:$0xff]
    %v3317 = vld [vmem:[#allocation4 + $0x70] sm:$0xff]
    %v3318 = vld [vmem:[#allocation4 + $0x78] sm:$0xff]
    %v3319 = vld [vmem:[#allocation4 + $0x80] sm:$0xff]
    %v3320 = vld [vmem:[#allocation4 + $0x88] sm:$0xff]
    %v3321 = vld [vmem:[#allocation4 + $0x90] sm:$0xff]
    %v3322 = vld [vmem:[#allocation4 + $0x98] sm:$0xff]
    %v3323 = vld [vmem:[#allocation4 + $0xa0] sm:$0xff]
    %v3324 = vld [vmem:[#allocation4 + $0xa8] sm:$0xff]
    %v3325 = vld [vmem:[#allocation4 + $0xb0] sm:$0xff]
    %v3326 = vld [vmem:[#allocation4 + $0xb8] sm:$0xff]
    %v3327 = vld [vmem:[#allocation4 + $0xc0] sm:$0xff]
    %v3328 = vld [vmem:[#allocation4 + $0xc8] sm:$0xff]
    %v3329 = vld [vmem:[#allocation4 + $0xd0] sm:$0xff]
    %v3330 = vld [vmem:[#allocation4 + $0xd8] sm:$0xff]
    %v3331 = vld [vmem:[#allocation4 + $0xe0] sm:$0xff]
    %v3332 = vld [vmem:[#allocation4 + $0xe8] sm:$0xff]
    %v3333 = vld [vmem:[#allocation4 + $0xf0] sm:$0xff]
    %v3334 = vld [vmem:[#allocation4 + $0xf8] sm:$0xff]
    %v3335 = vld [vmem:[#allocation4 + $0x100] sm:$0xff]
    %v3336 = vld [vmem:[#allocation4 + $0x108] sm:$0xff]
    %v3337 = vld [vmem:[#allocation4 + $0x110] sm:$0xff]
    %v3338 = vld [vmem:[#allocation4 + $0x118] sm:$0xff]
    %v3339 = vld [vmem:[#allocation4 + $0x120] sm:$0xff]
    %v3340 = vld [vmem:[#allocation4 + $0x128] sm:$0xff]
    %v3341 = vld [vmem:[#allocation4 + $0x130] sm:$0xff]
    %v3342 = vld [vmem:[#allocation4 + $0x138] sm:$0xff]
    %v3343 = vld [vmem:[#allocation4 + $0x140] sm:$0xff]
    %v3344 = vld [vmem:[#allocation4 + $0x148] sm:$0xff]
    %v3345 = vld [vmem:[#allocation4 + $0x150] sm:$0xff]
    %v3346 = vld [vmem:[#allocation4 + $0x158] sm:$0xff]
    %v3347 = vld [vmem:[#allocation4 + $0x160] sm:$0xff]
    %v3348 = vld [vmem:[#allocation4 + $0x168] sm:$0xff]
    %v3349 = vld [vmem:[#allocation4 + $0x170] sm:$0xff]
    %v3350 = vld [vmem:[#allocation4 + $0x178] sm:$0xff]
    %v3351 = vld [vmem:[#allocation4 + $0x180] sm:$0xff]
    %v3352 = vld [vmem:[#allocation4 + $0x188] sm:$0xff]
    %v3353 = vld [vmem:[#allocation4 + $0x190] sm:$0xff]
    %v3354 = vld [vmem:[#allocation4 + $0x198] sm:$0xff]
    %v3355 = vld [vmem:[#allocation4 + $0x1a0] sm:$0xff]
    %v3356 = vld [vmem:[#allocation4 + $0x1a8] sm:$0xff]
    %v3357 = vld [vmem:[#allocation4 + $0x1b0] sm:$0xff]
    %v3358 = vld [vmem:[#allocation4 + $0x1b8] sm:$0xff]
    %v3359 = vld [vmem:[#allocation4 + $0x1c0] sm:$0xff]
    %v3360 = vld [vmem:[#allocation4 + $0x1c8] sm:$0xff]
    %v3361 = vld [vmem:[#allocation4 + $0x1d0] sm:$0xff]
    %v3362 = vld [vmem:[#allocation4 + $0x1d8] sm:$0xff]
    %v3363 = vld [vmem:[#allocation4 + $0x1e0] sm:$0xff]
    %v3364 = vld [vmem:[#allocation4 + $0x1e8] sm:$0xff]
    %v3365 = vld [vmem:[#allocation4 + $0x1f0] sm:$0xff]
    %v3366 = vld [vmem:[#allocation4 + $0x1f8] sm:$0xff]
    %v3367 = vld [vmem:[#allocation4 + $0x200] sm:$0xff]
    %v3368 = vld [vmem:[#allocation4 + $0x208] sm:$0xff]
    %v3369 = vld [vmem:[#allocation4 + $0x210] sm:$0xff]
    %v3370 = vld [vmem:[#allocation4 + $0x218] sm:$0xff]
    %v3371 = vld [vmem:[#allocation4 + $0x220] sm:$0xff]
    %v3372 = vld [vmem:[#allocation4 + $0x228] sm:$0xff]
    %v3373 = vld [vmem:[#allocation4 + $0x230] sm:$0xff]
    %v3374 = vld [vmem:[#allocation4 + $0x238] sm:$0xff]
    %v3375 = vld [vmem:[#allocation4 + $0x240] sm:$0xff]
    %v3376 = vld [vmem:[#allocation4 + $0x248] sm:$0xff]
    %v3377 = vld [vmem:[#allocation4 + $0x250] sm:$0xff]
    %v3378 = vld [vmem:[#allocation4 + $0x258] sm:$0xff]
    %v3379 = vld [vmem:[#allocation4 + $0x260] sm:$0xff]
    %v3380 = vld [vmem:[#allocation4 + $0x268] sm:$0xff]
    %v3381 = vld [vmem:[#allocation4 + $0x270] sm:$0xff]
    %v3382 = vld [vmem:[#allocation4 + $0x278] sm:$0xff]
    %v3383 = vld [vmem:[#allocation4 + $0x280] sm:$0xff]
    %v3384 = vld [vmem:[#allocation4 + $0x288] sm:$0xff]
    %v3385 = vld [vmem:[#allocation4 + $0x290] sm:$0xff]
    %v3386 = vld [vmem:[#allocation4 + $0x298] sm:$0xff]
    %v3387 = vld [vmem:[#allocation4 + $0x2a0] sm:$0xff]
    %v3388 = vld [vmem:[#allocation4 + $0x2a8] sm:$0xff]
    %v3389 = vld [vmem:[#allocation4 + $0x2b0] sm:$0xff]
    %v3390 = vld [vmem:[#allocation4 + $0x2b8] sm:$0xff]
    %v3391 = vld [vmem:[#allocation4 + $0x2c0] sm:$0xff]
    %v3392 = vld [vmem:[#allocation4 + $0x2c8] sm:$0xff]
    %v3393 = vld [vmem:[#allocation4 + $0x2d0] sm:$0xff]
    %v3394 = vld [vmem:[#allocation4 + $0x2d8] sm:$0xff]
    %v3395 = vld [vmem:[#allocation4 + $0x2e0] sm:$0xff]
    %v3396 = vld [vmem:[#allocation4 + $0x2e8] sm:$0xff]
    %v3397 = vld [vmem:[#allocation4 + $0x2f0] sm:$0xff]
    %v3398 = vld [vmem:[#allocation4 + $0x2f8] sm:$0xff]
    %v3399 = vld [vmem:[#allocation4 + $0x300] sm:$0xff]
    %v3400 = vld [vmem:[#allocation4 + $0x308] sm:$0xff]
    %v3401 = vld [vmem:[#allocation4 + $0x310] sm:$0xff]
    %v3402 = vld [vmem:[#allocation4 + $0x318] sm:$0xff]
    %v3403 = vld [vmem:[#allocation4 + $0x320] sm:$0xff]
    %v3404 = vld [vmem:[#allocation4 + $0x328] sm:$0xff]
    %v3405 = vld [vmem:[#allocation4 + $0x330] sm:$0xff]
    %v3406 = vld [vmem:[#allocation4 + $0x338] sm:$0xff]
    %v3407 = vld [vmem:[#allocation4 + $0x340] sm:$0xff]
    %v3408 = vld [vmem:[#allocation4 + $0x348] sm:$0xff]
    %v3409 = vld [vmem:[#allocation4 + $0x350] sm:$0xff]
    %v3410 = vld [vmem:[#allocation4 + $0x358] sm:$0xff]
    %v3411 = vld [vmem:[#allocation4 + $0x360] sm:$0xff]
    %v3412 = vld [vmem:[#allocation4 + $0x368] sm:$0xff]
    %v3413 = vld [vmem:[#allocation4 + $0x370] sm:$0xff]
    %v3414 = vld [vmem:[#allocation4 + $0x378] sm:$0xff]
    %v3415 = vld [vmem:[#allocation4 + $0x380] sm:$0xff]
    %v3416 = vld [vmem:[#allocation4 + $0x388] sm:$0xff]
    %v3417 = vld [vmem:[#allocation4 + $0x390] sm:$0xff]
    %v3418 = vld [vmem:[#allocation4 + $0x398] sm:$0xff]
    %v3419 = vld [vmem:[#allocation4 + $0x3a0] sm:$0xff]
    %v3420 = vld [vmem:[#allocation4 + $0x3a8] sm:$0xff]
    %v3421 = vld [vmem:[#allocation4 + $0x3b0] sm:$0xff]
    %v3422 = vld [vmem:[#allocation4 + $0x3b8] sm:$0xff]
    %v3423 = vld [vmem:[#allocation4 + $0x3c0] sm:$0xff]
    %v3424 = vld [vmem:[#allocation4 + $0x3c8] sm:$0xff]
    %v3425 = vld [vmem:[#allocation4 + $0x3d0] sm:$0xff]
    %v3426 = vld [vmem:[#allocation4 + $0x3d8] sm:$0xff]
    %v3427 = vld [vmem:[#allocation4 + $0x3e0] sm:$0xff]
    %v3428 = vld [vmem:[#allocation4 + $0x3e8] sm:$0xff]
    %v3429 = vld [vmem:[#allocation4 + $0x3f0] sm:$0xff]
    %v3430 = vld [vmem:[#allocation4 + $0x3f8] sm:$0xff]
    %v3431 = vld [vmem:[#allocation4 + $0x400] sm:$0xff]
    %v3432 = vld [vmem:[#allocation4 + $0x408] sm:$0xff]
    %v3433 = vld [vmem:[#allocation4 + $0x410] sm:$0xff]
    %v3434 = vld [vmem:[#allocation4 + $0x418] sm:$0xff]
    %v3435 = vld [vmem:[#allocation4 + $0x420] sm:$0xff]
    %v3436 = vld [vmem:[#allocation4 + $0x428] sm:$0xff]
    %v3437 = vld [vmem:[#allocation4 + $0x430] sm:$0xff]
    %v3438 = vld [vmem:[#allocation4 + $0x438] sm:$0xff]
    %v3439 = vld [vmem:[#allocation4 + $0x440] sm:$0xff]
    %v3440 = vld [vmem:[#allocation4 + $0x448] sm:$0xff]
    %v3441 = vld [vmem:[#allocation4 + $0x450] sm:$0xff]
    %v3442 = vld [vmem:[#allocation4 + $0x458] sm:$0xff]
    %v3443 = vld [vmem:[#allocation4 + $0x460] sm:$0xff]
    %v3444 = vld [vmem:[#allocation4 + $0x468] sm:$0xff]
    %v3445 = vld [vmem:[#allocation4 + $0x470] sm:$0xff]
    %v3446 = vld [vmem:[#allocation4 + $0x478] sm:$0xff]
    %v3447 = vld [vmem:[#allocation4 + $0x480] sm:$0xff]
    %v3448 = vld [vmem:[#allocation4 + $0x488] sm:$0xff]
    %v3449 = vld [vmem:[#allocation4 + $0x490] sm:$0xff]
    %v3450 = vld [vmem:[#allocation4 + $0x498] sm:$0xff]
    %v3451 = vld [vmem:[#allocation4 + $0x4a0] sm:$0xff]
    %v3452 = vld [vmem:[#allocation4 + $0x4a8] sm:$0xff]
    %v3453 = vld [vmem:[#allocation4 + $0x4b0] sm:$0xff]
    %v3454 = vld [vmem:[#allocation4 + $0x4b8] sm:$0xff]
    %v3455 = vld [vmem:[#allocation4 + $0x4c0] sm:$0xff]
    %v3456 = vld [vmem:[#allocation4 + $0x4c8] sm:$0xff]
    %v3457 = vld [vmem:[#allocation4 + $0x4d0] sm:$0xff]
    %v3458 = vld [vmem:[#allocation4 + $0x4d8] sm:$0xff]
    %v3459 = vld [vmem:[#allocation4 + $0x4e0] sm:$0xff]
    %v3460 = vld [vmem:[#allocation4 + $0x4e8] sm:$0xff]
    %v3461 = vld [vmem:[#allocation4 + $0x4f0] sm:$0xff]
    %v3462 = vld [vmem:[#allocation4 + $0x4f8] sm:$0xff]
    %v3463 = vld [vmem:[#allocation4 + $0x500] sm:$0xff]
    %v3464 = vld [vmem:[#allocation4 + $0x508] sm:$0xff]
    %v3465 = vld [vmem:[#allocation4 + $0x510] sm:$0xff]
    %v3466 = vld [vmem:[#allocation4 + $0x518] sm:$0xff]
    %v3467 = vld [vmem:[#allocation4 + $0x520] sm:$0xff]
    %v3468 = vld [vmem:[#allocation4 + $0x528] sm:$0xff]
    %v3469 = vld [vmem:[#allocation4 + $0x530] sm:$0xff]
    %v3470 = vld [vmem:[#allocation4 + $0x538] sm:$0xff]
    %v3471 = vld [vmem:[#allocation4 + $0x540] sm:$0xff]
    %v3472 = vld [vmem:[#allocation4 + $0x548] sm:$0xff]
    %v3473 = vld [vmem:[#allocation4 + $0x550] sm:$0xff]
    %v3474 = vld [vmem:[#allocation4 + $0x558] sm:$0xff]
    %v3475 = vld [vmem:[#allocation4 + $0x560] sm:$0xff]
    %v3476 = vld [vmem:[#allocation4 + $0x568] sm:$0xff]
    %v3477 = vld [vmem:[#allocation4 + $0x570] sm:$0xff]
    %v3478 = vld [vmem:[#allocation4 + $0x578] sm:$0xff]
    %v3479 = vld [vmem:[#allocation4 + $0x580] sm:$0xff]
    %v3480 = vld [vmem:[#allocation4 + $0x588] sm:$0xff]
    %v3481 = vld [vmem:[#allocation4 + $0x590] sm:$0xff]
    %v3482 = vld [vmem:[#allocation4 + $0x598] sm:$0xff]
    %v3483 = vld [vmem:[#allocation4 + $0x5a0] sm:$0xff]
    %v3484 = vld [vmem:[#allocation4 + $0x5a8] sm:$0xff]
    %v3485 = vld [vmem:[#allocation4 + $0x5b0] sm:$0xff]
    %v3486 = vld [vmem:[#allocation4 + $0x5b8] sm:$0xff]
    %v3487 = vld [vmem:[#allocation4 + $0x5c0] sm:$0xff]
    %v3488 = vld [vmem:[#allocation4 + $0x5c8] sm:$0xff]
    %v3489 = vld [vmem:[#allocation4 + $0x5d0] sm:$0xff]
    %v3490 = vld [vmem:[#allocation4 + $0x5d8] sm:$0xff]
    %v3491 = vld [vmem:[#allocation4 + $0x5e0] sm:$0xff]
    %v3492 = vld [vmem:[#allocation4 + $0x5e8] sm:$0xff]
    %v3493 = vld [vmem:[#allocation4 + $0x5f0] sm:$0xff]
    %v3494 = vld [vmem:[#allocation4 + $0x5f8] sm:$0xff]
    %v3495 = vld [vmem:[#allocation4 + $0x600] sm:$0xff]
    %v3496 = vld [vmem:[#allocation4 + $0x608] sm:$0xff]
    %v3497 = vld [vmem:[#allocation4 + $0x610] sm:$0xff]
    %v3498 = vld [vmem:[#allocation4 + $0x618] sm:$0xff]
    %v3499 = vld [vmem:[#allocation4 + $0x620] sm:$0xff]
    %v3500 = vld [vmem:[#allocation4 + $0x628] sm:$0xff]
    %v3501 = vld [vmem:[#allocation4 + $0x630] sm:$0xff]
    %v3502 = vld [vmem:[#allocation4 + $0x638] sm:$0xff]
    %v3503 = vld [vmem:[#allocation4 + $0x640] sm:$0xff]
    %v3504 = vld [vmem:[#allocation4 + $0x648] sm:$0xff]
    %v3505 = vld [vmem:[#allocation4 + $0x650] sm:$0xff]
    %v3506 = vld [vmem:[#allocation4 + $0x658] sm:$0xff]
    %v3507 = vld [vmem:[#allocation4 + $0x660] sm:$0xff]
    %v3508 = vld [vmem:[#allocation4 + $0x668] sm:$0xff]
    %v3509 = vld [vmem:[#allocation4 + $0x670] sm:$0xff]
    %v3510 = vld [vmem:[#allocation4 + $0x678] sm:$0xff]
    %v3511 = vld [vmem:[#allocation4 + $0x680] sm:$0xff]
    %v3512 = vld [vmem:[#allocation4 + $0x688] sm:$0xff]
    %v3513 = vld [vmem:[#allocation4 + $0x690] sm:$0xff]
    %v3514 = vld [vmem:[#allocation4 + $0x698] sm:$0xff]
    %v3515 = vld [vmem:[#allocation4 + $0x6a0] sm:$0xff]
    %v3516 = vld [vmem:[#allocation4 + $0x6a8] sm:$0xff]
    %v3517 = vld [vmem:[#allocation4 + $0x6b0] sm:$0xff]
    %v3518 = vld [vmem:[#allocation4 + $0x6b8] sm:$0xff]
    %v3519 = vld [vmem:[#allocation4 + $0x6c0] sm:$0xff]
    %v3520 = vld [vmem:[#allocation4 + $0x6c8] sm:$0xff]
    %v3521 = vld [vmem:[#allocation4 + $0x6d0] sm:$0xff]
    %v3522 = vld [vmem:[#allocation4 + $0x6d8] sm:$0xff]
    %v3523 = vld [vmem:[#allocation4 + $0x6e0] sm:$0xff]
    %v3524 = vld [vmem:[#allocation4 + $0x6e8] sm:$0xff]
    %v3525 = vld [vmem:[#allocation4 + $0x6f0] sm:$0xff]
    %v3526 = vld [vmem:[#allocation4 + $0x6f8] sm:$0xff]
    %v3527 = vld [vmem:[#allocation4 + $0x700] sm:$0xff]
    %v3528 = vld [vmem:[#allocation4 + $0x708] sm:$0xff]
    %v3529 = vld [vmem:[#allocation4 + $0x710] sm:$0xff]
    %v3530 = vld [vmem:[#allocation4 + $0x718] sm:$0xff]
    %v3531 = vld [vmem:[#allocation4 + $0x720] sm:$0xff]
    %v3532 = vld [vmem:[#allocation4 + $0x728] sm:$0xff]
    %v3533 = vld [vmem:[#allocation4 + $0x730] sm:$0xff]
    %v3534 = vld [vmem:[#allocation4 + $0x738] sm:$0xff]
    %v3535 = vld [vmem:[#allocation4 + $0x740] sm:$0xff]
    %v3536 = vld [vmem:[#allocation4 + $0x748] sm:$0xff]
    %v3537 = vld [vmem:[#allocation4 + $0x750] sm:$0xff]
    %v3538 = vld [vmem:[#allocation4 + $0x758] sm:$0xff]
    %v3539 = vld [vmem:[#allocation4 + $0x760] sm:$0xff]
    %v3540 = vld [vmem:[#allocation4 + $0x768] sm:$0xff]
    %v3541 = vld [vmem:[#allocation4 + $0x770] sm:$0xff]
    %v3542 = vld [vmem:[#allocation4 + $0x778] sm:$0xff]
    %v3543 = vld [vmem:[#allocation4 + $0x780] sm:$0xff]
    %v3544 = vld [vmem:[#allocation4 + $0x788] sm:$0xff]
    %v3545 = vld [vmem:[#allocation4 + $0x790] sm:$0xff]
    %v3546 = vld [vmem:[#allocation4 + $0x798] sm:$0xff]
    %v3547 = vld [vmem:[#allocation4 + $0x7a0] sm:$0xff]
    %v3548 = vld [vmem:[#allocation4 + $0x7a8] sm:$0xff]
    %v3549 = vld [vmem:[#allocation4 + $0x7b0] sm:$0xff]
    %v3550 = vld [vmem:[#allocation4 + $0x7b8] sm:$0xff]
    %v3551 = vld [vmem:[#allocation4 + $0x7c0] sm:$0xff]
    %v3552 = vld [vmem:[#allocation4 + $0x7c8] sm:$0xff]
    %v3553 = vld [vmem:[#allocation4 + $0x7d0] sm:$0xff]
    %v3554 = vld [vmem:[#allocation4 + $0x7d8] sm:$0xff]
    %v3555 = vld [vmem:[#allocation4 + $0x7e0] sm:$0xff]
    %v3556 = vld [vmem:[#allocation4 + $0x7e8] sm:$0xff]
    %v3557 = vld [vmem:[#allocation4 + $0x7f0] sm:$0xff]
    %v3558 = vld [vmem:[#allocation4 + $0x7f8] sm:$0xff]
    %v3559 = vunpack.c.l.bf16 %v3303
    %v3560 = vunpack.c.h.bf16 %v3303
    %v3561 = vunpack.c.l.bf16 %v3304
    %v3562 = vunpack.c.h.bf16 %v3304
    %v3563 = vunpack.c.l.bf16 %v3305
    %v3564 = vunpack.c.h.bf16 %v3305
    %v3565 = vunpack.c.l.bf16 %v3306
    %v3566 = vunpack.c.h.bf16 %v3306
    %v3567 = vunpack.c.l.bf16 %v3307
    %v3568 = vunpack.c.h.bf16 %v3307
    %v3569 = vunpack.c.l.bf16 %v3308
    %v3570 = vunpack.c.h.bf16 %v3308
    %v3571 = vunpack.c.l.bf16 %v3309
    %v3572 = vunpack.c.h.bf16 %v3309
    %v3573 = vunpack.c.l.bf16 %v3310
    %v3574 = vunpack.c.h.bf16 %v3310
    %v3575 = vunpack.c.l.bf16 %v3311
    %v3576 = vunpack.c.h.bf16 %v3311
    %v3577 = vunpack.c.l.bf16 %v3312
    %v3578 = vunpack.c.h.bf16 %v3312
    %v3579 = vunpack.c.l.bf16 %v3313
    %v3580 = vunpack.c.h.bf16 %v3313
    %v3581 = vunpack.c.l.bf16 %v3314
    %v3582 = vunpack.c.h.bf16 %v3314
    %v3583 = vunpack.c.l.bf16 %v3315
    %v3584 = vunpack.c.h.bf16 %v3315
    %v3585 = vunpack.c.l.bf16 %v3316
    %v3586 = vunpack.c.h.bf16 %v3316
    %v3587 = vunpack.c.l.bf16 %v3317
    %v3588 = vunpack.c.h.bf16 %v3317
    %v3589 = vunpack.c.l.bf16 %v3318
    %v3590 = vunpack.c.h.bf16 %v3318
    %v3591 = vunpack.c.l.bf16 %v3319
    %v3592 = vunpack.c.h.bf16 %v3319
    %v3593 = vunpack.c.l.bf16 %v3320
    %v3594 = vunpack.c.h.bf16 %v3320
    %v3595 = vunpack.c.l.bf16 %v3321
    %v3596 = vunpack.c.h.bf16 %v3321
    %v3597 = vunpack.c.l.bf16 %v3322
    %v3598 = vunpack.c.h.bf16 %v3322
    %v3599 = vunpack.c.l.bf16 %v3323
    %v3600 = vunpack.c.h.bf16 %v3323
    %v3601 = vunpack.c.l.bf16 %v3324
    %v3602 = vunpack.c.h.bf16 %v3324
    %v3603 = vunpack.c.l.bf16 %v3325
    %v3604 = vunpack.c.h.bf16 %v3325
    %v3605 = vunpack.c.l.bf16 %v3326
    %v3606 = vunpack.c.h.bf16 %v3326
    %v3607 = vunpack.c.l.bf16 %v3327
    %v3608 = vunpack.c.h.bf16 %v3327
    %v3609 = vunpack.c.l.bf16 %v3328
    %v3610 = vunpack.c.h.bf16 %v3328
    %v3611 = vunpack.c.l.bf16 %v3329
    %v3612 = vunpack.c.h.bf16 %v3329
    %v3613 = vunpack.c.l.bf16 %v3330
    %v3614 = vunpack.c.h.bf16 %v3330
    %v3615 = vunpack.c.l.bf16 %v3331
    %v3616 = vunpack.c.h.bf16 %v3331
    %v3617 = vunpack.c.l.bf16 %v3332
    %v3618 = vunpack.c.h.bf16 %v3332
    %v3619 = vunpack.c.l.bf16 %v3333
    %v3620 = vunpack.c.h.bf16 %v3333
    %v3621 = vunpack.c.l.bf16 %v3334
    %v3622 = vunpack.c.h.bf16 %v3334
    %v3623 = vunpack.c.l.bf16 %v3335
    %v3624 = vunpack.c.h.bf16 %v3335
    %v3625 = vunpack.c.l.bf16 %v3336
    %v3626 = vunpack.c.h.bf16 %v3336
    %v3627 = vunpack.c.l.bf16 %v3337
    %v3628 = vunpack.c.h.bf16 %v3337
    %v3629 = vunpack.c.l.bf16 %v3338
    %v3630 = vunpack.c.h.bf16 %v3338
    %v3631 = vunpack.c.l.bf16 %v3339
    %v3632 = vunpack.c.h.bf16 %v3339
    %v3633 = vunpack.c.l.bf16 %v3340
    %v3634 = vunpack.c.h.bf16 %v3340
    %v3635 = vunpack.c.l.bf16 %v3341
    %v3636 = vunpack.c.h.bf16 %v3341
    %v3637 = vunpack.c.l.bf16 %v3342
    %v3638 = vunpack.c.h.bf16 %v3342
    %v3639 = vunpack.c.l.bf16 %v3343
    %v3640 = vunpack.c.h.bf16 %v3343
    %v3641 = vunpack.c.l.bf16 %v3344
    %v3642 = vunpack.c.h.bf16 %v3344
    %v3643 = vunpack.c.l.bf16 %v3345
    %v3644 = vunpack.c.h.bf16 %v3345
    %v3645 = vunpack.c.l.bf16 %v3346
    %v3646 = vunpack.c.h.bf16 %v3346
    %v3647 = vunpack.c.l.bf16 %v3347
    %v3648 = vunpack.c.h.bf16 %v3347
    %v3649 = vunpack.c.l.bf16 %v3348
    %v3650 = vunpack.c.h.bf16 %v3348
    %v3651 = vunpack.c.l.bf16 %v3349
    %v3652 = vunpack.c.h.bf16 %v3349
    %v3653 = vunpack.c.l.bf16 %v3350
    %v3654 = vunpack.c.h.bf16 %v3350
    %v3655 = vunpack.c.l.bf16 %v3351
    %v3656 = vunpack.c.h.bf16 %v3351
    %v3657 = vunpack.c.l.bf16 %v3352
    %v3658 = vunpack.c.h.bf16 %v3352
    %v3659 = vunpack.c.l.bf16 %v3353
    %v3660 = vunpack.c.h.bf16 %v3353
    %v3661 = vunpack.c.l.bf16 %v3354
    %v3662 = vunpack.c.h.bf16 %v3354
    %v3663 = vunpack.c.l.bf16 %v3355
    %v3664 = vunpack.c.h.bf16 %v3355
    %v3665 = vunpack.c.l.bf16 %v3356
    %v3666 = vunpack.c.h.bf16 %v3356
    %v3667 = vunpack.c.l.bf16 %v3357
    %v3668 = vunpack.c.h.bf16 %v3357
    %v3669 = vunpack.c.l.bf16 %v3358
    %v3670 = vunpack.c.h.bf16 %v3358
    %v3671 = vunpack.c.l.bf16 %v3359
    %v3672 = vunpack.c.h.bf16 %v3359
    %v3673 = vunpack.c.l.bf16 %v3360
    %v3674 = vunpack.c.h.bf16 %v3360
    %v3675 = vunpack.c.l.bf16 %v3361
    %v3676 = vunpack.c.h.bf16 %v3361
    %v3677 = vunpack.c.l.bf16 %v3362
    %v3678 = vunpack.c.h.bf16 %v3362
    %v3679 = vunpack.c.l.bf16 %v3363
    %v3680 = vunpack.c.h.bf16 %v3363
    %v3681 = vunpack.c.l.bf16 %v3364
    %v3682 = vunpack.c.h.bf16 %v3364
    %v3683 = vunpack.c.l.bf16 %v3365
    %v3684 = vunpack.c.h.bf16 %v3365
    %v3685 = vunpack.c.l.bf16 %v3366
    %v3686 = vunpack.c.h.bf16 %v3366
    %v3687 = vunpack.c.l.bf16 %v3367
    %v3688 = vunpack.c.h.bf16 %v3367
    %v3689 = vunpack.c.l.bf16 %v3368
    %v3690 = vunpack.c.h.bf16 %v3368
    %v3691 = vunpack.c.l.bf16 %v3369
    %v3692 = vunpack.c.h.bf16 %v3369
    %v3693 = vunpack.c.l.bf16 %v3370
    %v3694 = vunpack.c.h.bf16 %v3370
    %v3695 = vunpack.c.l.bf16 %v3371
    %v3696 = vunpack.c.h.bf16 %v3371
    %v3697 = vunpack.c.l.bf16 %v3372
    %v3698 = vunpack.c.h.bf16 %v3372
    %v3699 = vunpack.c.l.bf16 %v3373
    %v3700 = vunpack.c.h.bf16 %v3373
    %v3701 = vunpack.c.l.bf16 %v3374
    %v3702 = vunpack.c.h.bf16 %v3374
    %v3703 = vunpack.c.l.bf16 %v3375
    %v3704 = vunpack.c.h.bf16 %v3375
    %v3705 = vunpack.c.l.bf16 %v3376
    %v3706 = vunpack.c.h.bf16 %v3376
    %v3707 = vunpack.c.l.bf16 %v3377
    %v3708 = vunpack.c.h.bf16 %v3377
    %v3709 = vunpack.c.l.bf16 %v3378
    %v3710 = vunpack.c.h.bf16 %v3378
    %v3711 = vunpack.c.l.bf16 %v3379
    %v3712 = vunpack.c.h.bf16 %v3379
    %v3713 = vunpack.c.l.bf16 %v3380
    %v3714 = vunpack.c.h.bf16 %v3380
    %v3715 = vunpack.c.l.bf16 %v3381
    %v3716 = vunpack.c.h.bf16 %v3381
    %v3717 = vunpack.c.l.bf16 %v3382
    %v3718 = vunpack.c.h.bf16 %v3382
    %v3719 = vunpack.c.l.bf16 %v3383
    %v3720 = vunpack.c.h.bf16 %v3383
    %v3721 = vunpack.c.l.bf16 %v3384
    %v3722 = vunpack.c.h.bf16 %v3384
    %v3723 = vunpack.c.l.bf16 %v3385
    %v3724 = vunpack.c.h.bf16 %v3385
    %v3725 = vunpack.c.l.bf16 %v3386
    %v3726 = vunpack.c.h.bf16 %v3386
    %v3727 = vunpack.c.l.bf16 %v3387
    %v3728 = vunpack.c.h.bf16 %v3387
    %v3729 = vunpack.c.l.bf16 %v3388
    %v3730 = vunpack.c.h.bf16 %v3388
    %v3731 = vunpack.c.l.bf16 %v3389
    %v3732 = vunpack.c.h.bf16 %v3389
    %v3733 = vunpack.c.l.bf16 %v3390
    %v3734 = vunpack.c.h.bf16 %v3390
    %v3735 = vunpack.c.l.bf16 %v3391
    %v3736 = vunpack.c.h.bf16 %v3391
    %v3737 = vunpack.c.l.bf16 %v3392
    %v3738 = vunpack.c.h.bf16 %v3392
    %v3739 = vunpack.c.l.bf16 %v3393
    %v3740 = vunpack.c.h.bf16 %v3393
    %v3741 = vunpack.c.l.bf16 %v3394
    %v3742 = vunpack.c.h.bf16 %v3394
    %v3743 = vunpack.c.l.bf16 %v3395
    %v3744 = vunpack.c.h.bf16 %v3395
    %v3745 = vunpack.c.l.bf16 %v3396
    %v3746 = vunpack.c.h.bf16 %v3396
    %v3747 = vunpack.c.l.bf16 %v3397
    %v3748 = vunpack.c.h.bf16 %v3397
    %v3749 = vunpack.c.l.bf16 %v3398
    %v3750 = vunpack.c.h.bf16 %v3398
    %v3751 = vunpack.c.l.bf16 %v3399
    %v3752 = vunpack.c.h.bf16 %v3399
    %v3753 = vunpack.c.l.bf16 %v3400
    %v3754 = vunpack.c.h.bf16 %v3400
    %v3755 = vunpack.c.l.bf16 %v3401
    %v3756 = vunpack.c.h.bf16 %v3401
    %v3757 = vunpack.c.l.bf16 %v3402
    %v3758 = vunpack.c.h.bf16 %v3402
    %v3759 = vunpack.c.l.bf16 %v3403
    %v3760 = vunpack.c.h.bf16 %v3403
    %v3761 = vunpack.c.l.bf16 %v3404
    %v3762 = vunpack.c.h.bf16 %v3404
    %v3763 = vunpack.c.l.bf16 %v3405
    %v3764 = vunpack.c.h.bf16 %v3405
    %v3765 = vunpack.c.l.bf16 %v3406
    %v3766 = vunpack.c.h.bf16 %v3406
    %v3767 = vunpack.c.l.bf16 %v3407
    %v3768 = vunpack.c.h.bf16 %v3407
    %v3769 = vunpack.c.l.bf16 %v3408
    %v3770 = vunpack.c.h.bf16 %v3408
    %v3771 = vunpack.c.l.bf16 %v3409
    %v3772 = vunpack.c.h.bf16 %v3409
    %v3773 = vunpack.c.l.bf16 %v3410
    %v3774 = vunpack.c.h.bf16 %v3410
    %v3775 = vunpack.c.l.bf16 %v3411
    %v3776 = vunpack.c.h.bf16 %v3411
    %v3777 = vunpack.c.l.bf16 %v3412
    %v3778 = vunpack.c.h.bf16 %v3412
    %v3779 = vunpack.c.l.bf16 %v3413
    %v3780 = vunpack.c.h.bf16 %v3413
    %v3781 = vunpack.c.l.bf16 %v3414
    %v3782 = vunpack.c.h.bf16 %v3414
    %v3783 = vunpack.c.l.bf16 %v3415
    %v3784 = vunpack.c.h.bf16 %v3415
    %v3785 = vunpack.c.l.bf16 %v3416
    %v3786 = vunpack.c.h.bf16 %v3416
    %v3787 = vunpack.c.l.bf16 %v3417
    %v3788 = vunpack.c.h.bf16 %v3417
    %v3789 = vunpack.c.l.bf16 %v3418
    %v3790 = vunpack.c.h.bf16 %v3418
    %v3791 = vunpack.c.l.bf16 %v3419
    %v3792 = vunpack.c.h.bf16 %v3419
    %v3793 = vunpack.c.l.bf16 %v3420
    %v3794 = vunpack.c.h.bf16 %v3420
    %v3795 = vunpack.c.l.bf16 %v3421
    %v3796 = vunpack.c.h.bf16 %v3421
    %v3797 = vunpack.c.l.bf16 %v3422
    %v3798 = vunpack.c.h.bf16 %v3422
    %v3799 = vunpack.c.l.bf16 %v3423
    %v3800 = vunpack.c.h.bf16 %v3423
    %v3801 = vunpack.c.l.bf16 %v3424
    %v3802 = vunpack.c.h.bf16 %v3424
    %v3803 = vunpack.c.l.bf16 %v3425
    %v3804 = vunpack.c.h.bf16 %v3425
    %v3805 = vunpack.c.l.bf16 %v3426
    %v3806 = vunpack.c.h.bf16 %v3426
    %v3807 = vunpack.c.l.bf16 %v3427
    %v3808 = vunpack.c.h.bf16 %v3427
    %v3809 = vunpack.c.l.bf16 %v3428
    %v3810 = vunpack.c.h.bf16 %v3428
    %v3811 = vunpack.c.l.bf16 %v3429
    %v3812 = vunpack.c.h.bf16 %v3429
    %v3813 = vunpack.c.l.bf16 %v3430
    %v3814 = vunpack.c.h.bf16 %v3430
    %v3815 = vunpack.c.l.bf16 %v3431
    %v3816 = vunpack.c.h.bf16 %v3431
    %v3817 = vunpack.c.l.bf16 %v3432
    %v3818 = vunpack.c.h.bf16 %v3432
    %v3819 = vunpack.c.l.bf16 %v3433
    %v3820 = vunpack.c.h.bf16 %v3433
    %v3821 = vunpack.c.l.bf16 %v3434
    %v3822 = vunpack.c.h.bf16 %v3434
    %v3823 = vunpack.c.l.bf16 %v3435
    %v3824 = vunpack.c.h.bf16 %v3435
    %v3825 = vunpack.c.l.bf16 %v3436
    %v3826 = vunpack.c.h.bf16 %v3436
    %v3827 = vunpack.c.l.bf16 %v3437
    %v3828 = vunpack.c.h.bf16 %v3437
    %v3829 = vunpack.c.l.bf16 %v3438
    %v3830 = vunpack.c.h.bf16 %v3438
    %v3831 = vunpack.c.l.bf16 %v3439
    %v3832 = vunpack.c.h.bf16 %v3439
    %v3833 = vunpack.c.l.bf16 %v3440
    %v3834 = vunpack.c.h.bf16 %v3440
    %v3835 = vunpack.c.l.bf16 %v3441
    %v3836 = vunpack.c.h.bf16 %v3441
    %v3837 = vunpack.c.l.bf16 %v3442
    %v3838 = vunpack.c.h.bf16 %v3442
    %v3839 = vunpack.c.l.bf16 %v3443
    %v3840 = vunpack.c.h.bf16 %v3443
    %v3841 = vunpack.c.l.bf16 %v3444
    %v3842 = vunpack.c.h.bf16 %v3444
    %v3843 = vunpack.c.l.bf16 %v3445
    %v3844 = vunpack.c.h.bf16 %v3445
    %v3845 = vunpack.c.l.bf16 %v3446
    %v3846 = vunpack.c.h.bf16 %v3446
    %v3847 = vunpack.c.l.bf16 %v3447
    %v3848 = vunpack.c.h.bf16 %v3447
    %v3849 = vunpack.c.l.bf16 %v3448
    %v3850 = vunpack.c.h.bf16 %v3448
    %v3851 = vunpack.c.l.bf16 %v3449
    %v3852 = vunpack.c.h.bf16 %v3449
    %v3853 = vunpack.c.l.bf16 %v3450
    %v3854 = vunpack.c.h.bf16 %v3450
    %v3855 = vunpack.c.l.bf16 %v3451
    %v3856 = vunpack.c.h.bf16 %v3451
    %v3857 = vunpack.c.l.bf16 %v3452
    %v3858 = vunpack.c.h.bf16 %v3452
    %v3859 = vunpack.c.l.bf16 %v3453
    %v3860 = vunpack.c.h.bf16 %v3453
    %v3861 = vunpack.c.l.bf16 %v3454
    %v3862 = vunpack.c.h.bf16 %v3454
    %v3863 = vunpack.c.l.bf16 %v3455
    %v3864 = vunpack.c.h.bf16 %v3455
    %v3865 = vunpack.c.l.bf16 %v3456
    %v3866 = vunpack.c.h.bf16 %v3456
    %v3867 = vunpack.c.l.bf16 %v3457
    %v3868 = vunpack.c.h.bf16 %v3457
    %v3869 = vunpack.c.l.bf16 %v3458
    %v3870 = vunpack.c.h.bf16 %v3458
    %v3871 = vunpack.c.l.bf16 %v3459
    %v3872 = vunpack.c.h.bf16 %v3459
    %v3873 = vunpack.c.l.bf16 %v3460
    %v3874 = vunpack.c.h.bf16 %v3460
    %v3875 = vunpack.c.l.bf16 %v3461
    %v3876 = vunpack.c.h.bf16 %v3461
    %v3877 = vunpack.c.l.bf16 %v3462
    %v3878 = vunpack.c.h.bf16 %v3462
    %v3879 = vunpack.c.l.bf16 %v3463
    %v3880 = vunpack.c.h.bf16 %v3463
    %v3881 = vunpack.c.l.bf16 %v3464
    %v3882 = vunpack.c.h.bf16 %v3464
    %v3883 = vunpack.c.l.bf16 %v3465
    %v3884 = vunpack.c.h.bf16 %v3465
    %v3885 = vunpack.c.l.bf16 %v3466
    %v3886 = vunpack.c.h.bf16 %v3466
    %v3887 = vunpack.c.l.bf16 %v3467
    %v3888 = vunpack.c.h.bf16 %v3467
    %v3889 = vunpack.c.l.bf16 %v3468
    %v3890 = vunpack.c.h.bf16 %v3468
    %v3891 = vunpack.c.l.bf16 %v3469
    %v3892 = vunpack.c.h.bf16 %v3469
    %v3893 = vunpack.c.l.bf16 %v3470
    %v3894 = vunpack.c.h.bf16 %v3470
    %v3895 = vunpack.c.l.bf16 %v3471
    %v3896 = vunpack.c.h.bf16 %v3471
    %v3897 = vunpack.c.l.bf16 %v3472
    %v3898 = vunpack.c.h.bf16 %v3472
    %v3899 = vunpack.c.l.bf16 %v3473
    %v3900 = vunpack.c.h.bf16 %v3473
    %v3901 = vunpack.c.l.bf16 %v3474
    %v3902 = vunpack.c.h.bf16 %v3474
    %v3903 = vunpack.c.l.bf16 %v3475
    %v3904 = vunpack.c.h.bf16 %v3475
    %v3905 = vunpack.c.l.bf16 %v3476
    %v3906 = vunpack.c.h.bf16 %v3476
    %v3907 = vunpack.c.l.bf16 %v3477
    %v3908 = vunpack.c.h.bf16 %v3477
    %v3909 = vunpack.c.l.bf16 %v3478
    %v3910 = vunpack.c.h.bf16 %v3478
    %v3911 = vunpack.c.l.bf16 %v3479
    %v3912 = vunpack.c.h.bf16 %v3479
    %v3913 = vunpack.c.l.bf16 %v3480
    %v3914 = vunpack.c.h.bf16 %v3480
    %v3915 = vunpack.c.l.bf16 %v3481
    %v3916 = vunpack.c.h.bf16 %v3481
    %v3917 = vunpack.c.l.bf16 %v3482
    %v3918 = vunpack.c.h.bf16 %v3482
    %v3919 = vunpack.c.l.bf16 %v3483
    %v3920 = vunpack.c.h.bf16 %v3483
    %v3921 = vunpack.c.l.bf16 %v3484
    %v3922 = vunpack.c.h.bf16 %v3484
    %v3923 = vunpack.c.l.bf16 %v3485
    %v3924 = vunpack.c.h.bf16 %v3485
    %v3925 = vunpack.c.l.bf16 %v3486
    %v3926 = vunpack.c.h.bf16 %v3486
    %v3927 = vunpack.c.l.bf16 %v3487
    %v3928 = vunpack.c.h.bf16 %v3487
    %v3929 = vunpack.c.l.bf16 %v3488
    %v3930 = vunpack.c.h.bf16 %v3488
    %v3931 = vunpack.c.l.bf16 %v3489
    %v3932 = vunpack.c.h.bf16 %v3489
    %v3933 = vunpack.c.l.bf16 %v3490
    %v3934 = vunpack.c.h.bf16 %v3490
    %v3935 = vunpack.c.l.bf16 %v3491
    %v3936 = vunpack.c.h.bf16 %v3491
    %v3937 = vunpack.c.l.bf16 %v3492
    %v3938 = vunpack.c.h.bf16 %v3492
    %v3939 = vunpack.c.l.bf16 %v3493
    %v3940 = vunpack.c.h.bf16 %v3493
    %v3941 = vunpack.c.l.bf16 %v3494
    %v3942 = vunpack.c.h.bf16 %v3494
    %v3943 = vunpack.c.l.bf16 %v3495
    %v3944 = vunpack.c.h.bf16 %v3495
    %v3945 = vunpack.c.l.bf16 %v3496
    %v3946 = vunpack.c.h.bf16 %v3496
    %v3947 = vunpack.c.l.bf16 %v3497
    %v3948 = vunpack.c.h.bf16 %v3497
    %v3949 = vunpack.c.l.bf16 %v3498
    %v3950 = vunpack.c.h.bf16 %v3498
    %v3951 = vunpack.c.l.bf16 %v3499
    %v3952 = vunpack.c.h.bf16 %v3499
    %v3953 = vunpack.c.l.bf16 %v3500
    %v3954 = vunpack.c.h.bf16 %v3500
    %v3955 = vunpack.c.l.bf16 %v3501
    %v3956 = vunpack.c.h.bf16 %v3501
    %v3957 = vunpack.c.l.bf16 %v3502
    %v3958 = vunpack.c.h.bf16 %v3502
    %v3959 = vunpack.c.l.bf16 %v3503
    %v3960 = vunpack.c.h.bf16 %v3503
    %v3961 = vunpack.c.l.bf16 %v3504
    %v3962 = vunpack.c.h.bf16 %v3504
    %v3963 = vunpack.c.l.bf16 %v3505
    %v3964 = vunpack.c.h.bf16 %v3505
    %v3965 = vunpack.c.l.bf16 %v3506
    %v3966 = vunpack.c.h.bf16 %v3506
    %v3967 = vunpack.c.l.bf16 %v3507
    %v3968 = vunpack.c.h.bf16 %v3507
    %v3969 = vunpack.c.l.bf16 %v3508
    %v3970 = vunpack.c.h.bf16 %v3508
    %v3971 = vunpack.c.l.bf16 %v3509
    %v3972 = vunpack.c.h.bf16 %v3509
    %v3973 = vunpack.c.l.bf16 %v3510
    %v3974 = vunpack.c.h.bf16 %v3510
    %v3975 = vunpack.c.l.bf16 %v3511
    %v3976 = vunpack.c.h.bf16 %v3511
    %v3977 = vunpack.c.l.bf16 %v3512
    %v3978 = vunpack.c.h.bf16 %v3512
    %v3979 = vunpack.c.l.bf16 %v3513
    %v3980 = vunpack.c.h.bf16 %v3513
    %v3981 = vunpack.c.l.bf16 %v3514
    %v3982 = vunpack.c.h.bf16 %v3514
    %v3983 = vunpack.c.l.bf16 %v3515
    %v3984 = vunpack.c.h.bf16 %v3515
    %v3985 = vunpack.c.l.bf16 %v3516
    %v3986 = vunpack.c.h.bf16 %v3516
    %v3987 = vunpack.c.l.bf16 %v3517
    %v3988 = vunpack.c.h.bf16 %v3517
    %v3989 = vunpack.c.l.bf16 %v3518
    %v3990 = vunpack.c.h.bf16 %v3518
    %v3991 = vunpack.c.l.bf16 %v3519
    %v3992 = vunpack.c.h.bf16 %v3519
    %v3993 = vunpack.c.l.bf16 %v3520
    %v3994 = vunpack.c.h.bf16 %v3520
    %v3995 = vunpack.c.l.bf16 %v3521
    %v3996 = vunpack.c.h.bf16 %v3521
    %v3997 = vunpack.c.l.bf16 %v3522
    %v3998 = vunpack.c.h.bf16 %v3522
    %v3999 = vunpack.c.l.bf16 %v3523
    %v4000 = vunpack.c.h.bf16 %v3523
    %v4001 = vunpack.c.l.bf16 %v3524
    %v4002 = vunpack.c.h.bf16 %v3524
    %v4003 = vunpack.c.l.bf16 %v3525
    %v4004 = vunpack.c.h.bf16 %v3525
    %v4005 = vunpack.c.l.bf16 %v3526
    %v4006 = vunpack.c.h.bf16 %v3526
    %v4007 = vunpack.c.l.bf16 %v3527
    %v4008 = vunpack.c.h.bf16 %v3527
    %v4009 = vunpack.c.l.bf16 %v3528
    %v4010 = vunpack.c.h.bf16 %v3528
    %v4011 = vunpack.c.l.bf16 %v3529
    %v4012 = vunpack.c.h.bf16 %v3529
    %v4013 = vunpack.c.l.bf16 %v3530
    %v4014 = vunpack.c.h.bf16 %v3530
    %v4015 = vunpack.c.l.bf16 %v3531
    %v4016 = vunpack.c.h.bf16 %v3531
    %v4017 = vunpack.c.l.bf16 %v3532
    %v4018 = vunpack.c.h.bf16 %v3532
    %v4019 = vunpack.c.l.bf16 %v3533
    %v4020 = vunpack.c.h.bf16 %v3533
    %v4021 = vunpack.c.l.bf16 %v3534
    %v4022 = vunpack.c.h.bf16 %v3534
    %v4023 = vunpack.c.l.bf16 %v3535
    %v4024 = vunpack.c.h.bf16 %v3535
    %v4025 = vunpack.c.l.bf16 %v3536
    %v4026 = vunpack.c.h.bf16 %v3536
    %v4027 = vunpack.c.l.bf16 %v3537
    %v4028 = vunpack.c.h.bf16 %v3537
    %v4029 = vunpack.c.l.bf16 %v3538
    %v4030 = vunpack.c.h.bf16 %v3538
    %v4031 = vunpack.c.l.bf16 %v3539
    %v4032 = vunpack.c.h.bf16 %v3539
    %v4033 = vunpack.c.l.bf16 %v3540
    %v4034 = vunpack.c.h.bf16 %v3540
    %v4035 = vunpack.c.l.bf16 %v3541
    %v4036 = vunpack.c.h.bf16 %v3541
    %v4037 = vunpack.c.l.bf16 %v3542
    %v4038 = vunpack.c.h.bf16 %v3542
    %v4039 = vunpack.c.l.bf16 %v3543
    %v4040 = vunpack.c.h.bf16 %v3543
    %v4041 = vunpack.c.l.bf16 %v3544
    %v4042 = vunpack.c.h.bf16 %v3544
    %v4043 = vunpack.c.l.bf16 %v3545
    %v4044 = vunpack.c.h.bf16 %v3545
    %v4045 = vunpack.c.l.bf16 %v3546
    %v4046 = vunpack.c.h.bf16 %v3546
    %v4047 = vunpack.c.l.bf16 %v3547
    %v4048 = vunpack.c.h.bf16 %v3547
    %v4049 = vunpack.c.l.bf16 %v3548
    %v4050 = vunpack.c.h.bf16 %v3548
    %v4051 = vunpack.c.l.bf16 %v3549
    %v4052 = vunpack.c.h.bf16 %v3549
    %v4053 = vunpack.c.l.bf16 %v3550
    %v4054 = vunpack.c.h.bf16 %v3550
    %v4055 = vunpack.c.l.bf16 %v3551
    %v4056 = vunpack.c.h.bf16 %v3551
    %v4057 = vunpack.c.l.bf16 %v3552
    %v4058 = vunpack.c.h.bf16 %v3552
    %v4059 = vunpack.c.l.bf16 %v3553
    %v4060 = vunpack.c.h.bf16 %v3553
    %v4061 = vunpack.c.l.bf16 %v3554
    %v4062 = vunpack.c.h.bf16 %v3554
    %v4063 = vunpack.c.l.bf16 %v3555
    %v4064 = vunpack.c.h.bf16 %v3555
    %v4065 = vunpack.c.l.bf16 %v3556
    %v4066 = vunpack.c.h.bf16 %v3556
    %v4067 = vunpack.c.l.bf16 %v3557
    %v4068 = vunpack.c.h.bf16 %v3557
    %v4069 = vunpack.c.l.bf16 %v3558
    %v4070 = vunpack.c.h.bf16 %v3558
    %s4071 = scalar_lea.vmem [#allocation12], 3
    %v4072 = vld [vmem:[%s4071] ss:$8 sm:$0xf]
    %v4074 = vlaneseq
    %v4075 = vshrl.u32 %v4074, 7
    %v4076 = vsub.s32 0, %v4075
    %v4077 = vrot.slane %v4072, %v4076
    %v4078 = vlaneseq
    %v4079 = vshrl.u32 %v4078, 7
    %v4080 = vsub.s32 1, %v4079
    %v4081 = vrot.slane %v4072, %v4080
    %v4082 = vlaneseq
    %v4083 = vshrl.u32 %v4082, 7
    %v4084 = vsub.s32 2, %v4083
    %v4085 = vrot.slane %v4072, %v4084
    %v4086 = vlaneseq
    %v4087 = vshrl.u32 %v4086, 7
    %v4088 = vsub.s32 3, %v4087
    %v4089 = vrot.slane %v4072, %v4088
    %4094 = vmatprep.subr.mxu0 %v3560
    %4095 = vmatpush1.msra.mxu0 %v3559
    %4096 = vmatprep.subr.mxu0 %v3564
    %4097 = vmatpush1.msra.mxu0 %v3563
    %4098 = vmatprep.subr.mxu0 %v3568
    %4099 = vmatpush1.msra.mxu0 %v3567
    %4100 = vmatprep.subr.mxu0 %v3572
    %4101 = vmatpush1.msra.mxu0 %v3571
    %4102 = vmatprep.subr.mxu0 %v3576
    %4103 = vmatpush1.msra.mxu0 %v3575
    %4104 = vmatprep.subr.mxu0 %v3580
    %4105 = vmatpush1.msra.mxu0 %v3579
    %4106 = vmatprep.subr.mxu0 %v3584
    %4107 = vmatpush1.msra.mxu0 %v3583
    %4108 = vmatprep.subr.mxu0 %v3588
    %4109 = vmatpush1.msra.mxu0 %v3587
    %4110 = vmatprep.subr.mxu0 %v3592
    %4111 = vmatpush1.msra.mxu0 %v3591
    %4112 = vmatprep.subr.mxu0 %v3596
    %4113 = vmatpush1.msra.mxu0 %v3595
    %4114 = vmatprep.subr.mxu0 %v3600
    %4115 = vmatpush1.msra.mxu0 %v3599
    %4116 = vmatprep.subr.mxu0 %v3604
    %4117 = vmatpush1.msra.mxu0 %v3603
    %4118 = vmatprep.subr.mxu0 %v3608
    %4119 = vmatpush1.msra.mxu0 %v3607
    %4120 = vmatprep.subr.mxu0 %v3612
    %4121 = vmatpush1.msra.mxu0 %v3611
    %4122 = vmatprep.subr.mxu0 %v3616
    %4123 = vmatpush1.msra.mxu0 %v3615
    %4124 = vmatprep.subr.mxu0 %v3620
    %4125 = vmatpush1.msra.mxu0 %v3619
    %4126 = vmatprep.subr.mxu0 %v3624
    %4127 = vmatpush1.msra.mxu0 %v3623
    %4128 = vmatprep.subr.mxu0 %v3628
    %4129 = vmatpush1.msra.mxu0 %v3627
    %4130 = vmatprep.subr.mxu0 %v3632
    %4131 = vmatpush1.msra.mxu0 %v3631
    %4132 = vmatprep.subr.mxu0 %v3636
    %4133 = vmatpush1.msra.mxu0 %v3635
    %4134 = vmatprep.subr.mxu0 %v3640
    %4135 = vmatpush1.msra.mxu0 %v3639
    %4136 = vmatprep.subr.mxu0 %v3644
    %4137 = vmatpush1.msra.mxu0 %v3643
    %4138 = vmatprep.subr.mxu0 %v3648
    %4139 = vmatpush1.msra.mxu0 %v3647
    %4140 = vmatprep.subr.mxu0 %v3652
    %4141 = vmatpush1.msra.mxu0 %v3651
    %4142 = vmatprep.subr.mxu0 %v3656
    %4143 = vmatpush1.msra.mxu0 %v3655
    %4144 = vmatprep.subr.mxu0 %v3660
    %4145 = vmatpush1.msra.mxu0 %v3659
    %4146 = vmatprep.subr.mxu0 %v3664
    %4147 = vmatpush1.msra.mxu0 %v3663
    %4148 = vmatprep.subr.mxu0 %v3668
    %4149 = vmatpush1.msra.mxu0 %v3667
    %4150 = vmatprep.subr.mxu0 %v3672
    %4151 = vmatpush1.msra.mxu0 %v3671
    %4152 = vmatprep.subr.mxu0 %v3676
    %4153 = vmatpush1.msra.mxu0 %v3675
    %4154 = vmatprep.subr.mxu0 %v3680
    %4155 = vmatpush1.msra.mxu0 %v3679
    %4156 = vmatprep.subr.mxu0 %v3684
    %4157 = vmatpush1.msra.mxu0 %v3683
    %4158 = vmatprep.mubr.f32.mxu0 %v3296
    %4159 = vmatmul.mubr.f32.gmra.mrb[0].mxu0 %v3295
    %v4160 = vpop.f32.mrb[0].mxu0
    %v4161 = vadd.f32 %v4077, %v4160
    %v4162 = vpop.f32.mrb[0].mxu0
    %v4163 = vadd.f32 %v4081, %v4162
    %4164 = vdwg.mxu0
    %4165 = vmatprep.subr.mxu0 %v3688
    %4166 = vmatpush1.msra.mxu0 %v3687
    %4167 = vmatprep.subr.mxu0 %v3692
    %4168 = vmatpush1.msra.mxu0 %v3691
    %4169 = vmatprep.subr.mxu0 %v3696
    %4170 = vmatpush1.msra.mxu0 %v3695
    %4171 = vmatprep.subr.mxu0 %v3700
    %4172 = vmatpush1.msra.mxu0 %v3699
    %4173 = vmatprep.subr.mxu0 %v3704
    %4174 = vmatpush1.msra.mxu0 %v3703
    %4175 = vmatprep.subr.mxu0 %v3708
    %4176 = vmatpush1.msra.mxu0 %v3707
    %4177 = vmatprep.subr.mxu0 %v3712
    %4178 = vmatpush1.msra.mxu0 %v3711
    %4179 = vmatprep.subr.mxu0 %v3716
    %4180 = vmatpush1.msra.mxu0 %v3715
    %4181 = vmatprep.subr.mxu0 %v3720
    %4182 = vmatpush1.msra.mxu0 %v3719
    %4183 = vmatprep.subr.mxu0 %v3724
    %4184 = vmatpush1.msra.mxu0 %v3723
    %4185 = vmatprep.subr.mxu0 %v3728
    %4186 = vmatpush1.msra.mxu0 %v3727
    %4187 = vmatprep.subr.mxu0 %v3732
    %4188 = vmatpush1.msra.mxu0 %v3731
    %4189 = vmatprep.subr.mxu0 %v3736
    %4190 = vmatpush1.msra.mxu0 %v3735
    %4191 = vmatprep.subr.mxu0 %v3740
    %4192 = vmatpush1.msra.mxu0 %v3739
    %4193 = vmatprep.subr.mxu0 %v3744
    %4194 = vmatpush1.msra.mxu0 %v3743
    %4195 = vmatprep.subr.mxu0 %v3748
    %4196 = vmatpush1.msra.mxu0 %v3747
    %4197 = vmatprep.subr.mxu0 %v3752
    %4198 = vmatpush1.msra.mxu0 %v3751
    %4199 = vmatprep.subr.mxu0 %v3756
    %4200 = vmatpush1.msra.mxu0 %v3755
    %4201 = vmatprep.subr.mxu0 %v3760
    %4202 = vmatpush1.msra.mxu0 %v3759
    %4203 = vmatprep.subr.mxu0 %v3764
    %4204 = vmatpush1.msra.mxu0 %v3763
    %4205 = vmatprep.subr.mxu0 %v3768
    %4206 = vmatpush1.msra.mxu0 %v3767
    %4207 = vmatprep.subr.mxu0 %v3772
    %4208 = vmatpush1.msra.mxu0 %v3771
    %4209 = vmatprep.subr.mxu0 %v3776
    %4210 = vmatpush1.msra.mxu0 %v3775
    %4211 = vmatprep.subr.mxu0 %v3780
    %4212 = vmatpush1.msra.mxu0 %v3779
    %4213 = vmatprep.subr.mxu0 %v3784
    %4214 = vmatpush1.msra.mxu0 %v3783
    %4215 = vmatprep.subr.mxu0 %v3788
    %4216 = vmatpush1.msra.mxu0 %v3787
    %4217 = vmatprep.subr.mxu0 %v3792
    %4218 = vmatpush1.msra.mxu0 %v3791
    %4219 = vmatprep.subr.mxu0 %v3796
    %4220 = vmatpush1.msra.mxu0 %v3795
    %4221 = vmatprep.subr.mxu0 %v3800
    %4222 = vmatpush1.msra.mxu0 %v3799
    %4223 = vmatprep.subr.mxu0 %v3804
    %4224 = vmatpush1.msra.mxu0 %v3803
    %4225 = vmatprep.subr.mxu0 %v3808
    %4226 = vmatpush1.msra.mxu0 %v3807
    %4227 = vmatprep.subr.mxu0 %v3812
    %4228 = vmatpush1.msra.mxu0 %v3811
    %4229 = vmatprep.mubr.f32.mxu0 %v3298
    %4230 = vmatmul.mubr.f32.gmra.mrb[0].mxu0 %v3297
    %v4231 = vpop.f32.mrb[0].mxu0
    %v4232 = vadd.f32 %v4161, %v4231
    %v4233 = vpop.f32.mrb[0].mxu0
    %v4234 = vadd.f32 %v4163, %v4233
    %4235 = vdwg.mxu0
    %4236 = vmatprep.subr.mxu0 %v3816
    %4237 = vmatpush1.msra.mxu0 %v3815
    %4238 = vmatprep.subr.mxu0 %v3820
    %4239 = vmatpush1.msra.mxu0 %v3819
    %4240 = vmatprep.subr.mxu0 %v3824
    %4241 = vmatpush1.msra.mxu0 %v3823
    %4242 = vmatprep.subr.mxu0 %v3828
    %4243 = vmatpush1.msra.mxu0 %v3827
    %4244 = vmatprep.subr.mxu0 %v3832
    %4245 = vmatpush1.msra.mxu0 %v3831
    %4246 = vmatprep.subr.mxu0 %v3836
    %4247 = vmatpush1.msra.mxu0 %v3835
    %4248 = vmatprep.subr.mxu0 %v3840
    %4249 = vmatpush1.msra.mxu0 %v3839
    %4250 = vmatprep.subr.mxu0 %v3844
    %4251 = vmatpush1.msra.mxu0 %v3843
    %4252 = vmatprep.subr.mxu0 %v3848
    %4253 = vmatpush1.msra.mxu0 %v3847
    %4254 = vmatprep.subr.mxu0 %v3852
    %4255 = vmatpush1.msra.mxu0 %v3851
    %4256 = vmatprep.subr.mxu0 %v3856
    %4257 = vmatpush1.msra.mxu0 %v3855
    %4258 = vmatprep.subr.mxu0 %v3860
    %4259 = vmatpush1.msra.mxu0 %v3859
    %4260 = vmatprep.subr.mxu0 %v3864
    %4261 = vmatpush1.msra.mxu0 %v3863
    %4262 = vmatprep.subr.mxu0 %v3868
    %4263 = vmatpush1.msra.mxu0 %v3867
    %4264 = vmatprep.subr.mxu0 %v3872
    %4265 = vmatpush1.msra.mxu0 %v3871
    %4266 = vmatprep.subr.mxu0 %v3876
    %4267 = vmatpush1.msra.mxu0 %v3875
    %4268 = vmatprep.subr.mxu0 %v3880
    %4269 = vmatpush1.msra.mxu0 %v3879
    %4270 = vmatprep.subr.mxu0 %v3884
    %4271 = vmatpush1.msra.mxu0 %v3883
    %4272 = vmatprep.subr.mxu0 %v3888
    %4273 = vmatpush1.msra.mxu0 %v3887
    %4274 = vmatprep.subr.mxu0 %v3892
    %4275 = vmatpush1.msra.mxu0 %v3891
    %4276 = vmatprep.subr.mxu0 %v3896
    %4277 = vmatpush1.msra.mxu0 %v3895
    %4278 = vmatprep.subr.mxu0 %v3900
    %4279 = vmatpush1.msra.mxu0 %v3899
    %4280 = vmatprep.subr.mxu0 %v3904
    %4281 = vmatpush1.msra.mxu0 %v3903
    %4282 = vmatprep.subr.mxu0 %v3908
    %4283 = vmatpush1.msra.mxu0 %v3907
    %4284 = vmatprep.subr.mxu0 %v3912
    %4285 = vmatpush1.msra.mxu0 %v3911
    %4286 = vmatprep.subr.mxu0 %v3916
    %4287 = vmatpush1.msra.mxu0 %v3915
    %4288 = vmatprep.subr.mxu0 %v3920
    %4289 = vmatpush1.msra.mxu0 %v3919
    %4290 = vmatprep.subr.mxu0 %v3924
    %4291 = vmatpush1.msra.mxu0 %v3923
    %4292 = vmatprep.subr.mxu0 %v3928
    %4293 = vmatpush1.msra.mxu0 %v3927
    %4294 = vmatprep.subr.mxu0 %v3932
    %4295 = vmatpush1.msra.mxu0 %v3931
    %4296 = vmatprep.subr.mxu0 %v3936
    %4297 = vmatpush1.msra.mxu0 %v3935
    %4298 = vmatprep.subr.mxu0 %v3940
    %4299 = vmatpush1.msra.mxu0 %v3939
    %4300 = vmatprep.mubr.f32.mxu0 %v3300
    %4301 = vmatmul.mubr.f32.gmra.mrb[0].mxu0 %v3299
    %v4302 = vpop.f32.mrb[0].mxu0
    %v4303 = vadd.f32 %v4232, %v4302
    %v4304 = vpop.f32.mrb[0].mxu0
    %v4305 = vadd.f32 %v4234, %v4304
    %4306 = vdwg.mxu0
    %4307 = vmatprep.subr.mxu0 %v3944
    %4308 = vmatpush1.msra.mxu0 %v3943
    %4309 = vmatprep.subr.mxu0 %v3948
    %4310 = vmatpush1.msra.mxu0 %v3947
    %4311 = vmatprep.subr.mxu0 %v3952
    %4312 = vmatpush1.msra.mxu0 %v3951
    %4313 = vmatprep.subr.mxu0 %v3956
    %4314 = vmatpush1.msra.mxu0 %v3955
    %4315 = vmatprep.subr.mxu0 %v3960
    %4316 = vmatpush1.msra.mxu0 %v3959
    %4317 = vmatprep.subr.mxu0 %v3964
    %4318 = vmatpush1.msra.mxu0 %v3963
    %4319 = vmatprep.subr.mxu0 %v3968
    %4320 = vmatpush1.msra.mxu0 %v3967
    %4321 = vmatprep.subr.mxu0 %v3972
    %4322 = vmatpush1.msra.mxu0 %v3971
    %4323 = vmatprep.subr.mxu0 %v3976
    %4324 = vmatpush1.msra.mxu0 %v3975
    %4325 = vmatprep.subr.mxu0 %v3980
    %4326 = vmatpush1.msra.mxu0 %v3979
    %4327 = vmatprep.subr.mxu0 %v3984
    %4328 = vmatpush1.msra.mxu0 %v3983
    %4329 = vmatprep.subr.mxu0 %v3988
    %4330 = vmatpush1.msra.mxu0 %v3987
    %4331 = vmatprep.subr.mxu0 %v3992
    %4332 = vmatpush1.msra.mxu0 %v3991
    %4333 = vmatprep.subr.mxu0 %v3996
    %4334 = vmatpush1.msra.mxu0 %v3995
    %4335 = vmatprep.subr.mxu0 %v4000
    %4336 = vmatpush1.msra.mxu0 %v3999
    %4337 = vmatprep.subr.mxu0 %v4004
    %4338 = vmatpush1.msra.mxu0 %v4003
    %4339 = vmatprep.subr.mxu0 %v4008
    %4340 = vmatpush1.msra.mxu0 %v4007
    %4341 = vmatprep.subr.mxu0 %v4012
    %4342 = vmatpush1.msra.mxu0 %v4011
    %4343 = vmatprep.subr.mxu0 %v4016
    %4344 = vmatpush1.msra.mxu0 %v4015
    %4345 = vmatprep.subr.mxu0 %v4020
    %4346 = vmatpush1.msra.mxu0 %v4019
    %4347 = vmatprep.subr.mxu0 %v4024
    %4348 = vmatpush1.msra.mxu0 %v4023
    %4349 = vmatprep.subr.mxu0 %v4028
    %4350 = vmatpush1.msra.mxu0 %v4027
    %4351 = vmatprep.subr.mxu0 %v4032
    %4352 = vmatpush1.msra.mxu0 %v4031
    %4353 = vmatprep.subr.mxu0 %v4036
    %4354 = vmatpush1.msra.mxu0 %v4035
    %4355 = vmatprep.subr.mxu0 %v4040
    %4356 = vmatpush1.msra.mxu0 %v4039
    %4357 = vmatprep.subr.mxu0 %v4044
    %4358 = vmatpush1.msra.mxu0 %v4043
    %4359 = vmatprep.subr.mxu0 %v4048
    %4360 = vmatpush1.msra.mxu0 %v4047
    %4361 = vmatprep.subr.mxu0 %v4052
    %4362 = vmatpush1.msra.mxu0 %v4051
    %4363 = vmatprep.subr.mxu0 %v4056
    %4364 = vmatpush1.msra.mxu0 %v4055
    %4365 = vmatprep.subr.mxu0 %v4060
    %4366 = vmatpush1.msra.mxu0 %v4059
    %4367 = vmatprep.subr.mxu0 %v4064
    %4368 = vmatpush1.msra.mxu0 %v4063
    %4369 = vmatprep.subr.mxu0 %v4068
    %4370 = vmatpush1.msra.mxu0 %v4067
    %4371 = vmatprep.mubr.f32.mxu0 %v3302
    %4372 = vmatmul.mubr.f32.gmra.mrb[0].mxu0 %v3301
    %v4373 = vpop.f32.mrb[0].mxu0
    %v4374 = vadd.f32 %v4303, %v4373
    %v4375 = vpop.f32.mrb[0].mxu0
    %v4376 = vadd.f32 %v4305, %v4375
    %4377 = vdwg.mxu0
    %4378 = vmatprep.subr.mxu0 %v3562
    %4379 = vmatpush1.msra.mxu0 %v3561
    %4380 = vmatprep.subr.mxu0 %v3566
    %4381 = vmatpush1.msra.mxu0 %v3565
    %4382 = vmatprep.subr.mxu0 %v3570
    %4383 = vmatpush1.msra.mxu0 %v3569
    %4384 = vmatprep.subr.mxu0 %v3574
    %4385 = vmatpush1.msra.mxu0 %v3573
    %4386 = vmatprep.subr.mxu0 %v3578
    %4387 = vmatpush1.msra.mxu0 %v3577
    %4388 = vmatprep.subr.mxu0 %v3582
    %4389 = vmatpush1.msra.mxu0 %v3581
    %4390 = vmatprep.subr.mxu0 %v3586
    %4391 = vmatpush1.msra.mxu0 %v3585
    %4392 = vmatprep.subr.mxu0 %v3590
    %4393 = vmatpush1.msra.mxu0 %v3589
    %4394 = vmatprep.subr.mxu0 %v3594
    %4395 = vmatpush1.msra.mxu0 %v3593
    %4396 = vmatprep.subr.mxu0 %v3598
    %4397 = vmatpush1.msra.mxu0 %v3597
    %4398 = vmatprep.subr.mxu0 %v3602
    %4399 = vmatpush1.msra.mxu0 %v3601
    %4400 = vmatprep.subr.mxu0 %v3606
    %4401 = vmatpush1.msra.mxu0 %v3605
    %4402 = vmatprep.subr.mxu0 %v3610
    %4403 = vmatpush1.msra.mxu0 %v3609
    %4404 = vmatprep.subr.mxu0 %v3614
    %4405 = vmatpush1.msra.mxu0 %v3613
    %4406 = vmatprep.subr.mxu0 %v3618
    %4407 = vmatpush1.msra.mxu0 %v3617
    %4408 = vmatprep.subr.mxu0 %v3622
    %4409 = vmatpush1.msra.mxu0 %v3621
    %4410 = vmatprep.subr.mxu0 %v3626
    %4411 = vmatpush1.msra.mxu0 %v3625
    %4412 = vmatprep.subr.mxu0 %v3630
    %4413 = vmatpush1.msra.mxu0 %v3629
    %4414 = vmatprep.subr.mxu0 %v3634
    %4415 = vmatpush1.msra.mxu0 %v3633
    %4416 = vmatprep.subr.mxu0 %v3638
    %4417 = vmatpush1.msra.mxu0 %v3637
    %4418 = vmatprep.subr.mxu0 %v3642
    %4419 = vmatpush1.msra.mxu0 %v3641
    %4420 = vmatprep.subr.mxu0 %v3646
    %4421 = vmatpush1.msra.mxu0 %v3645
    %4422 = vmatprep.subr.mxu0 %v3650
    %4423 = vmatpush1.msra.mxu0 %v3649
    %4424 = vmatprep.subr.mxu0 %v3654
    %4425 = vmatpush1.msra.mxu0 %v3653
    %4426 = vmatprep.subr.mxu0 %v3658
    %4427 = vmatpush1.msra.mxu0 %v3657
    %4428 = vmatprep.subr.mxu0 %v3662
    %4429 = vmatpush1.msra.mxu0 %v3661
    %4430 = vmatprep.subr.mxu0 %v3666
    %4431 = vmatpush1.msra.mxu0 %v3665
    %4432 = vmatprep.subr.mxu0 %v3670
    %4433 = vmatpush1.msra.mxu0 %v3669
    %4434 = vmatprep.subr.mxu0 %v3674
    %4435 = vmatpush1.msra.mxu0 %v3673
    %4436 = vmatprep.subr.mxu0 %v3678
    %4437 = vmatpush1.msra.mxu0 %v3677
    %4438 = vmatprep.subr.mxu0 %v3682
    %4439 = vmatpush1.msra.mxu0 %v3681
    %4440 = vmatprep.subr.mxu0 %v3686
    %4441 = vmatpush1.msra.mxu0 %v3685
    %4442 = vmatprep.mubr.f32.mxu0 %v3296
    %4443 = vmatmul.mubr.f32.gmra.mrb[0].mxu0 %v3295
    %v4444 = vpop.f32.mrb[0].mxu0
    %v4445 = vadd.f32 %v4085, %v4444
    %v4446 = vpop.f32.mrb[0].mxu0
    %v4447 = vadd.f32 %v4089, %v4446
    %4448 = vdwg.mxu0
    %4449 = vmatprep.subr.mxu0 %v3690
    %4450 = vmatpush1.msra.mxu0 %v3689
    %4451 = vmatprep.subr.mxu0 %v3694
    %4452 = vmatpush1.msra.mxu0 %v3693
    %4453 = vmatprep.subr.mxu0 %v3698
    %4454 = vmatpush1.msra.mxu0 %v3697
    %4455 = vmatprep.subr.mxu0 %v3702
    %4456 = vmatpush1.msra.mxu0 %v3701
    %4457 = vmatprep.subr.mxu0 %v3706
    %4458 = vmatpush1.msra.mxu0 %v3705
    %4459 = vmatprep.subr.mxu0 %v3710
    %4460 = vmatpush1.msra.mxu0 %v3709
    %4461 = vmatprep.subr.mxu0 %v3714
    %4462 = vmatpush1.msra.mxu0 %v3713
    %4463 = vmatprep.subr.mxu0 %v3718
    %4464 = vmatpush1.msra.mxu0 %v3717
    %4465 = vmatprep.subr.mxu0 %v3722
    %4466 = vmatpush1.msra.mxu0 %v3721
    %4467 = vmatprep.subr.mxu0 %v3726
    %4468 = vmatpush1.msra.mxu0 %v3725
    %4469 = vmatprep.subr.mxu0 %v3730
    %4470 = vmatpush1.msra.mxu0 %v3729
    %4471 = vmatprep.subr.mxu0 %v3734
    %4472 = vmatpush1.msra.mxu0 %v3733
    %4473 = vmatprep.subr.mxu0 %v3738
    %4474 = vmatpush1.msra.mxu0 %v3737
    %4475 = vmatprep.subr.mxu0 %v3742
    %4476 = vmatpush1.msra.mxu0 %v3741
    %4477 = vmatprep.subr.mxu0 %v3746
    %4478 = vmatpush1.msra.mxu0 %v3745
    %4479 = vmatprep.subr.mxu0 %v3750
    %4480 = vmatpush1.msra.mxu0 %v3749
    %4481 = vmatprep.subr.mxu0 %v3754
    %4482 = vmatpush1.msra.mxu0 %v3753
    %4483 = vmatprep.subr.mxu0 %v3758
    %4484 = vmatpush1.msra.mxu0 %v3757
    %4485 = vmatprep.subr.mxu0 %v3762
    %4486 = vmatpush1.msra.mxu0 %v3761
    %4487 = vmatprep.subr.mxu0 %v3766
    %4488 = vmatpush1.msra.mxu0 %v3765
    %4489 = vmatprep.subr.mxu0 %v3770
    %4490 = vmatpush1.msra.mxu0 %v3769
    %4491 = vmatprep.subr.mxu0 %v3774
    %4492 = vmatpush1.msra.mxu0 %v3773
    %4493 = vmatprep.subr.mxu0 %v3778
    %4494 = vmatpush1.msra.mxu0 %v3777
    %4495 = vmatprep.subr.mxu0 %v3782
    %4496 = vmatpush1.msra.mxu0 %v3781
    %4497 = vmatprep.subr.mxu0 %v3786
    %4498 = vmatpush1.msra.mxu0 %v3785
    %4499 = vmatprep.subr.mxu0 %v3790
    %4500 = vmatpush1.msra.mxu0 %v3789
    %4501 = vmatprep.subr.mxu0 %v3794
    %4502 = vmatpush1.msra.mxu0 %v3793
    %4503 = vmatprep.subr.mxu0 %v3798
    %4504 = vmatpush1.msra.mxu0 %v3797
    %4505 = vmatprep.subr.mxu0 %v3802
    %4506 = vmatpush1.msra.mxu0 %v3801
    %4507 = vmatprep.subr.mxu0 %v3806
    %4508 = vmatpush1.msra.mxu0 %v3805
    %4509 = vmatprep.subr.mxu0 %v3810
    %4510 = vmatpush1.msra.mxu0 %v3809
    %4511 = vmatprep.subr.mxu0 %v3814
    %4512 = vmatpush1.msra.mxu0 %v3813
    %4513 = vmatprep.mubr.f32.mxu0 %v3298
    %4514 = vmatmul.mubr.f32.gmra.mrb[0].mxu0 %v3297
    %v4515 = vpop.f32.mrb[0].mxu0
    %v4516 = vadd.f32 %v4445, %v4515
    %v4517 = vpop.f32.mrb[0].mxu0
    %v4518 = vadd.f32 %v4447, %v4517
    %4519 = vdwg.mxu0
    %4520 = vmatprep.subr.mxu0 %v3818
    %4521 = vmatpush1.msra.mxu0 %v3817
    %4522 = vmatprep.subr.mxu0 %v3822
    %4523 = vmatpush1.msra.mxu0 %v3821
    %4524 = vmatprep.subr.mxu0 %v3826
    %4525 = vmatpush1.msra.mxu0 %v3825
    %4526 = vmatprep.subr.mxu0 %v3830
    %4527 = vmatpush1.msra.mxu0 %v3829
    %4528 = vmatprep.subr.mxu0 %v3834
    %4529 = vmatpush1.msra.mxu0 %v3833
    %4530 = vmatprep.subr.mxu0 %v3838
    %4531 = vmatpush1.msra.mxu0 %v3837
    %4532 = vmatprep.subr.mxu0 %v3842
    %4533 = vmatpush1.msra.mxu0 %v3841
    %4534 = vmatprep.subr.mxu0 %v3846
    %4535 = vmatpush1.msra.mxu0 %v3845
    %4536 = vmatprep.subr.mxu0 %v3850
    %4537 = vmatpush1.msra.mxu0 %v3849
    %4538 = vmatprep.subr.mxu0 %v3854
    %4539 = vmatpush1.msra.mxu0 %v3853
    %4540 = vmatprep.subr.mxu0 %v3858
    %4541 = vmatpush1.msra.mxu0 %v3857
    %4542 = vmatprep.subr.mxu0 %v3862
    %4543 = vmatpush1.msra.mxu0 %v3861
    %4544 = vmatprep.subr.mxu0 %v3866
    %4545 = vmatpush1.msra.mxu0 %v3865
    %4546 = vmatprep.subr.mxu0 %v3870
    %4547 = vmatpush1.msra.mxu0 %v3869
    %4548 = vmatprep.subr.mxu0 %v3874
    %4549 = vmatpush1.msra.mxu0 %v3873
    %4550 = vmatprep.subr.mxu0 %v3878
    %4551 = vmatpush1.msra.mxu0 %v3877
    %4552 = vmatprep.subr.mxu0 %v3882
    %4553 = vmatpush1.msra.mxu0 %v3881
    %4554 = vmatprep.subr.mxu0 %v3886
    %4555 = vmatpush1.msra.mxu0 %v3885
    %4556 = vmatprep.subr.mxu0 %v3890
    %4557 = vmatpush1.msra.mxu0 %v3889
    %4558 = vmatprep.subr.mxu0 %v3894
    %4559 = vmatpush1.msra.mxu0 %v3893
    %4560 = vmatprep.subr.mxu0 %v3898
    %4561 = vmatpush1.msra.mxu0 %v3897
    %4562 = vmatprep.subr.mxu0 %v3902
    %4563 = vmatpush1.msra.mxu0 %v3901
    %4564 = vmatprep.subr.mxu0 %v3906
    %4565 = vmatpush1.msra.mxu0 %v3905
    %4566 = vmatprep.subr.mxu0 %v3910
    %4567 = vmatpush1.msra.mxu0 %v3909
    %4568 = vmatprep.subr.mxu0 %v3914
    %4569 = vmatpush1.msra.mxu0 %v3913
    %4570 = vmatprep.subr.mxu0 %v3918
    %4571 = vmatpush1.msra.mxu0 %v3917
    %4572 = vmatprep.subr.mxu0 %v3922
    %4573 = vmatpush1.msra.mxu0 %v3921
    %4574 = vmatprep.subr.mxu0 %v3926
    %4575 = vmatpush1.msra.mxu0 %v3925
    %4576 = vmatprep.subr.mxu0 %v3930
    %4577 = vmatpush1.msra.mxu0 %v3929
    %4578 = vmatprep.subr.mxu0 %v3934
    %4579 = vmatpush1.msra.mxu0 %v3933
    %4580 = vmatprep.subr.mxu0 %v3938
    %4581 = vmatpush1.msra.mxu0 %v3937
    %4582 = vmatprep.subr.mxu0 %v3942
    %4583 = vmatpush1.msra.mxu0 %v3941
    %4584 = vmatprep.mubr.f32.mxu0 %v3300
    %4585 = vmatmul.mubr.f32.gmra.mrb[0].mxu0 %v3299
    %v4586 = vpop.f32.mrb[0].mxu0
    %v4587 = vadd.f32 %v4516, %v4586
    %v4588 = vpop.f32.mrb[0].mxu0
    %v4589 = vadd.f32 %v4518, %v4588
    %4590 = vdwg.mxu0
    %4591 = vmatprep.subr.mxu0 %v3946
    %4592 = vmatpush1.msra.mxu0 %v3945
    %4593 = vmatprep.subr.mxu0 %v3950
    %4594 = vmatpush1.msra.mxu0 %v3949
    %4595 = vmatprep.subr.mxu0 %v3954
    %4596 = vmatpush1.msra.mxu0 %v3953
    %4597 = vmatprep.subr.mxu0 %v3958
    %4598 = vmatpush1.msra.mxu0 %v3957
    %4599 = vmatprep.subr.mxu0 %v3962
    %4600 = vmatpush1.msra.mxu0 %v3961
    %4601 = vmatprep.subr.mxu0 %v3966
    %4602 = vmatpush1.msra.mxu0 %v3965
    %4603 = vmatprep.subr.mxu0 %v3970
    %4604 = vmatpush1.msra.mxu0 %v3969
    %4605 = vmatprep.subr.mxu0 %v3974
    %4606 = vmatpush1.msra.mxu0 %v3973
    %4607 = vmatprep.subr.mxu0 %v3978
    %4608 = vmatpush1.msra.mxu0 %v3977
    %4609 = vmatprep.subr.mxu0 %v3982
    %4610 = vmatpush1.msra.mxu0 %v3981
    %4611 = vmatprep.subr.mxu0 %v3986
    %4612 = vmatpush1.msra.mxu0 %v3985
    %4613 = vmatprep.subr.mxu0 %v3990
    %4614 = vmatpush1.msra.mxu0 %v3989
    %4615 = vmatprep.subr.mxu0 %v3994
    %4616 = vmatpush1.msra.mxu0 %v3993
    %4617 = vmatprep.subr.mxu0 %v3998
    %4618 = vmatpush1.msra.mxu0 %v3997
    %4619 = vmatprep.subr.mxu0 %v4002
    %4620 = vmatpush1.msra.mxu0 %v4001
    %4621 = vmatprep.subr.mxu0 %v4006
    %4622 = vmatpush1.msra.mxu0 %v4005
    %4623 = vmatprep.subr.mxu0 %v4010
    %4624 = vmatpush1.msra.mxu0 %v4009
    %4625 = vmatprep.subr.mxu0 %v4014
    %4626 = vmatpush1.msra.mxu0 %v4013
    %4627 = vmatprep.subr.mxu0 %v4018
    %4628 = vmatpush1.msra.mxu0 %v4017
    %4629 = vmatprep.subr.mxu0 %v4022
    %4630 = vmatpush1.msra.mxu0 %v4021
    %4631 = vmatprep.subr.mxu0 %v4026
    %4632 = vmatpush1.msra.mxu0 %v4025
    %4633 = vmatprep.subr.mxu0 %v4030
    %4634 = vmatpush1.msra.mxu0 %v4029
    %4635 = vmatprep.subr.mxu0 %v4034
    %4636 = vmatpush1.msra.mxu0 %v4033
    %4637 = vmatprep.subr.mxu0 %v4038
    %4638 = vmatpush1.msra.mxu0 %v4037
    %4639 = vmatprep.subr.mxu0 %v4042
    %4640 = vmatpush1.msra.mxu0 %v4041
    %4641 = vmatprep.subr.mxu0 %v4046
    %4642 = vmatpush1.msra.mxu0 %v4045
    %4643 = vmatprep.subr.mxu0 %v4050
    %4644 = vmatpush1.msra.mxu0 %v4049
    %4645 = vmatprep.subr.mxu0 %v4054
    %4646 = vmatpush1.msra.mxu0 %v4053
    %4647 = vmatprep.subr.mxu0 %v4058
    %4648 = vmatpush1.msra.mxu0 %v4057
    %4649 = vmatprep.subr.mxu0 %v4062
    %4650 = vmatpush1.msra.mxu0 %v4061
    %4651 = vmatprep.subr.mxu0 %v4066
    %4652 = vmatpush1.msra.mxu0 %v4065
    %4653 = vmatprep.subr.mxu0 %v4070
    %4654 = vmatpush1.msra.mxu0 %v4069
    %4655 = vmatprep.mubr.f32.mxu0 %v3302
    %4656 = vmatmul.mubr.f32.gmra.mrb[0].mxu0 %v3301
    %v4657 = vpop.f32.mrb[0].mxu0
    %v4658 = vadd.f32 %v4587, %v4657
    %v4659 = vpop.f32.mrb[0].mxu0
    %v4660 = vadd.f32 %v4589, %v4659
    %4661 = vdwg.mxu0
    %v4662 = vmax.f32 %v4374, 0.0
    %v4663 = vmax.f32 %v4376, 0.0
    %v4664 = vmax.f32 %v4658, 0.0
    %v4665 = vmax.f32 %v4660, 0.0
    %s4666 = scalar_lea.vmem [#allocation12], 4
    %v4667 = vld [vmem:[%s4666] ss:$8 sm:$0xf]
    %s4668 = scalar_lea.vmem [#allocation12], 5
    %v4669 = vld [vmem:[%s4668] ss:$8 sm:$0xf]
    %v4670 = vsel %vm2902, %v4662, 0.0
    %v4671 = vrot.slane %v4670, 4
    %v4672 = vadd.f32 %v4670, %v4671
    %v4673 = vrot.slane %v4672, 2
    %v4674 = vadd.f32 %v4672, %v4673
    %v4675 = vrot.slane %v4674, 1
    %v4676 = vadd.f32 %v4674, %v4675
    %v4677 = vsel %vm2902, %v4663, 0.0
    %v4678 = vrot.slane %v4677, 4
    %v4679 = vadd.f32 %v4677, %v4678
    %v4680 = vrot.slane %v4679, 2
    %v4681 = vadd.f32 %v4679, %v4680
    %v4682 = vrot.slane %v4681, 1
    %v4683 = vadd.f32 %v4681, %v4682
    %v4684 = vsel %vm2902, %v4664, 0.0
    %v4685 = vrot.slane %v4684, 4
    %v4686 = vadd.f32 %v4684, %v4685
    %v4687 = vrot.slane %v4686, 2
    %v4688 = vadd.f32 %v4686, %v4687
    %v4689 = vrot.slane %v4688, 1
    %v4690 = vadd.f32 %v4688, %v4689
    %v4691 = vsel %vm2902, %v4665, 0.0
    %v4692 = vrot.slane %v4691, 4
    %v4693 = vadd.f32 %v4691, %v4692
    %v4694 = vrot.slane %v4693, 2
    %v4695 = vadd.f32 %v4693, %v4694
    %v4696 = vrot.slane %v4695, 1
    %v4697 = vadd.f32 %v4695, %v4696
    %v4698 = vmul.f32 %v4662, %v4662
    %v4699 = vmul.f32 %v4663, %v4663
    %v4700 = vmul.f32 %v4664, %v4664
    %v4701 = vmul.f32 %v4665, %v4665
    %v4702 = vsel %vm2902, %v4698, 0.0
    %v4703 = vrot.slane %v4702, 4
    %v4704 = vadd.f32 %v4702, %v4703
    %v4705 = vrot.slane %v4704, 2
    %v4706 = vadd.f32 %v4704, %v4705
    %v4707 = vrot.slane %v4706, 1
    %v4708 = vadd.f32 %v4706, %v4707
    %v4709 = vsel %vm2902, %v4699, 0.0
    %v4710 = vrot.slane %v4709, 4
    %v4711 = vadd.f32 %v4709, %v4710
    %v4712 = vrot.slane %v4711, 2
    %v4713 = vadd.f32 %v4711, %v4712
    %v4714 = vrot.slane %v4713, 1
    %v4715 = vadd.f32 %v4713, %v4714
    %v4716 = vsel %vm2902, %v4700, 0.0
    %v4717 = vrot.slane %v4716, 4
    %v4718 = vadd.f32 %v4716, %v4717
    %v4719 = vrot.slane %v4718, 2
    %v4720 = vadd.f32 %v4718, %v4719
    %v4721 = vrot.slane %v4720, 1
    %v4722 = vadd.f32 %v4720, %v4721
    %v4723 = vsel %vm2902, %v4701, 0.0
    %v4724 = vrot.slane %v4723, 4
    %v4725 = vadd.f32 %v4723, %v4724
    %v4726 = vrot.slane %v4725, 2
    %v4727 = vadd.f32 %v4725, %v4726
    %v4728 = vrot.slane %v4727, 1
    %v4729 = vadd.f32 %v4727, %v4728
    %v4730 = vmul.f32 %v4676, 0.5
    %v4731 = vmul.f32 %v4683, 0.5
    %v4732 = vmul.f32 %v4690, 0.5
    %v4733 = vmul.f32 %v4697, 0.5
    %v4734 = vmul.f32 %v4708, 0.5
    %v4735 = vmul.f32 %v4715, 0.5
    %v4736 = vmul.f32 %v4722, 0.5
    %v4737 = vmul.f32 %v4729, 0.5
    %v4738 = vmul.f32 %v4730, %v4730
    %v4739 = vmul.f32 %v4731, %v4731
    %v4740 = vmul.f32 %v4732, %v4732
    %v4741 = vmul.f32 %v4733, %v4733
    %v4742 = vsub.f32 %v4734, %v4738
    %v4743 = vsub.f32 %v4735, %v4739
    %v4744 = vsub.f32 %v4736, %v4740
    %v4745 = vsub.f32 %v4737, %v4741
    %v4746 = vmax.f32 %v4742, 0.0
    %v4747 = vmax.f32 %v4743, 0.0
    %v4748 = vmax.f32 %v4744, 0.0
    %v4749 = vmax.f32 %v4745, 0.0
    %v4750 = vadd.f32 %v4746, 1e-05
    %v4751 = vadd.f32 %v4747, 1e-05
    %v4752 = vadd.f32 %v4748, 1e-05
    %v4753 = vadd.f32 %v4749, 1e-05
    %v4754 = vrsqrt.pop %v4750
    %v4755 = vrsqrt.pop %v4751
    %v4756 = vrsqrt.pop %v4752
    %v4757 = vrsqrt.pop %v4753
    %v4762 = vcombine.low %v4754, %v4755
    %v4763 = vcombine.low %v4756, %v4757
    %v4765 = vunpack.c.l.s4 1966171168
    %v4766 = vunpack.c.0.s8 %v4765
    %v4767 = vlaneseq
    %v4768 = vshrl.u32 %v4767, 7
    %v4769 = vsub.s32 %v4766, %v4768
    %v4770 = vrot.slane %v4762, %v4769
    %v4772 = vunpack.c.l.s4 1966171168
    %v4773 = vunpack.c.0.s8 %v4772
    %v4774 = vlaneseq
    %v4775 = vshrl.u32 %v4774, 7
    %v4776 = vsub.s32 %v4773, %v4775
    %v4777 = vrot.slane %v4763, %v4776
    %v4778 = vcombine.low %v4770, %v4777
    %v4780 = vunpack.c.l.s4 1966171168
    %v4781 = vunpack.c.0.s8 %v4780
    %v4782 = vlaneseq
    %v4783 = vshrl.u32 %v4782, 7
    %v4784 = vsub.s32 %v4781, %v4783
    %v4785 = vrot.slane %v4778, %v4784
    %v4787 = vmul.f32 %v4667, %v4785
    %v4789 = vlaneseq
    %v4790 = vshrl.u32 %v4789, 7
    %v4791 = vsub.s32 0, %v4790
    %v4792 = vrot.slane %v4787, %v4791
    %v4793 = vlaneseq
    %v4794 = vshrl.u32 %v4793, 7
    %v4795 = vsub.s32 1, %v4794
    %v4796 = vrot.slane %v4787, %v4795
    %v4797 = vlaneseq
    %v4798 = vshrl.u32 %v4797, 7
    %v4799 = vsub.s32 2, %v4798
    %v4800 = vrot.slane %v4787, %v4799
    %v4801 = vlaneseq
    %v4802 = vshrl.u32 %v4801, 7
    %v4803 = vsub.s32 3, %v4802
    %v4804 = vrot.slane %v4787, %v4803
    %v4809 = vmul.f32 %v4730, %v4792
    %v4810 = vmul.f32 %v4731, %v4796
    %v4811 = vmul.f32 %v4732, %v4800
    %v4812 = vmul.f32 %v4733, %v4804
    %v4817 = vcombine.low %v4809, %v4810
    %v4818 = vcombine.low %v4811, %v4812
    %v4820 = vunpack.c.l.s4 1966171168
    %v4821 = vunpack.c.0.s8 %v4820
    %v4822 = vlaneseq
    %v4823 = vshrl.u32 %v4822, 7
    %v4824 = vsub.s32 %v4821, %v4823
    %v4825 = vrot.slane %v4817, %v4824
    %v4827 = vunpack.c.l.s4 1966171168
    %v4828 = vunpack.c.0.s8 %v4827
    %v4829 = vlaneseq
    %v4830 = vshrl.u32 %v4829, 7
    %v4831 = vsub.s32 %v4828, %v4830
    %v4832 = vrot.slane %v4818, %v4831
    %v4833 = vcombine.low %v4825, %v4832
    %v4835 = vunpack.c.l.s4 1966171168
    %v4836 = vunpack.c.0.s8 %v4835
    %v4837 = vlaneseq
    %v4838 = vshrl.u32 %v4837, 7
    %v4839 = vsub.s32 %v4836, %v4838
    %v4840 = vrot.slane %v4833, %v4839
    %v4842 = vsub.f32 %v4669, %v4840
    %v4843 = vmul.f32 %v4662, %v4792
    %v4844 = vmul.f32 %v4663, %v4796
    %v4845 = vmul.f32 %v4664, %v4800
    %v4846 = vmul.f32 %v4665, %v4804
    %v4848 = vlaneseq
    %v4849 = vshrl.u32 %v4848, 7
    %v4850 = vsub.s32 0, %v4849
    %v4851 = vrot.slane %v4842, %v4850
    %v4852 = vlaneseq
    %v4853 = vshrl.u32 %v4852, 7
    %v4854 = vsub.s32 1, %v4853
    %v4855 = vrot.slane %v4842, %v4854
    %v4856 = vlaneseq
    %v4857 = vshrl.u32 %v4856, 7
    %v4858 = vsub.s32 2, %v4857
    %v4859 = vrot.slane %v4842, %v4858
    %v4860 = vlaneseq
    %v4861 = vshrl.u32 %v4860, 7
    %v4862 = vsub.s32 3, %v4861
    %v4863 = vrot.slane %v4842, %v4862
    %v4868 = vadd.f32 %v4843, %v4851
    %v4869 = vadd.f32 %v4844, %v4855
    %v4870 = vadd.f32 %v4845, %v4859
    %v4871 = vadd.f32 %v4846, %v4863
    %v4872 = vld [vmem:[#allocation6] sm:$0xf]
    %v4873 = vld [vmem:[#allocation6 + $0x4] sm:$0xf]
    %v4874 = vld [vmem:[#allocation6 + $0x8] sm:$0xf]
    %v4875 = vld [vmem:[#allocation6 + $0xc] sm:$0xf]
    %v4876 = vld [vmem:[#allocation6 + $0x10] sm:$0xf]
    %v4877 = vld [vmem:[#allocation6 + $0x14] sm:$0xf]
    %v4878 = vld [vmem:[#allocation6 + $0x18] sm:$0xf]
    %v4879 = vld [vmem:[#allocation6 + $0x1c] sm:$0xf]
    %v4880 = vld [vmem:[#allocation6 + $0x20] sm:$0xf]
    %v4881 = vld [vmem:[#allocation6 + $0x24] sm:$0xf]
    %v4882 = vld [vmem:[#allocation6 + $0x28] sm:$0xf]
    %v4883 = vld [vmem:[#allocation6 + $0x2c] sm:$0xf]
    %v4884 = vld [vmem:[#allocation6 + $0x30] sm:$0xf]
    %v4885 = vld [vmem:[#allocation6 + $0x34] sm:$0xf]
    %v4886 = vld [vmem:[#allocation6 + $0x38] sm:$0xf]
    %v4887 = vld [vmem:[#allocation6 + $0x3c] sm:$0xf]
    %v4888 = vld [vmem:[#allocation6 + $0x40] sm:$0xf]
    %v4889 = vld [vmem:[#allocation6 + $0x44] sm:$0xf]
    %v4890 = vld [vmem:[#allocation6 + $0x48] sm:$0xf]
    %v4891 = vld [vmem:[#allocation6 + $0x4c] sm:$0xf]
    %v4892 = vld [vmem:[#allocation6 + $0x50] sm:$0xf]
    %v4893 = vld [vmem:[#allocation6 + $0x54] sm:$0xf]
    %v4894 = vld [vmem:[#allocation6 + $0x58] sm:$0xf]
    %v4895 = vld [vmem:[#allocation6 + $0x5c] sm:$0xf]
    %v4896 = vld [vmem:[#allocation6 + $0x60] sm:$0xf]
    %v4897 = vld [vmem:[#allocation6 + $0x64] sm:$0xf]
    %v4898 = vld [vmem:[#allocation6 + $0x68] sm:$0xf]
    %v4899 = vld [vmem:[#allocation6 + $0x6c] sm:$0xf]
    %v4900 = vld [vmem:[#allocation6 + $0x70] sm:$0xf]
    %v4901 = vld [vmem:[#allocation6 + $0x74] sm:$0xf]
    %v4902 = vld [vmem:[#allocation6 + $0x78] sm:$0xf]
    %v4903 = vld [vmem:[#allocation6 + $0x7c] sm:$0xf]
    %v4904 = vld [vmem:[#allocation6 + $0x80] sm:$0xf]
    %v4905 = vld [vmem:[#allocation6 + $0x84] sm:$0xf]
    %v4906 = vld [vmem:[#allocation6 + $0x88] sm:$0xf]
    %v4907 = vld [vmem:[#allocation6 + $0x8c] sm:$0xf]
    %v4908 = vld [vmem:[#allocation6 + $0x90] sm:$0xf]
    %v4909 = vld [vmem:[#allocation6 + $0x94] sm:$0xf]
    %v4910 = vld [vmem:[#allocation6 + $0x98] sm:$0xf]
    %v4911 = vld [vmem:[#allocation6 + $0x9c] sm:$0xf]
    %v4912 = vld [vmem:[#allocation6 + $0xa0] sm:$0xf]
    %v4913 = vld [vmem:[#allocation6 + $0xa4] sm:$0xf]
    %v4914 = vld [vmem:[#allocation6 + $0xa8] sm:$0xf]
    %v4915 = vld [vmem:[#allocation6 + $0xac] sm:$0xf]
    %v4916 = vld [vmem:[#allocation6 + $0xb0] sm:$0xf]
    %v4917 = vld [vmem:[#allocation6 + $0xb4] sm:$0xf]
    %v4918 = vld [vmem:[#allocation6 + $0xb8] sm:$0xf]
    %v4919 = vld [vmem:[#allocation6 + $0xbc] sm:$0xf]
    %v4920 = vld [vmem:[#allocation6 + $0xc0] sm:$0xf]
    %v4921 = vld [vmem:[#allocation6 + $0xc4] sm:$0xf]
    %v4922 = vld [vmem:[#allocation6 + $0xc8] sm:$0xf]
    %v4923 = vld [vmem:[#allocation6 + $0xcc] sm:$0xf]
    %v4924 = vld [vmem:[#allocation6 + $0xd0] sm:$0xf]
    %v4925 = vld [vmem:[#allocation6 + $0xd4] sm:$0xf]
    %v4926 = vld [vmem:[#allocation6 + $0xd8] sm:$0xf]
    %v4927 = vld [vmem:[#allocation6 + $0xdc] sm:$0xf]
    %v4928 = vld [vmem:[#allocation6 + $0xe0] sm:$0xf]
    %v4929 = vld [vmem:[#allocation6 + $0xe4] sm:$0xf]
    %v4930 = vld [vmem:[#allocation6 + $0xe8] sm:$0xf]
    %v4931 = vld [vmem:[#allocation6 + $0xec] sm:$0xf]
    %v4932 = vld [vmem:[#allocation6 + $0xf0] sm:$0xf]
    %v4933 = vld [vmem:[#allocation6 + $0xf4] sm:$0xf]
    %v4934 = vld [vmem:[#allocation6 + $0xf8] sm:$0xf]
    %v4935 = vld [vmem:[#allocation6 + $0xfc] sm:$0xf]
    %v4936 = vunpack.c.l.bf16 %v4872
    %v4937 = vunpack.c.l.bf16 %v4873
    %v4938 = vunpack.c.l.bf16 %v4874
    %v4939 = vunpack.c.l.bf16 %v4875
    %v4940 = vunpack.c.l.bf16 %v4876
    %v4941 = vunpack.c.l.bf16 %v4877
    %v4942 = vunpack.c.l.bf16 %v4878
    %v4943 = vunpack.c.l.bf16 %v4879
    %v4944 = vunpack.c.l.bf16 %v4880
    %v4945 = vunpack.c.l.bf16 %v4881
    %v4946 = vunpack.c.l.bf16 %v4882
    %v4947 = vunpack.c.l.bf16 %v4883
    %v4948 = vunpack.c.l.bf16 %v4884
    %v4949 = vunpack.c.l.bf16 %v4885
    %v4950 = vunpack.c.l.bf16 %v4886
    %v4951 = vunpack.c.l.bf16 %v4887
    %v4952 = vunpack.c.l.bf16 %v4888
    %v4953 = vunpack.c.l.bf16 %v4889
    %v4954 = vunpack.c.l.bf16 %v4890
    %v4955 = vunpack.c.l.bf16 %v4891
    %v4956 = vunpack.c.l.bf16 %v4892
    %v4957 = vunpack.c.l.bf16 %v4893
    %v4958 = vunpack.c.l.bf16 %v4894
    %v4959 = vunpack.c.l.bf16 %v4895
    %v4960 = vunpack.c.l.bf16 %v4896
    %v4961 = vunpack.c.l.bf16 %v4897
    %v4962 = vunpack.c.l.bf16 %v4898
    %v4963 = vunpack.c.l.bf16 %v4899
    %v4964 = vunpack.c.l.bf16 %v4900
    %v4965 = vunpack.c.l.bf16 %v4901
    %v4966 = vunpack.c.l.bf16 %v4902
    %v4967 = vunpack.c.l.bf16 %v4903
    %v4968 = vunpack.c.l.bf16 %v4904
    %v4969 = vunpack.c.l.bf16 %v4905
    %v4970 = vunpack.c.l.bf16 %v4906
    %v4971 = vunpack.c.l.bf16 %v4907
    %v4972 = vunpack.c.l.bf16 %v4908
    %v4973 = vunpack.c.l.bf16 %v4909
    %v4974 = vunpack.c.l.bf16 %v4910
    %v4975 = vunpack.c.l.bf16 %v4911
    %v4976 = vunpack.c.l.bf16 %v4912
    %v4977 = vunpack.c.l.bf16 %v4913
    %v4978 = vunpack.c.l.bf16 %v4914
    %v4979 = vunpack.c.l.bf16 %v4915
    %v4980 = vunpack.c.l.bf16 %v4916
    %v4981 = vunpack.c.l.bf16 %v4917
    %v4982 = vunpack.c.l.bf16 %v4918
    %v4983 = vunpack.c.l.bf16 %v4919
    %v4984 = vunpack.c.l.bf16 %v4920
    %v4985 = vunpack.c.l.bf16 %v4921
    %v4986 = vunpack.c.l.bf16 %v4922
    %v4987 = vunpack.c.l.bf16 %v4923
    %v4988 = vunpack.c.l.bf16 %v4924
    %v4989 = vunpack.c.l.bf16 %v4925
    %v4990 = vunpack.c.l.bf16 %v4926
    %v4991 = vunpack.c.l.bf16 %v4927
    %v4992 = vunpack.c.l.bf16 %v4928
    %v4993 = vunpack.c.l.bf16 %v4929
    %v4994 = vunpack.c.l.bf16 %v4930
    %v4995 = vunpack.c.l.bf16 %v4931
    %v4996 = vunpack.c.l.bf16 %v4932
    %v4997 = vunpack.c.l.bf16 %v4933
    %v4998 = vunpack.c.l.bf16 %v4934
    %v4999 = vunpack.c.l.bf16 %v4935
    %v5000 = vld [vmem:[#allocation12 + $0x6] ss:$0 sm:$0xff]
    %5001 = vmatprep.subr.mxu0 0.0
    %5002 = vmatpush1.msra.mxu0 %v4936
    %5003 = vmatprep.subr.mxu0 0.0
    %5004 = vmatpush1.msra.mxu0 %v4937
    %5005 = vmatprep.subr.mxu0 0.0
    %5006 = vmatpush1.msra.mxu0 %v4938
    %5007 = vmatprep.subr.mxu0 0.0
    %5008 = vmatpush1.msra.mxu0 %v4939
    %5009 = vmatprep.subr.mxu0 0.0
    %5010 = vmatpush1.msra.mxu0 %v4940
    %5011 = vmatprep.subr.mxu0 0.0
    %5012 = vmatpush1.msra.mxu0 %v4941
    %5013 = vmatprep.subr.mxu0 0.0
    %5014 = vmatpush1.msra.mxu0 %v4942
    %5015 = vmatprep.subr.mxu0 0.0
    %5016 = vmatpush1.msra.mxu0 %v4943
    %5017 = vmatprep.subr.mxu0 0.0
    %5018 = vmatpush1.msra.mxu0 %v4944
    %5019 = vmatprep.subr.mxu0 0.0
    %5020 = vmatpush1.msra.mxu0 %v4945
    %5021 = vmatprep.subr.mxu0 0.0
    %5022 = vmatpush1.msra.mxu0 %v4946
    %5023 = vmatprep.subr.mxu0 0.0
    %5024 = vmatpush1.msra.mxu0 %v4947
    %5025 = vmatprep.subr.mxu0 0.0
    %5026 = vmatpush1.msra.mxu0 %v4948
    %5027 = vmatprep.subr.mxu0 0.0
    %5028 = vmatpush1.msra.mxu0 %v4949
    %5029 = vmatprep.subr.mxu0 0.0
    %5030 = vmatpush1.msra.mxu0 %v4950
    %5031 = vmatprep.subr.mxu0 0.0
    %5032 = vmatpush1.msra.mxu0 %v4951
    %5033 = vmatprep.subr.mxu0 0.0
    %5034 = vmatpush1.msra.mxu0 %v4952
    %5035 = vmatprep.subr.mxu0 0.0
    %5036 = vmatpush1.msra.mxu0 %v4953
    %5037 = vmatprep.subr.mxu0 0.0
    %5038 = vmatpush1.msra.mxu0 %v4954
    %5039 = vmatprep.subr.mxu0 0.0
    %5040 = vmatpush1.msra.mxu0 %v4955
    %5041 = vmatprep.subr.mxu0 0.0
    %5042 = vmatpush1.msra.mxu0 %v4956
    %5043 = vmatprep.subr.mxu0 0.0
    %5044 = vmatpush1.msra.mxu0 %v4957
    %5045 = vmatprep.subr.mxu0 0.0
    %5046 = vmatpush1.msra.mxu0 %v4958
    %5047 = vmatprep.subr.mxu0 0.0
    %5048 = vmatpush1.msra.mxu0 %v4959
    %5049 = vmatprep.subr.mxu0 0.0
    %5050 = vmatpush1.msra.mxu0 %v4960
    %5051 = vmatprep.subr.mxu0 0.0
    %5052 = vmatpush1.msra.mxu0 %v4961
    %5053 = vmatprep.subr.mxu0 0.0
    %5054 = vmatpush1.msra.mxu0 %v4962
    %5055 = vmatprep.subr.mxu0 0.0
    %5056 = vmatpush1.msra.mxu0 %v4963
    %5057 = vmatprep.subr.mxu0 0.0
    %5058 = vmatpush1.msra.mxu0 %v4964
    %5059 = vmatprep.subr.mxu0 0.0
    %5060 = vmatpush1.msra.mxu0 %v4965
    %5061 = vmatprep.subr.mxu0 0.0
    %5062 = vmatpush1.msra.mxu0 %v4966
    %5063 = vmatprep.subr.mxu0 0.0
    %5064 = vmatpush1.msra.mxu0 %v4967
    %5065 = vmatprep.mubr.f32.mxu0 %v4869
    %5066 = vmatmul.mubr.f32.gmra.mrb[0].mxu0 %v4868
    %v5067 = vpop.f32.mrb[0].mxu0
    %v5068 = vadd.f32 %v5000, %v5067
    %v5069 = vpop.f32.mrb[0].mxu0
    %5070 = vdwg.mxu0
    %5071 = vmatprep.subr.mxu0 0.0
    %5072 = vmatpush1.msra.mxu0 %v4968
    %5073 = vmatprep.subr.mxu0 0.0
    %5074 = vmatpush1.msra.mxu0 %v4969
    %5075 = vmatprep.subr.mxu0 0.0
    %5076 = vmatpush1.msra.mxu0 %v4970
    %5077 = vmatprep.subr.mxu0 0.0
    %5078 = vmatpush1.msra.mxu0 %v4971
    %5079 = vmatprep.subr.mxu0 0.0
    %5080 = vmatpush1.msra.mxu0 %v4972
    %5081 = vmatprep.subr.mxu0 0.0
    %5082 = vmatpush1.msra.mxu0 %v4973
    %5083 = vmatprep.subr.mxu0 0.0
    %5084 = vmatpush1.msra.mxu0 %v4974
    %5085 = vmatprep.subr.mxu0 0.0
    %5086 = vmatpush1.msra.mxu0 %v4975
    %5087 = vmatprep.subr.mxu0 0.0
    %5088 = vmatpush1.msra.mxu0 %v4976
    %5089 = vmatprep.subr.mxu0 0.0
    %5090 = vmatpush1.msra.mxu0 %v4977
    %5091 = vmatprep.subr.mxu0 0.0
    %5092 = vmatpush1.msra.mxu0 %v4978
    %5093 = vmatprep.subr.mxu0 0.0
    %5094 = vmatpush1.msra.mxu0 %v4979
    %5095 = vmatprep.subr.mxu0 0.0
    %5096 = vmatpush1.msra.mxu0 %v4980
    %5097 = vmatprep.subr.mxu0 0.0
    %5098 = vmatpush1.msra.mxu0 %v4981
    %5099 = vmatprep.subr.mxu0 0.0
    %5100 = vmatpush1.msra.mxu0 %v4982
    %5101 = vmatprep.subr.mxu0 0.0
    %5102 = vmatpush1.msra.mxu0 %v4983
    %5103 = vmatprep.subr.mxu0 0.0
    %5104 = vmatpush1.msra.mxu0 %v4984
    %5105 = vmatprep.subr.mxu0 0.0
    %5106 = vmatpush1.msra.mxu0 %v4985
    %5107 = vmatprep.subr.mxu0 0.0
    %5108 = vmatpush1.msra.mxu0 %v4986
    %5109 = vmatprep.subr.mxu0 0.0
    %5110 = vmatpush1.msra.mxu0 %v4987
    %5111 = vmatprep.subr.mxu0 0.0
    %5112 = vmatpush1.msra.mxu0 %v4988
    %5113 = vmatprep.subr.mxu0 0.0
    %5114 = vmatpush1.msra.mxu0 %v4989
    %5115 = vmatprep.subr.mxu0 0.0
    %5116 = vmatpush1.msra.mxu0 %v4990
    %5117 = vmatprep.subr.mxu0 0.0
    %5118 = vmatpush1.msra.mxu0 %v4991
    %5119 = vmatprep.subr.mxu0 0.0
    %5120 = vmatpush1.msra.mxu0 %v4992
    %5121 = vmatprep.subr.mxu0 0.0
    %5122 = vmatpush1.msra.mxu0 %v4993
    %5123 = vmatprep.subr.mxu0 0.0
    %5124 = vmatpush1.msra.mxu0 %v4994
    %5125 = vmatprep.subr.mxu0 0.0
    %5126 = vmatpush1.msra.mxu0 %v4995
    %5127 = vmatprep.subr.mxu0 0.0
    %5128 = vmatpush1.msra.mxu0 %v4996
    %5129 = vmatprep.subr.mxu0 0.0
    %5130 = vmatpush1.msra.mxu0 %v4997
    %5131 = vmatprep.subr.mxu0 0.0
    %5132 = vmatpush1.msra.mxu0 %v4998
    %5133 = vmatprep.subr.mxu0 0.0
    %5134 = vmatpush1.msra.mxu0 %v4999
    %5135 = vmatprep.mubr.f32.mxu0 %v4871
    %5136 = vmatmul.mubr.f32.gmra.mrb[0].mxu0 %v4870
    %v5137 = vpop.f32.mrb[0].mxu0
    %v5138 = vadd.f32 %v5068, %v5137
    %v5139 = vpop.f32.mrb[0].mxu0
    %5140 = vdwg.mxu0
    %v5141 = vmax.f32 %v5138, 0.0
    %v5142 = vld [vmem:[#allocation7] sm:$0xff]
    %v5143 = vld [vmem:[#allocation7 + $0x8] sm:$0xff]
    %v5144 = vld [vmem:[#allocation7 + $0x10] sm:$0xff]
    %v5145 = vld [vmem:[#allocation7 + $0x18] sm:$0xff]
    %v5146 = vld [vmem:[#allocation7 + $0x20] sm:$0xff]
    %v5147 = vld [vmem:[#allocation7 + $0x28] sm:$0xff]
    %v5148 = vld [vmem:[#allocation7 + $0x30] sm:$0xff]
    %v5149 = vld [vmem:[#allocation7 + $0x38] sm:$0xff]
    %v5150 = vld [vmem:[#allocation7 + $0x40] sm:$0xff]
    %v5151 = vld [vmem:[#allocation7 + $0x48] sm:$0xff]
    %v5152 = vld [vmem:[#allocation7 + $0x50] sm:$0xff]
    %v5153 = vld [vmem:[#allocation7 + $0x58] sm:$0xff]
    %v5154 = vld [vmem:[#allocation7 + $0x60] sm:$0xff]
    %v5155 = vld [vmem:[#allocation7 + $0x68] sm:$0xff]
    %v5156 = vld [vmem:[#allocation7 + $0x70] sm:$0xff]
    %v5157 = vld [vmem:[#allocation7 + $0x78] sm:$0xff]
    %v5158 = vld [vmem:[#allocation7 + $0x80] sm:$0xff]
    %v5159 = vld [vmem:[#allocation7 + $0x88] sm:$0xff]
    %v5160 = vld [vmem:[#allocation7 + $0x90] sm:$0xff]
    %v5161 = vld [vmem:[#allocation7 + $0x98] sm:$0xff]
    %v5162 = vld [vmem:[#allocation7 + $0xa0] sm:$0xff]
    %v5163 = vld [vmem:[#allocation7 + $0xa8] sm:$0xff]
    %v5164 = vld [vmem:[#allocation7 + $0xb0] sm:$0xff]
    %v5165 = vld [vmem:[#allocation7 + $0xb8] sm:$0xff]
    %v5166 = vld [vmem:[#allocation7 + $0xc0] sm:$0xff]
    %v5167 = vld [vmem:[#allocation7 + $0xc8] sm:$0xff]
    %v5168 = vld [vmem:[#allocation7 + $0xd0] sm:$0xff]
    %v5169 = vld [vmem:[#allocation7 + $0xd8] sm:$0xff]
    %v5170 = vld [vmem:[#allocation7 + $0xe0] sm:$0xff]
    %v5171 = vld [vmem:[#allocation7 + $0xe8] sm:$0xff]
    %v5172 = vld [vmem:[#allocation7 + $0xf0] sm:$0xff]
    %v5173 = vld [vmem:[#allocation7 + $0xf8] sm:$0xff]
    %v5174 = vunpack.c.l.bf16 %v5142
    %v5175 = vunpack.c.h.bf16 %v5142
    %v5176 = vunpack.c.l.bf16 %v5143
    %v5177 = vunpack.c.h.bf16 %v5143
    %v5178 = vunpack.c.l.bf16 %v5144
    %v5179 = vunpack.c.h.bf16 %v5144
    %v5180 = vunpack.c.l.bf16 %v5145
    %v5181 = vunpack.c.h.bf16 %v5145
    %v5182 = vunpack.c.l.bf16 %v5146
    %v5183 = vunpack.c.h.bf16 %v5146
    %v5184 = vunpack.c.l.bf16 %v5147
    %v5185 = vunpack.c.h.bf16 %v5147
    %v5186 = vunpack.c.l.bf16 %v5148
    %v5187 = vunpack.c.h.bf16 %v5148
    %v5188 = vunpack.c.l.bf16 %v5149
    %v5189 = vunpack.c.h.bf16 %v5149
    %v5190 = vunpack.c.l.bf16 %v5150
    %v5191 = vunpack.c.h.bf16 %v5150
    %v5192 = vunpack.c.l.bf16 %v5151
    %v5193 = vunpack.c.h.bf16 %v5151
    %v5194 = vunpack.c.l.bf16 %v5152
    %v5195 = vunpack.c.h.bf16 %v5152
    %v5196 = vunpack.c.l.bf16 %v5153
    %v5197 = vunpack.c.h.bf16 %v5153
    %v5198 = vunpack.c.l.bf16 %v5154
    %v5199 = vunpack.c.h.bf16 %v5154
    %v5200 = vunpack.c.l.bf16 %v5155
    %v5201 = vunpack.c.h.bf16 %v5155
    %v5202 = vunpack.c.l.bf16 %v5156
    %v5203 = vunpack.c.h.bf16 %v5156
    %v5204 = vunpack.c.l.bf16 %v5157
    %v5205 = vunpack.c.h.bf16 %v5157
    %v5206 = vunpack.c.l.bf16 %v5158
    %v5207 = vunpack.c.h.bf16 %v5158
    %v5208 = vunpack.c.l.bf16 %v5159
    %v5209 = vunpack.c.h.bf16 %v5159
    %v5210 = vunpack.c.l.bf16 %v5160
    %v5211 = vunpack.c.h.bf16 %v5160
    %v5212 = vunpack.c.l.bf16 %v5161
    %v5213 = vunpack.c.h.bf16 %v5161
    %v5214 = vunpack.c.l.bf16 %v5162
    %v5215 = vunpack.c.h.bf16 %v5162
    %v5216 = vunpack.c.l.bf16 %v5163
    %v5217 = vunpack.c.h.bf16 %v5163
    %v5218 = vunpack.c.l.bf16 %v5164
    %v5219 = vunpack.c.h.bf16 %v5164
    %v5220 = vunpack.c.l.bf16 %v5165
    %v5221 = vunpack.c.h.bf16 %v5165
    %v5222 = vunpack.c.l.bf16 %v5166
    %v5223 = vunpack.c.h.bf16 %v5166
    %v5224 = vunpack.c.l.bf16 %v5167
    %v5225 = vunpack.c.h.bf16 %v5167
    %v5226 = vunpack.c.l.bf16 %v5168
    %v5227 = vunpack.c.h.bf16 %v5168
    %v5228 = vunpack.c.l.bf16 %v5169
    %v5229 = vunpack.c.h.bf16 %v5169
    %v5230 = vunpack.c.l.bf16 %v5170
    %v5231 = vunpack.c.h.bf16 %v5170
    %v5232 = vunpack.c.l.bf16 %v5171
    %v5233 = vunpack.c.h.bf16 %v5171
    %v5234 = vunpack.c.l.bf16 %v5172
    %v5235 = vunpack.c.h.bf16 %v5172
    %v5236 = vunpack.c.l.bf16 %v5173
    %v5237 = vunpack.c.h.bf16 %v5173
    %s5238 = scalar_lea.vmem [#allocation12], 7
    %v5239 = vld [vmem:[%s5238] ss:$8 sm:$0xf]
    %v5241 = vlaneseq
    %v5242 = vshrl.u32 %v5241, 7
    %v5243 = vsub.s32 0, %v5242
    %v5244 = vrot.slane %v5239, %v5243
    %v5245 = vlaneseq
    %v5246 = vshrl.u32 %v5245, 7
    %v5247 = vsub.s32 1, %v5246
    %v5248 = vrot.slane %v5239, %v5247
    %v5249 = vlaneseq
    %v5250 = vshrl.u32 %v5249, 7
    %v5251 = vsub.s32 2, %v5250
    %v5252 = vrot.slane %v5239, %v5251
    %v5253 = vlaneseq
    %v5254 = vshrl.u32 %v5253, 7
    %v5255 = vsub.s32 3, %v5254
    %v5256 = vrot.slane %v5239, %v5255
    %5261 = vmatprep.subr.mxu0 %v5175
    %5262 = vmatpush1.msra.mxu0 %v5174
    %5263 = vmatprep.subr.mxu0 %v5179
    %5264 = vmatpush1.msra.mxu0 %v5178
    %5265 = vmatprep.subr.mxu0 %v5183
    %5266 = vmatpush1.msra.mxu0 %v5182
    %5267 = vmatprep.subr.mxu0 %v5187
    %5268 = vmatpush1.msra.mxu0 %v5186
    %5269 = vmatprep.subr.mxu0 %v5191
    %5270 = vmatpush1.msra.mxu0 %v5190
    %5271 = vmatprep.subr.mxu0 %v5195
    %5272 = vmatpush1.msra.mxu0 %v5194
    %5273 = vmatprep.subr.mxu0 %v5199
    %5274 = vmatpush1.msra.mxu0 %v5198
    %5275 = vmatprep.subr.mxu0 %v5203
    %5276 = vmatpush1.msra.mxu0 %v5202
    %5277 = vmatprep.subr.mxu0 %v5207
    %5278 = vmatpush1.msra.mxu0 %v5206
    %5279 = vmatprep.subr.mxu0 %v5211
    %5280 = vmatpush1.msra.mxu0 %v5210
    %5281 = vmatprep.subr.mxu0 %v5215
    %5282 = vmatpush1.msra.mxu0 %v5214
    %5283 = vmatprep.subr.mxu0 %v5219
    %5284 = vmatpush1.msra.mxu0 %v5218
    %5285 = vmatprep.subr.mxu0 %v5223
    %5286 = vmatpush1.msra.mxu0 %v5222
    %5287 = vmatprep.subr.mxu0 %v5227
    %5288 = vmatpush1.msra.mxu0 %v5226
    %5289 = vmatprep.subr.mxu0 %v5231
    %5290 = vmatpush1.msra.mxu0 %v5230
    %5291 = vmatprep.subr.mxu0 %v5235
    %5292 = vmatpush1.msra.mxu0 %v5234
    %5293 = vmatprep.subr.mxu0 0.0
    %5294 = vmatpush1.msra.mxu0 0.0
    %5295 = vmatprep.subr.mxu0 0.0
    %5296 = vmatpush1.msra.mxu0 0.0
    %5297 = vmatprep.subr.mxu0 0.0
    %5298 = vmatpush1.msra.mxu0 0.0
    %5299 = vmatprep.subr.mxu0 0.0
    %5300 = vmatpush1.msra.mxu0 0.0
    %5301 = vmatprep.subr.mxu0 0.0
    %5302 = vmatpush1.msra.mxu0 0.0
    %5303 = vmatprep.subr.mxu0 0.0
    %5304 = vmatpush1.msra.mxu0 0.0
    %5305 = vmatprep.subr.mxu0 0.0
    %5306 = vmatpush1.msra.mxu0 0.0
    %5307 = vmatprep.subr.mxu0 0.0
    %5308 = vmatpush1.msra.mxu0 0.0
    %5309 = vmatprep.subr.mxu0 0.0
    %5310 = vmatpush1.msra.mxu0 0.0
    %5311 = vmatprep.subr.mxu0 0.0
    %5312 = vmatpush1.msra.mxu0 0.0
    %5313 = vmatprep.subr.mxu0 0.0
    %5314 = vmatpush1.msra.mxu0 0.0
    %5315 = vmatprep.subr.mxu0 0.0
    %5316 = vmatpush1.msra.mxu0 0.0
    %5317 = vmatprep.subr.mxu0 0.0
    %5318 = vmatpush1.msra.mxu0 0.0
    %5319 = vmatprep.subr.mxu0 0.0
    %5320 = vmatpush1.msra.mxu0 0.0
    %5321 = vmatprep.subr.mxu0 0.0
    %5322 = vmatpush1.msra.mxu0 0.0
    %5323 = vmatprep.subr.mxu0 0.0
    %5324 = vmatpush1.msra.mxu0 0.0
    %5325 = vmatprep.mubr.f32.mxu0 0.0
    %5326 = vmatmul.mubr.f32.gmra.mrb[0].mxu0 %v5141
    %v5327 = vpop.f32.mrb[0].mxu0
    %v5328 = vadd.f32 %v5244, %v5327
    %v5329 = vpop.f32.mrb[0].mxu0
    %v5330 = vadd.f32 %v5248, %v5329
    %5331 = vdwg.mxu0
    %5332 = vmatprep.subr.mxu0 %v5177
    %5333 = vmatpush1.msra.mxu0 %v5176
    %5334 = vmatprep.subr.mxu0 %v5181
    %5335 = vmatpush1.msra.mxu0 %v5180
    %5336 = vmatprep.subr.mxu0 %v5185
    %5337 = vmatpush1.msra.mxu0 %v5184
    %5338 = vmatprep.subr.mxu0 %v5189
    %5339 = vmatpush1.msra.mxu0 %v5188
    %5340 = vmatprep.subr.mxu0 %v5193
    %5341 = vmatpush1.msra.mxu0 %v5192
    %5342 = vmatprep.subr.mxu0 %v5197
    %5343 = vmatpush1.msra.mxu0 %v5196
    %5344 = vmatprep.subr.mxu0 %v5201
    %5345 = vmatpush1.msra.mxu0 %v5200
    %5346 = vmatprep.subr.mxu0 %v5205
    %5347 = vmatpush1.msra.mxu0 %v5204
    %5348 = vmatprep.subr.mxu0 %v5209
    %5349 = vmatpush1.msra.mxu0 %v5208
    %5350 = vmatprep.subr.mxu0 %v5213
    %5351 = vmatpush1.msra.mxu0 %v5212
    %5352 = vmatprep.subr.mxu0 %v5217
    %5353 = vmatpush1.msra.mxu0 %v5216
    %5354 = vmatprep.subr.mxu0 %v5221
    %5355 = vmatpush1.msra.mxu0 %v5220
    %5356 = vmatprep.subr.mxu0 %v5225
    %5357 = vmatpush1.msra.mxu0 %v5224
    %5358 = vmatprep.subr.mxu0 %v5229
    %5359 = vmatpush1.msra.mxu0 %v5228
    %5360 = vmatprep.subr.mxu0 %v5233
    %5361 = vmatpush1.msra.mxu0 %v5232
    %5362 = vmatprep.subr.mxu0 %v5237
    %5363 = vmatpush1.msra.mxu0 %v5236
    %5364 = vmatprep.subr.mxu0 0.0
    %5365 = vmatpush1.msra.mxu0 0.0
    %5366 = vmatprep.subr.mxu0 0.0
    %5367 = vmatpush1.msra.mxu0 0.0
    %5368 = vmatprep.subr.mxu0 0.0
    %5369 = vmatpush1.msra.mxu0 0.0
    %5370 = vmatprep.subr.mxu0 0.0
    %5371 = vmatpush1.msra.mxu0 0.0
    %5372 = vmatprep.subr.mxu0 0.0
    %5373 = vmatpush1.msra.mxu0 0.0
    %5374 = vmatprep.subr.mxu0 0.0
    %5375 = vmatpush1.msra.mxu0 0.0
    %5376 = vmatprep.subr.mxu0 0.0
    %5377 = vmatpush1.msra.mxu0 0.0
    %5378 = vmatprep.subr.mxu0 0.0
    %5379 = vmatpush1.msra.mxu0 0.0
    %5380 = vmatprep.subr.mxu0 0.0
    %5381 = vmatpush1.msra.mxu0 0.0
    %5382 = vmatprep.subr.mxu0 0.0
    %5383 = vmatpush1.msra.mxu0 0.0
    %5384 = vmatprep.subr.mxu0 0.0
    %5385 = vmatpush1.msra.mxu0 0.0
    %5386 = vmatprep.subr.mxu0 0.0
    %5387 = vmatpush1.msra.mxu0 0.0
    %5388 = vmatprep.subr.mxu0 0.0
    %5389 = vmatpush1.msra.mxu0 0.0
    %5390 = vmatprep.subr.mxu0 0.0
    %5391 = vmatpush1.msra.mxu0 0.0
    %5392 = vmatprep.subr.mxu0 0.0
    %5393 = vmatpush1.msra.mxu0 0.0
    %5394 = vmatprep.subr.mxu0 0.0
    %5395 = vmatpush1.msra.mxu0 0.0
    %5396 = vmatprep.mubr.f32.mxu0 0.0
    %5397 = vmatmul.mubr.f32.gmra.mrb[0].mxu0 %v5141
    %v5398 = vpop.f32.mrb[0].mxu0
    %v5399 = vadd.f32 %v5252, %v5398
    %v5400 = vpop.f32.mrb[0].mxu0
    %v5401 = vadd.f32 %v5256, %v5400
    %5402 = vdwg.mxu0
    %v5403 = vmax.f32 %v5328, 0.0
    %v5404 = vmax.f32 %v5330, 0.0
    %v5405 = vmax.f32 %v5399, 0.0
    %v5406 = vmax.f32 %v5401, 0.0
    %s5407 = scalar_lea.vmem [#allocation12], 64
    %v5408 = vld [vmem:[%s5407] ss:$8 sm:$0xf]
    %s5409 = scalar_lea.vmem [#allocation12], 65
    %v5410 = vld [vmem:[%s5409] ss:$8 sm:$0xf]
    %v5411 = vsel %vm2902, %v5403, 0.0
    %v5412 = vrot.slane %v5411, 4
    %v5413 = vadd.f32 %v5411, %v5412
    %v5414 = vrot.slane %v5413, 2
    %v5415 = vadd.f32 %v5413, %v5414
    %v5416 = vrot.slane %v5415, 1
    %v5417 = vadd.f32 %v5415, %v5416
    %v5418 = vsel %vm2902, %v5404, 0.0
    %v5419 = vrot.slane %v5418, 4
    %v5420 = vadd.f32 %v5418, %v5419
    %v5421 = vrot.slane %v5420, 2
    %v5422 = vadd.f32 %v5420, %v5421
    %v5423 = vrot.slane %v5422, 1
    %v5424 = vadd.f32 %v5422, %v5423
    %v5425 = vsel %vm2902, %v5405, 0.0
    %v5426 = vrot.slane %v5425, 4
    %v5427 = vadd.f32 %v5425, %v5426
    %v5428 = vrot.slane %v5427, 2
    %v5429 = vadd.f32 %v5427, %v5428
    %v5430 = vrot.slane %v5429, 1
    %v5431 = vadd.f32 %v5429, %v5430
    %v5432 = vsel %vm2902, %v5406, 0.0
    %v5433 = vrot.slane %v5432, 4
    %v5434 = vadd.f32 %v5432, %v5433
    %v5435 = vrot.slane %v5434, 2
    %v5436 = vadd.f32 %v5434, %v5435
    %v5437 = vrot.slane %v5436, 1
    %v5438 = vadd.f32 %v5436, %v5437
    %v5439 = vmul.f32 %v5403, %v5403
    %v5440 = vmul.f32 %v5404, %v5404
    %v5441 = vmul.f32 %v5405, %v5405
    %v5442 = vmul.f32 %v5406, %v5406
    %v5443 = vsel %vm2902, %v5439, 0.0
    %v5444 = vrot.slane %v5443, 4
    %v5445 = vadd.f32 %v5443, %v5444
    %v5446 = vrot.slane %v5445, 2
    %v5447 = vadd.f32 %v5445, %v5446
    %v5448 = vrot.slane %v5447, 1
    %v5449 = vadd.f32 %v5447, %v5448
    %v5450 = vsel %vm2902, %v5440, 0.0
    %v5451 = vrot.slane %v5450, 4
    %v5452 = vadd.f32 %v5450, %v5451
    %v5453 = vrot.slane %v5452, 2
    %v5454 = vadd.f32 %v5452, %v5453
    %v5455 = vrot.slane %v5454, 1
    %v5456 = vadd.f32 %v5454, %v5455
    %v5457 = vsel %vm2902, %v5441, 0.0
    %v5458 = vrot.slane %v5457, 4
    %v5459 = vadd.f32 %v5457, %v5458
    %v5460 = vrot.slane %v5459, 2
    %v5461 = vadd.f32 %v5459, %v5460
    %v5462 = vrot.slane %v5461, 1
    %v5463 = vadd.f32 %v5461, %v5462
    %v5464 = vsel %vm2902, %v5442, 0.0
    %v5465 = vrot.slane %v5464, 4
    %v5466 = vadd.f32 %v5464, %v5465
    %v5467 = vrot.slane %v5466, 2
    %v5468 = vadd.f32 %v5466, %v5467
    %v5469 = vrot.slane %v5468, 1
    %v5470 = vadd.f32 %v5468, %v5469
    %v5471 = vmul.f32 %v5417, 0.5
    %v5472 = vmul.f32 %v5424, 0.5
    %v5473 = vmul.f32 %v5431, 0.5
    %v5474 = vmul.f32 %v5438, 0.5
    %v5475 = vmul.f32 %v5449, 0.5
    %v5476 = vmul.f32 %v5456, 0.5
    %v5477 = vmul.f32 %v5463, 0.5
    %v5478 = vmul.f32 %v5470, 0.5
    %v5479 = vmul.f32 %v5471, %v5471
    %v5480 = vmul.f32 %v5472, %v5472
    %v5481 = vmul.f32 %v5473, %v5473
    %v5482 = vmul.f32 %v5474, %v5474
    %v5483 = vsub.f32 %v5475, %v5479
    %v5484 = vsub.f32 %v5476, %v5480
    %v5485 = vsub.f32 %v5477, %v5481
    %v5486 = vsub.f32 %v5478, %v5482
    %v5487 = vmax.f32 %v5483, 0.0
    %v5488 = vmax.f32 %v5484, 0.0
    %v5489 = vmax.f32 %v5485, 0.0
    %v5490 = vmax.f32 %v5486, 0.0
    %v5491 = vadd.f32 %v5487, 1e-05
    %v5492 = vadd.f32 %v5488, 1e-05
    %v5493 = vadd.f32 %v5489, 1e-05
    %v5494 = vadd.f32 %v5490, 1e-05
    %v5495 = vrsqrt.pop %v5491
    %v5496 = vrsqrt.pop %v5492
    %v5497 = vrsqrt.pop %v5493
    %v5498 = vrsqrt.pop %v5494
    %v5503 = vcombine.low %v5495, %v5496
    %v5504 = vcombine.low %v5497, %v5498
    %v5506 = vunpack.c.l.s4 1966171168
    %v5507 = vunpack.c.0.s8 %v5506
    %v5508 = vlaneseq
    %v5509 = vshrl.u32 %v5508, 7
    %v5510 = vsub.s32 %v5507, %v5509
    %v5511 = vrot.slane %v5503, %v5510
    %v5513 = vunpack.c.l.s4 1966171168
    %v5514 = vunpack.c.0.s8 %v5513
    %v5515 = vlaneseq
    %v5516 = vshrl.u32 %v5515, 7
    %v5517 = vsub.s32 %v5514, %v5516
    %v5518 = vrot.slane %v5504, %v5517
    %v5519 = vcombine.low %v5511, %v5518
    %v5521 = vunpack.c.l.s4 1966171168
    %v5522 = vunpack.c.0.s8 %v5521
    %v5523 = vlaneseq
    %v5524 = vshrl.u32 %v5523, 7
    %v5525 = vsub.s32 %v5522, %v5524
    %v5526 = vrot.slane %v5519, %v5525
    %v5528 = vmul.f32 %v5408, %v5526
    %v5530 = vlaneseq
    %v5531 = vshrl.u32 %v5530, 7
    %v5532 = vsub.s32 0, %v5531
    %v5533 = vrot.slane %v5528, %v5532
    %v5534 = vlaneseq
    %v5535 = vshrl.u32 %v5534, 7
    %v5536 = vsub.s32 1, %v5535
    %v5537 = vrot.slane %v5528, %v5536
    %v5538 = vlaneseq
    %v5539 = vshrl.u32 %v5538, 7
    %v5540 = vsub.s32 2, %v5539
    %v5541 = vrot.slane %v5528, %v5540
    %v5542 = vlaneseq
    %v5543 = vshrl.u32 %v5542, 7
    %v5544 = vsub.s32 3, %v5543
    %v5545 = vrot.slane %v5528, %v5544
    %v5550 = vmul.f32 %v5471, %v5533
    %v5551 = vmul.f32 %v5472, %v5537
    %v5552 = vmul.f32 %v5473, %v5541
    %v5553 = vmul.f32 %v5474, %v5545
    %v5558 = vcombine.low %v5550, %v5551
    %v5559 = vcombine.low %v5552, %v5553
    %v5561 = vunpack.c.l.s4 1966171168
    %v5562 = vunpack.c.0.s8 %v5561
    %v5563 = vlaneseq
    %v5564 = vshrl.u32 %v5563, 7
    %v5565 = vsub.s32 %v5562, %v5564
    %v5566 = vrot.slane %v5558, %v5565
    %v5568 = vunpack.c.l.s4 1966171168
    %v5569 = vunpack.c.0.s8 %v5568
    %v5570 = vlaneseq
    %v5571 = vshrl.u32 %v5570, 7
    %v5572 = vsub.s32 %v5569, %v5571
    %v5573 = vrot.slane %v5559, %v5572
    %v5574 = vcombine.low %v5566, %v5573
    %v5576 = vunpack.c.l.s4 1966171168
    %v5577 = vunpack.c.0.s8 %v5576
    %v5578 = vlaneseq
    %v5579 = vshrl.u32 %v5578, 7
    %v5580 = vsub.s32 %v5577, %v5579
    %v5581 = vrot.slane %v5574, %v5580
    %v5583 = vsub.f32 %v5410, %v5581
    %v5584 = vmul.f32 %v5403, %v5533
    %v5585 = vmul.f32 %v5404, %v5537
    %v5586 = vmul.f32 %v5405, %v5541
    %v5587 = vmul.f32 %v5406, %v5545
    %v5589 = vlaneseq
    %v5590 = vshrl.u32 %v5589, 7
    %v5591 = vsub.s32 0, %v5590
    %v5592 = vrot.slane %v5583, %v5591
    %v5593 = vlaneseq
    %v5594 = vshrl.u32 %v5593, 7
    %v5595 = vsub.s32 1, %v5594
    %v5596 = vrot.slane %v5583, %v5595
    %v5597 = vlaneseq
    %v5598 = vshrl.u32 %v5597, 7
    %v5599 = vsub.s32 2, %v5598
    %v5600 = vrot.slane %v5583, %v5599
    %v5601 = vlaneseq
    %v5602 = vshrl.u32 %v5601, 7
    %v5603 = vsub.s32 3, %v5602
    %v5604 = vrot.slane %v5583, %v5603
    %v5609 = vadd.f32 %v5584, %v5592
    %v5610 = vadd.f32 %v5585, %v5596
    %v5611 = vadd.f32 %v5586, %v5600
    %v5612 = vadd.f32 %v5587, %v5604
    %v5613 = vld [vmem:[#allocation9] sm:$0xff]
    %v5614 = vld [vmem:[#allocation9 + $0x8] sm:$0xff]
    %v5615 = vld [vmem:[#allocation9 + $0x10] sm:$0xff]
    %v5616 = vld [vmem:[#allocation9 + $0x18] sm:$0xff]
    %v5617 = vld [vmem:[#allocation9 + $0x20] sm:$0xff]
    %v5618 = vld [vmem:[#allocation9 + $0x28] sm:$0xff]
    %v5619 = vld [vmem:[#allocation9 + $0x30] sm:$0xff]
    %v5620 = vld [vmem:[#allocation9 + $0x38] sm:$0xff]
    %v5621 = vld [vmem:[#allocation9 + $0x40] sm:$0xff]
    %v5622 = vld [vmem:[#allocation9 + $0x48] sm:$0xff]
    %v5623 = vld [vmem:[#allocation9 + $0x50] sm:$0xff]
    %v5624 = vld [vmem:[#allocation9 + $0x58] sm:$0xff]
    %v5625 = vld [vmem:[#allocation9 + $0x60] sm:$0xff]
    %v5626 = vld [vmem:[#allocation9 + $0x68] sm:$0xff]
    %v5627 = vld [vmem:[#allocation9 + $0x70] sm:$0xff]
    %v5628 = vld [vmem:[#allocation9 + $0x78] sm:$0xff]
    %v5629 = vld [vmem:[#allocation9 + $0x80] sm:$0xff]
    %v5630 = vld [vmem:[#allocation9 + $0x88] sm:$0xff]
    %v5631 = vld [vmem:[#allocation9 + $0x90] sm:$0xff]
    %v5632 = vld [vmem:[#allocation9 + $0x98] sm:$0xff]
    %v5633 = vld [vmem:[#allocation9 + $0xa0] sm:$0xff]
    %v5634 = vld [vmem:[#allocation9 + $0xa8] sm:$0xff]
    %v5635 = vld [vmem:[#allocation9 + $0xb0] sm:$0xff]
    %v5636 = vld [vmem:[#allocation9 + $0xb8] sm:$0xff]
    %v5637 = vld [vmem:[#allocation9 + $0xc0] sm:$0xff]
    %v5638 = vld [vmem:[#allocation9 + $0xc8] sm:$0xff]
    %v5639 = vld [vmem:[#allocation9 + $0xd0] sm:$0xff]
    %v5640 = vld [vmem:[#allocation9 + $0xd8] sm:$0xff]
    %v5641 = vld [vmem:[#allocation9 + $0xe0] sm:$0xff]
    %v5642 = vld [vmem:[#allocation9 + $0xe8] sm:$0xff]
    %v5643 = vld [vmem:[#allocation9 + $0xf0] sm:$0xff]
    %v5644 = vld [vmem:[#allocation9 + $0xf8] sm:$0xff]
    %v5645 = vld [vmem:[#allocation9 + $0x100] sm:$0xff]
    %v5646 = vld [vmem:[#allocation9 + $0x108] sm:$0xff]
    %v5647 = vld [vmem:[#allocation9 + $0x110] sm:$0xff]
    %v5648 = vld [vmem:[#allocation9 + $0x118] sm:$0xff]
    %v5649 = vld [vmem:[#allocation9 + $0x120] sm:$0xff]
    %v5650 = vld [vmem:[#allocation9 + $0x128] sm:$0xff]
    %v5651 = vld [vmem:[#allocation9 + $0x130] sm:$0xff]
    %v5652 = vld [vmem:[#allocation9 + $0x138] sm:$0xff]
    %v5653 = vld [vmem:[#allocation9 + $0x140] sm:$0xff]
    %v5654 = vld [vmem:[#allocation9 + $0x148] sm:$0xff]
    %v5655 = vld [vmem:[#allocation9 + $0x150] sm:$0xff]
    %v5656 = vld [vmem:[#allocation9 + $0x158] sm:$0xff]
    %v5657 = vld [vmem:[#allocation9 + $0x160] sm:$0xff]
    %v5658 = vld [vmem:[#allocation9 + $0x168] sm:$0xff]
    %v5659 = vld [vmem:[#allocation9 + $0x170] sm:$0xff]
    %v5660 = vld [vmem:[#allocation9 + $0x178] sm:$0xff]
    %v5661 = vld [vmem:[#allocation9 + $0x180] sm:$0xff]
    %v5662 = vld [vmem:[#allocation9 + $0x188] sm:$0xff]
    %v5663 = vld [vmem:[#allocation9 + $0x190] sm:$0xff]
    %v5664 = vld [vmem:[#allocation9 + $0x198] sm:$0xff]
    %v5665 = vld [vmem:[#allocation9 + $0x1a0] sm:$0xff]
    %v5666 = vld [vmem:[#allocation9 + $0x1a8] sm:$0xff]
    %v5667 = vld [vmem:[#allocation9 + $0x1b0] sm:$0xff]
    %v5668 = vld [vmem:[#allocation9 + $0x1b8] sm:$0xff]
    %v5669 = vld [vmem:[#allocation9 + $0x1c0] sm:$0xff]
    %v5670 = vld [vmem:[#allocation9 + $0x1c8] sm:$0xff]
    %v5671 = vld [vmem:[#allocation9 + $0x1d0] sm:$0xff]
    %v5672 = vld [vmem:[#allocation9 + $0x1d8] sm:$0xff]
    %v5673 = vld [vmem:[#allocation9 + $0x1e0] sm:$0xff]
    %v5674 = vld [vmem:[#allocation9 + $0x1e8] sm:$0xff]
    %v5675 = vld [vmem:[#allocation9 + $0x1f0] sm:$0xff]
    %v5676 = vld [vmem:[#allocation9 + $0x1f8] sm:$0xff]
    %v5677 = vld [vmem:[#allocation9 + $0x200] sm:$0xff]
    %v5678 = vld [vmem:[#allocation9 + $0x208] sm:$0xff]
    %v5679 = vld [vmem:[#allocation9 + $0x210] sm:$0xff]
    %v5680 = vld [vmem:[#allocation9 + $0x218] sm:$0xff]
    %v5681 = vld [vmem:[#allocation9 + $0x220] sm:$0xff]
    %v5682 = vld [vmem:[#allocation9 + $0x228] sm:$0xff]
    %v5683 = vld [vmem:[#allocation9 + $0x230] sm:$0xff]
    %v5684 = vld [vmem:[#allocation9 + $0x238] sm:$0xff]
    %v5685 = vld [vmem:[#allocation9 + $0x240] sm:$0xff]
    %v5686 = vld [vmem:[#allocation9 + $0x248] sm:$0xff]
    %v5687 = vld [vmem:[#allocation9 + $0x250] sm:$0xff]
    %v5688 = vld [vmem:[#allocation9 + $0x258] sm:$0xff]
    %v5689 = vld [vmem:[#allocation9 + $0x260] sm:$0xff]
    %v5690 = vld [vmem:[#allocation9 + $0x268] sm:$0xff]
    %v5691 = vld [vmem:[#allocation9 + $0x270] sm:$0xff]
    %v5692 = vld [vmem:[#allocation9 + $0x278] sm:$0xff]
    %v5693 = vld [vmem:[#allocation9 + $0x280] sm:$0xff]
    %v5694 = vld [vmem:[#allocation9 + $0x288] sm:$0xff]
    %v5695 = vld [vmem:[#allocation9 + $0x290] sm:$0xff]
    %v5696 = vld [vmem:[#allocation9 + $0x298] sm:$0xff]
    %v5697 = vld [vmem:[#allocation9 + $0x2a0] sm:$0xff]
    %v5698 = vld [vmem:[#allocation9 + $0x2a8] sm:$0xff]
    %v5699 = vld [vmem:[#allocation9 + $0x2b0] sm:$0xff]
    %v5700 = vld [vmem:[#allocation9 + $0x2b8] sm:$0xff]
    %v5701 = vld [vmem:[#allocation9 + $0x2c0] sm:$0xff]
    %v5702 = vld [vmem:[#allocation9 + $0x2c8] sm:$0xff]
    %v5703 = vld [vmem:[#allocation9 + $0x2d0] sm:$0xff]
    %v5704 = vld [vmem:[#allocation9 + $0x2d8] sm:$0xff]
    %v5705 = vld [vmem:[#allocation9 + $0x2e0] sm:$0xff]
    %v5706 = vld [vmem:[#allocation9 + $0x2e8] sm:$0xff]
    %v5707 = vld [vmem:[#allocation9 + $0x2f0] sm:$0xff]
    %v5708 = vld [vmem:[#allocation9 + $0x2f8] sm:$0xff]
    %v5709 = vld [vmem:[#allocation9 + $0x300] sm:$0xff]
    %v5710 = vld [vmem:[#allocation9 + $0x308] sm:$0xff]
    %v5711 = vld [vmem:[#allocation9 + $0x310] sm:$0xff]
    %v5712 = vld [vmem:[#allocation9 + $0x318] sm:$0xff]
    %v5713 = vld [vmem:[#allocation9 + $0x320] sm:$0xff]
    %v5714 = vld [vmem:[#allocation9 + $0x328] sm:$0xff]
    %v5715 = vld [vmem:[#allocation9 + $0x330] sm:$0xff]
    %v5716 = vld [vmem:[#allocation9 + $0x338] sm:$0xff]
    %v5717 = vld [vmem:[#allocation9 + $0x340] sm:$0xff]
    %v5718 = vld [vmem:[#allocation9 + $0x348] sm:$0xff]
    %v5719 = vld [vmem:[#allocation9 + $0x350] sm:$0xff]
    %v5720 = vld [vmem:[#allocation9 + $0x358] sm:$0xff]
    %v5721 = vld [vmem:[#allocation9 + $0x360] sm:$0xff]
    %v5722 = vld [vmem:[#allocation9 + $0x368] sm:$0xff]
    %v5723 = vld [vmem:[#allocation9 + $0x370] sm:$0xff]
    %v5724 = vld [vmem:[#allocation9 + $0x378] sm:$0xff]
    %v5725 = vld [vmem:[#allocation9 + $0x380] sm:$0xff]
    %v5726 = vld [vmem:[#allocation9 + $0x388] sm:$0xff]
    %v5727 = vld [vmem:[#allocation9 + $0x390] sm:$0xff]
    %v5728 = vld [vmem:[#allocation9 + $0x398] sm:$0xff]
    %v5729 = vld [vmem:[#allocation9 + $0x3a0] sm:$0xff]
    %v5730 = vld [vmem:[#allocation9 + $0x3a8] sm:$0xff]
    %v5731 = vld [vmem:[#allocation9 + $0x3b0] sm:$0xff]
    %v5732 = vld [vmem:[#allocation9 + $0x3b8] sm:$0xff]
    %v5733 = vld [vmem:[#allocation9 + $0x3c0] sm:$0xff]
    %v5734 = vld [vmem:[#allocation9 + $0x3c8] sm:$0xff]
    %v5735 = vld [vmem:[#allocation9 + $0x3d0] sm:$0xff]
    %v5736 = vld [vmem:[#allocation9 + $0x3d8] sm:$0xff]
    %v5737 = vld [vmem:[#allocation9 + $0x3e0] sm:$0xff]
    %v5738 = vld [vmem:[#allocation9 + $0x3e8] sm:$0xff]
    %v5739 = vld [vmem:[#allocation9 + $0x3f0] sm:$0xff]
    %v5740 = vld [vmem:[#allocation9 + $0x3f8] sm:$0xff]
    %v5741 = vld [vmem:[#allocation9 + $0x400] sm:$0xff]
    %v5742 = vld [vmem:[#allocation9 + $0x408] sm:$0xff]
    %v5743 = vld [vmem:[#allocation9 + $0x410] sm:$0xff]
    %v5744 = vld [vmem:[#allocation9 + $0x418] sm:$0xff]
    %v5745 = vld [vmem:[#allocation9 + $0x420] sm:$0xff]
    %v5746 = vld [vmem:[#allocation9 + $0x428] sm:$0xff]
    %v5747 = vld [vmem:[#allocation9 + $0x430] sm:$0xff]
    %v5748 = vld [vmem:[#allocation9 + $0x438] sm:$0xff]
    %v5749 = vld [vmem:[#allocation9 + $0x440] sm:$0xff]
    %v5750 = vld [vmem:[#allocation9 + $0x448] sm:$0xff]
    %v5751 = vld [vmem:[#allocation9 + $0x450] sm:$0xff]
    %v5752 = vld [vmem:[#allocation9 + $0x458] sm:$0xff]
    %v5753 = vld [vmem:[#allocation9 + $0x460] sm:$0xff]
    %v5754 = vld [vmem:[#allocation9 + $0x468] sm:$0xff]
    %v5755 = vld [vmem:[#allocation9 + $0x470] sm:$0xff]
    %v5756 = vld [vmem:[#allocation9 + $0x478] sm:$0xff]
    %v5757 = vld [vmem:[#allocation9 + $0x480] sm:$0xff]
    %v5758 = vld [vmem:[#allocation9 + $0x488] sm:$0xff]
    %v5759 = vld [vmem:[#allocation9 + $0x490] sm:$0xff]
    %v5760 = vld [vmem:[#allocation9 + $0x498] sm:$0xff]
    %v5761 = vld [vmem:[#allocation9 + $0x4a0] sm:$0xff]
    %v5762 = vld [vmem:[#allocation9 + $0x4a8] sm:$0xff]
    %v5763 = vld [vmem:[#allocation9 + $0x4b0] sm:$0xff]
    %v5764 = vld [vmem:[#allocation9 + $0x4b8] sm:$0xff]
    %v5765 = vld [vmem:[#allocation9 + $0x4c0] sm:$0xff]
    %v5766 = vld [vmem:[#allocation9 + $0x4c8] sm:$0xff]
    %v5767 = vld [vmem:[#allocation9 + $0x4d0] sm:$0xff]
    %v5768 = vld [vmem:[#allocation9 + $0x4d8] sm:$0xff]
    %v5769 = vld [vmem:[#allocation9 + $0x4e0] sm:$0xff]
    %v5770 = vld [vmem:[#allocation9 + $0x4e8] sm:$0xff]
    %v5771 = vld [vmem:[#allocation9 + $0x4f0] sm:$0xff]
    %v5772 = vld [vmem:[#allocation9 + $0x4f8] sm:$0xff]
    %v5773 = vld [vmem:[#allocation9 + $0x500] sm:$0xff]
    %v5774 = vld [vmem:[#allocation9 + $0x508] sm:$0xff]
    %v5775 = vld [vmem:[#allocation9 + $0x510] sm:$0xff]
    %v5776 = vld [vmem:[#allocation9 + $0x518] sm:$0xff]
    %v5777 = vld [vmem:[#allocation9 + $0x520] sm:$0xff]
    %v5778 = vld [vmem:[#allocation9 + $0x528] sm:$0xff]
    %v5779 = vld [vmem:[#allocation9 + $0x530] sm:$0xff]
    %v5780 = vld [vmem:[#allocation9 + $0x538] sm:$0xff]
    %v5781 = vld [vmem:[#allocation9 + $0x540] sm:$0xff]
    %v5782 = vld [vmem:[#allocation9 + $0x548] sm:$0xff]
    %v5783 = vld [vmem:[#allocation9 + $0x550] sm:$0xff]
    %v5784 = vld [vmem:[#allocation9 + $0x558] sm:$0xff]
    %v5785 = vld [vmem:[#allocation9 + $0x560] sm:$0xff]
    %v5786 = vld [vmem:[#allocation9 + $0x568] sm:$0xff]
    %v5787 = vld [vmem:[#allocation9 + $0x570] sm:$0xff]
    %v5788 = vld [vmem:[#allocation9 + $0x578] sm:$0xff]
    %v5789 = vld [vmem:[#allocation9 + $0x580] sm:$0xff]
    %v5790 = vld [vmem:[#allocation9 + $0x588] sm:$0xff]
    %v5791 = vld [vmem:[#allocation9 + $0x590] sm:$0xff]
    %v5792 = vld [vmem:[#allocation9 + $0x598] sm:$0xff]
    %v5793 = vld [vmem:[#allocation9 + $0x5a0] sm:$0xff]
    %v5794 = vld [vmem:[#allocation9 + $0x5a8] sm:$0xff]
    %v5795 = vld [vmem:[#allocation9 + $0x5b0] sm:$0xff]
    %v5796 = vld [vmem:[#allocation9 + $0x5b8] sm:$0xff]
    %v5797 = vld [vmem:[#allocation9 + $0x5c0] sm:$0xff]
    %v5798 = vld [vmem:[#allocation9 + $0x5c8] sm:$0xff]
    %v5799 = vld [vmem:[#allocation9 + $0x5d0] sm:$0xff]
    %v5800 = vld [vmem:[#allocation9 + $0x5d8] sm:$0xff]
    %v5801 = vld [vmem:[#allocation9 + $0x5e0] sm:$0xff]
    %v5802 = vld [vmem:[#allocation9 + $0x5e8] sm:$0xff]
    %v5803 = vld [vmem:[#allocation9 + $0x5f0] sm:$0xff]
    %v5804 = vld [vmem:[#allocation9 + $0x5f8] sm:$0xff]
    %v5805 = vld [vmem:[#allocation9 + $0x600] sm:$0xff]
    %v5806 = vld [vmem:[#allocation9 + $0x608] sm:$0xff]
    %v5807 = vld [vmem:[#allocation9 + $0x610] sm:$0xff]
    %v5808 = vld [vmem:[#allocation9 + $0x618] sm:$0xff]
    %v5809 = vld [vmem:[#allocation9 + $0x620] sm:$0xff]
    %v5810 = vld [vmem:[#allocation9 + $0x628] sm:$0xff]
    %v5811 = vld [vmem:[#allocation9 + $0x630] sm:$0xff]
    %v5812 = vld [vmem:[#allocation9 + $0x638] sm:$0xff]
    %v5813 = vld [vmem:[#allocation9 + $0x640] sm:$0xff]
    %v5814 = vld [vmem:[#allocation9 + $0x648] sm:$0xff]
    %v5815 = vld [vmem:[#allocation9 + $0x650] sm:$0xff]
    %v5816 = vld [vmem:[#allocation9 + $0x658] sm:$0xff]
    %v5817 = vld [vmem:[#allocation9 + $0x660] sm:$0xff]
    %v5818 = vld [vmem:[#allocation9 + $0x668] sm:$0xff]
    %v5819 = vld [vmem:[#allocation9 + $0x670] sm:$0xff]
    %v5820 = vld [vmem:[#allocation9 + $0x678] sm:$0xff]
    %v5821 = vld [vmem:[#allocation9 + $0x680] sm:$0xff]
    %v5822 = vld [vmem:[#allocation9 + $0x688] sm:$0xff]
    %v5823 = vld [vmem:[#allocation9 + $0x690] sm:$0xff]
    %v5824 = vld [vmem:[#allocation9 + $0x698] sm:$0xff]
    %v5825 = vld [vmem:[#allocation9 + $0x6a0] sm:$0xff]
    %v5826 = vld [vmem:[#allocation9 + $0x6a8] sm:$0xff]
    %v5827 = vld [vmem:[#allocation9 + $0x6b0] sm:$0xff]
    %v5828 = vld [vmem:[#allocation9 + $0x6b8] sm:$0xff]
    %v5829 = vld [vmem:[#allocation9 + $0x6c0] sm:$0xff]
    %v5830 = vld [vmem:[#allocation9 + $0x6c8] sm:$0xff]
    %v5831 = vld [vmem:[#allocation9 + $0x6d0] sm:$0xff]
    %v5832 = vld [vmem:[#allocation9 + $0x6d8] sm:$0xff]
    %v5833 = vld [vmem:[#allocation9 + $0x6e0] sm:$0xff]
    %v5834 = vld [vmem:[#allocation9 + $0x6e8] sm:$0xff]
    %v5835 = vld [vmem:[#allocation9 + $0x6f0] sm:$0xff]
    %v5836 = vld [vmem:[#allocation9 + $0x6f8] sm:$0xff]
    %v5837 = vld [vmem:[#allocation9 + $0x700] sm:$0xff]
    %v5838 = vld [vmem:[#allocation9 + $0x708] sm:$0xff]
    %v5839 = vld [vmem:[#allocation9 + $0x710] sm:$0xff]
    %v5840 = vld [vmem:[#allocation9 + $0x718] sm:$0xff]
    %v5841 = vld [vmem:[#allocation9 + $0x720] sm:$0xff]
    %v5842 = vld [vmem:[#allocation9 + $0x728] sm:$0xff]
    %v5843 = vld [vmem:[#allocation9 + $0x730] sm:$0xff]
    %v5844 = vld [vmem:[#allocation9 + $0x738] sm:$0xff]
    %v5845 = vld [vmem:[#allocation9 + $0x740] sm:$0xff]
    %v5846 = vld [vmem:[#allocation9 + $0x748] sm:$0xff]
    %v5847 = vld [vmem:[#allocation9 + $0x750] sm:$0xff]
    %v5848 = vld [vmem:[#allocation9 + $0x758] sm:$0xff]
    %v5849 = vld [vmem:[#allocation9 + $0x760] sm:$0xff]
    %v5850 = vld [vmem:[#allocation9 + $0x768] sm:$0xff]
    %v5851 = vld [vmem:[#allocation9 + $0x770] sm:$0xff]
    %v5852 = vld [vmem:[#allocation9 + $0x778] sm:$0xff]
    %v5853 = vld [vmem:[#allocation9 + $0x780] sm:$0xff]
    %v5854 = vld [vmem:[#allocation9 + $0x788] sm:$0xff]
    %v5855 = vld [vmem:[#allocation9 + $0x790] sm:$0xff]
    %v5856 = vld [vmem:[#allocation9 + $0x798] sm:$0xff]
    %v5857 = vld [vmem:[#allocation9 + $0x7a0] sm:$0xff]
    %v5858 = vld [vmem:[#allocation9 + $0x7a8] sm:$0xff]
    %v5859 = vld [vmem:[#allocation9 + $0x7b0] sm:$0xff]
    %v5860 = vld [vmem:[#allocation9 + $0x7b8] sm:$0xff]
    %v5861 = vld [vmem:[#allocation9 + $0x7c0] sm:$0xff]
    %v5862 = vld [vmem:[#allocation9 + $0x7c8] sm:$0xff]
    %v5863 = vld [vmem:[#allocation9 + $0x7d0] sm:$0xff]
    %v5864 = vld [vmem:[#allocation9 + $0x7d8] sm:$0xff]
    %v5865 = vld [vmem:[#allocation9 + $0x7e0] sm:$0xff]
    %v5866 = vld [vmem:[#allocation9 + $0x7e8] sm:$0xff]
    %v5867 = vld [vmem:[#allocation9 + $0x7f0] sm:$0xff]
    %v5868 = vld [vmem:[#allocation9 + $0x7f8] sm:$0xff]
    %v5869 = vunpack.c.l.bf16 %v5613
    %v5870 = vunpack.c.h.bf16 %v5613
    %v5871 = vunpack.c.l.bf16 %v5614
    %v5872 = vunpack.c.h.bf16 %v5614
    %v5873 = vunpack.c.l.bf16 %v5615
    %v5874 = vunpack.c.h.bf16 %v5615
    %v5875 = vunpack.c.l.bf16 %v5616
    %v5876 = vunpack.c.h.bf16 %v5616
    %v5877 = vunpack.c.l.bf16 %v5617
    %v5878 = vunpack.c.h.bf16 %v5617
    %v5879 = vunpack.c.l.bf16 %v5618
    %v5880 = vunpack.c.h.bf16 %v5618
    %v5881 = vunpack.c.l.bf16 %v5619
    %v5882 = vunpack.c.h.bf16 %v5619
    %v5883 = vunpack.c.l.bf16 %v5620
    %v5884 = vunpack.c.h.bf16 %v5620
    %v5885 = vunpack.c.l.bf16 %v5621
    %v5886 = vunpack.c.h.bf16 %v5621
    %v5887 = vunpack.c.l.bf16 %v5622
    %v5888 = vunpack.c.h.bf16 %v5622
    %v5889 = vunpack.c.l.bf16 %v5623
    %v5890 = vunpack.c.h.bf16 %v5623
    %v5891 = vunpack.c.l.bf16 %v5624
    %v5892 = vunpack.c.h.bf16 %v5624
    %v5893 = vunpack.c.l.bf16 %v5625
    %v5894 = vunpack.c.h.bf16 %v5625
    %v5895 = vunpack.c.l.bf16 %v5626
    %v5896 = vunpack.c.h.bf16 %v5626
    %v5897 = vunpack.c.l.bf16 %v5627
    %v5898 = vunpack.c.h.bf16 %v5627
    %v5899 = vunpack.c.l.bf16 %v5628
    %v5900 = vunpack.c.h.bf16 %v5628
    %v5901 = vunpack.c.l.bf16 %v5629
    %v5902 = vunpack.c.h.bf16 %v5629
    %v5903 = vunpack.c.l.bf16 %v5630
    %v5904 = vunpack.c.h.bf16 %v5630
    %v5905 = vunpack.c.l.bf16 %v5631
    %v5906 = vunpack.c.h.bf16 %v5631
    %v5907 = vunpack.c.l.bf16 %v5632
    %v5908 = vunpack.c.h.bf16 %v5632
    %v5909 = vunpack.c.l.bf16 %v5633
    %v5910 = vunpack.c.h.bf16 %v5633
    %v5911 = vunpack.c.l.bf16 %v5634
    %v5912 = vunpack.c.h.bf16 %v5634
    %v5913 = vunpack.c.l.bf16 %v5635
    %v5914 = vunpack.c.h.bf16 %v5635
    %v5915 = vunpack.c.l.bf16 %v5636
    %v5916 = vunpack.c.h.bf16 %v5636
    %v5917 = vunpack.c.l.bf16 %v5637
    %v5918 = vunpack.c.h.bf16 %v5637
    %v5919 = vunpack.c.l.bf16 %v5638
    %v5920 = vunpack.c.h.bf16 %v5638
    %v5921 = vunpack.c.l.bf16 %v5639
    %v5922 = vunpack.c.h.bf16 %v5639
    %v5923 = vunpack.c.l.bf16 %v5640
    %v5924 = vunpack.c.h.bf16 %v5640
    %v5925 = vunpack.c.l.bf16 %v5641
    %v5926 = vunpack.c.h.bf16 %v5641
    %v5927 = vunpack.c.l.bf16 %v5642
    %v5928 = vunpack.c.h.bf16 %v5642
    %v5929 = vunpack.c.l.bf16 %v5643
    %v5930 = vunpack.c.h.bf16 %v5643
    %v5931 = vunpack.c.l.bf16 %v5644
    %v5932 = vunpack.c.h.bf16 %v5644
    %v5933 = vunpack.c.l.bf16 %v5645
    %v5934 = vunpack.c.h.bf16 %v5645
    %v5935 = vunpack.c.l.bf16 %v5646
    %v5936 = vunpack.c.h.bf16 %v5646
    %v5937 = vunpack.c.l.bf16 %v5647
    %v5938 = vunpack.c.h.bf16 %v5647
    %v5939 = vunpack.c.l.bf16 %v5648
    %v5940 = vunpack.c.h.bf16 %v5648
    %v5941 = vunpack.c.l.bf16 %v5649
    %v5942 = vunpack.c.h.bf16 %v5649
    %v5943 = vunpack.c.l.bf16 %v5650
    %v5944 = vunpack.c.h.bf16 %v5650
    %v5945 = vunpack.c.l.bf16 %v5651
    %v5946 = vunpack.c.h.bf16 %v5651
    %v5947 = vunpack.c.l.bf16 %v5652
    %v5948 = vunpack.c.h.bf16 %v5652
    %v5949 = vunpack.c.l.bf16 %v5653
    %v5950 = vunpack.c.h.bf16 %v5653
    %v5951 = vunpack.c.l.bf16 %v5654
    %v5952 = vunpack.c.h.bf16 %v5654
    %v5953 = vunpack.c.l.bf16 %v5655
    %v5954 = vunpack.c.h.bf16 %v5655
    %v5955 = vunpack.c.l.bf16 %v5656
    %v5956 = vunpack.c.h.bf16 %v5656
    %v5957 = vunpack.c.l.bf16 %v5657
    %v5958 = vunpack.c.h.bf16 %v5657
    %v5959 = vunpack.c.l.bf16 %v5658
    %v5960 = vunpack.c.h.bf16 %v5658
    %v5961 = vunpack.c.l.bf16 %v5659
    %v5962 = vunpack.c.h.bf16 %v5659
    %v5963 = vunpack.c.l.bf16 %v5660
    %v5964 = vunpack.c.h.bf16 %v5660
    %v5965 = vunpack.c.l.bf16 %v5661
    %v5966 = vunpack.c.h.bf16 %v5661
    %v5967 = vunpack.c.l.bf16 %v5662
    %v5968 = vunpack.c.h.bf16 %v5662
    %v5969 = vunpack.c.l.bf16 %v5663
    %v5970 = vunpack.c.h.bf16 %v5663
    %v5971 = vunpack.c.l.bf16 %v5664
    %v5972 = vunpack.c.h.bf16 %v5664
    %v5973 = vunpack.c.l.bf16 %v5665
    %v5974 = vunpack.c.h.bf16 %v5665
    %v5975 = vunpack.c.l.bf16 %v5666
    %v5976 = vunpack.c.h.bf16 %v5666
    %v5977 = vunpack.c.l.bf16 %v5667
    %v5978 = vunpack.c.h.bf16 %v5667
    %v5979 = vunpack.c.l.bf16 %v5668
    %v5980 = vunpack.c.h.bf16 %v5668
    %v5981 = vunpack.c.l.bf16 %v5669
    %v5982 = vunpack.c.h.bf16 %v5669
    %v5983 = vunpack.c.l.bf16 %v5670
    %v5984 = vunpack.c.h.bf16 %v5670
    %v5985 = vunpack.c.l.bf16 %v5671
    %v5986 = vunpack.c.h.bf16 %v5671
    %v5987 = vunpack.c.l.bf16 %v5672
    %v5988 = vunpack.c.h.bf16 %v5672
    %v5989 = vunpack.c.l.bf16 %v5673
    %v5990 = vunpack.c.h.bf16 %v5673
    %v5991 = vunpack.c.l.bf16 %v5674
    %v5992 = vunpack.c.h.bf16 %v5674
    %v5993 = vunpack.c.l.bf16 %v5675
    %v5994 = vunpack.c.h.bf16 %v5675
    %v5995 = vunpack.c.l.bf16 %v5676
    %v5996 = vunpack.c.h.bf16 %v5676
    %v5997 = vunpack.c.l.bf16 %v5677
    %v5998 = vunpack.c.h.bf16 %v5677
    %v5999 = vunpack.c.l.bf16 %v5678
    %v6000 = vunpack.c.h.bf16 %v5678
    %v6001 = vunpack.c.l.bf16 %v5679
    %v6002 = vunpack.c.h.bf16 %v5679
    %v6003 = vunpack.c.l.bf16 %v5680
    %v6004 = vunpack.c.h.bf16 %v5680
    %v6005 = vunpack.c.l.bf16 %v5681
    %v6006 = vunpack.c.h.bf16 %v5681
    %v6007 = vunpack.c.l.bf16 %v5682
    %v6008 = vunpack.c.h.bf16 %v5682
    %v6009 = vunpack.c.l.bf16 %v5683
    %v6010 = vunpack.c.h.bf16 %v5683
    %v6011 = vunpack.c.l.bf16 %v5684
    %v6012 = vunpack.c.h.bf16 %v5684
    %v6013 = vunpack.c.l.bf16 %v5685
    %v6014 = vunpack.c.h.bf16 %v5685
    %v6015 = vunpack.c.l.bf16 %v5686
    %v6016 = vunpack.c.h.bf16 %v5686
    %v6017 = vunpack.c.l.bf16 %v5687
    %v6018 = vunpack.c.h.bf16 %v5687
    %v6019 = vunpack.c.l.bf16 %v5688
    %v6020 = vunpack.c.h.bf16 %v5688
    %v6021 = vunpack.c.l.bf16 %v5689
    %v6022 = vunpack.c.h.bf16 %v5689
    %v6023 = vunpack.c.l.bf16 %v5690
    %v6024 = vunpack.c.h.bf16 %v5690
    %v6025 = vunpack.c.l.bf16 %v5691
    %v6026 = vunpack.c.h.bf16 %v5691
    %v6027 = vunpack.c.l.bf16 %v5692
    %v6028 = vunpack.c.h.bf16 %v5692
    %v6029 = vunpack.c.l.bf16 %v5693
    %v6030 = vunpack.c.h.bf16 %v5693
    %v6031 = vunpack.c.l.bf16 %v5694
    %v6032 = vunpack.c.h.bf16 %v5694
    %v6033 = vunpack.c.l.bf16 %v5695
    %v6034 = vunpack.c.h.bf16 %v5695
    %v6035 = vunpack.c.l.bf16 %v5696
    %v6036 = vunpack.c.h.bf16 %v5696
    %v6037 = vunpack.c.l.bf16 %v5697
    %v6038 = vunpack.c.h.bf16 %v5697
    %v6039 = vunpack.c.l.bf16 %v5698
    %v6040 = vunpack.c.h.bf16 %v5698
    %v6041 = vunpack.c.l.bf16 %v5699
    %v6042 = vunpack.c.h.bf16 %v5699
    %v6043 = vunpack.c.l.bf16 %v5700
    %v6044 = vunpack.c.h.bf16 %v5700
    %v6045 = vunpack.c.l.bf16 %v5701
    %v6046 = vunpack.c.h.bf16 %v5701
    %v6047 = vunpack.c.l.bf16 %v5702
    %v6048 = vunpack.c.h.bf16 %v5702
    %v6049 = vunpack.c.l.bf16 %v5703
    %v6050 = vunpack.c.h.bf16 %v5703
    %v6051 = vunpack.c.l.bf16 %v5704
    %v6052 = vunpack.c.h.bf16 %v5704
    %v6053 = vunpack.c.l.bf16 %v5705
    %v6054 = vunpack.c.h.bf16 %v5705
    %v6055 = vunpack.c.l.bf16 %v5706
    %v6056 = vunpack.c.h.bf16 %v5706
    %v6057 = vunpack.c.l.bf16 %v5707
    %v6058 = vunpack.c.h.bf16 %v5707
    %v6059 = vunpack.c.l.bf16 %v5708
    %v6060 = vunpack.c.h.bf16 %v5708
    %v6061 = vunpack.c.l.bf16 %v5709
    %v6062 = vunpack.c.h.bf16 %v5709
    %v6063 = vunpack.c.l.bf16 %v5710
    %v6064 = vunpack.c.h.bf16 %v5710
    %v6065 = vunpack.c.l.bf16 %v5711
    %v6066 = vunpack.c.h.bf16 %v5711
    %v6067 = vunpack.c.l.bf16 %v5712
    %v6068 = vunpack.c.h.bf16 %v5712
    %v6069 = vunpack.c.l.bf16 %v5713
    %v6070 = vunpack.c.h.bf16 %v5713
    %v6071 = vunpack.c.l.bf16 %v5714
    %v6072 = vunpack.c.h.bf16 %v5714
    %v6073 = vunpack.c.l.bf16 %v5715
    %v6074 = vunpack.c.h.bf16 %v5715
    %v6075 = vunpack.c.l.bf16 %v5716
    %v6076 = vunpack.c.h.bf16 %v5716
    %v6077 = vunpack.c.l.bf16 %v5717
    %v6078 = vunpack.c.h.bf16 %v5717
    %v6079 = vunpack.c.l.bf16 %v5718
    %v6080 = vunpack.c.h.bf16 %v5718
    %v6081 = vunpack.c.l.bf16 %v5719
    %v6082 = vunpack.c.h.bf16 %v5719
    %v6083 = vunpack.c.l.bf16 %v5720
    %v6084 = vunpack.c.h.bf16 %v5720
    %v6085 = vunpack.c.l.bf16 %v5721
    %v6086 = vunpack.c.h.bf16 %v5721
    %v6087 = vunpack.c.l.bf16 %v5722
    %v6088 = vunpack.c.h.bf16 %v5722
    %v6089 = vunpack.c.l.bf16 %v5723
    %v6090 = vunpack.c.h.bf16 %v5723
    %v6091 = vunpack.c.l.bf16 %v5724
    %v6092 = vunpack.c.h.bf16 %v5724
    %v6093 = vunpack.c.l.bf16 %v5725
    %v6094 = vunpack.c.h.bf16 %v5725
    %v6095 = vunpack.c.l.bf16 %v5726
    %v6096 = vunpack.c.h.bf16 %v5726
    %v6097 = vunpack.c.l.bf16 %v5727
    %v6098 = vunpack.c.h.bf16 %v5727
    %v6099 = vunpack.c.l.bf16 %v5728
    %v6100 = vunpack.c.h.bf16 %v5728
    %v6101 = vunpack.c.l.bf16 %v5729
    %v6102 = vunpack.c.h.bf16 %v5729
    %v6103 = vunpack.c.l.bf16 %v5730
    %v6104 = vunpack.c.h.bf16 %v5730
    %v6105 = vunpack.c.l.bf16 %v5731
    %v6106 = vunpack.c.h.bf16 %v5731
    %v6107 = vunpack.c.l.bf16 %v5732
    %v6108 = vunpack.c.h.bf16 %v5732
    %v6109 = vunpack.c.l.bf16 %v5733
    %v6110 = vunpack.c.h.bf16 %v5733
    %v6111 = vunpack.c.l.bf16 %v5734
    %v6112 = vunpack.c.h.bf16 %v5734
    %v6113 = vunpack.c.l.bf16 %v5735
    %v6114 = vunpack.c.h.bf16 %v5735
    %v6115 = vunpack.c.l.bf16 %v5736
    %v6116 = vunpack.c.h.bf16 %v5736
    %v6117 = vunpack.c.l.bf16 %v5737
    %v6118 = vunpack.c.h.bf16 %v5737
    %v6119 = vunpack.c.l.bf16 %v5738
    %v6120 = vunpack.c.h.bf16 %v5738
    %v6121 = vunpack.c.l.bf16 %v5739
    %v6122 = vunpack.c.h.bf16 %v5739
    %v6123 = vunpack.c.l.bf16 %v5740
    %v6124 = vunpack.c.h.bf16 %v5740
    %v6125 = vunpack.c.l.bf16 %v5741
    %v6126 = vunpack.c.h.bf16 %v5741
    %v6127 = vunpack.c.l.bf16 %v5742
    %v6128 = vunpack.c.h.bf16 %v5742
    %v6129 = vunpack.c.l.bf16 %v5743
    %v6130 = vunpack.c.h.bf16 %v5743
    %v6131 = vunpack.c.l.bf16 %v5744
    %v6132 = vunpack.c.h.bf16 %v5744
    %v6133 = vunpack.c.l.bf16 %v5745
    %v6134 = vunpack.c.h.bf16 %v5745
    %v6135 = vunpack.c.l.bf16 %v5746
    %v6136 = vunpack.c.h.bf16 %v5746
    %v6137 = vunpack.c.l.bf16 %v5747
    %v6138 = vunpack.c.h.bf16 %v5747
    %v6139 = vunpack.c.l.bf16 %v5748
    %v6140 = vunpack.c.h.bf16 %v5748
    %v6141 = vunpack.c.l.bf16 %v5749
    %v6142 = vunpack.c.h.bf16 %v5749
    %v6143 = vunpack.c.l.bf16 %v5750
    %v6144 = vunpack.c.h.bf16 %v5750
    %v6145 = vunpack.c.l.bf16 %v5751
    %v6146 = vunpack.c.h.bf16 %v5751
    %v6147 = vunpack.c.l.bf16 %v5752
    %v6148 = vunpack.c.h.bf16 %v5752
    %v6149 = vunpack.c.l.bf16 %v5753
    %v6150 = vunpack.c.h.bf16 %v5753
    %v6151 = vunpack.c.l.bf16 %v5754
    %v6152 = vunpack.c.h.bf16 %v5754
    %v6153 = vunpack.c.l.bf16 %v5755
    %v6154 = vunpack.c.h.bf16 %v5755
    %v6155 = vunpack.c.l.bf16 %v5756
    %v6156 = vunpack.c.h.bf16 %v5756
    %v6157 = vunpack.c.l.bf16 %v5757
    %v6158 = vunpack.c.h.bf16 %v5757
    %v6159 = vunpack.c.l.bf16 %v5758
    %v6160 = vunpack.c.h.bf16 %v5758
    %v6161 = vunpack.c.l.bf16 %v5759
    %v6162 = vunpack.c.h.bf16 %v5759
    %v6163 = vunpack.c.l.bf16 %v5760
    %v6164 = vunpack.c.h.bf16 %v5760
    %v6165 = vunpack.c.l.bf16 %v5761
    %v6166 = vunpack.c.h.bf16 %v5761
    %v6167 = vunpack.c.l.bf16 %v5762
    %v6168 = vunpack.c.h.bf16 %v5762
    %v6169 = vunpack.c.l.bf16 %v5763
    %v6170 = vunpack.c.h.bf16 %v5763
    %v6171 = vunpack.c.l.bf16 %v5764
    %v6172 = vunpack.c.h.bf16 %v5764
    %v6173 = vunpack.c.l.bf16 %v5765
    %v6174 = vunpack.c.h.bf16 %v5765
    %v6175 = vunpack.c.l.bf16 %v5766
    %v6176 = vunpack.c.h.bf16 %v5766
    %v6177 = vunpack.c.l.bf16 %v5767
    %v6178 = vunpack.c.h.bf16 %v5767
    %v6179 = vunpack.c.l.bf16 %v5768
    %v6180 = vunpack.c.h.bf16 %v5768
    %v6181 = vunpack.c.l.bf16 %v5769
    %v6182 = vunpack.c.h.bf16 %v5769
    %v6183 = vunpack.c.l.bf16 %v5770
    %v6184 = vunpack.c.h.bf16 %v5770
    %v6185 = vunpack.c.l.bf16 %v5771
    %v6186 = vunpack.c.h.bf16 %v5771
    %v6187 = vunpack.c.l.bf16 %v5772
    %v6188 = vunpack.c.h.bf16 %v5772
    %v6189 = vunpack.c.l.bf16 %v5773
    %v6190 = vunpack.c.h.bf16 %v5773
    %v6191 = vunpack.c.l.bf16 %v5774
    %v6192 = vunpack.c.h.bf16 %v5774
    %v6193 = vunpack.c.l.bf16 %v5775
    %v6194 = vunpack.c.h.bf16 %v5775
    %v6195 = vunpack.c.l.bf16 %v5776
    %v6196 = vunpack.c.h.bf16 %v5776
    %v6197 = vunpack.c.l.bf16 %v5777
    %v6198 = vunpack.c.h.bf16 %v5777
    %v6199 = vunpack.c.l.bf16 %v5778
    %v6200 = vunpack.c.h.bf16 %v5778
    %v6201 = vunpack.c.l.bf16 %v5779
    %v6202 = vunpack.c.h.bf16 %v5779
    %v6203 = vunpack.c.l.bf16 %v5780
    %v6204 = vunpack.c.h.bf16 %v5780
    %v6205 = vunpack.c.l.bf16 %v5781
    %v6206 = vunpack.c.h.bf16 %v5781
    %v6207 = vunpack.c.l.bf16 %v5782
    %v6208 = vunpack.c.h.bf16 %v5782
    %v6209 = vunpack.c.l.bf16 %v5783
    %v6210 = vunpack.c.h.bf16 %v5783
    %v6211 = vunpack.c.l.bf16 %v5784
    %v6212 = vunpack.c.h.bf16 %v5784
    %v6213 = vunpack.c.l.bf16 %v5785
    %v6214 = vunpack.c.h.bf16 %v5785
    %v6215 = vunpack.c.l.bf16 %v5786
    %v6216 = vunpack.c.h.bf16 %v5786
    %v6217 = vunpack.c.l.bf16 %v5787
    %v6218 = vunpack.c.h.bf16 %v5787
    %v6219 = vunpack.c.l.bf16 %v5788
    %v6220 = vunpack.c.h.bf16 %v5788
    %v6221 = vunpack.c.l.bf16 %v5789
    %v6222 = vunpack.c.h.bf16 %v5789
    %v6223 = vunpack.c.l.bf16 %v5790
    %v6224 = vunpack.c.h.bf16 %v5790
    %v6225 = vunpack.c.l.bf16 %v5791
    %v6226 = vunpack.c.h.bf16 %v5791
    %v6227 = vunpack.c.l.bf16 %v5792
    %v6228 = vunpack.c.h.bf16 %v5792
    %v6229 = vunpack.c.l.bf16 %v5793
    %v6230 = vunpack.c.h.bf16 %v5793
    %v6231 = vunpack.c.l.bf16 %v5794
    %v6232 = vunpack.c.h.bf16 %v5794
    %v6233 = vunpack.c.l.bf16 %v5795
    %v6234 = vunpack.c.h.bf16 %v5795
    %v6235 = vunpack.c.l.bf16 %v5796
    %v6236 = vunpack.c.h.bf16 %v5796
    %v6237 = vunpack.c.l.bf16 %v5797
    %v6238 = vunpack.c.h.bf16 %v5797
    %v6239 = vunpack.c.l.bf16 %v5798
    %v6240 = vunpack.c.h.bf16 %v5798
    %v6241 = vunpack.c.l.bf16 %v5799
    %v6242 = vunpack.c.h.bf16 %v5799
    %v6243 = vunpack.c.l.bf16 %v5800
    %v6244 = vunpack.c.h.bf16 %v5800
    %v6245 = vunpack.c.l.bf16 %v5801
    %v6246 = vunpack.c.h.bf16 %v5801
    %v6247 = vunpack.c.l.bf16 %v5802
    %v6248 = vunpack.c.h.bf16 %v5802
    %v6249 = vunpack.c.l.bf16 %v5803
    %v6250 = vunpack.c.h.bf16 %v5803
    %v6251 = vunpack.c.l.bf16 %v5804
    %v6252 = vunpack.c.h.bf16 %v5804
    %v6253 = vunpack.c.l.bf16 %v5805
    %v6254 = vunpack.c.h.bf16 %v5805
    %v6255 = vunpack.c.l.bf16 %v5806
    %v6256 = vunpack.c.h.bf16 %v5806
    %v6257 = vunpack.c.l.bf16 %v5807
    %v6258 = vunpack.c.h.bf16 %v5807
    %v6259 = vunpack.c.l.bf16 %v5808
    %v6260 = vunpack.c.h.bf16 %v5808
    %v6261 = vunpack.c.l.bf16 %v5809
    %v6262 = vunpack.c.h.bf16 %v5809
    %v6263 = vunpack.c.l.bf16 %v5810
    %v6264 = vunpack.c.h.bf16 %v5810
    %v6265 = vunpack.c.l.bf16 %v5811
    %v6266 = vunpack.c.h.bf16 %v5811
    %v6267 = vunpack.c.l.bf16 %v5812
    %v6268 = vunpack.c.h.bf16 %v5812
    %v6269 = vunpack.c.l.bf16 %v5813
    %v6270 = vunpack.c.h.bf16 %v5813
    %v6271 = vunpack.c.l.bf16 %v5814
    %v6272 = vunpack.c.h.bf16 %v5814
    %v6273 = vunpack.c.l.bf16 %v5815
    %v6274 = vunpack.c.h.bf16 %v5815
    %v6275 = vunpack.c.l.bf16 %v5816
    %v6276 = vunpack.c.h.bf16 %v5816
    %v6277 = vunpack.c.l.bf16 %v5817
    %v6278 = vunpack.c.h.bf16 %v5817
    %v6279 = vunpack.c.l.bf16 %v5818
    %v6280 = vunpack.c.h.bf16 %v5818
    %v6281 = vunpack.c.l.bf16 %v5819
    %v6282 = vunpack.c.h.bf16 %v5819
    %v6283 = vunpack.c.l.bf16 %v5820
    %v6284 = vunpack.c.h.bf16 %v5820
    %v6285 = vunpack.c.l.bf16 %v5821
    %v6286 = vunpack.c.h.bf16 %v5821
    %v6287 = vunpack.c.l.bf16 %v5822
    %v6288 = vunpack.c.h.bf16 %v5822
    %v6289 = vunpack.c.l.bf16 %v5823
    %v6290 = vunpack.c.h.bf16 %v5823
    %v6291 = vunpack.c.l.bf16 %v5824
    %v6292 = vunpack.c.h.bf16 %v5824
    %v6293 = vunpack.c.l.bf16 %v5825
    %v6294 = vunpack.c.h.bf16 %v5825
    %v6295 = vunpack.c.l.bf16 %v5826
    %v6296 = vunpack.c.h.bf16 %v5826
    %v6297 = vunpack.c.l.bf16 %v5827
    %v6298 = vunpack.c.h.bf16 %v5827
    %v6299 = vunpack.c.l.bf16 %v5828
    %v6300 = vunpack.c.h.bf16 %v5828
    %v6301 = vunpack.c.l.bf16 %v5829
    %v6302 = vunpack.c.h.bf16 %v5829
    %v6303 = vunpack.c.l.bf16 %v5830
    %v6304 = vunpack.c.h.bf16 %v5830
    %v6305 = vunpack.c.l.bf16 %v5831
    %v6306 = vunpack.c.h.bf16 %v5831
    %v6307 = vunpack.c.l.bf16 %v5832
    %v6308 = vunpack.c.h.bf16 %v5832
    %v6309 = vunpack.c.l.bf16 %v5833
    %v6310 = vunpack.c.h.bf16 %v5833
    %v6311 = vunpack.c.l.bf16 %v5834
    %v6312 = vunpack.c.h.bf16 %v5834
    %v6313 = vunpack.c.l.bf16 %v5835
    %v6314 = vunpack.c.h.bf16 %v5835
    %v6315 = vunpack.c.l.bf16 %v5836
    %v6316 = vunpack.c.h.bf16 %v5836
    %v6317 = vunpack.c.l.bf16 %v5837
    %v6318 = vunpack.c.h.bf16 %v5837
    %v6319 = vunpack.c.l.bf16 %v5838
    %v6320 = vunpack.c.h.bf16 %v5838
    %v6321 = vunpack.c.l.bf16 %v5839
    %v6322 = vunpack.c.h.bf16 %v5839
    %v6323 = vunpack.c.l.bf16 %v5840
    %v6324 = vunpack.c.h.bf16 %v5840
    %v6325 = vunpack.c.l.bf16 %v5841
    %v6326 = vunpack.c.h.bf16 %v5841
    %v6327 = vunpack.c.l.bf16 %v5842
    %v6328 = vunpack.c.h.bf16 %v5842
    %v6329 = vunpack.c.l.bf16 %v5843
    %v6330 = vunpack.c.h.bf16 %v5843
    %v6331 = vunpack.c.l.bf16 %v5844
    %v6332 = vunpack.c.h.bf16 %v5844
    %v6333 = vunpack.c.l.bf16 %v5845
    %v6334 = vunpack.c.h.bf16 %v5845
    %v6335 = vunpack.c.l.bf16 %v5846
    %v6336 = vunpack.c.h.bf16 %v5846
    %v6337 = vunpack.c.l.bf16 %v5847
    %v6338 = vunpack.c.h.bf16 %v5847
    %v6339 = vunpack.c.l.bf16 %v5848
    %v6340 = vunpack.c.h.bf16 %v5848
    %v6341 = vunpack.c.l.bf16 %v5849
    %v6342 = vunpack.c.h.bf16 %v5849
    %v6343 = vunpack.c.l.bf16 %v5850
    %v6344 = vunpack.c.h.bf16 %v5850
    %v6345 = vunpack.c.l.bf16 %v5851
    %v6346 = vunpack.c.h.bf16 %v5851
    %v6347 = vunpack.c.l.bf16 %v5852
    %v6348 = vunpack.c.h.bf16 %v5852
    %v6349 = vunpack.c.l.bf16 %v5853
    %v6350 = vunpack.c.h.bf16 %v5853
    %v6351 = vunpack.c.l.bf16 %v5854
    %v6352 = vunpack.c.h.bf16 %v5854
    %v6353 = vunpack.c.l.bf16 %v5855
    %v6354 = vunpack.c.h.bf16 %v5855
    %v6355 = vunpack.c.l.bf16 %v5856
    %v6356 = vunpack.c.h.bf16 %v5856
    %v6357 = vunpack.c.l.bf16 %v5857
    %v6358 = vunpack.c.h.bf16 %v5857
    %v6359 = vunpack.c.l.bf16 %v5858
    %v6360 = vunpack.c.h.bf16 %v5858
    %v6361 = vunpack.c.l.bf16 %v5859
    %v6362 = vunpack.c.h.bf16 %v5859
    %v6363 = vunpack.c.l.bf16 %v5860
    %v6364 = vunpack.c.h.bf16 %v5860
    %v6365 = vunpack.c.l.bf16 %v5861
    %v6366 = vunpack.c.h.bf16 %v5861
    %v6367 = vunpack.c.l.bf16 %v5862
    %v6368 = vunpack.c.h.bf16 %v5862
    %v6369 = vunpack.c.l.bf16 %v5863
    %v6370 = vunpack.c.h.bf16 %v5863
    %v6371 = vunpack.c.l.bf16 %v5864
    %v6372 = vunpack.c.h.bf16 %v5864
    %v6373 = vunpack.c.l.bf16 %v5865
    %v6374 = vunpack.c.h.bf16 %v5865
    %v6375 = vunpack.c.l.bf16 %v5866
    %v6376 = vunpack.c.h.bf16 %v5866
    %v6377 = vunpack.c.l.bf16 %v5867
    %v6378 = vunpack.c.h.bf16 %v5867
    %v6379 = vunpack.c.l.bf16 %v5868
    %v6380 = vunpack.c.h.bf16 %v5868
    %s6381 = scalar_lea.vmem [#allocation12], 66
    %v6382 = vld [vmem:[%s6381] ss:$8 sm:$0xf]
    %v6383 = vld [vmem:[%s6381] ss:$8 sm:$0xf0]
    %v6384 = vor.u32 %v6382, %v6383
    %v6386 = vlaneseq
    %v6387 = vshrl.u32 %v6386, 7
    %v6388 = vsub.s32 0, %v6387
    %v6389 = vrot.slane %v6384, %v6388
    %v6390 = vlaneseq
    %v6391 = vshrl.u32 %v6390, 7
    %v6392 = vsub.s32 1, %v6391
    %v6393 = vrot.slane %v6384, %v6392
    %v6394 = vlaneseq
    %v6395 = vshrl.u32 %v6394, 7
    %v6396 = vsub.s32 2, %v6395
    %v6397 = vrot.slane %v6384, %v6396
    %v6398 = vlaneseq
    %v6399 = vshrl.u32 %v6398, 7
    %v6400 = vsub.s32 3, %v6399
    %v6401 = vrot.slane %v6384, %v6400
    %v6402 = vlaneseq
    %v6403 = vshrl.u32 %v6402, 7
    %v6404 = vsub.s32 4, %v6403
    %v6405 = vrot.slane %v6384, %v6404
    %v6406 = vlaneseq
    %v6407 = vshrl.u32 %v6406, 7
    %v6408 = vsub.s32 5, %v6407
    %v6409 = vrot.slane %v6384, %v6408
    %v6410 = vlaneseq
    %v6411 = vshrl.u32 %v6410, 7
    %v6412 = vsub.s32 6, %v6411
    %v6413 = vrot.slane %v6384, %v6412
    %v6414 = vlaneseq
    %v6415 = vshrl.u32 %v6414, 7
    %v6416 = vsub.s32 7, %v6415
    %v6417 = vrot.slane %v6384, %v6416
    %6426 = vmatprep.subr.mxu0 %v5870
    %6427 = vmatpush1.msra.mxu0 %v5869
    %6428 = vmatprep.subr.mxu0 %v5878
    %6429 = vmatpush1.msra.mxu0 %v5877
    %6430 = vmatprep.subr.mxu0 %v5886
    %6431 = vmatpush1.msra.mxu0 %v5885
    %6432 = vmatprep.subr.mxu0 %v5894
    %6433 = vmatpush1.msra.mxu0 %v5893
    %6434 = vmatprep.subr.mxu0 %v5902
    %6435 = vmatpush1.msra.mxu0 %v5901
    %6436 = vmatprep.subr.mxu0 %v5910
    %6437 = vmatpush1.msra.mxu0 %v5909
    %6438 = vmatprep.subr.mxu0 %v5918
    %6439 = vmatpush1.msra.mxu0 %v5917
    %6440 = vmatprep.subr.mxu0 %v5926
    %6441 = vmatpush1.msra.mxu0 %v5925
    %6442 = vmatprep.subr.mxu0 %v5934
    %6443 = vmatpush1.msra.mxu0 %v5933
    %6444 = vmatprep.subr.mxu0 %v5942
    %6445 = vmatpush1.msra.mxu0 %v5941
    %6446 = vmatprep.subr.mxu0 %v5950
    %6447 = vmatpush1.msra.mxu0 %v5949
    %6448 = vmatprep.subr.mxu0 %v5958
    %6449 = vmatpush1.msra.mxu0 %v5957
    %6450 = vmatprep.subr.mxu0 %v5966
    %6451 = vmatpush1.msra.mxu0 %v5965
    %6452 = vmatprep.subr.mxu0 %v5974
    %6453 = vmatpush1.msra.mxu0 %v5973
    %6454 = vmatprep.subr.mxu0 %v5982
    %6455 = vmatpush1.msra.mxu0 %v5981
    %6456 = vmatprep.subr.mxu0 %v5990
    %6457 = vmatpush1.msra.mxu0 %v5989
    %6458 = vmatprep.subr.mxu0 %v5998
    %6459 = vmatpush1.msra.mxu0 %v5997
    %6460 = vmatprep.subr.mxu0 %v6006
    %6461 = vmatpush1.msra.mxu0 %v6005
    %6462 = vmatprep.subr.mxu0 %v6014
    %6463 = vmatpush1.msra.mxu0 %v6013
    %6464 = vmatprep.subr.mxu0 %v6022
    %6465 = vmatpush1.msra.mxu0 %v6021
    %6466 = vmatprep.subr.mxu0 %v6030
    %6467 = vmatpush1.msra.mxu0 %v6029
    %6468 = vmatprep.subr.mxu0 %v6038
    %6469 = vmatpush1.msra.mxu0 %v6037
    %6470 = vmatprep.subr.mxu0 %v6046
    %6471 = vmatpush1.msra.mxu0 %v6045
    %6472 = vmatprep.subr.mxu0 %v6054
    %6473 = vmatpush1.msra.mxu0 %v6053
    %6474 = vmatprep.subr.mxu0 %v6062
    %6475 = vmatpush1.msra.mxu0 %v6061
    %6476 = vmatprep.subr.mxu0 %v6070
    %6477 = vmatpush1.msra.mxu0 %v6069
    %6478 = vmatprep.subr.mxu0 %v6078
    %6479 = vmatpush1.msra.mxu0 %v6077
    %6480 = vmatprep.subr.mxu0 %v6086
    %6481 = vmatpush1.msra.mxu0 %v6085
    %6482 = vmatprep.subr.mxu0 %v6094
    %6483 = vmatpush1.msra.mxu0 %v6093
    %6484 = vmatprep.subr.mxu0 %v6102
    %6485 = vmatpush1.msra.mxu0 %v6101
    %6486 = vmatprep.subr.mxu0 %v6110
    %6487 = vmatpush1.msra.mxu0 %v6109
    %6488 = vmatprep.subr.mxu0 %v6118
    %6489 = vmatpush1.msra.mxu0 %v6117
    %6490 = vmatprep.mubr.f32.mxu0 %v5610
    %6491 = vmatmul.mubr.f32.gmra.mrb[0].mxu0 %v5609
    %v6492 = vpop.f32.mrb[0].mxu0
    %v6493 = vadd.f32 %v6389, %v6492
    %v6494 = vpop.f32.mrb[0].mxu0
    %v6495 = vadd.f32 %v6393, %v6494
    %6496 = vdwg.mxu0
    %6497 = vmatprep.subr.mxu0 %v6126
    %6498 = vmatpush1.msra.mxu0 %v6125
    %6499 = vmatprep.subr.mxu0 %v6134
    %6500 = vmatpush1.msra.mxu0 %v6133
    %6501 = vmatprep.subr.mxu0 %v6142
    %6502 = vmatpush1.msra.mxu0 %v6141
    %6503 = vmatprep.subr.mxu0 %v6150
    %6504 = vmatpush1.msra.mxu0 %v6149
    %6505 = vmatprep.subr.mxu0 %v6158
    %6506 = vmatpush1.msra.mxu0 %v6157
    %6507 = vmatprep.subr.mxu0 %v6166
    %6508 = vmatpush1.msra.mxu0 %v6165
    %6509 = vmatprep.subr.mxu0 %v6174
    %6510 = vmatpush1.msra.mxu0 %v6173
    %6511 = vmatprep.subr.mxu0 %v6182
    %6512 = vmatpush1.msra.mxu0 %v6181
    %6513 = vmatprep.subr.mxu0 %v6190
    %6514 = vmatpush1.msra.mxu0 %v6189
    %6515 = vmatprep.subr.mxu0 %v6198
    %6516 = vmatpush1.msra.mxu0 %v6197
    %6517 = vmatprep.subr.mxu0 %v6206
    %6518 = vmatpush1.msra.mxu0 %v6205
    %6519 = vmatprep.subr.mxu0 %v6214
    %6520 = vmatpush1.msra.mxu0 %v6213
    %6521 = vmatprep.subr.mxu0 %v6222
    %6522 = vmatpush1.msra.mxu0 %v6221
    %6523 = vmatprep.subr.mxu0 %v6230
    %6524 = vmatpush1.msra.mxu0 %v6229
    %6525 = vmatprep.subr.mxu0 %v6238
    %6526 = vmatpush1.msra.mxu0 %v6237
    %6527 = vmatprep.subr.mxu0 %v6246
    %6528 = vmatpush1.msra.mxu0 %v6245
    %6529 = vmatprep.subr.mxu0 %v6254
    %6530 = vmatpush1.msra.mxu0 %v6253
    %6531 = vmatprep.subr.mxu0 %v6262
    %6532 = vmatpush1.msra.mxu0 %v6261
    %6533 = vmatprep.subr.mxu0 %v6270
    %6534 = vmatpush1.msra.mxu0 %v6269
    %6535 = vmatprep.subr.mxu0 %v6278
    %6536 = vmatpush1.msra.mxu0 %v6277
    %6537 = vmatprep.subr.mxu0 %v6286
    %6538 = vmatpush1.msra.mxu0 %v6285
    %6539 = vmatprep.subr.mxu0 %v6294
    %6540 = vmatpush1.msra.mxu0 %v6293
    %6541 = vmatprep.subr.mxu0 %v6302
    %6542 = vmatpush1.msra.mxu0 %v6301
    %6543 = vmatprep.subr.mxu0 %v6310
    %6544 = vmatpush1.msra.mxu0 %v6309
    %6545 = vmatprep.subr.mxu0 %v6318
    %6546 = vmatpush1.msra.mxu0 %v6317
    %6547 = vmatprep.subr.mxu0 %v6326
    %6548 = vmatpush1.msra.mxu0 %v6325
    %6549 = vmatprep.subr.mxu0 %v6334
    %6550 = vmatpush1.msra.mxu0 %v6333
    %6551 = vmatprep.subr.mxu0 %v6342
    %6552 = vmatpush1.msra.mxu0 %v6341
    %6553 = vmatprep.subr.mxu0 %v6350
    %6554 = vmatpush1.msra.mxu0 %v6349
    %6555 = vmatprep.subr.mxu0 %v6358
    %6556 = vmatpush1.msra.mxu0 %v6357
    %6557 = vmatprep.subr.mxu0 %v6366
    %6558 = vmatpush1.msra.mxu0 %v6365
    %6559 = vmatprep.subr.mxu0 %v6374
    %6560 = vmatpush1.msra.mxu0 %v6373
    %6561 = vmatprep.mubr.f32.mxu0 %v5612
    %6562 = vmatmul.mubr.f32.gmra.mrb[0].mxu0 %v5611
    %v6563 = vpop.f32.mrb[0].mxu0
    %v6564 = vadd.f32 %v6493, %v6563
    %v6565 = vpop.f32.mrb[0].mxu0
    %v6566 = vadd.f32 %v6495, %v6565
    %6567 = vdwg.mxu0
    %6568 = vmatprep.subr.mxu0 %v5872
    %6569 = vmatpush1.msra.mxu0 %v5871
    %6570 = vmatprep.subr.mxu0 %v5880
    %6571 = vmatpush1.msra.mxu0 %v5879
    %6572 = vmatprep.subr.mxu0 %v5888
    %6573 = vmatpush1.msra.mxu0 %v5887
    %6574 = vmatprep.subr.mxu0 %v5896
    %6575 = vmatpush1.msra.mxu0 %v5895
    %6576 = vmatprep.subr.mxu0 %v5904
    %6577 = vmatpush1.msra.mxu0 %v5903
    %6578 = vmatprep.subr.mxu0 %v5912
    %6579 = vmatpush1.msra.mxu0 %v5911
    %6580 = vmatprep.subr.mxu0 %v5920
    %6581 = vmatpush1.msra.mxu0 %v5919
    %6582 = vmatprep.subr.mxu0 %v5928
    %6583 = vmatpush1.msra.mxu0 %v5927
    %6584 = vmatprep.subr.mxu0 %v5936
    %6585 = vmatpush1.msra.mxu0 %v5935
    %6586 = vmatprep.subr.mxu0 %v5944
    %6587 = vmatpush1.msra.mxu0 %v5943
    %6588 = vmatprep.subr.mxu0 %v5952
    %6589 = vmatpush1.msra.mxu0 %v5951
    %6590 = vmatprep.subr.mxu0 %v5960
    %6591 = vmatpush1.msra.mxu0 %v5959
    %6592 = vmatprep.subr.mxu0 %v5968
    %6593 = vmatpush1.msra.mxu0 %v5967
    %6594 = vmatprep.subr.mxu0 %v5976
    %6595 = vmatpush1.msra.mxu0 %v5975
    %6596 = vmatprep.subr.mxu0 %v5984
    %6597 = vmatpush1.msra.mxu0 %v5983
    %6598 = vmatprep.subr.mxu0 %v5992
    %6599 = vmatpush1.msra.mxu0 %v5991
    %6600 = vmatprep.subr.mxu0 %v6000
    %6601 = vmatpush1.msra.mxu0 %v5999
    %6602 = vmatprep.subr.mxu0 %v6008
    %6603 = vmatpush1.msra.mxu0 %v6007
    %6604 = vmatprep.subr.mxu0 %v6016
    %6605 = vmatpush1.msra.mxu0 %v6015
    %6606 = vmatprep.subr.mxu0 %v6024
    %6607 = vmatpush1.msra.mxu0 %v6023
    %6608 = vmatprep.subr.mxu0 %v6032
    %6609 = vmatpush1.msra.mxu0 %v6031
    %6610 = vmatprep.subr.mxu0 %v6040
    %6611 = vmatpush1.msra.mxu0 %v6039
    %6612 = vmatprep.subr.mxu0 %v6048
    %6613 = vmatpush1.msra.mxu0 %v6047
    %6614 = vmatprep.subr.mxu0 %v6056
    %6615 = vmatpush1.msra.mxu0 %v6055
    %6616 = vmatprep.subr.mxu0 %v6064
    %6617 = vmatpush1.msra.mxu0 %v6063
    %6618 = vmatprep.subr.mxu0 %v6072
    %6619 = vmatpush1.msra.mxu0 %v6071
    %6620 = vmatprep.subr.mxu0 %v6080
    %6621 = vmatpush1.msra.mxu0 %v6079
    %6622 = vmatprep.subr.mxu0 %v6088
    %6623 = vmatpush1.msra.mxu0 %v6087
    %6624 = vmatprep.subr.mxu0 %v6096
    %6625 = vmatpush1.msra.mxu0 %v6095
    %6626 = vmatprep.subr.mxu0 %v6104
    %6627 = vmatpush1.msra.mxu0 %v6103
    %6628 = vmatprep.subr.mxu0 %v6112
    %6629 = vmatpush1.msra.mxu0 %v6111
    %6630 = vmatprep.subr.mxu0 %v6120
    %6631 = vmatpush1.msra.mxu0 %v6119
    %6632 = vmatprep.mubr.f32.mxu0 %v5610
    %6633 = vmatmul.mubr.f32.gmra.mrb[0].mxu0 %v5609
    %v6634 = vpop.f32.mrb[0].mxu0
    %v6635 = vadd.f32 %v6397, %v6634
    %v6636 = vpop.f32.mrb[0].mxu0
    %v6637 = vadd.f32 %v6401, %v6636
    %6638 = vdwg.mxu0
    %6639 = vmatprep.subr.mxu0 %v6128
    %6640 = vmatpush1.msra.mxu0 %v6127
    %6641 = vmatprep.subr.mxu0 %v6136
    %6642 = vmatpush1.msra.mxu0 %v6135
    %6643 = vmatprep.subr.mxu0 %v6144
    %6644 = vmatpush1.msra.mxu0 %v6143
    %6645 = vmatprep.subr.mxu0 %v6152
    %6646 = vmatpush1.msra.mxu0 %v6151
    %6647 = vmatprep.subr.mxu0 %v6160
    %6648 = vmatpush1.msra.mxu0 %v6159
    %6649 = vmatprep.subr.mxu0 %v6168
    %6650 = vmatpush1.msra.mxu0 %v6167
    %6651 = vmatprep.subr.mxu0 %v6176
    %6652 = vmatpush1.msra.mxu0 %v6175
    %6653 = vmatprep.subr.mxu0 %v6184
    %6654 = vmatpush1.msra.mxu0 %v6183
    %6655 = vmatprep.subr.mxu0 %v6192
    %6656 = vmatpush1.msra.mxu0 %v6191
    %6657 = vmatprep.subr.mxu0 %v6200
    %6658 = vmatpush1.msra.mxu0 %v6199
    %6659 = vmatprep.subr.mxu0 %v6208
    %6660 = vmatpush1.msra.mxu0 %v6207
    %6661 = vmatprep.subr.mxu0 %v6216
    %6662 = vmatpush1.msra.mxu0 %v6215
    %6663 = vmatprep.subr.mxu0 %v6224
    %6664 = vmatpush1.msra.mxu0 %v6223
    %6665 = vmatprep.subr.mxu0 %v6232
    %6666 = vmatpush1.msra.mxu0 %v6231
    %6667 = vmatprep.subr.mxu0 %v6240
    %6668 = vmatpush1.msra.mxu0 %v6239
    %6669 = vmatprep.subr.mxu0 %v6248
    %6670 = vmatpush1.msra.mxu0 %v6247
    %6671 = vmatprep.subr.mxu0 %v6256
    %6672 = vmatpush1.msra.mxu0 %v6255
    %6673 = vmatprep.subr.mxu0 %v6264
    %6674 = vmatpush1.msra.mxu0 %v6263
    %6675 = vmatprep.subr.mxu0 %v6272
    %6676 = vmatpush1.msra.mxu0 %v6271
    %6677 = vmatprep.subr.mxu0 %v6280
    %6678 = vmatpush1.msra.mxu0 %v6279
    %6679 = vmatprep.subr.mxu0 %v6288
    %6680 = vmatpush1.msra.mxu0 %v6287
    %6681 = vmatprep.subr.mxu0 %v6296
    %6682 = vmatpush1.msra.mxu0 %v6295
    %6683 = vmatprep.subr.mxu0 %v6304
    %6684 = vmatpush1.msra.mxu0 %v6303
    %6685 = vmatprep.subr.mxu0 %v6312
    %6686 = vmatpush1.msra.mxu0 %v6311
    %6687 = vmatprep.subr.mxu0 %v6320
    %6688 = vmatpush1.msra.mxu0 %v6319
    %6689 = vmatprep.subr.mxu0 %v6328
    %6690 = vmatpush1.msra.mxu0 %v6327
    %6691 = vmatprep.subr.mxu0 %v6336
    %6692 = vmatpush1.msra.mxu0 %v6335
    %6693 = vmatprep.subr.mxu0 %v6344
    %6694 = vmatpush1.msra.mxu0 %v6343
    %6695 = vmatprep.subr.mxu0 %v6352
    %6696 = vmatpush1.msra.mxu0 %v6351
    %6697 = vmatprep.subr.mxu0 %v6360
    %6698 = vmatpush1.msra.mxu0 %v6359
    %6699 = vmatprep.subr.mxu0 %v6368
    %6700 = vmatpush1.msra.mxu0 %v6367
    %6701 = vmatprep.subr.mxu0 %v6376
    %6702 = vmatpush1.msra.mxu0 %v6375
    %6703 = vmatprep.mubr.f32.mxu0 %v5612
    %6704 = vmatmul.mubr.f32.gmra.mrb[0].mxu0 %v5611
    %v6705 = vpop.f32.mrb[0].mxu0
    %v6706 = vadd.f32 %v6635, %v6705
    %v6707 = vpop.f32.mrb[0].mxu0
    %v6708 = vadd.f32 %v6637, %v6707
    %6709 = vdwg.mxu0
    %6710 = vmatprep.subr.mxu0 %v5874
    %6711 = vmatpush1.msra.mxu0 %v5873
    %6712 = vmatprep.subr.mxu0 %v5882
    %6713 = vmatpush1.msra.mxu0 %v5881
    %6714 = vmatprep.subr.mxu0 %v5890
    %6715 = vmatpush1.msra.mxu0 %v5889
    %6716 = vmatprep.subr.mxu0 %v5898
    %6717 = vmatpush1.msra.mxu0 %v5897
    %6718 = vmatprep.subr.mxu0 %v5906
    %6719 = vmatpush1.msra.mxu0 %v5905
    %6720 = vmatprep.subr.mxu0 %v5914
    %6721 = vmatpush1.msra.mxu0 %v5913
    %6722 = vmatprep.subr.mxu0 %v5922
    %6723 = vmatpush1.msra.mxu0 %v5921
    %6724 = vmatprep.subr.mxu0 %v5930
    %6725 = vmatpush1.msra.mxu0 %v5929
    %6726 = vmatprep.subr.mxu0 %v5938
    %6727 = vmatpush1.msra.mxu0 %v5937
    %6728 = vmatprep.subr.mxu0 %v5946
    %6729 = vmatpush1.msra.mxu0 %v5945
    %6730 = vmatprep.subr.mxu0 %v5954
    %6731 = vmatpush1.msra.mxu0 %v5953
    %6732 = vmatprep.subr.mxu0 %v5962
    %6733 = vmatpush1.msra.mxu0 %v5961
    %6734 = vmatprep.subr.mxu0 %v5970
    %6735 = vmatpush1.msra.mxu0 %v5969
    %6736 = vmatprep.subr.mxu0 %v5978
    %6737 = vmatpush1.msra.mxu0 %v5977
    %6738 = vmatprep.subr.mxu0 %v5986
    %6739 = vmatpush1.msra.mxu0 %v5985
    %6740 = vmatprep.subr.mxu0 %v5994
    %6741 = vmatpush1.msra.mxu0 %v5993
    %6742 = vmatprep.subr.mxu0 %v6002
    %6743 = vmatpush1.msra.mxu0 %v6001
    %6744 = vmatprep.subr.mxu0 %v6010
    %6745 = vmatpush1.msra.mxu0 %v6009
    %6746 = vmatprep.subr.mxu0 %v6018
    %6747 = vmatpush1.msra.mxu0 %v6017
    %6748 = vmatprep.subr.mxu0 %v6026
    %6749 = vmatpush1.msra.mxu0 %v6025
    %6750 = vmatprep.subr.mxu0 %v6034
    %6751 = vmatpush1.msra.mxu0 %v6033
    %6752 = vmatprep.subr.mxu0 %v6042
    %6753 = vmatpush1.msra.mxu0 %v6041
    %6754 = vmatprep.subr.mxu0 %v6050
    %6755 = vmatpush1.msra.mxu0 %v6049
    %6756 = vmatprep.subr.mxu0 %v6058
    %6757 = vmatpush1.msra.mxu0 %v6057
    %6758 = vmatprep.subr.mxu0 %v6066
    %6759 = vmatpush1.msra.mxu0 %v6065
    %6760 = vmatprep.subr.mxu0 %v6074
    %6761 = vmatpush1.msra.mxu0 %v6073
    %6762 = vmatprep.subr.mxu0 %v6082
    %6763 = vmatpush1.msra.mxu0 %v6081
    %6764 = vmatprep.subr.mxu0 %v6090
    %6765 = vmatpush1.msra.mxu0 %v6089
    %6766 = vmatprep.subr.mxu0 %v6098
    %6767 = vmatpush1.msra.mxu0 %v6097
    %6768 = vmatprep.subr.mxu0 %v6106
    %6769 = vmatpush1.msra.mxu0 %v6105
    %6770 = vmatprep.subr.mxu0 %v6114
    %6771 = vmatpush1.msra.mxu0 %v6113
    %6772 = vmatprep.subr.mxu0 %v6122
    %6773 = vmatpush1.msra.mxu0 %v6121
    %6774 = vmatprep.mubr.f32.mxu0 %v5610
    %6775 = vmatmul.mubr.f32.gmra.mrb[0].mxu0 %v5609
    %v6776 = vpop.f32.mrb[0].mxu0
    %v6777 = vadd.f32 %v6405, %v6776
    %v6778 = vpop.f32.mrb[0].mxu0
    %v6779 = vadd.f32 %v6409, %v6778
    %6780 = vdwg.mxu0
    %6781 = vmatprep.subr.mxu0 %v6130
    %6782 = vmatpush1.msra.mxu0 %v6129
    %6783 = vmatprep.subr.mxu0 %v6138
    %6784 = vmatpush1.msra.mxu0 %v6137
    %6785 = vmatprep.subr.mxu0 %v6146
    %6786 = vmatpush1.msra.mxu0 %v6145
    %6787 = vmatprep.subr.mxu0 %v6154
    %6788 = vmatpush1.msra.mxu0 %v6153
    %6789 = vmatprep.subr.mxu0 %v6162
    %6790 = vmatpush1.msra.mxu0 %v6161
    %6791 = vmatprep.subr.mxu0 %v6170
    %6792 = vmatpush1.msra.mxu0 %v6169
    %6793 = vmatprep.subr.mxu0 %v6178
    %6794 = vmatpush1.msra.mxu0 %v6177
    %6795 = vmatprep.subr.mxu0 %v6186
    %6796 = vmatpush1.msra.mxu0 %v6185
    %6797 = vmatprep.subr.mxu0 %v6194
    %6798 = vmatpush1.msra.mxu0 %v6193
    %6799 = vmatprep.subr.mxu0 %v6202
    %6800 = vmatpush1.msra.mxu0 %v6201
    %6801 = vmatprep.subr.mxu0 %v6210
    %6802 = vmatpush1.msra.mxu0 %v6209
    %6803 = vmatprep.subr.mxu0 %v6218
    %6804 = vmatpush1.msra.mxu0 %v6217
    %6805 = vmatprep.subr.mxu0 %v6226
    %6806 = vmatpush1.msra.mxu0 %v6225
    %6807 = vmatprep.subr.mxu0 %v6234
    %6808 = vmatpush1.msra.mxu0 %v6233
    %6809 = vmatprep.subr.mxu0 %v6242
    %6810 = vmatpush1.msra.mxu0 %v6241
    %6811 = vmatprep.subr.mxu0 %v6250
    %6812 = vmatpush1.msra.mxu0 %v6249
    %6813 = vmatprep.subr.mxu0 %v6258
    %6814 = vmatpush1.msra.mxu0 %v6257
    %6815 = vmatprep.subr.mxu0 %v6266
    %6816 = vmatpush1.msra.mxu0 %v6265
    %6817 = vmatprep.subr.mxu0 %v6274
    %6818 = vmatpush1.msra.mxu0 %v6273
    %6819 = vmatprep.subr.mxu0 %v6282
    %6820 = vmatpush1.msra.mxu0 %v6281
    %6821 = vmatprep.subr.mxu0 %v6290
    %6822 = vmatpush1.msra.mxu0 %v6289
    %6823 = vmatprep.subr.mxu0 %v6298
    %6824 = vmatpush1.msra.mxu0 %v6297
    %6825 = vmatprep.subr.mxu0 %v6306
    %6826 = vmatpush1.msra.mxu0 %v6305
    %6827 = vmatprep.subr.mxu0 %v6314
    %6828 = vmatpush1.msra.mxu0 %v6313
    %6829 = vmatprep.subr.mxu0 %v6322
    %6830 = vmatpush1.msra.mxu0 %v6321
    %6831 = vmatprep.subr.mxu0 %v6330
    %6832 = vmatpush1.msra.mxu0 %v6329
    %6833 = vmatprep.subr.mxu0 %v6338
    %6834 = vmatpush1.msra.mxu0 %v6337
    %6835 = vmatprep.subr.mxu0 %v6346
    %6836 = vmatpush1.msra.mxu0 %v6345
    %6837 = vmatprep.subr.mxu0 %v6354
    %6838 = vmatpush1.msra.mxu0 %v6353
    %6839 = vmatprep.subr.mxu0 %v6362
    %6840 = vmatpush1.msra.mxu0 %v6361
    %6841 = vmatprep.subr.mxu0 %v6370
    %6842 = vmatpush1.msra.mxu0 %v6369
    %6843 = vmatprep.subr.mxu0 %v6378
    %6844 = vmatpush1.msra.mxu0 %v6377
    %6845 = vmatprep.mubr.f32.mxu0 %v5612
    %6846 = vmatmul.mubr.f32.gmra.mrb[0].mxu0 %v5611
    %v6847 = vpop.f32.mrb[0].mxu0
    %v6848 = vadd.f32 %v6777, %v6847
    %v6849 = vpop.f32.mrb[0].mxu0
    %v6850 = vadd.f32 %v6779, %v6849
    %6851 = vdwg.mxu0
    %6852 = vmatprep.subr.mxu0 %v5876
    %6853 = vmatpush1.msra.mxu0 %v5875
    %6854 = vmatprep.subr.mxu0 %v5884
    %6855 = vmatpush1.msra.mxu0 %v5883
    %6856 = vmatprep.subr.mxu0 %v5892
    %6857 = vmatpush1.msra.mxu0 %v5891
    %6858 = vmatprep.subr.mxu0 %v5900
    %6859 = vmatpush1.msra.mxu0 %v5899
    %6860 = vmatprep.subr.mxu0 %v5908
    %6861 = vmatpush1.msra.mxu0 %v5907
    %6862 = vmatprep.subr.mxu0 %v5916
    %6863 = vmatpush1.msra.mxu0 %v5915
    %6864 = vmatprep.subr.mxu0 %v5924
    %6865 = vmatpush1.msra.mxu0 %v5923
    %6866 = vmatprep.subr.mxu0 %v5932
    %6867 = vmatpush1.msra.mxu0 %v5931
    %6868 = vmatprep.subr.mxu0 %v5940
    %6869 = vmatpush1.msra.mxu0 %v5939
    %6870 = vmatprep.subr.mxu0 %v5948
    %6871 = vmatpush1.msra.mxu0 %v5947
    %6872 = vmatprep.subr.mxu0 %v5956
    %6873 = vmatpush1.msra.mxu0 %v5955
    %6874 = vmatprep.subr.mxu0 %v5964
    %6875 = vmatpush1.msra.mxu0 %v5963
    %6876 = vmatprep.subr.mxu0 %v5972
    %6877 = vmatpush1.msra.mxu0 %v5971
    %6878 = vmatprep.subr.mxu0 %v5980
    %6879 = vmatpush1.msra.mxu0 %v5979
    %6880 = vmatprep.subr.mxu0 %v5988
    %6881 = vmatpush1.msra.mxu0 %v5987
    %6882 = vmatprep.subr.mxu0 %v5996
    %6883 = vmatpush1.msra.mxu0 %v5995
    %6884 = vmatprep.subr.mxu0 %v6004
    %6885 = vmatpush1.msra.mxu0 %v6003
    %6886 = vmatprep.subr.mxu0 %v6012
    %6887 = vmatpush1.msra.mxu0 %v6011
    %6888 = vmatprep.subr.mxu0 %v6020
    %6889 = vmatpush1.msra.mxu0 %v6019
    %6890 = vmatprep.subr.mxu0 %v6028
    %6891 = vmatpush1.msra.mxu0 %v6027
    %6892 = vmatprep.subr.mxu0 %v6036
    %6893 = vmatpush1.msra.mxu0 %v6035
    %6894 = vmatprep.subr.mxu0 %v6044
    %6895 = vmatpush1.msra.mxu0 %v6043
    %6896 = vmatprep.subr.mxu0 %v6052
    %6897 = vmatpush1.msra.mxu0 %v6051
    %6898 = vmatprep.subr.mxu0 %v6060
    %6899 = vmatpush1.msra.mxu0 %v6059
    %6900 = vmatprep.subr.mxu0 %v6068
    %6901 = vmatpush1.msra.mxu0 %v6067
    %6902 = vmatprep.subr.mxu0 %v6076
    %6903 = vmatpush1.msra.mxu0 %v6075
    %6904 = vmatprep.subr.mxu0 %v6084
    %6905 = vmatpush1.msra.mxu0 %v6083
    %6906 = vmatprep.subr.mxu0 %v6092
    %6907 = vmatpush1.msra.mxu0 %v6091
    %6908 = vmatprep.subr.mxu0 %v6100
    %6909 = vmatpush1.msra.mxu0 %v6099
    %6910 = vmatprep.subr.mxu0 %v6108
    %6911 = vmatpush1.msra.mxu0 %v6107
    %6912 = vmatprep.subr.mxu0 %v6116
    %6913 = vmatpush1.msra.mxu0 %v6115
    %6914 = vmatprep.subr.mxu0 %v6124
    %6915 = vmatpush1.msra.mxu0 %v6123
    %6916 = vmatprep.mubr.f32.mxu0 %v5610
    %6917 = vmatmul.mubr.f32.gmra.mrb[0].mxu0 %v5609
    %v6918 = vpop.f32.mrb[0].mxu0
    %v6919 = vadd.f32 %v6413, %v6918
    %v6920 = vpop.f32.mrb[0].mxu0
    %v6921 = vadd.f32 %v6417, %v6920
    %6922 = vdwg.mxu0
    %6923 = vmatprep.subr.mxu0 %v6132
    %6924 = vmatpush1.msra.mxu0 %v6131
    %6925 = vmatprep.subr.mxu0 %v6140
    %6926 = vmatpush1.msra.mxu0 %v6139
    %6927 = vmatprep.subr.mxu0 %v6148
    %6928 = vmatpush1.msra.mxu0 %v6147
    %6929 = vmatprep.subr.mxu0 %v6156
    %6930 = vmatpush1.msra.mxu0 %v6155
    %6931 = vmatprep.subr.mxu0 %v6164
    %6932 = vmatpush1.msra.mxu0 %v6163
    %6933 = vmatprep.subr.mxu0 %v6172
    %6934 = vmatpush1.msra.mxu0 %v6171
    %6935 = vmatprep.subr.mxu0 %v6180
    %6936 = vmatpush1.msra.mxu0 %v6179
    %6937 = vmatprep.subr.mxu0 %v6188
    %6938 = vmatpush1.msra.mxu0 %v6187
    %6939 = vmatprep.subr.mxu0 %v6196
    %6940 = vmatpush1.msra.mxu0 %v6195
    %6941 = vmatprep.subr.mxu0 %v6204
    %6942 = vmatpush1.msra.mxu0 %v6203
    %6943 = vmatprep.subr.mxu0 %v6212
    %6944 = vmatpush1.msra.mxu0 %v6211
    %6945 = vmatprep.subr.mxu0 %v6220
    %6946 = vmatpush1.msra.mxu0 %v6219
    %6947 = vmatprep.subr.mxu0 %v6228
    %6948 = vmatpush1.msra.mxu0 %v6227
    %6949 = vmatprep.subr.mxu0 %v6236
    %6950 = vmatpush1.msra.mxu0 %v6235
    %6951 = vmatprep.subr.mxu0 %v6244
    %6952 = vmatpush1.msra.mxu0 %v6243
    %6953 = vmatprep.subr.mxu0 %v6252
    %6954 = vmatpush1.msra.mxu0 %v6251
    %6955 = vmatprep.subr.mxu0 %v6260
    %6956 = vmatpush1.msra.mxu0 %v6259
    %6957 = vmatprep.subr.mxu0 %v6268
    %6958 = vmatpush1.msra.mxu0 %v6267
    %6959 = vmatprep.subr.mxu0 %v6276
    %6960 = vmatpush1.msra.mxu0 %v6275
    %6961 = vmatprep.subr.mxu0 %v6284
    %6962 = vmatpush1.msra.mxu0 %v6283
    %6963 = vmatprep.subr.mxu0 %v6292
    %6964 = vmatpush1.msra.mxu0 %v6291
    %6965 = vmatprep.subr.mxu0 %v6300
    %6966 = vmatpush1.msra.mxu0 %v6299
    %6967 = vmatprep.subr.mxu0 %v6308
    %6968 = vmatpush1.msra.mxu0 %v6307
    %6969 = vmatprep.subr.mxu0 %v6316
    %6970 = vmatpush1.msra.mxu0 %v6315
    %6971 = vmatprep.subr.mxu0 %v6324
    %6972 = vmatpush1.msra.mxu0 %v6323
    %6973 = vmatprep.subr.mxu0 %v6332
    %6974 = vmatpush1.msra.mxu0 %v6331
    %6975 = vmatprep.subr.mxu0 %v6340
    %6976 = vmatpush1.msra.mxu0 %v6339
    %6977 = vmatprep.subr.mxu0 %v6348
    %6978 = vmatpush1.msra.mxu0 %v6347
    %6979 = vmatprep.subr.mxu0 %v6356
    %6980 = vmatpush1.msra.mxu0 %v6355
    %6981 = vmatprep.subr.mxu0 %v6364
    %6982 = vmatpush1.msra.mxu0 %v6363
    %6983 = vmatprep.subr.mxu0 %v6372
    %6984 = vmatpush1.msra.mxu0 %v6371
    %6985 = vmatprep.subr.mxu0 %v6380
    %6986 = vmatpush1.msra.mxu0 %v6379
    %6987 = vmatprep.mubr.f32.mxu0 %v5612
    %6988 = vmatmul.mubr.f32.gmra.mrb[0].mxu0 %v5611
    %v6989 = vpop.f32.mrb[0].mxu0
    %v6990 = vadd.f32 %v6919, %v6989
    %v6991 = vpop.f32.mrb[0].mxu0
    %v6992 = vadd.f32 %v6921, %v6991
    %6993 = vdwg.mxu0
    %v6994 = vmax.f32 %v6564, 0.0
    %v6995 = vmax.f32 %v6566, 0.0
    %v6996 = vmax.f32 %v6706, 0.0
    %v6997 = vmax.f32 %v6708, 0.0
    %v6998 = vmax.f32 %v6848, 0.0
    %v6999 = vmax.f32 %v6850, 0.0
    %v7000 = vmax.f32 %v6990, 0.0
    %v7001 = vmax.f32 %v6992, 0.0
    %s7002 = scalar_lea.vmem [#allocation12], 67
    %v7003 = vld [vmem:[%s7002] ss:$8 sm:$0xf]
    %v7004 = vld [vmem:[%s7002] ss:$8 sm:$0xf0]
    %v7005 = vor.u32 %v7003, %v7004
    %s7006 = scalar_lea.vmem [#allocation12], 68
    %v7007 = vld [vmem:[%s7006] ss:$8 sm:$0xf]
    %v7008 = vld [vmem:[%s7006] ss:$8 sm:$0xf0]
    %v7009 = vor.u32 %v7007, %v7008
    %v7010 = vsel %vm2902, %v6994, 0.0
    %v7011 = vrot.slane %v7010, 4
    %v7012 = vadd.f32 %v7010, %v7011
    %v7013 = vrot.slane %v7012, 2
    %v7014 = vadd.f32 %v7012, %v7013
    %v7015 = vrot.slane %v7014, 1
    %v7016 = vadd.f32 %v7014, %v7015
    %v7017 = vsel %vm2902, %v6995, 0.0
    %v7018 = vrot.slane %v7017, 4
    %v7019 = vadd.f32 %v7017, %v7018
    %v7020 = vrot.slane %v7019, 2
    %v7021 = vadd.f32 %v7019, %v7020
    %v7022 = vrot.slane %v7021, 1
    %v7023 = vadd.f32 %v7021, %v7022
    %v7024 = vsel %vm2902, %v6996, 0.0
    %v7025 = vrot.slane %v7024, 4
    %v7026 = vadd.f32 %v7024, %v7025
    %v7027 = vrot.slane %v7026, 2
    %v7028 = vadd.f32 %v7026, %v7027
    %v7029 = vrot.slane %v7028, 1
    %v7030 = vadd.f32 %v7028, %v7029
    %v7031 = vsel %vm2902, %v6997, 0.0
    %v7032 = vrot.slane %v7031, 4
    %v7033 = vadd.f32 %v7031, %v7032
    %v7034 = vrot.slane %v7033, 2
    %v7035 = vadd.f32 %v7033, %v7034
    %v7036 = vrot.slane %v7035, 1
    %v7037 = vadd.f32 %v7035, %v7036
    %v7038 = vsel %vm2902, %v6998, 0.0
    %v7039 = vrot.slane %v7038, 4
    %v7040 = vadd.f32 %v7038, %v7039
    %v7041 = vrot.slane %v7040, 2
    %v7042 = vadd.f32 %v7040, %v7041
    %v7043 = vrot.slane %v7042, 1
    %v7044 = vadd.f32 %v7042, %v7043
    %v7045 = vsel %vm2902, %v6999, 0.0
    %v7046 = vrot.slane %v7045, 4
    %v7047 = vadd.f32 %v7045, %v7046
    %v7048 = vrot.slane %v7047, 2
    %v7049 = vadd.f32 %v7047, %v7048
    %v7050 = vrot.slane %v7049, 1
    %v7051 = vadd.f32 %v7049, %v7050
    %v7052 = vsel %vm2902, %v7000, 0.0
    %v7053 = vrot.slane %v7052, 4
    %v7054 = vadd.f32 %v7052, %v7053
    %v7055 = vrot.slane %v7054, 2
    %v7056 = vadd.f32 %v7054, %v7055
    %v7057 = vrot.slane %v7056, 1
    %v7058 = vadd.f32 %v7056, %v7057
    %v7059 = vsel %vm2902, %v7001, 0.0
    %v7060 = vrot.slane %v7059, 4
    %v7061 = vadd.f32 %v7059, %v7060
    %v7062 = vrot.slane %v7061, 2
    %v7063 = vadd.f32 %v7061, %v7062
    %v7064 = vrot.slane %v7063, 1
    %v7065 = vadd.f32 %v7063, %v7064
    %v7066 = vmul.f32 %v6994, %v6994
    %v7067 = vmul.f32 %v6995, %v6995
    %v7068 = vmul.f32 %v6996, %v6996
    %v7069 = vmul.f32 %v6997, %v6997
    %v7070 = vmul.f32 %v6998, %v6998
    %v7071 = vmul.f32 %v6999, %v6999
    %v7072 = vmul.f32 %v7000, %v7000
    %v7073 = vmul.f32 %v7001, %v7001
    %v7074 = vsel %vm2902, %v7066, 0.0
    %v7075 = vrot.slane %v7074, 4
    %v7076 = vadd.f32 %v7074, %v7075
    %v7077 = vrot.slane %v7076, 2
    %v7078 = vadd.f32 %v7076, %v7077
    %v7079 = vrot.slane %v7078, 1
    %v7080 = vadd.f32 %v7078, %v7079
    %v7081 = vsel %vm2902, %v7067, 0.0
    %v7082 = vrot.slane %v7081, 4
    %v7083 = vadd.f32 %v7081, %v7082
    %v7084 = vrot.slane %v7083, 2
    %v7085 = vadd.f32 %v7083, %v7084
    %v7086 = vrot.slane %v7085, 1
    %v7087 = vadd.f32 %v7085, %v7086
    %v7088 = vsel %vm2902, %v7068, 0.0
    %v7089 = vrot.slane %v7088, 4
    %v7090 = vadd.f32 %v7088, %v7089
    %v7091 = vrot.slane %v7090, 2
    %v7092 = vadd.f32 %v7090, %v7091
    %v7093 = vrot.slane %v7092, 1
    %v7094 = vadd.f32 %v7092, %v7093
    %v7095 = vsel %vm2902, %v7069, 0.0
    %v7096 = vrot.slane %v7095, 4
    %v7097 = vadd.f32 %v7095, %v7096
    %v7098 = vrot.slane %v7097, 2
    %v7099 = vadd.f32 %v7097, %v7098
    %v7100 = vrot.slane %v7099, 1
    %v7101 = vadd.f32 %v7099, %v7100
    %v7102 = vsel %vm2902, %v7070, 0.0
    %v7103 = vrot.slane %v7102, 4
    %v7104 = vadd.f32 %v7102, %v7103
    %v7105 = vrot.slane %v7104, 2
    %v7106 = vadd.f32 %v7104, %v7105
    %v7107 = vrot.slane %v7106, 1
    %v7108 = vadd.f32 %v7106, %v7107
    %v7109 = vsel %vm2902, %v7071, 0.0
    %v7110 = vrot.slane %v7109, 4
    %v7111 = vadd.f32 %v7109, %v7110
    %v7112 = vrot.slane %v7111, 2
    %v7113 = vadd.f32 %v7111, %v7112
    %v7114 = vrot.slane %v7113, 1
    %v7115 = vadd.f32 %v7113, %v7114
    %v7116 = vsel %vm2902, %v7072, 0.0
    %v7117 = vrot.slane %v7116, 4
    %v7118 = vadd.f32 %v7116, %v7117
    %v7119 = vrot.slane %v7118, 2
    %v7120 = vadd.f32 %v7118, %v7119
    %v7121 = vrot.slane %v7120, 1
    %v7122 = vadd.f32 %v7120, %v7121
    %v7123 = vsel %vm2902, %v7073, 0.0
    %v7124 = vrot.slane %v7123, 4
    %v7125 = vadd.f32 %v7123, %v7124
    %v7126 = vrot.slane %v7125, 2
    %v7127 = vadd.f32 %v7125, %v7126
    %v7128 = vrot.slane %v7127, 1
    %v7129 = vadd.f32 %v7127, %v7128
    %v7130 = vmul.f32 %v7016, 0.5
    %v7131 = vmul.f32 %v7023, 0.5
    %v7132 = vmul.f32 %v7030, 0.5
    %v7133 = vmul.f32 %v7037, 0.5
    %v7134 = vmul.f32 %v7044, 0.5
    %v7135 = vmul.f32 %v7051, 0.5
    %v7136 = vmul.f32 %v7058, 0.5
    %v7137 = vmul.f32 %v7065, 0.5
    %v7138 = vmul.f32 %v7080, 0.5
    %v7139 = vmul.f32 %v7087, 0.5
    %v7140 = vmul.f32 %v7094, 0.5
    %v7141 = vmul.f32 %v7101, 0.5
    %v7142 = vmul.f32 %v7108, 0.5
    %v7143 = vmul.f32 %v7115, 0.5
    %v7144 = vmul.f32 %v7122, 0.5
    %v7145 = vmul.f32 %v7129, 0.5
    %v7146 = vmul.f32 %v7130, %v7130
    %v7147 = vmul.f32 %v7131, %v7131
    %v7148 = vmul.f32 %v7132, %v7132
    %v7149 = vmul.f32 %v7133, %v7133
    %v7150 = vmul.f32 %v7134, %v7134
    %v7151 = vmul.f32 %v7135, %v7135
    %v7152 = vmul.f32 %v7136, %v7136
    %v7153 = vmul.f32 %v7137, %v7137
    %v7154 = vsub.f32 %v7138, %v7146
    %v7155 = vsub.f32 %v7139, %v7147
    %v7156 = vsub.f32 %v7140, %v7148
    %v7157 = vsub.f32 %v7141, %v7149
    %v7158 = vsub.f32 %v7142, %v7150
    %v7159 = vsub.f32 %v7143, %v7151
    %v7160 = vsub.f32 %v7144, %v7152
    %v7161 = vsub.f32 %v7145, %v7153
    %v7162 = vmax.f32 %v7154, 0.0
    %v7163 = vmax.f32 %v7155, 0.0
    %v7164 = vmax.f32 %v7156, 0.0
    %v7165 = vmax.f32 %v7157, 0.0
    %v7166 = vmax.f32 %v7158, 0.0
    %v7167 = vmax.f32 %v7159, 0.0
    %v7168 = vmax.f32 %v7160, 0.0
    %v7169 = vmax.f32 %v7161, 0.0
    %v7170 = vadd.f32 %v7162, 1e-05
    %v7171 = vadd.f32 %v7163, 1e-05
    %v7172 = vadd.f32 %v7164, 1e-05
    %v7173 = vadd.f32 %v7165, 1e-05
    %v7174 = vadd.f32 %v7166, 1e-05
    %v7175 = vadd.f32 %v7167, 1e-05
    %v7176 = vadd.f32 %v7168, 1e-05
    %v7177 = vadd.f32 %v7169, 1e-05
    %v7178 = vrsqrt.pop %v7170
    %v7179 = vrsqrt.pop %v7171
    %v7180 = vrsqrt.pop %v7172
    %v7181 = vrsqrt.pop %v7173
    %v7182 = vrsqrt.pop %v7174
    %v7183 = vrsqrt.pop %v7175
    %v7184 = vrsqrt.pop %v7176
    %v7185 = vrsqrt.pop %v7177
    %v7194 = vcombine.low %v7178, %v7179
    %v7195 = vcombine.low %v7180, %v7181
    %v7196 = vcombine.low %v7182, %v7183
    %v7197 = vcombine.low %v7184, %v7185
    %v7199 = vunpack.c.l.s4 1966171168
    %v7200 = vunpack.c.0.s8 %v7199
    %v7201 = vlaneseq
    %v7202 = vshrl.u32 %v7201, 7
    %v7203 = vsub.s32 %v7200, %v7202
    %v7204 = vrot.slane %v7194, %v7203
    %v7206 = vunpack.c.l.s4 1966171168
    %v7207 = vunpack.c.0.s8 %v7206
    %v7208 = vlaneseq
    %v7209 = vshrl.u32 %v7208, 7
    %v7210 = vsub.s32 %v7207, %v7209
    %v7211 = vrot.slane %v7195, %v7210
    %v7213 = vunpack.c.l.s4 1966171168
    %v7214 = vunpack.c.0.s8 %v7213
    %v7215 = vlaneseq
    %v7216 = vshrl.u32 %v7215, 7
    %v7217 = vsub.s32 %v7214, %v7216
    %v7218 = vrot.slane %v7196, %v7217
    %v7220 = vunpack.c.l.s4 1966171168
    %v7221 = vunpack.c.0.s8 %v7220
    %v7222 = vlaneseq
    %v7223 = vshrl.u32 %v7222, 7
    %v7224 = vsub.s32 %v7221, %v7223
    %v7225 = vrot.slane %v7197, %v7224
    %v7226 = vcombine.low %v7204, %v7211
    %v7227 = vcombine.low %v7218, %v7225
    %v7229 = vunpack.c.l.s4 1966171168
    %v7230 = vunpack.c.0.s8 %v7229
    %v7231 = vlaneseq
    %v7232 = vshrl.u32 %v7231, 7
    %v7233 = vsub.s32 %v7230, %v7232
    %v7234 = vrot.slane %v7226, %v7233
    %v7236 = vunpack.c.l.s4 1966171168
    %v7237 = vunpack.c.0.s8 %v7236
    %v7238 = vlaneseq
    %v7239 = vshrl.u32 %v7238, 7
    %v7240 = vsub.s32 %v7237, %v7239
    %v7241 = vrot.slane %v7227, %v7240
    %v7242 = vcombine.low %v7234, %v7241
    %v7244 = vmul.f32 %v7005, %v7242
    %v7246 = vlaneseq
    %v7247 = vshrl.u32 %v7246, 7
    %v7248 = vsub.s32 0, %v7247
    %v7249 = vrot.slane %v7244, %v7248
    %v7250 = vlaneseq
    %v7251 = vshrl.u32 %v7250, 7
    %v7252 = vsub.s32 1, %v7251
    %v7253 = vrot.slane %v7244, %v7252
    %v7254 = vlaneseq
    %v7255 = vshrl.u32 %v7254, 7
    %v7256 = vsub.s32 2, %v7255
    %v7257 = vrot.slane %v7244, %v7256
    %v7258 = vlaneseq
    %v7259 = vshrl.u32 %v7258, 7
    %v7260 = vsub.s32 3, %v7259
    %v7261 = vrot.slane %v7244, %v7260
    %v7262 = vlaneseq
    %v7263 = vshrl.u32 %v7262, 7
    %v7264 = vsub.s32 4, %v7263
    %v7265 = vrot.slane %v7244, %v7264
    %v7266 = vlaneseq
    %v7267 = vshrl.u32 %v7266, 7
    %v7268 = vsub.s32 5, %v7267
    %v7269 = vrot.slane %v7244, %v7268
    %v7270 = vlaneseq
    %v7271 = vshrl.u32 %v7270, 7
    %v7272 = vsub.s32 6, %v7271
    %v7273 = vrot.slane %v7244, %v7272
    %v7274 = vlaneseq
    %v7275 = vshrl.u32 %v7274, 7
    %v7276 = vsub.s32 7, %v7275
    %v7277 = vrot.slane %v7244, %v7276
    %v7286 = vmul.f32 %v7130, %v7249
    %v7287 = vmul.f32 %v7131, %v7253
    %v7288 = vmul.f32 %v7132, %v7257
    %v7289 = vmul.f32 %v7133, %v7261
    %v7290 = vmul.f32 %v7134, %v7265
    %v7291 = vmul.f32 %v7135, %v7269
    %v7292 = vmul.f32 %v7136, %v7273
    %v7293 = vmul.f32 %v7137, %v7277
    %v7302 = vcombine.low %v7286, %v7287
    %v7303 = vcombine.low %v7288, %v7289
    %v7304 = vcombine.low %v7290, %v7291
    %v7305 = vcombine.low %v7292, %v7293
    %v7307 = vunpack.c.l.s4 1966171168
    %v7308 = vunpack.c.0.s8 %v7307
    %v7309 = vlaneseq
    %v7310 = vshrl.u32 %v7309, 7
    %v7311 = vsub.s32 %v7308, %v7310
    %v7312 = vrot.slane %v7302, %v7311
    %v7314 = vunpack.c.l.s4 1966171168
    %v7315 = vunpack.c.0.s8 %v7314
    %v7316 = vlaneseq
    %v7317 = vshrl.u32 %v7316, 7
    %v7318 = vsub.s32 %v7315, %v7317
    %v7319 = vrot.slane %v7303, %v7318
    %v7321 = vunpack.c.l.s4 1966171168
    %v7322 = vunpack.c.0.s8 %v7321
    %v7323 = vlaneseq
    %v7324 = vshrl.u32 %v7323, 7
    %v7325 = vsub.s32 %v7322, %v7324
    %v7326 = vrot.slane %v7304, %v7325
    %v7328 = vunpack.c.l.s4 1966171168
    %v7329 = vunpack.c.0.s8 %v7328
    %v7330 = vlaneseq
    %v7331 = vshrl.u32 %v7330, 7
    %v7332 = vsub.s32 %v7329, %v7331
    %v7333 = vrot.slane %v7305, %v7332
    %v7334 = vcombine.low %v7312, %v7319
    %v7335 = vcombine.low %v7326, %v7333
    %v7337 = vunpack.c.l.s4 1966171168
    %v7338 = vunpack.c.0.s8 %v7337
    %v7339 = vlaneseq
    %v7340 = vshrl.u32 %v7339, 7
    %v7341 = vsub.s32 %v7338, %v7340
    %v7342 = vrot.slane %v7334, %v7341
    %v7344 = vunpack.c.l.s4 1966171168
    %v7345 = vunpack.c.0.s8 %v7344
    %v7346 = vlaneseq
    %v7347 = vshrl.u32 %v7346, 7
    %v7348 = vsub.s32 %v7345, %v7347
    %v7349 = vrot.slane %v7335, %v7348
    %v7350 = vcombine.low %v7342, %v7349
    %v7352 = vsub.f32 %v7009, %v7350
    %v7353 = vmul.f32 %v6994, %v7249
    %v7354 = vmul.f32 %v6995, %v7253
    %v7355 = vmul.f32 %v6996, %v7257
    %v7356 = vmul.f32 %v6997, %v7261
    %v7357 = vmul.f32 %v6998, %v7265
    %v7358 = vmul.f32 %v6999, %v7269
    %v7359 = vmul.f32 %v7000, %v7273
    %v7360 = vmul.f32 %v7001, %v7277
    %v7362 = vlaneseq
    %v7363 = vshrl.u32 %v7362, 7
    %v7364 = vsub.s32 0, %v7363
    %v7365 = vrot.slane %v7352, %v7364
    %v7366 = vlaneseq
    %v7367 = vshrl.u32 %v7366, 7
    %v7368 = vsub.s32 1, %v7367
    %v7369 = vrot.slane %v7352, %v7368
    %v7370 = vlaneseq
    %v7371 = vshrl.u32 %v7370, 7
    %v7372 = vsub.s32 2, %v7371
    %v7373 = vrot.slane %v7352, %v7372
    %v7374 = vlaneseq
    %v7375 = vshrl.u32 %v7374, 7
    %v7376 = vsub.s32 3, %v7375
    %v7377 = vrot.slane %v7352, %v7376
    %v7378 = vlaneseq
    %v7379 = vshrl.u32 %v7378, 7
    %v7380 = vsub.s32 4, %v7379
    %v7381 = vrot.slane %v7352, %v7380
    %v7382 = vlaneseq
    %v7383 = vshrl.u32 %v7382, 7
    %v7384 = vsub.s32 5, %v7383
    %v7385 = vrot.slane %v7352, %v7384
    %v7386 = vlaneseq
    %v7387 = vshrl.u32 %v7386, 7
    %v7388 = vsub.s32 6, %v7387
    %v7389 = vrot.slane %v7352, %v7388
    %v7390 = vlaneseq
    %v7391 = vshrl.u32 %v7390, 7
    %v7392 = vsub.s32 7, %v7391
    %v7393 = vrot.slane %v7352, %v7392
    %v7402 = vadd.f32 %v7353, %v7365
    %v7403 = vadd.f32 %v7354, %v7369
    %v7404 = vadd.f32 %v7355, %v7373
    %v7405 = vadd.f32 %v7356, %v7377
    %v7406 = vadd.f32 %v7357, %v7381
    %v7407 = vadd.f32 %v7358, %v7385
    %v7408 = vadd.f32 %v7359, %v7389
    %v7409 = vadd.f32 %v7360, %v7393
    %v7410 = vld [vmem:[#allocation10] sm:$0xff]
    %v7411 = vld [vmem:[#allocation10 + $0x8] sm:$0xff]
    %v7412 = vld [vmem:[#allocation10 + $0x10] sm:$0xff]
    %v7413 = vld [vmem:[#allocation10 + $0x18] sm:$0xff]
    %v7414 = vld [vmem:[#allocation10 + $0x20] sm:$0xff]
    %v7415 = vld [vmem:[#allocation10 + $0x28] sm:$0xff]
    %v7416 = vld [vmem:[#allocation10 + $0x30] sm:$0xff]
    %v7417 = vld [vmem:[#allocation10 + $0x38] sm:$0xff]
    %v7418 = vld [vmem:[#allocation10 + $0x40] sm:$0xff]
    %v7419 = vld [vmem:[#allocation10 + $0x48] sm:$0xff]
    %v7420 = vld [vmem:[#allocation10 + $0x50] sm:$0xff]
    %v7421 = vld [vmem:[#allocation10 + $0x58] sm:$0xff]
    %v7422 = vld [vmem:[#allocation10 + $0x60] sm:$0xff]
    %v7423 = vld [vmem:[#allocation10 + $0x68] sm:$0xff]
    %v7424 = vld [vmem:[#allocation10 + $0x70] sm:$0xff]
    %v7425 = vld [vmem:[#allocation10 + $0x78] sm:$0xff]
    %v7426 = vld [vmem:[#allocation10 + $0x80] sm:$0xff]
    %v7427 = vld [vmem:[#allocation10 + $0x88] sm:$0xff]
    %v7428 = vld [vmem:[#allocation10 + $0x90] sm:$0xff]
    %v7429 = vld [vmem:[#allocation10 + $0x98] sm:$0xff]
    %v7430 = vld [vmem:[#allocation10 + $0xa0] sm:$0xff]
    %v7431 = vld [vmem:[#allocation10 + $0xa8] sm:$0xff]
    %v7432 = vld [vmem:[#allocation10 + $0xb0] sm:$0xff]
    %v7433 = vld [vmem:[#allocation10 + $0xb8] sm:$0xff]
    %v7434 = vld [vmem:[#allocation10 + $0xc0] sm:$0xff]
    %v7435 = vld [vmem:[#allocation10 + $0xc8] sm:$0xff]
    %v7436 = vld [vmem:[#allocation10 + $0xd0] sm:$0xff]
    %v7437 = vld [vmem:[#allocation10 + $0xd8] sm:$0xff]
    %v7438 = vld [vmem:[#allocation10 + $0xe0] sm:$0xff]
    %v7439 = vld [vmem:[#allocation10 + $0xe8] sm:$0xff]
    %v7440 = vld [vmem:[#allocation10 + $0xf0] sm:$0xff]
    %v7441 = vld [vmem:[#allocation10 + $0xf8] sm:$0xff]
    %v7442 = vld [vmem:[#allocation10 + $0x100] sm:$0xff]
    %v7443 = vld [vmem:[#allocation10 + $0x108] sm:$0xff]
    %v7444 = vld [vmem:[#allocation10 + $0x110] sm:$0xff]
    %v7445 = vld [vmem:[#allocation10 + $0x118] sm:$0xff]
    %v7446 = vld [vmem:[#allocation10 + $0x120] sm:$0xff]
    %v7447 = vld [vmem:[#allocation10 + $0x128] sm:$0xff]
    %v7448 = vld [vmem:[#allocation10 + $0x130] sm:$0xff]
    %v7449 = vld [vmem:[#allocation10 + $0x138] sm:$0xff]
    %v7450 = vld [vmem:[#allocation10 + $0x140] sm:$0xff]
    %v7451 = vld [vmem:[#allocation10 + $0x148] sm:$0xff]
    %v7452 = vld [vmem:[#allocation10 + $0x150] sm:$0xff]
    %v7453 = vld [vmem:[#allocation10 + $0x158] sm:$0xff]
    %v7454 = vld [vmem:[#allocation10 + $0x160] sm:$0xff]
    %v7455 = vld [vmem:[#allocation10 + $0x168] sm:$0xff]
    %v7456 = vld [vmem:[#allocation10 + $0x170] sm:$0xff]
    %v7457 = vld [vmem:[#allocation10 + $0x178] sm:$0xff]
    %v7458 = vld [vmem:[#allocation10 + $0x180] sm:$0xff]
    %v7459 = vld [vmem:[#allocation10 + $0x188] sm:$0xff]
    %v7460 = vld [vmem:[#allocation10 + $0x190] sm:$0xff]
    %v7461 = vld [vmem:[#allocation10 + $0x198] sm:$0xff]
    %v7462 = vld [vmem:[#allocation10 + $0x1a0] sm:$0xff]
    %v7463 = vld [vmem:[#allocation10 + $0x1a8] sm:$0xff]
    %v7464 = vld [vmem:[#allocation10 + $0x1b0] sm:$0xff]
    %v7465 = vld [vmem:[#allocation10 + $0x1b8] sm:$0xff]
    %v7466 = vld [vmem:[#allocation10 + $0x1c0] sm:$0xff]
    %v7467 = vld [vmem:[#allocation10 + $0x1c8] sm:$0xff]
    %v7468 = vld [vmem:[#allocation10 + $0x1d0] sm:$0xff]
    %v7469 = vld [vmem:[#allocation10 + $0x1d8] sm:$0xff]
    %v7470 = vld [vmem:[#allocation10 + $0x1e0] sm:$0xff]
    %v7471 = vld [vmem:[#allocation10 + $0x1e8] sm:$0xff]
    %v7472 = vld [vmem:[#allocation10 + $0x1f0] sm:$0xff]
    %v7473 = vld [vmem:[#allocation10 + $0x1f8] sm:$0xff]
    %v7474 = vld [vmem:[#allocation10 + $0x200] sm:$0xff]
    %v7475 = vld [vmem:[#allocation10 + $0x208] sm:$0xff]
    %v7476 = vld [vmem:[#allocation10 + $0x210] sm:$0xff]
    %v7477 = vld [vmem:[#allocation10 + $0x218] sm:$0xff]
    %v7478 = vld [vmem:[#allocation10 + $0x220] sm:$0xff]
    %v7479 = vld [vmem:[#allocation10 + $0x228] sm:$0xff]
    %v7480 = vld [vmem:[#allocation10 + $0x230] sm:$0xff]
    %v7481 = vld [vmem:[#allocation10 + $0x238] sm:$0xff]
    %v7482 = vld [vmem:[#allocation10 + $0x240] sm:$0xff]
    %v7483 = vld [vmem:[#allocation10 + $0x248] sm:$0xff]
    %v7484 = vld [vmem:[#allocation10 + $0x250] sm:$0xff]
    %v7485 = vld [vmem:[#allocation10 + $0x258] sm:$0xff]
    %v7486 = vld [vmem:[#allocation10 + $0x260] sm:$0xff]
    %v7487 = vld [vmem:[#allocation10 + $0x268] sm:$0xff]
    %v7488 = vld [vmem:[#allocation10 + $0x270] sm:$0xff]
    %v7489 = vld [vmem:[#allocation10 + $0x278] sm:$0xff]
    %v7490 = vld [vmem:[#allocation10 + $0x280] sm:$0xff]
    %v7491 = vld [vmem:[#allocation10 + $0x288] sm:$0xff]
    %v7492 = vld [vmem:[#allocation10 + $0x290] sm:$0xff]
    %v7493 = vld [vmem:[#allocation10 + $0x298] sm:$0xff]
    %v7494 = vld [vmem:[#allocation10 + $0x2a0] sm:$0xff]
    %v7495 = vld [vmem:[#allocation10 + $0x2a8] sm:$0xff]
    %v7496 = vld [vmem:[#allocation10 + $0x2b0] sm:$0xff]
    %v7497 = vld [vmem:[#allocation10 + $0x2b8] sm:$0xff]
    %v7498 = vld [vmem:[#allocation10 + $0x2c0] sm:$0xff]
    %v7499 = vld [vmem:[#allocation10 + $0x2c8] sm:$0xff]
    %v7500 = vld [vmem:[#allocation10 + $0x2d0] sm:$0xff]
    %v7501 = vld [vmem:[#allocation10 + $0x2d8] sm:$0xff]
    %v7502 = vld [vmem:[#allocation10 + $0x2e0] sm:$0xff]
    %v7503 = vld [vmem:[#allocation10 + $0x2e8] sm:$0xff]
    %v7504 = vld [vmem:[#allocation10 + $0x2f0] sm:$0xff]
    %v7505 = vld [vmem:[#allocation10 + $0x2f8] sm:$0xff]
    %v7506 = vld [vmem:[#allocation10 + $0x300] sm:$0xff]
    %v7507 = vld [vmem:[#allocation10 + $0x308] sm:$0xff]
    %v7508 = vld [vmem:[#allocation10 + $0x310] sm:$0xff]
    %v7509 = vld [vmem:[#allocation10 + $0x318] sm:$0xff]
    %v7510 = vld [vmem:[#allocation10 + $0x320] sm:$0xff]
    %v7511 = vld [vmem:[#allocation10 + $0x328] sm:$0xff]
    %v7512 = vld [vmem:[#allocation10 + $0x330] sm:$0xff]
    %v7513 = vld [vmem:[#allocation10 + $0x338] sm:$0xff]
    %v7514 = vld [vmem:[#allocation10 + $0x340] sm:$0xff]
    %v7515 = vld [vmem:[#allocation10 + $0x348] sm:$0xff]
    %v7516 = vld [vmem:[#allocation10 + $0x350] sm:$0xff]
    %v7517 = vld [vmem:[#allocation10 + $0x358] sm:$0xff]
    %v7518 = vld [vmem:[#allocation10 + $0x360] sm:$0xff]
    %v7519 = vld [vmem:[#allocation10 + $0x368] sm:$0xff]
    %v7520 = vld [vmem:[#allocation10 + $0x370] sm:$0xff]
    %v7521 = vld [vmem:[#allocation10 + $0x378] sm:$0xff]
    %v7522 = vld [vmem:[#allocation10 + $0x380] sm:$0xff]
    %v7523 = vld [vmem:[#allocation10 + $0x388] sm:$0xff]
    %v7524 = vld [vmem:[#allocation10 + $0x390] sm:$0xff]
    %v7525 = vld [vmem:[#allocation10 + $0x398] sm:$0xff]
    %v7526 = vld [vmem:[#allocation10 + $0x3a0] sm:$0xff]
    %v7527 = vld [vmem:[#allocation10 + $0x3a8] sm:$0xff]
    %v7528 = vld [vmem:[#allocation10 + $0x3b0] sm:$0xff]
    %v7529 = vld [vmem:[#allocation10 + $0x3b8] sm:$0xff]
    %v7530 = vld [vmem:[#allocation10 + $0x3c0] sm:$0xff]
    %v7531 = vld [vmem:[#allocation10 + $0x3c8] sm:$0xff]
    %v7532 = vld [vmem:[#allocation10 + $0x3d0] sm:$0xff]
    %v7533 = vld [vmem:[#allocation10 + $0x3d8] sm:$0xff]
    %v7534 = vld [vmem:[#allocation10 + $0x3e0] sm:$0xff]
    %v7535 = vld [vmem:[#allocation10 + $0x3e8] sm:$0xff]
    %v7536 = vld [vmem:[#allocation10 + $0x3f0] sm:$0xff]
    %v7537 = vld [vmem:[#allocation10 + $0x3f8] sm:$0xff]
    %v7538 = vld [vmem:[#allocation10 + $0x400] sm:$0xff]
    %v7539 = vld [vmem:[#allocation10 + $0x408] sm:$0xff]
    %v7540 = vld [vmem:[#allocation10 + $0x410] sm:$0xff]
    %v7541 = vld [vmem:[#allocation10 + $0x418] sm:$0xff]
    %v7542 = vld [vmem:[#allocation10 + $0x420] sm:$0xff]
    %v7543 = vld [vmem:[#allocation10 + $0x428] sm:$0xff]
    %v7544 = vld [vmem:[#allocation10 + $0x430] sm:$0xff]
    %v7545 = vld [vmem:[#allocation10 + $0x438] sm:$0xff]
    %v7546 = vld [vmem:[#allocation10 + $0x440] sm:$0xff]
    %v7547 = vld [vmem:[#allocation10 + $0x448] sm:$0xff]
    %v7548 = vld [vmem:[#allocation10 + $0x450] sm:$0xff]
    %v7549 = vld [vmem:[#allocation10 + $0x458] sm:$0xff]
    %v7550 = vld [vmem:[#allocation10 + $0x460] sm:$0xff]
    %v7551 = vld [vmem:[#allocation10 + $0x468] sm:$0xff]
    %v7552 = vld [vmem:[#allocation10 + $0x470] sm:$0xff]
    %v7553 = vld [vmem:[#allocation10 + $0x478] sm:$0xff]
    %v7554 = vld [vmem:[#allocation10 + $0x480] sm:$0xff]
    %v7555 = vld [vmem:[#allocation10 + $0x488] sm:$0xff]
    %v7556 = vld [vmem:[#allocation10 + $0x490] sm:$0xff]
    %v7557 = vld [vmem:[#allocation10 + $0x498] sm:$0xff]
    %v7558 = vld [vmem:[#allocation10 + $0x4a0] sm:$0xff]
    %v7559 = vld [vmem:[#allocation10 + $0x4a8] sm:$0xff]
    %v7560 = vld [vmem:[#allocation10 + $0x4b0] sm:$0xff]
    %v7561 = vld [vmem:[#allocation10 + $0x4b8] sm:$0xff]
    %v7562 = vld [vmem:[#allocation10 + $0x4c0] sm:$0xff]
    %v7563 = vld [vmem:[#allocation10 + $0x4c8] sm:$0xff]
    %v7564 = vld [vmem:[#allocation10 + $0x4d0] sm:$0xff]
    %v7565 = vld [vmem:[#allocation10 + $0x4d8] sm:$0xff]
    %v7566 = vld [vmem:[#allocation10 + $0x4e0] sm:$0xff]
    %v7567 = vld [vmem:[#allocation10 + $0x4e8] sm:$0xff]
    %v7568 = vld [vmem:[#allocation10 + $0x4f0] sm:$0xff]
    %v7569 = vld [vmem:[#allocation10 + $0x4f8] sm:$0xff]
    %v7570 = vld [vmem:[#allocation10 + $0x500] sm:$0xff]
    %v7571 = vld [vmem:[#allocation10 + $0x508] sm:$0xff]
    %v7572 = vld [vmem:[#allocation10 + $0x510] sm:$0xff]
    %v7573 = vld [vmem:[#allocation10 + $0x518] sm:$0xff]
    %v7574 = vld [vmem:[#allocation10 + $0x520] sm:$0xff]
    %v7575 = vld [vmem:[#allocation10 + $0x528] sm:$0xff]
    %v7576 = vld [vmem:[#allocation10 + $0x530] sm:$0xff]
    %v7577 = vld [vmem:[#allocation10 + $0x538] sm:$0xff]
    %v7578 = vld [vmem:[#allocation10 + $0x540] sm:$0xff]
    %v7579 = vld [vmem:[#allocation10 + $0x548] sm:$0xff]
    %v7580 = vld [vmem:[#allocation10 + $0x550] sm:$0xff]
    %v7581 = vld [vmem:[#allocation10 + $0x558] sm:$0xff]
    %v7582 = vld [vmem:[#allocation10 + $0x560] sm:$0xff]
    %v7583 = vld [vmem:[#allocation10 + $0x568] sm:$0xff]
    %v7584 = vld [vmem:[#allocation10 + $0x570] sm:$0xff]
    %v7585 = vld [vmem:[#allocation10 + $0x578] sm:$0xff]
    %v7586 = vld [vmem:[#allocation10 + $0x580] sm:$0xff]
    %v7587 = vld [vmem:[#allocation10 + $0x588] sm:$0xff]
    %v7588 = vld [vmem:[#allocation10 + $0x590] sm:$0xff]
    %v7589 = vld [vmem:[#allocation10 + $0x598] sm:$0xff]
    %v7590 = vld [vmem:[#allocation10 + $0x5a0] sm:$0xff]
    %v7591 = vld [vmem:[#allocation10 + $0x5a8] sm:$0xff]
    %v7592 = vld [vmem:[#allocation10 + $0x5b0] sm:$0xff]
    %v7593 = vld [vmem:[#allocation10 + $0x5b8] sm:$0xff]
    %v7594 = vld [vmem:[#allocation10 + $0x5c0] sm:$0xff]
    %v7595 = vld [vmem:[#allocation10 + $0x5c8] sm:$0xff]
    %v7596 = vld [vmem:[#allocation10 + $0x5d0] sm:$0xff]
    %v7597 = vld [vmem:[#allocation10 + $0x5d8] sm:$0xff]
    %v7598 = vld [vmem:[#allocation10 + $0x5e0] sm:$0xff]
    %v7599 = vld [vmem:[#allocation10 + $0x5e8] sm:$0xff]
    %v7600 = vld [vmem:[#allocation10 + $0x5f0] sm:$0xff]
    %v7601 = vld [vmem:[#allocation10 + $0x5f8] sm:$0xff]
    %v7602 = vld [vmem:[#allocation10 + $0x600] sm:$0xff]
    %v7603 = vld [vmem:[#allocation10 + $0x608] sm:$0xff]
    %v7604 = vld [vmem:[#allocation10 + $0x610] sm:$0xff]
    %v7605 = vld [vmem:[#allocation10 + $0x618] sm:$0xff]
    %v7606 = vld [vmem:[#allocation10 + $0x620] sm:$0xff]
    %v7607 = vld [vmem:[#allocation10 + $0x628] sm:$0xff]
    %v7608 = vld [vmem:[#allocation10 + $0x630] sm:$0xff]
    %v7609 = vld [vmem:[#allocation10 + $0x638] sm:$0xff]
    %v7610 = vld [vmem:[#allocation10 + $0x640] sm:$0xff]
    %v7611 = vld [vmem:[#allocation10 + $0x648] sm:$0xff]
    %v7612 = vld [vmem:[#allocation10 + $0x650] sm:$0xff]
    %v7613 = vld [vmem:[#allocation10 + $0x658] sm:$0xff]
    %v7614 = vld [vmem:[#allocation10 + $0x660] sm:$0xff]
    %v7615 = vld [vmem:[#allocation10 + $0x668] sm:$0xff]
    %v7616 = vld [vmem:[#allocation10 + $0x670] sm:$0xff]
    %v7617 = vld [vmem:[#allocation10 + $0x678] sm:$0xff]
    %v7618 = vld [vmem:[#allocation10 + $0x680] sm:$0xff]
    %v7619 = vld [vmem:[#allocation10 + $0x688] sm:$0xff]
    %v7620 = vld [vmem:[#allocation10 + $0x690] sm:$0xff]
    %v7621 = vld [vmem:[#allocation10 + $0x698] sm:$0xff]
    %v7622 = vld [vmem:[#allocation10 + $0x6a0] sm:$0xff]
    %v7623 = vld [vmem:[#allocation10 + $0x6a8] sm:$0xff]
    %v7624 = vld [vmem:[#allocation10 + $0x6b0] sm:$0xff]
    %v7625 = vld [vmem:[#allocation10 + $0x6b8] sm:$0xff]
    %v7626 = vld [vmem:[#allocation10 + $0x6c0] sm:$0xff]
    %v7627 = vld [vmem:[#allocation10 + $0x6c8] sm:$0xff]
    %v7628 = vld [vmem:[#allocation10 + $0x6d0] sm:$0xff]
    %v7629 = vld [vmem:[#allocation10 + $0x6d8] sm:$0xff]
    %v7630 = vld [vmem:[#allocation10 + $0x6e0] sm:$0xff]
    %v7631 = vld [vmem:[#allocation10 + $0x6e8] sm:$0xff]
    %v7632 = vld [vmem:[#allocation10 + $0x6f0] sm:$0xff]
    %v7633 = vld [vmem:[#allocation10 + $0x6f8] sm:$0xff]
    %v7634 = vld [vmem:[#allocation10 + $0x700] sm:$0xff]
    %v7635 = vld [vmem:[#allocation10 + $0x708] sm:$0xff]
    %v7636 = vld [vmem:[#allocation10 + $0x710] sm:$0xff]
    %v7637 = vld [vmem:[#allocation10 + $0x718] sm:$0xff]
    %v7638 = vld [vmem:[#allocation10 + $0x720] sm:$0xff]
    %v7639 = vld [vmem:[#allocation10 + $0x728] sm:$0xff]
    %v7640 = vld [vmem:[#allocation10 + $0x730] sm:$0xff]
    %v7641 = vld [vmem:[#allocation10 + $0x738] sm:$0xff]
    %v7642 = vld [vmem:[#allocation10 + $0x740] sm:$0xff]
    %v7643 = vld [vmem:[#allocation10 + $0x748] sm:$0xff]
    %v7644 = vld [vmem:[#allocation10 + $0x750] sm:$0xff]
    %v7645 = vld [vmem:[#allocation10 + $0x758] sm:$0xff]
    %v7646 = vld [vmem:[#allocation10 + $0x760] sm:$0xff]
    %v7647 = vld [vmem:[#allocation10 + $0x768] sm:$0xff]
    %v7648 = vld [vmem:[#allocation10 + $0x770] sm:$0xff]
    %v7649 = vld [vmem:[#allocation10 + $0x778] sm:$0xff]
    %v7650 = vld [vmem:[#allocation10 + $0x780] sm:$0xff]
    %v7651 = vld [vmem:[#allocation10 + $0x788] sm:$0xff]
    %v7652 = vld [vmem:[#allocation10 + $0x790] sm:$0xff]
    %v7653 = vld [vmem:[#allocation10 + $0x798] sm:$0xff]
    %v7654 = vld [vmem:[#allocation10 + $0x7a0] sm:$0xff]
    %v7655 = vld [vmem:[#allocation10 + $0x7a8] sm:$0xff]
    %v7656 = vld [vmem:[#allocation10 + $0x7b0] sm:$0xff]
    %v7657 = vld [vmem:[#allocation10 + $0x7b8] sm:$0xff]
    %v7658 = vld [vmem:[#allocation10 + $0x7c0] sm:$0xff]
    %v7659 = vld [vmem:[#allocation10 + $0x7c8] sm:$0xff]
    %v7660 = vld [vmem:[#allocation10 + $0x7d0] sm:$0xff]
    %v7661 = vld [vmem:[#allocation10 + $0x7d8] sm:$0xff]
    %v7662 = vld [vmem:[#allocation10 + $0x7e0] sm:$0xff]
    %v7663 = vld [vmem:[#allocation10 + $0x7e8] sm:$0xff]
    %v7664 = vld [vmem:[#allocation10 + $0x7f0] sm:$0xff]
    %v7665 = vld [vmem:[#allocation10 + $0x7f8] sm:$0xff]
    %v7666 = vld [vmem:[#allocation10 + $0x800] sm:$0xff]
    %v7667 = vld [vmem:[#allocation10 + $0x808] sm:$0xff]
    %v7668 = vld [vmem:[#allocation10 + $0x810] sm:$0xff]
    %v7669 = vld [vmem:[#allocation10 + $0x818] sm:$0xff]
    %v7670 = vld [vmem:[#allocation10 + $0x820] sm:$0xff]
    %v7671 = vld [vmem:[#allocation10 + $0x828] sm:$0xff]
    %v7672 = vld [vmem:[#allocation10 + $0x830] sm:$0xff]
    %v7673 = vld [vmem:[#allocation10 + $0x838] sm:$0xff]
    %v7674 = vld [vmem:[#allocation10 + $0x840] sm:$0xff]
    %v7675 = vld [vmem:[#allocation10 + $0x848] sm:$0xff]
    %v7676 = vld [vmem:[#allocation10 + $0x850] sm:$0xff]
    %v7677 = vld [vmem:[#allocation10 + $0x858] sm:$0xff]
    %v7678 = vld [vmem:[#allocation10 + $0x860] sm:$0xff]
    %v7679 = vld [vmem:[#allocation10 + $0x868] sm:$0xff]
    %v7680 = vld [vmem:[#allocation10 + $0x870] sm:$0xff]
    %v7681 = vld [vmem:[#allocation10 + $0x878] sm:$0xff]
    %v7682 = vld [vmem:[#allocation10 + $0x880] sm:$0xff]
    %v7683 = vld [vmem:[#allocation10 + $0x888] sm:$0xff]
    %v7684 = vld [vmem:[#allocation10 + $0x890] sm:$0xff]
    %v7685 = vld [vmem:[#allocation10 + $0x898] sm:$0xff]
    %v7686 = vld [vmem:[#allocation10 + $0x8a0] sm:$0xff]
    %v7687 = vld [vmem:[#allocation10 + $0x8a8] sm:$0xff]
    %v7688 = vld [vmem:[#allocation10 + $0x8b0] sm:$0xff]
    %v7689 = vld [vmem:[#allocation10 + $0x8b8] sm:$0xff]
    %v7690 = vld [vmem:[#allocation10 + $0x8c0] sm:$0xff]
    %v7691 = vld [vmem:[#allocation10 + $0x8c8] sm:$0xff]
    %v7692 = vld [vmem:[#allocation10 + $0x8d0] sm:$0xff]
    %v7693 = vld [vmem:[#allocation10 + $0x8d8] sm:$0xff]
    %v7694 = vld [vmem:[#allocation10 + $0x8e0] sm:$0xff]
    %v7695 = vld [vmem:[#allocation10 + $0x8e8] sm:$0xff]
    %v7696 = vld [vmem:[#allocation10 + $0x8f0] sm:$0xff]
    %v7697 = vld [vmem:[#allocation10 + $0x8f8] sm:$0xff]
    %v7698 = vld [vmem:[#allocation10 + $0x900] sm:$0xff]
    %v7699 = vld [vmem:[#allocation10 + $0x908] sm:$0xff]
    %v7700 = vld [vmem:[#allocation10 + $0x910] sm:$0xff]
    %v7701 = vld [vmem:[#allocation10 + $0x918] sm:$0xff]
    %v7702 = vld [vmem:[#allocation10 + $0x920] sm:$0xff]
    %v7703 = vld [vmem:[#allocation10 + $0x928] sm:$0xff]
    %v7704 = vld [vmem:[#allocation10 + $0x930] sm:$0xff]
    %v7705 = vld [vmem:[#allocation10 + $0x938] sm:$0xff]
    %v7706 = vld [vmem:[#allocation10 + $0x940] sm:$0xff]
    %v7707 = vld [vmem:[#allocation10 + $0x948] sm:$0xff]
    %v7708 = vld [vmem:[#allocation10 + $0x950] sm:$0xff]
    %v7709 = vld [vmem:[#allocation10 + $0x958] sm:$0xff]
    %v7710 = vld [vmem:[#allocation10 + $0x960] sm:$0xff]
    %v7711 = vld [vmem:[#allocation10 + $0x968] sm:$0xff]
    %v7712 = vld [vmem:[#allocation10 + $0x970] sm:$0xff]
    %v7713 = vld [vmem:[#allocation10 + $0x978] sm:$0xff]
    %v7714 = vld [vmem:[#allocation10 + $0x980] sm:$0xff]
    %v7715 = vld [vmem:[#allocation10 + $0x988] sm:$0xff]
    %v7716 = vld [vmem:[#allocation10 + $0x990] sm:$0xff]
    %v7717 = vld [vmem:[#allocation10 + $0x998] sm:$0xff]
    %v7718 = vld [vmem:[#allocation10 + $0x9a0] sm:$0xff]
    %v7719 = vld [vmem:[#allocation10 + $0x9a8] sm:$0xff]
    %v7720 = vld [vmem:[#allocation10 + $0x9b0] sm:$0xff]
    %v7721 = vld [vmem:[#allocation10 + $0x9b8] sm:$0xff]
    %v7722 = vld [vmem:[#allocation10 + $0x9c0] sm:$0xff]
    %v7723 = vld [vmem:[#allocation10 + $0x9c8] sm:$0xff]
    %v7724 = vld [vmem:[#allocation10 + $0x9d0] sm:$0xff]
    %v7725 = vld [vmem:[#allocation10 + $0x9d8] sm:$0xff]
    %v7726 = vld [vmem:[#allocation10 + $0x9e0] sm:$0xff]
    %v7727 = vld [vmem:[#allocation10 + $0x9e8] sm:$0xff]
    %v7728 = vld [vmem:[#allocation10 + $0x9f0] sm:$0xff]
    %v7729 = vld [vmem:[#allocation10 + $0x9f8] sm:$0xff]
    %v7730 = vld [vmem:[#allocation10 + $0xa00] sm:$0xff]
    %v7731 = vld [vmem:[#allocation10 + $0xa08] sm:$0xff]
    %v7732 = vld [vmem:[#allocation10 + $0xa10] sm:$0xff]
    %v7733 = vld [vmem:[#allocation10 + $0xa18] sm:$0xff]
    %v7734 = vld [vmem:[#allocation10 + $0xa20] sm:$0xff]
    %v7735 = vld [vmem:[#allocation10 + $0xa28] sm:$0xff]
    %v7736 = vld [vmem:[#allocation10 + $0xa30] sm:$0xff]
    %v7737 = vld [vmem:[#allocation10 + $0xa38] sm:$0xff]
    %v7738 = vld [vmem:[#allocation10 + $0xa40] sm:$0xff]
    %v7739 = vld [vmem:[#allocation10 + $0xa48] sm:$0xff]
    %v7740 = vld [vmem:[#allocation10 + $0xa50] sm:$0xff]
    %v7741 = vld [vmem:[#allocation10 + $0xa58] sm:$0xff]
    %v7742 = vld [vmem:[#allocation10 + $0xa60] sm:$0xff]
    %v7743 = vld [vmem:[#allocation10 + $0xa68] sm:$0xff]
    %v7744 = vld [vmem:[#allocation10 + $0xa70] sm:$0xff]
    %v7745 = vld [vmem:[#allocation10 + $0xa78] sm:$0xff]
    %v7746 = vld [vmem:[#allocation10 + $0xa80] sm:$0xff]
    %v7747 = vld [vmem:[#allocation10 + $0xa88] sm:$0xff]
    %v7748 = vld [vmem:[#allocation10 + $0xa90] sm:$0xff]
    %v7749 = vld [vmem:[#allocation10 + $0xa98] sm:$0xff]
    %v7750 = vld [vmem:[#allocation10 + $0xaa0] sm:$0xff]
    %v7751 = vld [vmem:[#allocation10 + $0xaa8] sm:$0xff]
    %v7752 = vld [vmem:[#allocation10 + $0xab0] sm:$0xff]
    %v7753 = vld [vmem:[#allocation10 + $0xab8] sm:$0xff]
    %v7754 = vld [vmem:[#allocation10 + $0xac0] sm:$0xff]
    %v7755 = vld [vmem:[#allocation10 + $0xac8] sm:$0xff]
    %v7756 = vld [vmem:[#allocation10 + $0xad0] sm:$0xff]
    %v7757 = vld [vmem:[#allocation10 + $0xad8] sm:$0xff]
    %v7758 = vld [vmem:[#allocation10 + $0xae0] sm:$0xff]
    %v7759 = vld [vmem:[#allocation10 + $0xae8] sm:$0xff]
    %v7760 = vld [vmem:[#allocation10 + $0xaf0] sm:$0xff]
    %v7761 = vld [vmem:[#allocation10 + $0xaf8] sm:$0xff]
    %v7762 = vld [vmem:[#allocation10 + $0xb00] sm:$0xff]
    %v7763 = vld [vmem:[#allocation10 + $0xb08] sm:$0xff]
    %v7764 = vld [vmem:[#allocation10 + $0xb10] sm:$0xff]
    %v7765 = vld [vmem:[#allocation10 + $0xb18] sm:$0xff]
    %v7766 = vld [vmem:[#allocation10 + $0xb20] sm:$0xff]
    %v7767 = vld [vmem:[#allocation10 + $0xb28] sm:$0xff]
    %v7768 = vld [vmem:[#allocation10 + $0xb30] sm:$0xff]
    %v7769 = vld [vmem:[#allocation10 + $0xb38] sm:$0xff]
    %v7770 = vld [vmem:[#allocation10 + $0xb40] sm:$0xff]
    %v7771 = vld [vmem:[#allocation10 + $0xb48] sm:$0xff]
    %v7772 = vld [vmem:[#allocation10 + $0xb50] sm:$0xff]
    %v7773 = vld [vmem:[#allocation10 + $0xb58] sm:$0xff]
    %v7774 = vld [vmem:[#allocation10 + $0xb60] sm:$0xff]
    %v7775 = vld [vmem:[#allocation10 + $0xb68] sm:$0xff]
    %v7776 = vld [vmem:[#allocation10 + $0xb70] sm:$0xff]
    %v7777 = vld [vmem:[#allocation10 + $0xb78] sm:$0xff]
    %v7778 = vld [vmem:[#allocation10 + $0xb80] sm:$0xff]
    %v7779 = vld [vmem:[#allocation10 + $0xb88] sm:$0xff]
    %v7780 = vld [vmem:[#allocation10 + $0xb90] sm:$0xff]
    %v7781 = vld [vmem:[#allocation10 + $0xb98] sm:$0xff]
    %v7782 = vld [vmem:[#allocation10 + $0xba0] sm:$0xff]
    %v7783 = vld [vmem:[#allocation10 + $0xba8] sm:$0xff]
    %v7784 = vld [vmem:[#allocation10 + $0xbb0] sm:$0xff]
    %v7785 = vld [vmem:[#allocation10 + $0xbb8] sm:$0xff]
    %v7786 = vld [vmem:[#allocation10 + $0xbc0] sm:$0xff]
    %v7787 = vld [vmem:[#allocation10 + $0xbc8] sm:$0xff]
    %v7788 = vld [vmem:[#allocation10 + $0xbd0] sm:$0xff]
    %v7789 = vld [vmem:[#allocation10 + $0xbd8] sm:$0xff]
    %v7790 = vld [vmem:[#allocation10 + $0xbe0] sm:$0xff]
    %v7791 = vld [vmem:[#allocation10 + $0xbe8] sm:$0xff]
    %v7792 = vld [vmem:[#allocation10 + $0xbf0] sm:$0xff]
    %v7793 = vld [vmem:[#allocation10 + $0xbf8] sm:$0xff]
    %v7794 = vld [vmem:[#allocation10 + $0xc00] sm:$0xff]
    %v7795 = vld [vmem:[#allocation10 + $0xc08] sm:$0xff]
    %v7796 = vld [vmem:[#allocation10 + $0xc10] sm:$0xff]
    %v7797 = vld [vmem:[#allocation10 + $0xc18] sm:$0xff]
    %v7798 = vld [vmem:[#allocation10 + $0xc20] sm:$0xff]
    %v7799 = vld [vmem:[#allocation10 + $0xc28] sm:$0xff]
    %v7800 = vld [vmem:[#allocation10 + $0xc30] sm:$0xff]
    %v7801 = vld [vmem:[#allocation10 + $0xc38] sm:$0xff]
    %v7802 = vld [vmem:[#allocation10 + $0xc40] sm:$0xff]
    %v7803 = vld [vmem:[#allocation10 + $0xc48] sm:$0xff]
    %v7804 = vld [vmem:[#allocation10 + $0xc50] sm:$0xff]
    %v7805 = vld [vmem:[#allocation10 + $0xc58] sm:$0xff]
    %v7806 = vld [vmem:[#allocation10 + $0xc60] sm:$0xff]
    %v7807 = vld [vmem:[#allocation10 + $0xc68] sm:$0xff]
    %v7808 = vld [vmem:[#allocation10 + $0xc70] sm:$0xff]
    %v7809 = vld [vmem:[#allocation10 + $0xc78] sm:$0xff]
    %v7810 = vld [vmem:[#allocation10 + $0xc80] sm:$0xff]
    %v7811 = vld [vmem:[#allocation10 + $0xc88] sm:$0xff]
    %v7812 = vld [vmem:[#allocation10 + $0xc90] sm:$0xff]
    %v7813 = vld [vmem:[#allocation10 + $0xc98] sm:$0xff]
    %v7814 = vld [vmem:[#allocation10 + $0xca0] sm:$0xff]
    %v7815 = vld [vmem:[#allocation10 + $0xca8] sm:$0xff]
    %v7816 = vld [vmem:[#allocation10 + $0xcb0] sm:$0xff]
    %v7817 = vld [vmem:[#allocation10 + $0xcb8] sm:$0xff]
    %v7818 = vld [vmem:[#allocation10 + $0xcc0] sm:$0xff]
    %v7819 = vld [vmem:[#allocation10 + $0xcc8] sm:$0xff]
    %v7820 = vld [vmem:[#allocation10 + $0xcd0] sm:$0xff]
    %v7821 = vld [vmem:[#allocation10 + $0xcd8] sm:$0xff]
    %v7822 = vld [vmem:[#allocation10 + $0xce0] sm:$0xff]
    %v7823 = vld [vmem:[#allocation10 + $0xce8] sm:$0xff]
    %v7824 = vld [vmem:[#allocation10 + $0xcf0] sm:$0xff]
    %v7825 = vld [vmem:[#allocation10 + $0xcf8] sm:$0xff]
    %v7826 = vld [vmem:[#allocation10 + $0xd00] sm:$0xff]
    %v7827 = vld [vmem:[#allocation10 + $0xd08] sm:$0xff]
    %v7828 = vld [vmem:[#allocation10 + $0xd10] sm:$0xff]
    %v7829 = vld [vmem:[#allocation10 + $0xd18] sm:$0xff]
    %v7830 = vld [vmem:[#allocation10 + $0xd20] sm:$0xff]
    %v7831 = vld [vmem:[#allocation10 + $0xd28] sm:$0xff]
    %v7832 = vld [vmem:[#allocation10 + $0xd30] sm:$0xff]
    %v7833 = vld [vmem:[#allocation10 + $0xd38] sm:$0xff]
    %v7834 = vld [vmem:[#allocation10 + $0xd40] sm:$0xff]
    %v7835 = vld [vmem:[#allocation10 + $0xd48] sm:$0xff]
    %v7836 = vld [vmem:[#allocation10 + $0xd50] sm:$0xff]
    %v7837 = vld [vmem:[#allocation10 + $0xd58] sm:$0xff]
    %v7838 = vld [vmem:[#allocation10 + $0xd60] sm:$0xff]
    %v7839 = vld [vmem:[#allocation10 + $0xd68] sm:$0xff]
    %v7840 = vld [vmem:[#allocation10 + $0xd70] sm:$0xff]
    %v7841 = vld [vmem:[#allocation10 + $0xd78] sm:$0xff]
    %v7842 = vld [vmem:[#allocation10 + $0xd80] sm:$0xff]
    %v7843 = vld [vmem:[#allocation10 + $0xd88] sm:$0xff]
    %v7844 = vld [vmem:[#allocation10 + $0xd90] sm:$0xff]
    %v7845 = vld [vmem:[#allocation10 + $0xd98] sm:$0xff]
    %v7846 = vld [vmem:[#allocation10 + $0xda0] sm:$0xff]
    %v7847 = vld [vmem:[#allocation10 + $0xda8] sm:$0xff]
    %v7848 = vld [vmem:[#allocation10 + $0xdb0] sm:$0xff]
    %v7849 = vld [vmem:[#allocation10 + $0xdb8] sm:$0xff]
    %v7850 = vld [vmem:[#allocation10 + $0xdc0] sm:$0xff]
    %v7851 = vld [vmem:[#allocation10 + $0xdc8] sm:$0xff]
    %v7852 = vld [vmem:[#allocation10 + $0xdd0] sm:$0xff]
    %v7853 = vld [vmem:[#allocation10 + $0xdd8] sm:$0xff]
    %v7854 = vld [vmem:[#allocation10 + $0xde0] sm:$0xff]
    %v7855 = vld [vmem:[#allocation10 + $0xde8] sm:$0xff]
    %v7856 = vld [vmem:[#allocation10 + $0xdf0] sm:$0xff]
    %v7857 = vld [vmem:[#allocation10 + $0xdf8] sm:$0xff]
    %v7858 = vld [vmem:[#allocation10 + $0xe00] sm:$0xff]
    %v7859 = vld [vmem:[#allocation10 + $0xe08] sm:$0xff]
    %v7860 = vld [vmem:[#allocation10 + $0xe10] sm:$0xff]
    %v7861 = vld [vmem:[#allocation10 + $0xe18] sm:$0xff]
    %v7862 = vld [vmem:[#allocation10 + $0xe20] sm:$0xff]
    %v7863 = vld [vmem:[#allocation10 + $0xe28] sm:$0xff]
    %v7864 = vld [vmem:[#allocation10 + $0xe30] sm:$0xff]
    %v7865 = vld [vmem:[#allocation10 + $0xe38] sm:$0xff]
    %v7866 = vld [vmem:[#allocation10 + $0xe40] sm:$0xff]
    %v7867 = vld [vmem:[#allocation10 + $0xe48] sm:$0xff]
    %v7868 = vld [vmem:[#allocation10 + $0xe50] sm:$0xff]
    %v7869 = vld [vmem:[#allocation10 + $0xe58] sm:$0xff]
    %v7870 = vld [vmem:[#allocation10 + $0xe60] sm:$0xff]
    %v7871 = vld [vmem:[#allocation10 + $0xe68] sm:$0xff]
    %v7872 = vld [vmem:[#allocation10 + $0xe70] sm:$0xff]
    %v7873 = vld [vmem:[#allocation10 + $0xe78] sm:$0xff]
    %v7874 = vld [vmem:[#allocation10 + $0xe80] sm:$0xff]
    %v7875 = vld [vmem:[#allocation10 + $0xe88] sm:$0xff]
    %v7876 = vld [vmem:[#allocation10 + $0xe90] sm:$0xff]
    %v7877 = vld [vmem:[#allocation10 + $0xe98] sm:$0xff]
    %v7878 = vld [vmem:[#allocation10 + $0xea0] sm:$0xff]
    %v7879 = vld [vmem:[#allocation10 + $0xea8] sm:$0xff]
    %v7880 = vld [vmem:[#allocation10 + $0xeb0] sm:$0xff]
    %v7881 = vld [vmem:[#allocation10 + $0xeb8] sm:$0xff]
    %v7882 = vld [vmem:[#allocation10 + $0xec0] sm:$0xff]
    %v7883 = vld [vmem:[#allocation10 + $0xec8] sm:$0xff]
    %v7884 = vld [vmem:[#allocation10 + $0xed0] sm:$0xff]
    %v7885 = vld [vmem:[#allocation10 + $0xed8] sm:$0xff]
    %v7886 = vld [vmem:[#allocation10 + $0xee0] sm:$0xff]
    %v7887 = vld [vmem:[#allocation10 + $0xee8] sm:$0xff]
    %v7888 = vld [vmem:[#allocation10 + $0xef0] sm:$0xff]
    %v7889 = vld [vmem:[#allocation10 + $0xef8] sm:$0xff]
    %v7890 = vld [vmem:[#allocation10 + $0xf00] sm:$0xff]
    %v7891 = vld [vmem:[#allocation10 + $0xf08] sm:$0xff]
    %v7892 = vld [vmem:[#allocation10 + $0xf10] sm:$0xff]
    %v7893 = vld [vmem:[#allocation10 + $0xf18] sm:$0xff]
    %v7894 = vld [vmem:[#allocation10 + $0xf20] sm:$0xff]
    %v7895 = vld [vmem:[#allocation10 + $0xf28] sm:$0xff]
    %v7896 = vld [vmem:[#allocation10 + $0xf30] sm:$0xff]
    %v7897 = vld [vmem:[#allocation10 + $0xf38] sm:$0xff]
    %v7898 = vld [vmem:[#allocation10 + $0xf40] sm:$0xff]
    %v7899 = vld [vmem:[#allocation10 + $0xf48] sm:$0xff]
    %v7900 = vld [vmem:[#allocation10 + $0xf50] sm:$0xff]
    %v7901 = vld [vmem:[#allocation10 + $0xf58] sm:$0xff]
    %v7902 = vld [vmem:[#allocation10 + $0xf60] sm:$0xff]
    %v7903 = vld [vmem:[#allocation10 + $0xf68] sm:$0xff]
    %v7904 = vld [vmem:[#allocation10 + $0xf70] sm:$0xff]
    %v7905 = vld [vmem:[#allocation10 + $0xf78] sm:$0xff]
    %v7906 = vld [vmem:[#allocation10 + $0xf80] sm:$0xff]
    %v7907 = vld [vmem:[#allocation10 + $0xf88] sm:$0xff]
    %v7908 = vld [vmem:[#allocation10 + $0xf90] sm:$0xff]
    %v7909 = vld [vmem:[#allocation10 + $0xf98] sm:$0xff]
    %v7910 = vld [vmem:[#allocation10 + $0xfa0] sm:$0xff]
    %v7911 = vld [vmem:[#allocation10 + $0xfa8] sm:$0xff]
    %v7912 = vld [vmem:[#allocation10 + $0xfb0] sm:$0xff]
    %v7913 = vld [vmem:[#allocation10 + $0xfb8] sm:$0xff]
    %v7914 = vld [vmem:[#allocation10 + $0xfc0] sm:$0xff]
    %v7915 = vld [vmem:[#allocation10 + $0xfc8] sm:$0xff]
    %v7916 = vld [vmem:[#allocation10 + $0xfd0] sm:$0xff]
    %v7917 = vld [vmem:[#allocation10 + $0xfd8] sm:$0xff]
    %v7918 = vld [vmem:[#allocation10 + $0xfe0] sm:$0xff]
    %v7919 = vld [vmem:[#allocation10 + $0xfe8] sm:$0xff]
    %v7920 = vld [vmem:[#allocation10 + $0xff0] sm:$0xff]
    %v7921 = vld [vmem:[#allocation10 + $0xff8] sm:$0xff]
    %v7922 = vunpack.c.l.bf16 %v7410
    %v7923 = vunpack.c.h.bf16 %v7410
    %v7924 = vunpack.c.l.bf16 %v7411
    %v7925 = vunpack.c.h.bf16 %v7411
    %v7926 = vunpack.c.l.bf16 %v7412
    %v7927 = vunpack.c.h.bf16 %v7412
    %v7928 = vunpack.c.l.bf16 %v7413
    %v7929 = vunpack.c.h.bf16 %v7413
    %v7930 = vunpack.c.l.bf16 %v7414
    %v7931 = vunpack.c.h.bf16 %v7414
    %v7932 = vunpack.c.l.bf16 %v7415
    %v7933 = vunpack.c.h.bf16 %v7415
    %v7934 = vunpack.c.l.bf16 %v7416
    %v7935 = vunpack.c.h.bf16 %v7416
    %v7936 = vunpack.c.l.bf16 %v7417
    %v7937 = vunpack.c.h.bf16 %v7417
    %v7938 = vunpack.c.l.bf16 %v7418
    %v7939 = vunpack.c.h.bf16 %v7418
    %v7940 = vunpack.c.l.bf16 %v7419
    %v7941 = vunpack.c.h.bf16 %v7419
    %v7942 = vunpack.c.l.bf16 %v7420
    %v7943 = vunpack.c.h.bf16 %v7420
    %v7944 = vunpack.c.l.bf16 %v7421
    %v7945 = vunpack.c.h.bf16 %v7421
    %v7946 = vunpack.c.l.bf16 %v7422
    %v7947 = vunpack.c.h.bf16 %v7422
    %v7948 = vunpack.c.l.bf16 %v7423
    %v7949 = vunpack.c.h.bf16 %v7423
    %v7950 = vunpack.c.l.bf16 %v7424
    %v7951 = vunpack.c.h.bf16 %v7424
    %v7952 = vunpack.c.l.bf16 %v7425
    %v7953 = vunpack.c.h.bf16 %v7425
    %v7954 = vunpack.c.l.bf16 %v7426
    %v7955 = vunpack.c.h.bf16 %v7426
    %v7956 = vunpack.c.l.bf16 %v7427
    %v7957 = vunpack.c.h.bf16 %v7427
    %v7958 = vunpack.c.l.bf16 %v7428
    %v7959 = vunpack.c.h.bf16 %v7428
    %v7960 = vunpack.c.l.bf16 %v7429
    %v7961 = vunpack.c.h.bf16 %v7429
    %v7962 = vunpack.c.l.bf16 %v7430
    %v7963 = vunpack.c.h.bf16 %v7430
    %v7964 = vunpack.c.l.bf16 %v7431
    %v7965 = vunpack.c.h.bf16 %v7431
    %v7966 = vunpack.c.l.bf16 %v7432
    %v7967 = vunpack.c.h.bf16 %v7432
    %v7968 = vunpack.c.l.bf16 %v7433
    %v7969 = vunpack.c.h.bf16 %v7433
    %v7970 = vunpack.c.l.bf16 %v7434
    %v7971 = vunpack.c.h.bf16 %v7434
    %v7972 = vunpack.c.l.bf16 %v7435
    %v7973 = vunpack.c.h.bf16 %v7435
    %v7974 = vunpack.c.l.bf16 %v7436
    %v7975 = vunpack.c.h.bf16 %v7436
    %v7976 = vunpack.c.l.bf16 %v7437
    %v7977 = vunpack.c.h.bf16 %v7437
    %v7978 = vunpack.c.l.bf16 %v7438
    %v7979 = vunpack.c.h.bf16 %v7438
    %v7980 = vunpack.c.l.bf16 %v7439
    %v7981 = vunpack.c.h.bf16 %v7439
    %v7982 = vunpack.c.l.bf16 %v7440
    %v7983 = vunpack.c.h.bf16 %v7440
    %v7984 = vunpack.c.l.bf16 %v7441
    %v7985 = vunpack.c.h.bf16 %v7441
    %v7986 = vunpack.c.l.bf16 %v7442
    %v7987 = vunpack.c.h.bf16 %v7442
    %v7988 = vunpack.c.l.bf16 %v7443
    %v7989 = vunpack.c.h.bf16 %v7443
    %v7990 = vunpack.c.l.bf16 %v7444
    %v7991 = vunpack.c.h.bf16 %v7444
    %v7992 = vunpack.c.l.bf16 %v7445
    %v7993 = vunpack.c.h.bf16 %v7445
    %v7994 = vunpack.c.l.bf16 %v7446
    %v7995 = vunpack.c.h.bf16 %v7446
    %v7996 = vunpack.c.l.bf16 %v7447
    %v7997 = vunpack.c.h.bf16 %v7447
    %v7998 = vunpack.c.l.bf16 %v7448
    %v7999 = vunpack.c.h.bf16 %v7448
    %v8000 = vunpack.c.l.bf16 %v7449
    %v8001 = vunpack.c.h.bf16 %v7449
    %v8002 = vunpack.c.l.bf16 %v7450
    %v8003 = vunpack.c.h.bf16 %v7450
    %v8004 = vunpack.c.l.bf16 %v7451
    %v8005 = vunpack.c.h.bf16 %v7451
    %v8006 = vunpack.c.l.bf16 %v7452
    %v8007 = vunpack.c.h.bf16 %v7452
    %v8008 = vunpack.c.l.bf16 %v7453
    %v8009 = vunpack.c.h.bf16 %v7453
    %v8010 = vunpack.c.l.bf16 %v7454
    %v8011 = vunpack.c.h.bf16 %v7454
    %v8012 = vunpack.c.l.bf16 %v7455
    %v8013 = vunpack.c.h.bf16 %v7455
    %v8014 = vunpack.c.l.bf16 %v7456
    %v8015 = vunpack.c.h.bf16 %v7456
    %v8016 = vunpack.c.l.bf16 %v7457
    %v8017 = vunpack.c.h.bf16 %v7457
    %v8018 = vunpack.c.l.bf16 %v7458
    %v8019 = vunpack.c.h.bf16 %v7458
    %v8020 = vunpack.c.l.bf16 %v7459
    %v8021 = vunpack.c.h.bf16 %v7459
    %v8022 = vunpack.c.l.bf16 %v7460
    %v8023 = vunpack.c.h.bf16 %v7460
    %v8024 = vunpack.c.l.bf16 %v7461
    %v8025 = vunpack.c.h.bf16 %v7461
    %v8026 = vunpack.c.l.bf16 %v7462
    %v8027 = vunpack.c.h.bf16 %v7462
    %v8028 = vunpack.c.l.bf16 %v7463
    %v8029 = vunpack.c.h.bf16 %v7463
    %v8030 = vunpack.c.l.bf16 %v7464
    %v8031 = vunpack.c.h.bf16 %v7464
    %v8032 = vunpack.c.l.bf16 %v7465
    %v8033 = vunpack.c.h.bf16 %v7465
    %v8034 = vunpack.c.l.bf16 %v7466
    %v8035 = vunpack.c.h.bf16 %v7466
    %v8036 = vunpack.c.l.bf16 %v7467
    %v8037 = vunpack.c.h.bf16 %v7467
    %v8038 = vunpack.c.l.bf16 %v7468
    %v8039 = vunpack.c.h.bf16 %v7468
    %v8040 = vunpack.c.l.bf16 %v7469
    %v8041 = vunpack.c.h.bf16 %v7469
    %v8042 = vunpack.c.l.bf16 %v7470
    %v8043 = vunpack.c.h.bf16 %v7470
    %v8044 = vunpack.c.l.bf16 %v7471
    %v8045 = vunpack.c.h.bf16 %v7471
    %v8046 = vunpack.c.l.bf16 %v7472
    %v8047 = vunpack.c.h.bf16 %v7472
    %v8048 = vunpack.c.l.bf16 %v7473
    %v8049 = vunpack.c.h.bf16 %v7473
    %v8050 = vunpack.c.l.bf16 %v7474
    %v8051 = vunpack.c.h.bf16 %v7474
    %v8052 = vunpack.c.l.bf16 %v7475
    %v8053 = vunpack.c.h.bf16 %v7475
    %v8054 = vunpack.c.l.bf16 %v7476
    %v8055 = vunpack.c.h.bf16 %v7476
    %v8056 = vunpack.c.l.bf16 %v7477
    %v8057 = vunpack.c.h.bf16 %v7477
    %v8058 = vunpack.c.l.bf16 %v7478
    %v8059 = vunpack.c.h.bf16 %v7478
    %v8060 = vunpack.c.l.bf16 %v7479
    %v8061 = vunpack.c.h.bf16 %v7479
    %v8062 = vunpack.c.l.bf16 %v7480
    %v8063 = vunpack.c.h.bf16 %v7480
    %v8064 = vunpack.c.l.bf16 %v7481
    %v8065 = vunpack.c.h.bf16 %v7481
    %v8066 = vunpack.c.l.bf16 %v7482
    %v8067 = vunpack.c.h.bf16 %v7482
    %v8068 = vunpack.c.l.bf16 %v7483
    %v8069 = vunpack.c.h.bf16 %v7483
    %v8070 = vunpack.c.l.bf16 %v7484
    %v8071 = vunpack.c.h.bf16 %v7484
    %v8072 = vunpack.c.l.bf16 %v7485
    %v8073 = vunpack.c.h.bf16 %v7485
    %v8074 = vunpack.c.l.bf16 %v7486
    %v8075 = vunpack.c.h.bf16 %v7486
    %v8076 = vunpack.c.l.bf16 %v7487
    %v8077 = vunpack.c.h.bf16 %v7487
    %v8078 = vunpack.c.l.bf16 %v7488
    %v8079 = vunpack.c.h.bf16 %v7488
    %v8080 = vunpack.c.l.bf16 %v7489
    %v8081 = vunpack.c.h.bf16 %v7489
    %v8082 = vunpack.c.l.bf16 %v7490
    %v8083 = vunpack.c.h.bf16 %v7490
    %v8084 = vunpack.c.l.bf16 %v7491
    %v8085 = vunpack.c.h.bf16 %v7491
    %v8086 = vunpack.c.l.bf16 %v7492
    %v8087 = vunpack.c.h.bf16 %v7492
    %v8088 = vunpack.c.l.bf16 %v7493
    %v8089 = vunpack.c.h.bf16 %v7493
    %v8090 = vunpack.c.l.bf16 %v7494
    %v8091 = vunpack.c.h.bf16 %v7494
    %v8092 = vunpack.c.l.bf16 %v7495
    %v8093 = vunpack.c.h.bf16 %v7495
    %v8094 = vunpack.c.l.bf16 %v7496
    %v8095 = vunpack.c.h.bf16 %v7496
    %v8096 = vunpack.c.l.bf16 %v7497
    %v8097 = vunpack.c.h.bf16 %v7497
    %v8098 = vunpack.c.l.bf16 %v7498
    %v8099 = vunpack.c.h.bf16 %v7498
    %v8100 = vunpack.c.l.bf16 %v7499
    %v8101 = vunpack.c.h.bf16 %v7499
    %v8102 = vunpack.c.l.bf16 %v7500
    %v8103 = vunpack.c.h.bf16 %v7500
    %v8104 = vunpack.c.l.bf16 %v7501
    %v8105 = vunpack.c.h.bf16 %v7501
    %v8106 = vunpack.c.l.bf16 %v7502
    %v8107 = vunpack.c.h.bf16 %v7502
    %v8108 = vunpack.c.l.bf16 %v7503
    %v8109 = vunpack.c.h.bf16 %v7503
    %v8110 = vunpack.c.l.bf16 %v7504
    %v8111 = vunpack.c.h.bf16 %v7504
    %v8112 = vunpack.c.l.bf16 %v7505
    %v8113 = vunpack.c.h.bf16 %v7505
    %v8114 = vunpack.c.l.bf16 %v7506
    %v8115 = vunpack.c.h.bf16 %v7506
    %v8116 = vunpack.c.l.bf16 %v7507
    %v8117 = vunpack.c.h.bf16 %v7507
    %v8118 = vunpack.c.l.bf16 %v7508
    %v8119 = vunpack.c.h.bf16 %v7508
    %v8120 = vunpack.c.l.bf16 %v7509
    %v8121 = vunpack.c.h.bf16 %v7509
    %v8122 = vunpack.c.l.bf16 %v7510
    %v8123 = vunpack.c.h.bf16 %v7510
    %v8124 = vunpack.c.l.bf16 %v7511
    %v8125 = vunpack.c.h.bf16 %v7511
    %v8126 = vunpack.c.l.bf16 %v7512
    %v8127 = vunpack.c.h.bf16 %v7512
    %v8128 = vunpack.c.l.bf16 %v7513
    %v8129 = vunpack.c.h.bf16 %v7513
    %v8130 = vunpack.c.l.bf16 %v7514
    %v8131 = vunpack.c.h.bf16 %v7514
    %v8132 = vunpack.c.l.bf16 %v7515
    %v8133 = vunpack.c.h.bf16 %v7515
    %v8134 = vunpack.c.l.bf16 %v7516
    %v8135 = vunpack.c.h.bf16 %v7516
    %v8136 = vunpack.c.l.bf16 %v7517
    %v8137 = vunpack.c.h.bf16 %v7517
    %v8138 = vunpack.c.l.bf16 %v7518
    %v8139 = vunpack.c.h.bf16 %v7518
    %v8140 = vunpack.c.l.bf16 %v7519
    %v8141 = vunpack.c.h.bf16 %v7519
    %v8142 = vunpack.c.l.bf16 %v7520
    %v8143 = vunpack.c.h.bf16 %v7520
    %v8144 = vunpack.c.l.bf16 %v7521
    %v8145 = vunpack.c.h.bf16 %v7521
    %v8146 = vunpack.c.l.bf16 %v7522
    %v8147 = vunpack.c.h.bf16 %v7522
    %v8148 = vunpack.c.l.bf16 %v7523
    %v8149 = vunpack.c.h.bf16 %v7523
    %v8150 = vunpack.c.l.bf16 %v7524
    %v8151 = vunpack.c.h.bf16 %v7524
    %v8152 = vunpack.c.l.bf16 %v7525
    %v8153 = vunpack.c.h.bf16 %v7525
    %v8154 = vunpack.c.l.bf16 %v7526
    %v8155 = vunpack.c.h.bf16 %v7526
    %v8156 = vunpack.c.l.bf16 %v7527
    %v8157 = vunpack.c.h.bf16 %v7527
    %v8158 = vunpack.c.l.bf16 %v7528
    %v8159 = vunpack.c.h.bf16 %v7528
    %v8160 = vunpack.c.l.bf16 %v7529
    %v8161 = vunpack.c.h.bf16 %v7529
    %v8162 = vunpack.c.l.bf16 %v7530
    %v8163 = vunpack.c.h.bf16 %v7530
    %v8164 = vunpack.c.l.bf16 %v7531
    %v8165 = vunpack.c.h.bf16 %v7531
    %v8166 = vunpack.c.l.bf16 %v7532
    %v8167 = vunpack.c.h.bf16 %v7532
    %v8168 = vunpack.c.l.bf16 %v7533
    %v8169 = vunpack.c.h.bf16 %v7533
    %v8170 = vunpack.c.l.bf16 %v7534
    %v8171 = vunpack.c.h.bf16 %v7534
    %v8172 = vunpack.c.l.bf16 %v7535
    %v8173 = vunpack.c.h.bf16 %v7535
    %v8174 = vunpack.c.l.bf16 %v7536
    %v8175 = vunpack.c.h.bf16 %v7536
    %v8176 = vunpack.c.l.bf16 %v7537
    %v8177 = vunpack.c.h.bf16 %v7537
    %v8178 = vunpack.c.l.bf16 %v7538
    %v8179 = vunpack.c.h.bf16 %v7538
    %v8180 = vunpack.c.l.bf16 %v7539
    %v8181 = vunpack.c.h.bf16 %v7539
    %v8182 = vunpack.c.l.bf16 %v7540
    %v8183 = vunpack.c.h.bf16 %v7540
    %v8184 = vunpack.c.l.bf16 %v7541
    %v8185 = vunpack.c.h.bf16 %v7541
    %v8186 = vunpack.c.l.bf16 %v7542
    %v8187 = vunpack.c.h.bf16 %v7542
    %v8188 = vunpack.c.l.bf16 %v7543
    %v8189 = vunpack.c.h.bf16 %v7543
    %v8190 = vunpack.c.l.bf16 %v7544
    %v8191 = vunpack.c.h.bf16 %v7544
    %v8192 = vunpack.c.l.bf16 %v7545
    %v8193 = vunpack.c.h.bf16 %v7545
    %v8194 = vunpack.c.l.bf16 %v7546
    %v8195 = vunpack.c.h.bf16 %v7546
    %v8196 = vunpack.c.l.bf16 %v7547
    %v8197 = vunpack.c.h.bf16 %v7547
    %v8198 = vunpack.c.l.bf16 %v7548
    %v8199 = vunpack.c.h.bf16 %v7548
    %v8200 = vunpack.c.l.bf16 %v7549
    %v8201 = vunpack.c.h.bf16 %v7549
    %v8202 = vunpack.c.l.bf16 %v7550
    %v8203 = vunpack.c.h.bf16 %v7550
    %v8204 = vunpack.c.l.bf16 %v7551
    %v8205 = vunpack.c.h.bf16 %v7551
    %v8206 = vunpack.c.l.bf16 %v7552
    %v8207 = vunpack.c.h.bf16 %v7552
    %v8208 = vunpack.c.l.bf16 %v7553
    %v8209 = vunpack.c.h.bf16 %v7553
    %v8210 = vunpack.c.l.bf16 %v7554
    %v8211 = vunpack.c.h.bf16 %v7554
    %v8212 = vunpack.c.l.bf16 %v7555
    %v8213 = vunpack.c.h.bf16 %v7555
    %v8214 = vunpack.c.l.bf16 %v7556
    %v8215 = vunpack.c.h.bf16 %v7556
    %v8216 = vunpack.c.l.bf16 %v7557
    %v8217 = vunpack.c.h.bf16 %v7557
    %v8218 = vunpack.c.l.bf16 %v7558
    %v8219 = vunpack.c.h.bf16 %v7558
    %v8220 = vunpack.c.l.bf16 %v7559
    %v8221 = vunpack.c.h.bf16 %v7559
    %v8222 = vunpack.c.l.bf16 %v7560
    %v8223 = vunpack.c.h.bf16 %v7560
    %v8224 = vunpack.c.l.bf16 %v7561
    %v8225 = vunpack.c.h.bf16 %v7561
    %v8226 = vunpack.c.l.bf16 %v7562
    %v8227 = vunpack.c.h.bf16 %v7562
    %v8228 = vunpack.c.l.bf16 %v7563
    %v8229 = vunpack.c.h.bf16 %v7563
    %v8230 = vunpack.c.l.bf16 %v7564
    %v8231 = vunpack.c.h.bf16 %v7564
    %v8232 = vunpack.c.l.bf16 %v7565
    %v8233 = vunpack.c.h.bf16 %v7565
    %v8234 = vunpack.c.l.bf16 %v7566
    %v8235 = vunpack.c.h.bf16 %v7566
    %v8236 = vunpack.c.l.bf16 %v7567
    %v8237 = vunpack.c.h.bf16 %v7567
    %v8238 = vunpack.c.l.bf16 %v7568
    %v8239 = vunpack.c.h.bf16 %v7568
    %v8240 = vunpack.c.l.bf16 %v7569
    %v8241 = vunpack.c.h.bf16 %v7569
    %v8242 = vunpack.c.l.bf16 %v7570
    %v8243 = vunpack.c.h.bf16 %v7570
    %v8244 = vunpack.c.l.bf16 %v7571
    %v8245 = vunpack.c.h.bf16 %v7571
    %v8246 = vunpack.c.l.bf16 %v7572
    %v8247 = vunpack.c.h.bf16 %v7572
    %v8248 = vunpack.c.l.bf16 %v7573
    %v8249 = vunpack.c.h.bf16 %v7573
    %v8250 = vunpack.c.l.bf16 %v7574
    %v8251 = vunpack.c.h.bf16 %v7574
    %v8252 = vunpack.c.l.bf16 %v7575
    %v8253 = vunpack.c.h.bf16 %v7575
    %v8254 = vunpack.c.l.bf16 %v7576
    %v8255 = vunpack.c.h.bf16 %v7576
    %v8256 = vunpack.c.l.bf16 %v7577
    %v8257 = vunpack.c.h.bf16 %v7577
    %v8258 = vunpack.c.l.bf16 %v7578
    %v8259 = vunpack.c.h.bf16 %v7578
    %v8260 = vunpack.c.l.bf16 %v7579
    %v8261 = vunpack.c.h.bf16 %v7579
    %v8262 = vunpack.c.l.bf16 %v7580
    %v8263 = vunpack.c.h.bf16 %v7580
    %v8264 = vunpack.c.l.bf16 %v7581
    %v8265 = vunpack.c.h.bf16 %v7581
    %v8266 = vunpack.c.l.bf16 %v7582
    %v8267 = vunpack.c.h.bf16 %v7582
    %v8268 = vunpack.c.l.bf16 %v7583
    %v8269 = vunpack.c.h.bf16 %v7583
    %v8270 = vunpack.c.l.bf16 %v7584
    %v8271 = vunpack.c.h.bf16 %v7584
    %v8272 = vunpack.c.l.bf16 %v7585
    %v8273 = vunpack.c.h.bf16 %v7585
    %v8274 = vunpack.c.l.bf16 %v7586
    %v8275 = vunpack.c.h.bf16 %v7586
    %v8276 = vunpack.c.l.bf16 %v7587
    %v8277 = vunpack.c.h.bf16 %v7587
    %v8278 = vunpack.c.l.bf16 %v7588
    %v8279 = vunpack.c.h.bf16 %v7588
    %v8280 = vunpack.c.l.bf16 %v7589
    %v8281 = vunpack.c.h.bf16 %v7589
    %v8282 = vunpack.c.l.bf16 %v7590
    %v8283 = vunpack.c.h.bf16 %v7590
    %v8284 = vunpack.c.l.bf16 %v7591
    %v8285 = vunpack.c.h.bf16 %v7591
    %v8286 = vunpack.c.l.bf16 %v7592
    %v8287 = vunpack.c.h.bf16 %v7592
    %v8288 = vunpack.c.l.bf16 %v7593
    %v8289 = vunpack.c.h.bf16 %v7593
    %v8290 = vunpack.c.l.bf16 %v7594
    %v8291 = vunpack.c.h.bf16 %v7594
    %v8292 = vunpack.c.l.bf16 %v7595
    %v8293 = vunpack.c.h.bf16 %v7595
    %v8294 = vunpack.c.l.bf16 %v7596
    %v8295 = vunpack.c.h.bf16 %v7596
    %v8296 = vunpack.c.l.bf16 %v7597
    %v8297 = vunpack.c.h.bf16 %v7597
    %v8298 = vunpack.c.l.bf16 %v7598
    %v8299 = vunpack.c.h.bf16 %v7598
    %v8300 = vunpack.c.l.bf16 %v7599
    %v8301 = vunpack.c.h.bf16 %v7599
    %v8302 = vunpack.c.l.bf16 %v7600
    %v8303 = vunpack.c.h.bf16 %v7600
    %v8304 = vunpack.c.l.bf16 %v7601
    %v8305 = vunpack.c.h.bf16 %v7601
    %v8306 = vunpack.c.l.bf16 %v7602
    %v8307 = vunpack.c.h.bf16 %v7602
    %v8308 = vunpack.c.l.bf16 %v7603
    %v8309 = vunpack.c.h.bf16 %v7603
    %v8310 = vunpack.c.l.bf16 %v7604
    %v8311 = vunpack.c.h.bf16 %v7604
    %v8312 = vunpack.c.l.bf16 %v7605
    %v8313 = vunpack.c.h.bf16 %v7605
    %v8314 = vunpack.c.l.bf16 %v7606
    %v8315 = vunpack.c.h.bf16 %v7606
    %v8316 = vunpack.c.l.bf16 %v7607
    %v8317 = vunpack.c.h.bf16 %v7607
    %v8318 = vunpack.c.l.bf16 %v7608
    %v8319 = vunpack.c.h.bf16 %v7608
    %v8320 = vunpack.c.l.bf16 %v7609
    %v8321 = vunpack.c.h.bf16 %v7609
    %v8322 = vunpack.c.l.bf16 %v7610
    %v8323 = vunpack.c.h.bf16 %v7610
    %v8324 = vunpack.c.l.bf16 %v7611
    %v8325 = vunpack.c.h.bf16 %v7611
    %v8326 = vunpack.c.l.bf16 %v7612
    %v8327 = vunpack.c.h.bf16 %v7612
    %v8328 = vunpack.c.l.bf16 %v7613
    %v8329 = vunpack.c.h.bf16 %v7613
    %v8330 = vunpack.c.l.bf16 %v7614
    %v8331 = vunpack.c.h.bf16 %v7614
    %v8332 = vunpack.c.l.bf16 %v7615
    %v8333 = vunpack.c.h.bf16 %v7615
    %v8334 = vunpack.c.l.bf16 %v7616
    %v8335 = vunpack.c.h.bf16 %v7616
    %v8336 = vunpack.c.l.bf16 %v7617
    %v8337 = vunpack.c.h.bf16 %v7617
    %v8338 = vunpack.c.l.bf16 %v7618
    %v8339 = vunpack.c.h.bf16 %v7618
    %v8340 = vunpack.c.l.bf16 %v7619
    %v8341 = vunpack.c.h.bf16 %v7619
    %v8342 = vunpack.c.l.bf16 %v7620
    %v8343 = vunpack.c.h.bf16 %v7620
    %v8344 = vunpack.c.l.bf16 %v7621
    %v8345 = vunpack.c.h.bf16 %v7621
    %v8346 = vunpack.c.l.bf16 %v7622
    %v8347 = vunpack.c.h.bf16 %v7622
    %v8348 = vunpack.c.l.bf16 %v7623
    %v8349 = vunpack.c.h.bf16 %v7623
    %v8350 = vunpack.c.l.bf16 %v7624
    %v8351 = vunpack.c.h.bf16 %v7624
    %v8352 = vunpack.c.l.bf16 %v7625
    %v8353 = vunpack.c.h.bf16 %v7625
    %v8354 = vunpack.c.l.bf16 %v7626
    %v8355 = vunpack.c.h.bf16 %v7626
    %v8356 = vunpack.c.l.bf16 %v7627
    %v8357 = vunpack.c.h.bf16 %v7627
    %v8358 = vunpack.c.l.bf16 %v7628
    %v8359 = vunpack.c.h.bf16 %v7628
    %v8360 = vunpack.c.l.bf16 %v7629
    %v8361 = vunpack.c.h.bf16 %v7629
    %v8362 = vunpack.c.l.bf16 %v7630
    %v8363 = vunpack.c.h.bf16 %v7630
    %v8364 = vunpack.c.l.bf16 %v7631
    %v8365 = vunpack.c.h.bf16 %v7631
    %v8366 = vunpack.c.l.bf16 %v7632
    %v8367 = vunpack.c.h.bf16 %v7632
    %v8368 = vunpack.c.l.bf16 %v7633
    %v8369 = vunpack.c.h.bf16 %v7633
    %v8370 = vunpack.c.l.bf16 %v7634
    %v8371 = vunpack.c.h.bf16 %v7634
    %v8372 = vunpack.c.l.bf16 %v7635
    %v8373 = vunpack.c.h.bf16 %v7635
    %v8374 = vunpack.c.l.bf16 %v7636
    %v8375 = vunpack.c.h.bf16 %v7636
    %v8376 = vunpack.c.l.bf16 %v7637
    %v8377 = vunpack.c.h.bf16 %v7637
    %v8378 = vunpack.c.l.bf16 %v7638
    %v8379 = vunpack.c.h.bf16 %v7638
    %v8380 = vunpack.c.l.bf16 %v7639
    %v8381 = vunpack.c.h.bf16 %v7639
    %v8382 = vunpack.c.l.bf16 %v7640
    %v8383 = vunpack.c.h.bf16 %v7640
    %v8384 = vunpack.c.l.bf16 %v7641
    %v8385 = vunpack.c.h.bf16 %v7641
    %v8386 = vunpack.c.l.bf16 %v7642
    %v8387 = vunpack.c.h.bf16 %v7642
    %v8388 = vunpack.c.l.bf16 %v7643
    %v8389 = vunpack.c.h.bf16 %v7643
    %v8390 = vunpack.c.l.bf16 %v7644
    %v8391 = vunpack.c.h.bf16 %v7644
    %v8392 = vunpack.c.l.bf16 %v7645
    %v8393 = vunpack.c.h.bf16 %v7645
    %v8394 = vunpack.c.l.bf16 %v7646
    %v8395 = vunpack.c.h.bf16 %v7646
    %v8396 = vunpack.c.l.bf16 %v7647
    %v8397 = vunpack.c.h.bf16 %v7647
    %v8398 = vunpack.c.l.bf16 %v7648
    %v8399 = vunpack.c.h.bf16 %v7648
    %v8400 = vunpack.c.l.bf16 %v7649
    %v8401 = vunpack.c.h.bf16 %v7649
    %v8402 = vunpack.c.l.bf16 %v7650
    %v8403 = vunpack.c.h.bf16 %v7650
    %v8404 = vunpack.c.l.bf16 %v7651
    %v8405 = vunpack.c.h.bf16 %v7651
    %v8406 = vunpack.c.l.bf16 %v7652
    %v8407 = vunpack.c.h.bf16 %v7652
    %v8408 = vunpack.c.l.bf16 %v7653
    %v8409 = vunpack.c.h.bf16 %v7653
    %v8410 = vunpack.c.l.bf16 %v7654
    %v8411 = vunpack.c.h.bf16 %v7654
    %v8412 = vunpack.c.l.bf16 %v7655
    %v8413 = vunpack.c.h.bf16 %v7655
    %v8414 = vunpack.c.l.bf16 %v7656
    %v8415 = vunpack.c.h.bf16 %v7656
    %v8416 = vunpack.c.l.bf16 %v7657
    %v8417 = vunpack.c.h.bf16 %v7657
    %v8418 = vunpack.c.l.bf16 %v7658
    %v8419 = vunpack.c.h.bf16 %v7658
    %v8420 = vunpack.c.l.bf16 %v7659
    %v8421 = vunpack.c.h.bf16 %v7659
    %v8422 = vunpack.c.l.bf16 %v7660
    %v8423 = vunpack.c.h.bf16 %v7660
    %v8424 = vunpack.c.l.bf16 %v7661
    %v8425 = vunpack.c.h.bf16 %v7661
    %v8426 = vunpack.c.l.bf16 %v7662
    %v8427 = vunpack.c.h.bf16 %v7662
    %v8428 = vunpack.c.l.bf16 %v7663
    %v8429 = vunpack.c.h.bf16 %v7663
    %v8430 = vunpack.c.l.bf16 %v7664
    %v8431 = vunpack.c.h.bf16 %v7664
    %v8432 = vunpack.c.l.bf16 %v7665
    %v8433 = vunpack.c.h.bf16 %v7665
    %v8434 = vunpack.c.l.bf16 %v7666
    %v8435 = vunpack.c.h.bf16 %v7666
    %v8436 = vunpack.c.l.bf16 %v7667
    %v8437 = vunpack.c.h.bf16 %v7667
    %v8438 = vunpack.c.l.bf16 %v7668
    %v8439 = vunpack.c.h.bf16 %v7668
    %v8440 = vunpack.c.l.bf16 %v7669
    %v8441 = vunpack.c.h.bf16 %v7669
    %v8442 = vunpack.c.l.bf16 %v7670
    %v8443 = vunpack.c.h.bf16 %v7670
    %v8444 = vunpack.c.l.bf16 %v7671
    %v8445 = vunpack.c.h.bf16 %v7671
    %v8446 = vunpack.c.l.bf16 %v7672
    %v8447 = vunpack.c.h.bf16 %v7672
    %v8448 = vunpack.c.l.bf16 %v7673
    %v8449 = vunpack.c.h.bf16 %v7673
    %v8450 = vunpack.c.l.bf16 %v7674
    %v8451 = vunpack.c.h.bf16 %v7674
    %v8452 = vunpack.c.l.bf16 %v7675
    %v8453 = vunpack.c.h.bf16 %v7675
    %v8454 = vunpack.c.l.bf16 %v7676
    %v8455 = vunpack.c.h.bf16 %v7676
    %v8456 = vunpack.c.l.bf16 %v7677
    %v8457 = vunpack.c.h.bf16 %v7677
    %v8458 = vunpack.c.l.bf16 %v7678
    %v8459 = vunpack.c.h.bf16 %v7678
    %v8460 = vunpack.c.l.bf16 %v7679
    %v8461 = vunpack.c.h.bf16 %v7679
    %v8462 = vunpack.c.l.bf16 %v7680
    %v8463 = vunpack.c.h.bf16 %v7680
    %v8464 = vunpack.c.l.bf16 %v7681
    %v8465 = vunpack.c.h.bf16 %v7681
    %v8466 = vunpack.c.l.bf16 %v7682
    %v8467 = vunpack.c.h.bf16 %v7682
    %v8468 = vunpack.c.l.bf16 %v7683
    %v8469 = vunpack.c.h.bf16 %v7683
    %v8470 = vunpack.c.l.bf16 %v7684
    %v8471 = vunpack.c.h.bf16 %v7684
    %v8472 = vunpack.c.l.bf16 %v7685
    %v8473 = vunpack.c.h.bf16 %v7685
    %v8474 = vunpack.c.l.bf16 %v7686
    %v8475 = vunpack.c.h.bf16 %v7686
    %v8476 = vunpack.c.l.bf16 %v7687
    %v8477 = vunpack.c.h.bf16 %v7687
    %v8478 = vunpack.c.l.bf16 %v7688
    %v8479 = vunpack.c.h.bf16 %v7688
    %v8480 = vunpack.c.l.bf16 %v7689
    %v8481 = vunpack.c.h.bf16 %v7689
    %v8482 = vunpack.c.l.bf16 %v7690
    %v8483 = vunpack.c.h.bf16 %v7690
    %v8484 = vunpack.c.l.bf16 %v7691
    %v8485 = vunpack.c.h.bf16 %v7691
    %v8486 = vunpack.c.l.bf16 %v7692
    %v8487 = vunpack.c.h.bf16 %v7692
    %v8488 = vunpack.c.l.bf16 %v7693
    %v8489 = vunpack.c.h.bf16 %v7693
    %v8490 = vunpack.c.l.bf16 %v7694
    %v8491 = vunpack.c.h.bf16 %v7694
    %v8492 = vunpack.c.l.bf16 %v7695
    %v8493 = vunpack.c.h.bf16 %v7695
    %v8494 = vunpack.c.l.bf16 %v7696
    %v8495 = vunpack.c.h.bf16 %v7696
    %v8496 = vunpack.c.l.bf16 %v7697
    %v8497 = vunpack.c.h.bf16 %v7697
    %v8498 = vunpack.c.l.bf16 %v7698
    %v8499 = vunpack.c.h.bf16 %v7698
    %v8500 = vunpack.c.l.bf16 %v7699
    %v8501 = vunpack.c.h.bf16 %v7699
    %v8502 = vunpack.c.l.bf16 %v7700
    %v8503 = vunpack.c.h.bf16 %v7700
    %v8504 = vunpack.c.l.bf16 %v7701
    %v8505 = vunpack.c.h.bf16 %v7701
    %v8506 = vunpack.c.l.bf16 %v7702
    %v8507 = vunpack.c.h.bf16 %v7702
    %v8508 = vunpack.c.l.bf16 %v7703
    %v8509 = vunpack.c.h.bf16 %v7703
    %v8510 = vunpack.c.l.bf16 %v7704
    %v8511 = vunpack.c.h.bf16 %v7704
    %v8512 = vunpack.c.l.bf16 %v7705
    %v8513 = vunpack.c.h.bf16 %v7705
    %v8514 = vunpack.c.l.bf16 %v7706
    %v8515 = vunpack.c.h.bf16 %v7706
    %v8516 = vunpack.c.l.bf16 %v7707
    %v8517 = vunpack.c.h.bf16 %v7707
    %v8518 = vunpack.c.l.bf16 %v7708
    %v8519 = vunpack.c.h.bf16 %v7708
    %v8520 = vunpack.c.l.bf16 %v7709
    %v8521 = vunpack.c.h.bf16 %v7709
    %v8522 = vunpack.c.l.bf16 %v7710
    %v8523 = vunpack.c.h.bf16 %v7710
    %v8524 = vunpack.c.l.bf16 %v7711
    %v8525 = vunpack.c.h.bf16 %v7711
    %v8526 = vunpack.c.l.bf16 %v7712
    %v8527 = vunpack.c.h.bf16 %v7712
    %v8528 = vunpack.c.l.bf16 %v7713
    %v8529 = vunpack.c.h.bf16 %v7713
    %v8530 = vunpack.c.l.bf16 %v7714
    %v8531 = vunpack.c.h.bf16 %v7714
    %v8532 = vunpack.c.l.bf16 %v7715
    %v8533 = vunpack.c.h.bf16 %v7715
    %v8534 = vunpack.c.l.bf16 %v7716
    %v8535 = vunpack.c.h.bf16 %v7716
    %v8536 = vunpack.c.l.bf16 %v7717
    %v8537 = vunpack.c.h.bf16 %v7717
    %v8538 = vunpack.c.l.bf16 %v7718
    %v8539 = vunpack.c.h.bf16 %v7718
    %v8540 = vunpack.c.l.bf16 %v7719
    %v8541 = vunpack.c.h.bf16 %v7719
    %v8542 = vunpack.c.l.bf16 %v7720
    %v8543 = vunpack.c.h.bf16 %v7720
    %v8544 = vunpack.c.l.bf16 %v7721
    %v8545 = vunpack.c.h.bf16 %v7721
    %v8546 = vunpack.c.l.bf16 %v7722
    %v8547 = vunpack.c.h.bf16 %v7722
    %v8548 = vunpack.c.l.bf16 %v7723
    %v8549 = vunpack.c.h.bf16 %v7723
    %v8550 = vunpack.c.l.bf16 %v7724
    %v8551 = vunpack.c.h.bf16 %v7724
    %v8552 = vunpack.c.l.bf16 %v7725
    %v8553 = vunpack.c.h.bf16 %v7725
    %v8554 = vunpack.c.l.bf16 %v7726
    %v8555 = vunpack.c.h.bf16 %v7726
    %v8556 = vunpack.c.l.bf16 %v7727
    %v8557 = vunpack.c.h.bf16 %v7727
    %v8558 = vunpack.c.l.bf16 %v7728
    %v8559 = vunpack.c.h.bf16 %v7728
    %v8560 = vunpack.c.l.bf16 %v7729
    %v8561 = vunpack.c.h.bf16 %v7729
    %v8562 = vunpack.c.l.bf16 %v7730
    %v8563 = vunpack.c.h.bf16 %v7730
    %v8564 = vunpack.c.l.bf16 %v7731
    %v8565 = vunpack.c.h.bf16 %v7731
    %v8566 = vunpack.c.l.bf16 %v7732
    %v8567 = vunpack.c.h.bf16 %v7732
    %v8568 = vunpack.c.l.bf16 %v7733
    %v8569 = vunpack.c.h.bf16 %v7733
    %v8570 = vunpack.c.l.bf16 %v7734
    %v8571 = vunpack.c.h.bf16 %v7734
    %v8572 = vunpack.c.l.bf16 %v7735
    %v8573 = vunpack.c.h.bf16 %v7735
    %v8574 = vunpack.c.l.bf16 %v7736
    %v8575 = vunpack.c.h.bf16 %v7736
    %v8576 = vunpack.c.l.bf16 %v7737
    %v8577 = vunpack.c.h.bf16 %v7737
    %v8578 = vunpack.c.l.bf16 %v7738
    %v8579 = vunpack.c.h.bf16 %v7738
    %v8580 = vunpack.c.l.bf16 %v7739
    %v8581 = vunpack.c.h.bf16 %v7739
    %v8582 = vunpack.c.l.bf16 %v7740
    %v8583 = vunpack.c.h.bf16 %v7740
    %v8584 = vunpack.c.l.bf16 %v7741
    %v8585 = vunpack.c.h.bf16 %v7741
    %v8586 = vunpack.c.l.bf16 %v7742
    %v8587 = vunpack.c.h.bf16 %v7742
    %v8588 = vunpack.c.l.bf16 %v7743
    %v8589 = vunpack.c.h.bf16 %v7743
    %v8590 = vunpack.c.l.bf16 %v7744
    %v8591 = vunpack.c.h.bf16 %v7744
    %v8592 = vunpack.c.l.bf16 %v7745
    %v8593 = vunpack.c.h.bf16 %v7745
    %v8594 = vunpack.c.l.bf16 %v7746
    %v8595 = vunpack.c.h.bf16 %v7746
    %v8596 = vunpack.c.l.bf16 %v7747
    %v8597 = vunpack.c.h.bf16 %v7747
    %v8598 = vunpack.c.l.bf16 %v7748
    %v8599 = vunpack.c.h.bf16 %v7748
    %v8600 = vunpack.c.l.bf16 %v7749
    %v8601 = vunpack.c.h.bf16 %v7749
    %v8602 = vunpack.c.l.bf16 %v7750
    %v8603 = vunpack.c.h.bf16 %v7750
    %v8604 = vunpack.c.l.bf16 %v7751
    %v8605 = vunpack.c.h.bf16 %v7751
    %v8606 = vunpack.c.l.bf16 %v7752
    %v8607 = vunpack.c.h.bf16 %v7752
    %v8608 = vunpack.c.l.bf16 %v7753
    %v8609 = vunpack.c.h.bf16 %v7753
    %v8610 = vunpack.c.l.bf16 %v7754
    %v8611 = vunpack.c.h.bf16 %v7754
    %v8612 = vunpack.c.l.bf16 %v7755
    %v8613 = vunpack.c.h.bf16 %v7755
    %v8614 = vunpack.c.l.bf16 %v7756
    %v8615 = vunpack.c.h.bf16 %v7756
    %v8616 = vunpack.c.l.bf16 %v7757
    %v8617 = vunpack.c.h.bf16 %v7757
    %v8618 = vunpack.c.l.bf16 %v7758
    %v8619 = vunpack.c.h.bf16 %v7758
    %v8620 = vunpack.c.l.bf16 %v7759
    %v8621 = vunpack.c.h.bf16 %v7759
    %v8622 = vunpack.c.l.bf16 %v7760
    %v8623 = vunpack.c.h.bf16 %v7760
    %v8624 = vunpack.c.l.bf16 %v7761
    %v8625 = vunpack.c.h.bf16 %v7761
    %v8626 = vunpack.c.l.bf16 %v7762
    %v8627 = vunpack.c.h.bf16 %v7762
    %v8628 = vunpack.c.l.bf16 %v7763
    %v8629 = vunpack.c.h.bf16 %v7763
    %v8630 = vunpack.c.l.bf16 %v7764
    %v8631 = vunpack.c.h.bf16 %v7764
    %v8632 = vunpack.c.l.bf16 %v7765
    %v8633 = vunpack.c.h.bf16 %v7765
    %v8634 = vunpack.c.l.bf16 %v7766
    %v8635 = vunpack.c.h.bf16 %v7766
    %v8636 = vunpack.c.l.bf16 %v7767
    %v8637 = vunpack.c.h.bf16 %v7767
    %v8638 = vunpack.c.l.bf16 %v7768
    %v8639 = vunpack.c.h.bf16 %v7768
    %v8640 = vunpack.c.l.bf16 %v7769
    %v8641 = vunpack.c.h.bf16 %v7769
    %v8642 = vunpack.c.l.bf16 %v7770
    %v8643 = vunpack.c.h.bf16 %v7770
    %v8644 = vunpack.c.l.bf16 %v7771
    %v8645 = vunpack.c.h.bf16 %v7771
    %v8646 = vunpack.c.l.bf16 %v7772
    %v8647 = vunpack.c.h.bf16 %v7772
    %v8648 = vunpack.c.l.bf16 %v7773
    %v8649 = vunpack.c.h.bf16 %v7773
    %v8650 = vunpack.c.l.bf16 %v7774
    %v8651 = vunpack.c.h.bf16 %v7774
    %v8652 = vunpack.c.l.bf16 %v7775
    %v8653 = vunpack.c.h.bf16 %v7775
    %v8654 = vunpack.c.l.bf16 %v7776
    %v8655 = vunpack.c.h.bf16 %v7776
    %v8656 = vunpack.c.l.bf16 %v7777
    %v8657 = vunpack.c.h.bf16 %v7777
    %v8658 = vunpack.c.l.bf16 %v7778
    %v8659 = vunpack.c.h.bf16 %v7778
    %v8660 = vunpack.c.l.bf16 %v7779
    %v8661 = vunpack.c.h.bf16 %v7779
    %v8662 = vunpack.c.l.bf16 %v7780
    %v8663 = vunpack.c.h.bf16 %v7780
    %v8664 = vunpack.c.l.bf16 %v7781
    %v8665 = vunpack.c.h.bf16 %v7781
    %v8666 = vunpack.c.l.bf16 %v7782
    %v8667 = vunpack.c.h.bf16 %v7782
    %v8668 = vunpack.c.l.bf16 %v7783
    %v8669 = vunpack.c.h.bf16 %v7783
    %v8670 = vunpack.c.l.bf16 %v7784
    %v8671 = vunpack.c.h.bf16 %v7784
    %v8672 = vunpack.c.l.bf16 %v7785
    %v8673 = vunpack.c.h.bf16 %v7785
    %v8674 = vunpack.c.l.bf16 %v7786
    %v8675 = vunpack.c.h.bf16 %v7786
    %v8676 = vunpack.c.l.bf16 %v7787
    %v8677 = vunpack.c.h.bf16 %v7787
    %v8678 = vunpack.c.l.bf16 %v7788
    %v8679 = vunpack.c.h.bf16 %v7788
    %v8680 = vunpack.c.l.bf16 %v7789
    %v8681 = vunpack.c.h.bf16 %v7789
    %v8682 = vunpack.c.l.bf16 %v7790
    %v8683 = vunpack.c.h.bf16 %v7790
    %v8684 = vunpack.c.l.bf16 %v7791
    %v8685 = vunpack.c.h.bf16 %v7791
    %v8686 = vunpack.c.l.bf16 %v7792
    %v8687 = vunpack.c.h.bf16 %v7792
    %v8688 = vunpack.c.l.bf16 %v7793
    %v8689 = vunpack.c.h.bf16 %v7793
    %v8690 = vunpack.c.l.bf16 %v7794
    %v8691 = vunpack.c.h.bf16 %v7794
    %v8692 = vunpack.c.l.bf16 %v7795
    %v8693 = vunpack.c.h.bf16 %v7795
    %v8694 = vunpack.c.l.bf16 %v7796
    %v8695 = vunpack.c.h.bf16 %v7796
    %v8696 = vunpack.c.l.bf16 %v7797
    %v8697 = vunpack.c.h.bf16 %v7797
    %v8698 = vunpack.c.l.bf16 %v7798
    %v8699 = vunpack.c.h.bf16 %v7798
    %v8700 = vunpack.c.l.bf16 %v7799
    %v8701 = vunpack.c.h.bf16 %v7799
    %v8702 = vunpack.c.l.bf16 %v7800
    %v8703 = vunpack.c.h.bf16 %v7800
    %v8704 = vunpack.c.l.bf16 %v7801
    %v8705 = vunpack.c.h.bf16 %v7801
    %v8706 = vunpack.c.l.bf16 %v7802
    %v8707 = vunpack.c.h.bf16 %v7802
    %v8708 = vunpack.c.l.bf16 %v7803
    %v8709 = vunpack.c.h.bf16 %v7803
    %v8710 = vunpack.c.l.bf16 %v7804
    %v8711 = vunpack.c.h.bf16 %v7804
    %v8712 = vunpack.c.l.bf16 %v7805
    %v8713 = vunpack.c.h.bf16 %v7805
    %v8714 = vunpack.c.l.bf16 %v7806
    %v8715 = vunpack.c.h.bf16 %v7806
    %v8716 = vunpack.c.l.bf16 %v7807
    %v8717 = vunpack.c.h.bf16 %v7807
    %v8718 = vunpack.c.l.bf16 %v7808
    %v8719 = vunpack.c.h.bf16 %v7808
    %v8720 = vunpack.c.l.bf16 %v7809
    %v8721 = vunpack.c.h.bf16 %v7809
    %v8722 = vunpack.c.l.bf16 %v7810
    %v8723 = vunpack.c.h.bf16 %v7810
    %v8724 = vunpack.c.l.bf16 %v7811
    %v8725 = vunpack.c.h.bf16 %v7811
    %v8726 = vunpack.c.l.bf16 %v7812
    %v8727 = vunpack.c.h.bf16 %v7812
    %v8728 = vunpack.c.l.bf16 %v7813
    %v8729 = vunpack.c.h.bf16 %v7813
    %v8730 = vunpack.c.l.bf16 %v7814
    %v8731 = vunpack.c.h.bf16 %v7814
    %v8732 = vunpack.c.l.bf16 %v7815
    %v8733 = vunpack.c.h.bf16 %v7815
    %v8734 = vunpack.c.l.bf16 %v7816
    %v8735 = vunpack.c.h.bf16 %v7816
    %v8736 = vunpack.c.l.bf16 %v7817
    %v8737 = vunpack.c.h.bf16 %v7817
    %v8738 = vunpack.c.l.bf16 %v7818
    %v8739 = vunpack.c.h.bf16 %v7818
    %v8740 = vunpack.c.l.bf16 %v7819
    %v8741 = vunpack.c.h.bf16 %v7819
    %v8742 = vunpack.c.l.bf16 %v7820
    %v8743 = vunpack.c.h.bf16 %v7820
    %v8744 = vunpack.c.l.bf16 %v7821
    %v8745 = vunpack.c.h.bf16 %v7821
    %v8746 = vunpack.c.l.bf16 %v7822
    %v8747 = vunpack.c.h.bf16 %v7822
    %v8748 = vunpack.c.l.bf16 %v7823
    %v8749 = vunpack.c.h.bf16 %v7823
    %v8750 = vunpack.c.l.bf16 %v7824
    %v8751 = vunpack.c.h.bf16 %v7824
    %v8752 = vunpack.c.l.bf16 %v7825
    %v8753 = vunpack.c.h.bf16 %v7825
    %v8754 = vunpack.c.l.bf16 %v7826
    %v8755 = vunpack.c.h.bf16 %v7826
    %v8756 = vunpack.c.l.bf16 %v7827
    %v8757 = vunpack.c.h.bf16 %v7827
    %v8758 = vunpack.c.l.bf16 %v7828
    %v8759 = vunpack.c.h.bf16 %v7828
    %v8760 = vunpack.c.l.bf16 %v7829
    %v8761 = vunpack.c.h.bf16 %v7829
    %v8762 = vunpack.c.l.bf16 %v7830
    %v8763 = vunpack.c.h.bf16 %v7830
    %v8764 = vunpack.c.l.bf16 %v7831
    %v8765 = vunpack.c.h.bf16 %v7831
    %v8766 = vunpack.c.l.bf16 %v7832
    %v8767 = vunpack.c.h.bf16 %v7832
    %v8768 = vunpack.c.l.bf16 %v7833
    %v8769 = vunpack.c.h.bf16 %v7833
    %v8770 = vunpack.c.l.bf16 %v7834
    %v8771 = vunpack.c.h.bf16 %v7834
    %v8772 = vunpack.c.l.bf16 %v7835
    %v8773 = vunpack.c.h.bf16 %v7835
    %v8774 = vunpack.c.l.bf16 %v7836
    %v8775 = vunpack.c.h.bf16 %v7836
    %v8776 = vunpack.c.l.bf16 %v7837
    %v8777 = vunpack.c.h.bf16 %v7837
    %v8778 = vunpack.c.l.bf16 %v7838
    %v8779 = vunpack.c.h.bf16 %v7838
    %v8780 = vunpack.c.l.bf16 %v7839
    %v8781 = vunpack.c.h.bf16 %v7839
    %v8782 = vunpack.c.l.bf16 %v7840
    %v8783 = vunpack.c.h.bf16 %v7840
    %v8784 = vunpack.c.l.bf16 %v7841
    %v8785 = vunpack.c.h.bf16 %v7841
    %v8786 = vunpack.c.l.bf16 %v7842
    %v8787 = vunpack.c.h.bf16 %v7842
    %v8788 = vunpack.c.l.bf16 %v7843
    %v8789 = vunpack.c.h.bf16 %v7843
    %v8790 = vunpack.c.l.bf16 %v7844
    %v8791 = vunpack.c.h.bf16 %v7844
    %v8792 = vunpack.c.l.bf16 %v7845
    %v8793 = vunpack.c.h.bf16 %v7845
    %v8794 = vunpack.c.l.bf16 %v7846
    %v8795 = vunpack.c.h.bf16 %v7846
    %v8796 = vunpack.c.l.bf16 %v7847
    %v8797 = vunpack.c.h.bf16 %v7847
    %v8798 = vunpack.c.l.bf16 %v7848
    %v8799 = vunpack.c.h.bf16 %v7848
    %v8800 = vunpack.c.l.bf16 %v7849
    %v8801 = vunpack.c.h.bf16 %v7849
    %v8802 = vunpack.c.l.bf16 %v7850
    %v8803 = vunpack.c.h.bf16 %v7850
    %v8804 = vunpack.c.l.bf16 %v7851
    %v8805 = vunpack.c.h.bf16 %v7851
    %v8806 = vunpack.c.l.bf16 %v7852
    %v8807 = vunpack.c.h.bf16 %v7852
    %v8808 = vunpack.c.l.bf16 %v7853
    %v8809 = vunpack.c.h.bf16 %v7853
    %v8810 = vunpack.c.l.bf16 %v7854
    %v8811 = vunpack.c.h.bf16 %v7854
    %v8812 = vunpack.c.l.bf16 %v7855
    %v8813 = vunpack.c.h.bf16 %v7855
    %v8814 = vunpack.c.l.bf16 %v7856
    %v8815 = vunpack.c.h.bf16 %v7856
    %v8816 = vunpack.c.l.bf16 %v7857
    %v8817 = vunpack.c.h.bf16 %v7857
    %v8818 = vunpack.c.l.bf16 %v7858
    %v8819 = vunpack.c.h.bf16 %v7858
    %v8820 = vunpack.c.l.bf16 %v7859
    %v8821 = vunpack.c.h.bf16 %v7859
    %v8822 = vunpack.c.l.bf16 %v7860
    %v8823 = vunpack.c.h.bf16 %v7860
    %v8824 = vunpack.c.l.bf16 %v7861
    %v8825 = vunpack.c.h.bf16 %v7861
    %v8826 = vunpack.c.l.bf16 %v7862
    %v8827 = vunpack.c.h.bf16 %v7862
    %v8828 = vunpack.c.l.bf16 %v7863
    %v8829 = vunpack.c.h.bf16 %v7863
    %v8830 = vunpack.c.l.bf16 %v7864
    %v8831 = vunpack.c.h.bf16 %v7864
    %v8832 = vunpack.c.l.bf16 %v7865
    %v8833 = vunpack.c.h.bf16 %v7865
    %v8834 = vunpack.c.l.bf16 %v7866
    %v8835 = vunpack.c.h.bf16 %v7866
    %v8836 = vunpack.c.l.bf16 %v7867
    %v8837 = vunpack.c.h.bf16 %v7867
    %v8838 = vunpack.c.l.bf16 %v7868
    %v8839 = vunpack.c.h.bf16 %v7868
    %v8840 = vunpack.c.l.bf16 %v7869
    %v8841 = vunpack.c.h.bf16 %v7869
    %v8842 = vunpack.c.l.bf16 %v7870
    %v8843 = vunpack.c.h.bf16 %v7870
    %v8844 = vunpack.c.l.bf16 %v7871
    %v8845 = vunpack.c.h.bf16 %v7871
    %v8846 = vunpack.c.l.bf16 %v7872
    %v8847 = vunpack.c.h.bf16 %v7872
    %v8848 = vunpack.c.l.bf16 %v7873
    %v8849 = vunpack.c.h.bf16 %v7873
    %v8850 = vunpack.c.l.bf16 %v7874
    %v8851 = vunpack.c.h.bf16 %v7874
    %v8852 = vunpack.c.l.bf16 %v7875
    %v8853 = vunpack.c.h.bf16 %v7875
    %v8854 = vunpack.c.l.bf16 %v7876
    %v8855 = vunpack.c.h.bf16 %v7876
    %v8856 = vunpack.c.l.bf16 %v7877
    %v8857 = vunpack.c.h.bf16 %v7877
    %v8858 = vunpack.c.l.bf16 %v7878
    %v8859 = vunpack.c.h.bf16 %v7878
    %v8860 = vunpack.c.l.bf16 %v7879
    %v8861 = vunpack.c.h.bf16 %v7879
    %v8862 = vunpack.c.l.bf16 %v7880
    %v8863 = vunpack.c.h.bf16 %v7880
    %v8864 = vunpack.c.l.bf16 %v7881
    %v8865 = vunpack.c.h.bf16 %v7881
    %v8866 = vunpack.c.l.bf16 %v7882
    %v8867 = vunpack.c.h.bf16 %v7882
    %v8868 = vunpack.c.l.bf16 %v7883
    %v8869 = vunpack.c.h.bf16 %v7883
    %v8870 = vunpack.c.l.bf16 %v7884
    %v8871 = vunpack.c.h.bf16 %v7884
    %v8872 = vunpack.c.l.bf16 %v7885
    %v8873 = vunpack.c.h.bf16 %v7885
    %v8874 = vunpack.c.l.bf16 %v7886
    %v8875 = vunpack.c.h.bf16 %v7886
    %v8876 = vunpack.c.l.bf16 %v7887
    %v8877 = vunpack.c.h.bf16 %v7887
    %v8878 = vunpack.c.l.bf16 %v7888
    %v8879 = vunpack.c.h.bf16 %v7888
    %v8880 = vunpack.c.l.bf16 %v7889
    %v8881 = vunpack.c.h.bf16 %v7889
    %v8882 = vunpack.c.l.bf16 %v7890
    %v8883 = vunpack.c.h.bf16 %v7890
    %v8884 = vunpack.c.l.bf16 %v7891
    %v8885 = vunpack.c.h.bf16 %v7891
    %v8886 = vunpack.c.l.bf16 %v7892
    %v8887 = vunpack.c.h.bf16 %v7892
    %v8888 = vunpack.c.l.bf16 %v7893
    %v8889 = vunpack.c.h.bf16 %v7893
    %v8890 = vunpack.c.l.bf16 %v7894
    %v8891 = vunpack.c.h.bf16 %v7894
    %v8892 = vunpack.c.l.bf16 %v7895
    %v8893 = vunpack.c.h.bf16 %v7895
    %v8894 = vunpack.c.l.bf16 %v7896
    %v8895 = vunpack.c.h.bf16 %v7896
    %v8896 = vunpack.c.l.bf16 %v7897
    %v8897 = vunpack.c.h.bf16 %v7897
    %v8898 = vunpack.c.l.bf16 %v7898
    %v8899 = vunpack.c.h.bf16 %v7898
    %v8900 = vunpack.c.l.bf16 %v7899
    %v8901 = vunpack.c.h.bf16 %v7899
    %v8902 = vunpack.c.l.bf16 %v7900
    %v8903 = vunpack.c.h.bf16 %v7900
    %v8904 = vunpack.c.l.bf16 %v7901
    %v8905 = vunpack.c.h.bf16 %v7901
    %v8906 = vunpack.c.l.bf16 %v7902
    %v8907 = vunpack.c.h.bf16 %v7902
    %v8908 = vunpack.c.l.bf16 %v7903
    %v8909 = vunpack.c.h.bf16 %v7903
    %v8910 = vunpack.c.l.bf16 %v7904
    %v8911 = vunpack.c.h.bf16 %v7904
    %v8912 = vunpack.c.l.bf16 %v7905
    %v8913 = vunpack.c.h.bf16 %v7905
    %v8914 = vunpack.c.l.bf16 %v7906
    %v8915 = vunpack.c.h.bf16 %v7906
    %v8916 = vunpack.c.l.bf16 %v7907
    %v8917 = vunpack.c.h.bf16 %v7907
    %v8918 = vunpack.c.l.bf16 %v7908
    %v8919 = vunpack.c.h.bf16 %v7908
    %v8920 = vunpack.c.l.bf16 %v7909
    %v8921 = vunpack.c.h.bf16 %v7909
    %v8922 = vunpack.c.l.bf16 %v7910
    %v8923 = vunpack.c.h.bf16 %v7910
    %v8924 = vunpack.c.l.bf16 %v7911
    %v8925 = vunpack.c.h.bf16 %v7911
    %v8926 = vunpack.c.l.bf16 %v7912
    %v8927 = vunpack.c.h.bf16 %v7912
    %v8928 = vunpack.c.l.bf16 %v7913
    %v8929 = vunpack.c.h.bf16 %v7913
    %v8930 = vunpack.c.l.bf16 %v7914
    %v8931 = vunpack.c.h.bf16 %v7914
    %v8932 = vunpack.c.l.bf16 %v7915
    %v8933 = vunpack.c.h.bf16 %v7915
    %v8934 = vunpack.c.l.bf16 %v7916
    %v8935 = vunpack.c.h.bf16 %v7916
    %v8936 = vunpack.c.l.bf16 %v7917
    %v8937 = vunpack.c.h.bf16 %v7917
    %v8938 = vunpack.c.l.bf16 %v7918
    %v8939 = vunpack.c.h.bf16 %v7918
    %v8940 = vunpack.c.l.bf16 %v7919
    %v8941 = vunpack.c.h.bf16 %v7919
    %v8942 = vunpack.c.l.bf16 %v7920
    %v8943 = vunpack.c.h.bf16 %v7920
    %v8944 = vunpack.c.l.bf16 %v7921
    %v8945 = vunpack.c.h.bf16 %v7921
    %s8946 = scalar_lea.vmem [#allocation12], 69
    %v8947 = vld [vmem:[%s8946] ss:$8 sm:$0xf]
    %v8948 = vld [vmem:[%s8946] ss:$8 sm:$0xf0]
    %v8949 = vor.u32 %v8947, %v8948
    %v8951 = vlaneseq
    %v8952 = vshrl.u32 %v8951, 7
    %v8953 = vsub.s32 0, %v8952
    %v8954 = vrot.slane %v8949, %v8953
    %v8955 = vlaneseq
    %v8956 = vshrl.u32 %v8955, 7
    %v8957 = vsub.s32 1, %v8956
    %v8958 = vrot.slane %v8949, %v8957
    %v8959 = vlaneseq
    %v8960 = vshrl.u32 %v8959, 7
    %v8961 = vsub.s32 2, %v8960
    %v8962 = vrot.slane %v8949, %v8961
    %v8963 = vlaneseq
    %v8964 = vshrl.u32 %v8963, 7
    %v8965 = vsub.s32 3, %v8964
    %v8966 = vrot.slane %v8949, %v8965
    %v8967 = vlaneseq
    %v8968 = vshrl.u32 %v8967, 7
    %v8969 = vsub.s32 4, %v8968
    %v8970 = vrot.slane %v8949, %v8969
    %v8971 = vlaneseq
    %v8972 = vshrl.u32 %v8971, 7
    %v8973 = vsub.s32 5, %v8972
    %v8974 = vrot.slane %v8949, %v8973
    %v8975 = vlaneseq
    %v8976 = vshrl.u32 %v8975, 7
    %v8977 = vsub.s32 6, %v8976
    %v8978 = vrot.slane %v8949, %v8977
    %v8979 = vlaneseq
    %v8980 = vshrl.u32 %v8979, 7
    %v8981 = vsub.s32 7, %v8980
    %v8982 = vrot.slane %v8949, %v8981
    %8991 = vmatprep.subr.mxu0 %v7923
    %8992 = vmatpush1.msra.mxu0 %v7922
    %8993 = vmatprep.subr.mxu0 %v7931
    %8994 = vmatpush1.msra.mxu0 %v7930
    %8995 = vmatprep.subr.mxu0 %v7939
    %8996 = vmatpush1.msra.mxu0 %v7938
    %8997 = vmatprep.subr.mxu0 %v7947
    %8998 = vmatpush1.msra.mxu0 %v7946
    %8999 = vmatprep.subr.mxu0 %v7955
    %9000 = vmatpush1.msra.mxu0 %v7954
    %9001 = vmatprep.subr.mxu0 %v7963
    %9002 = vmatpush1.msra.mxu0 %v7962
    %9003 = vmatprep.subr.mxu0 %v7971
    %9004 = vmatpush1.msra.mxu0 %v7970
    %9005 = vmatprep.subr.mxu0 %v7979
    %9006 = vmatpush1.msra.mxu0 %v7978
    %9007 = vmatprep.subr.mxu0 %v7987
    %9008 = vmatpush1.msra.mxu0 %v7986
    %9009 = vmatprep.subr.mxu0 %v7995
    %9010 = vmatpush1.msra.mxu0 %v7994
    %9011 = vmatprep.subr.mxu0 %v8003
    %9012 = vmatpush1.msra.mxu0 %v8002
    %9013 = vmatprep.subr.mxu0 %v8011
    %9014 = vmatpush1.msra.mxu0 %v8010
    %9015 = vmatprep.subr.mxu0 %v8019
    %9016 = vmatpush1.msra.mxu0 %v8018
    %9017 = vmatprep.subr.mxu0 %v8027
    %9018 = vmatpush1.msra.mxu0 %v8026
    %9019 = vmatprep.subr.mxu0 %v8035
    %9020 = vmatpush1.msra.mxu0 %v8034
    %9021 = vmatprep.subr.mxu0 %v8043
    %9022 = vmatpush1.msra.mxu0 %v8042
    %9023 = vmatprep.subr.mxu0 %v8051
    %9024 = vmatpush1.msra.mxu0 %v8050
    %9025 = vmatprep.subr.mxu0 %v8059
    %9026 = vmatpush1.msra.mxu0 %v8058
    %9027 = vmatprep.subr.mxu0 %v8067
    %9028 = vmatpush1.msra.mxu0 %v8066
    %9029 = vmatprep.subr.mxu0 %v8075
    %9030 = vmatpush1.msra.mxu0 %v8074
    %9031 = vmatprep.subr.mxu0 %v8083
    %9032 = vmatpush1.msra.mxu0 %v8082
    %9033 = vmatprep.subr.mxu0 %v8091
    %9034 = vmatpush1.msra.mxu0 %v8090
    %9035 = vmatprep.subr.mxu0 %v8099
    %9036 = vmatpush1.msra.mxu0 %v8098
    %9037 = vmatprep.subr.mxu0 %v8107
    %9038 = vmatpush1.msra.mxu0 %v8106
    %9039 = vmatprep.subr.mxu0 %v8115
    %9040 = vmatpush1.msra.mxu0 %v8114
    %9041 = vmatprep.subr.mxu0 %v8123
    %9042 = vmatpush1.msra.mxu0 %v8122
    %9043 = vmatprep.subr.mxu0 %v8131
    %9044 = vmatpush1.msra.mxu0 %v8130
    %9045 = vmatprep.subr.mxu0 %v8139
    %9046 = vmatpush1.msra.mxu0 %v8138
    %9047 = vmatprep.subr.mxu0 %v8147
    %9048 = vmatpush1.msra.mxu0 %v8146
    %9049 = vmatprep.subr.mxu0 %v8155
    %9050 = vmatpush1.msra.mxu0 %v8154
    %9051 = vmatprep.subr.mxu0 %v8163
    %9052 = vmatpush1.msra.mxu0 %v8162
    %9053 = vmatprep.subr.mxu0 %v8171
    %9054 = vmatpush1.msra.mxu0 %v8170
    %9055 = vmatprep.mubr.f32.mxu0 %v7403
    %9056 = vmatmul.mubr.f32.gmra.mrb[0].mxu0 %v7402
    %v9057 = vpop.f32.mrb[0].mxu0
    %v9058 = vadd.f32 %v8954, %v9057
    %v9059 = vpop.f32.mrb[0].mxu0
    %v9060 = vadd.f32 %v8958, %v9059
    %9061 = vdwg.mxu0
    %9062 = vmatprep.subr.mxu0 %v8179
    %9063 = vmatpush1.msra.mxu0 %v8178
    %9064 = vmatprep.subr.mxu0 %v8187
    %9065 = vmatpush1.msra.mxu0 %v8186
    %9066 = vmatprep.subr.mxu0 %v8195
    %9067 = vmatpush1.msra.mxu0 %v8194
    %9068 = vmatprep.subr.mxu0 %v8203
    %9069 = vmatpush1.msra.mxu0 %v8202
    %9070 = vmatprep.subr.mxu0 %v8211
    %9071 = vmatpush1.msra.mxu0 %v8210
    %9072 = vmatprep.subr.mxu0 %v8219
    %9073 = vmatpush1.msra.mxu0 %v8218
    %9074 = vmatprep.subr.mxu0 %v8227
    %9075 = vmatpush1.msra.mxu0 %v8226
    %9076 = vmatprep.subr.mxu0 %v8235
    %9077 = vmatpush1.msra.mxu0 %v8234
    %9078 = vmatprep.subr.mxu0 %v8243
    %9079 = vmatpush1.msra.mxu0 %v8242
    %9080 = vmatprep.subr.mxu0 %v8251
    %9081 = vmatpush1.msra.mxu0 %v8250
    %9082 = vmatprep.subr.mxu0 %v8259
    %9083 = vmatpush1.msra.mxu0 %v8258
    %9084 = vmatprep.subr.mxu0 %v8267
    %9085 = vmatpush1.msra.mxu0 %v8266
    %9086 = vmatprep.subr.mxu0 %v8275
    %9087 = vmatpush1.msra.mxu0 %v8274
    %9088 = vmatprep.subr.mxu0 %v8283
    %9089 = vmatpush1.msra.mxu0 %v8282
    %9090 = vmatprep.subr.mxu0 %v8291
    %9091 = vmatpush1.msra.mxu0 %v8290
    %9092 = vmatprep.subr.mxu0 %v8299
    %9093 = vmatpush1.msra.mxu0 %v8298
    %9094 = vmatprep.subr.mxu0 %v8307
    %9095 = vmatpush1.msra.mxu0 %v8306
    %9096 = vmatprep.subr.mxu0 %v8315
    %9097 = vmatpush1.msra.mxu0 %v8314
    %9098 = vmatprep.subr.mxu0 %v8323
    %9099 = vmatpush1.msra.mxu0 %v8322
    %9100 = vmatprep.subr.mxu0 %v8331
    %9101 = vmatpush1.msra.mxu0 %v8330
    %9102 = vmatprep.subr.mxu0 %v8339
    %9103 = vmatpush1.msra.mxu0 %v8338
    %9104 = vmatprep.subr.mxu0 %v8347
    %9105 = vmatpush1.msra.mxu0 %v8346
    %9106 = vmatprep.subr.mxu0 %v8355
    %9107 = vmatpush1.msra.mxu0 %v8354
    %9108 = vmatprep.subr.mxu0 %v8363
    %9109 = vmatpush1.msra.mxu0 %v8362
    %9110 = vmatprep.subr.mxu0 %v8371
    %9111 = vmatpush1.msra.mxu0 %v8370
    %9112 = vmatprep.subr.mxu0 %v8379
    %9113 = vmatpush1.msra.mxu0 %v8378
    %9114 = vmatprep.subr.mxu0 %v8387
    %9115 = vmatpush1.msra.mxu0 %v8386
    %9116 = vmatprep.subr.mxu0 %v8395
    %9117 = vmatpush1.msra.mxu0 %v8394
    %9118 = vmatprep.subr.mxu0 %v8403
    %9119 = vmatpush1.msra.mxu0 %v8402
    %9120 = vmatprep.subr.mxu0 %v8411
    %9121 = vmatpush1.msra.mxu0 %v8410
    %9122 = vmatprep.subr.mxu0 %v8419
    %9123 = vmatpush1.msra.mxu0 %v8418
    %9124 = vmatprep.subr.mxu0 %v8427
    %9125 = vmatpush1.msra.mxu0 %v8426
    %9126 = vmatprep.mubr.f32.mxu0 %v7405
    %9127 = vmatmul.mubr.f32.gmra.mrb[0].mxu0 %v7404
    %v9128 = vpop.f32.mrb[0].mxu0
    %v9129 = vadd.f32 %v9058, %v9128
    %v9130 = vpop.f32.mrb[0].mxu0
    %v9131 = vadd.f32 %v9060, %v9130
    %9132 = vdwg.mxu0
    %9133 = vmatprep.subr.mxu0 %v8435
    %9134 = vmatpush1.msra.mxu0 %v8434
    %9135 = vmatprep.subr.mxu0 %v8443
    %9136 = vmatpush1.msra.mxu0 %v8442
    %9137 = vmatprep.subr.mxu0 %v8451
    %9138 = vmatpush1.msra.mxu0 %v8450
    %9139 = vmatprep.subr.mxu0 %v8459
    %9140 = vmatpush1.msra.mxu0 %v8458
    %9141 = vmatprep.subr.mxu0 %v8467
    %9142 = vmatpush1.msra.mxu0 %v8466
    %9143 = vmatprep.subr.mxu0 %v8475
    %9144 = vmatpush1.msra.mxu0 %v8474
    %9145 = vmatprep.subr.mxu0 %v8483
    %9146 = vmatpush1.msra.mxu0 %v8482
    %9147 = vmatprep.subr.mxu0 %v8491
    %9148 = vmatpush1.msra.mxu0 %v8490
    %9149 = vmatprep.subr.mxu0 %v8499
    %9150 = vmatpush1.msra.mxu0 %v8498
    %9151 = vmatprep.subr.mxu0 %v8507
    %9152 = vmatpush1.msra.mxu0 %v8506
    %9153 = vmatprep.subr.mxu0 %v8515
    %9154 = vmatpush1.msra.mxu0 %v8514
    %9155 = vmatprep.subr.mxu0 %v8523
    %9156 = vmatpush1.msra.mxu0 %v8522
    %9157 = vmatprep.subr.mxu0 %v8531
    %9158 = vmatpush1.msra.mxu0 %v8530
    %9159 = vmatprep.subr.mxu0 %v8539
    %9160 = vmatpush1.msra.mxu0 %v8538
    %9161 = vmatprep.subr.mxu0 %v8547
    %9162 = vmatpush1.msra.mxu0 %v8546
    %9163 = vmatprep.subr.mxu0 %v8555
    %9164 = vmatpush1.msra.mxu0 %v8554
    %9165 = vmatprep.subr.mxu0 %v8563
    %9166 = vmatpush1.msra.mxu0 %v8562
    %9167 = vmatprep.subr.mxu0 %v8571
    %9168 = vmatpush1.msra.mxu0 %v8570
    %9169 = vmatprep.subr.mxu0 %v8579
    %9170 = vmatpush1.msra.mxu0 %v8578
    %9171 = vmatprep.subr.mxu0 %v8587
    %9172 = vmatpush1.msra.mxu0 %v8586
    %9173 = vmatprep.subr.mxu0 %v8595
    %9174 = vmatpush1.msra.mxu0 %v8594
    %9175 = vmatprep.subr.mxu0 %v8603
    %9176 = vmatpush1.msra.mxu0 %v8602
    %9177 = vmatprep.subr.mxu0 %v8611
    %9178 = vmatpush1.msra.mxu0 %v8610
    %9179 = vmatprep.subr.mxu0 %v8619
    %9180 = vmatpush1.msra.mxu0 %v8618
    %9181 = vmatprep.subr.mxu0 %v8627
    %9182 = vmatpush1.msra.mxu0 %v8626
    %9183 = vmatprep.subr.mxu0 %v8635
    %9184 = vmatpush1.msra.mxu0 %v8634
    %9185 = vmatprep.subr.mxu0 %v8643
    %9186 = vmatpush1.msra.mxu0 %v8642
    %9187 = vmatprep.subr.mxu0 %v8651
    %9188 = vmatpush1.msra.mxu0 %v8650
    %9189 = vmatprep.subr.mxu0 %v8659
    %9190 = vmatpush1.msra.mxu0 %v8658
    %9191 = vmatprep.subr.mxu0 %v8667
    %9192 = vmatpush1.msra.mxu0 %v8666
    %9193 = vmatprep.subr.mxu0 %v8675
    %9194 = vmatpush1.msra.mxu0 %v8674
    %9195 = vmatprep.subr.mxu0 %v8683
    %9196 = vmatpush1.msra.mxu0 %v8682
    %9197 = vmatprep.mubr.f32.mxu0 %v7407
    %9198 = vmatmul.mubr.f32.gmra.mrb[0].mxu0 %v7406
    %v9199 = vpop.f32.mrb[0].mxu0
    %v9200 = vadd.f32 %v9129, %v9199
    %v9201 = vpop.f32.mrb[0].mxu0
    %v9202 = vadd.f32 %v9131, %v9201
    %9203 = vdwg.mxu0
    %9204 = vmatprep.subr.mxu0 %v8691
    %9205 = vmatpush1.msra.mxu0 %v8690
    %9206 = vmatprep.subr.mxu0 %v8699
    %9207 = vmatpush1.msra.mxu0 %v8698
    %9208 = vmatprep.subr.mxu0 %v8707
    %9209 = vmatpush1.msra.mxu0 %v8706
    %9210 = vmatprep.subr.mxu0 %v8715
    %9211 = vmatpush1.msra.mxu0 %v8714
    %9212 = vmatprep.subr.mxu0 %v8723
    %9213 = vmatpush1.msra.mxu0 %v8722
    %9214 = vmatprep.subr.mxu0 %v8731
    %9215 = vmatpush1.msra.mxu0 %v8730
    %9216 = vmatprep.subr.mxu0 %v8739
    %9217 = vmatpush1.msra.mxu0 %v8738
    %9218 = vmatprep.subr.mxu0 %v8747
    %9219 = vmatpush1.msra.mxu0 %v8746
    %9220 = vmatprep.subr.mxu0 %v8755
    %9221 = vmatpush1.msra.mxu0 %v8754
    %9222 = vmatprep.subr.mxu0 %v8763
    %9223 = vmatpush1.msra.mxu0 %v8762
    %9224 = vmatprep.subr.mxu0 %v8771
    %9225 = vmatpush1.msra.mxu0 %v8770
    %9226 = vmatprep.subr.mxu0 %v8779
    %9227 = vmatpush1.msra.mxu0 %v8778
    %9228 = vmatprep.subr.mxu0 %v8787
    %9229 = vmatpush1.msra.mxu0 %v8786
    %9230 = vmatprep.subr.mxu0 %v8795
    %9231 = vmatpush1.msra.mxu0 %v8794
    %9232 = vmatprep.subr.mxu0 %v8803
    %9233 = vmatpush1.msra.mxu0 %v8802
    %9234 = vmatprep.subr.mxu0 %v8811
    %9235 = vmatpush1.msra.mxu0 %v8810
    %9236 = vmatprep.subr.mxu0 %v8819
    %9237 = vmatpush1.msra.mxu0 %v8818
    %9238 = vmatprep.subr.mxu0 %v8827
    %9239 = vmatpush1.msra.mxu0 %v8826
    %9240 = vmatprep.subr.mxu0 %v8835
    %9241 = vmatpush1.msra.mxu0 %v8834
    %9242 = vmatprep.subr.mxu0 %v8843
    %9243 = vmatpush1.msra.mxu0 %v8842
    %9244 = vmatprep.subr.mxu0 %v8851
    %9245 = vmatpush1.msra.mxu0 %v8850
    %9246 = vmatprep.subr.mxu0 %v8859
    %9247 = vmatpush1.msra.mxu0 %v8858
    %9248 = vmatprep.subr.mxu0 %v8867
    %9249 = vmatpush1.msra.mxu0 %v8866
    %9250 = vmatprep.subr.mxu0 %v8875
    %9251 = vmatpush1.msra.mxu0 %v8874
    %9252 = vmatprep.subr.mxu0 %v8883
    %9253 = vmatpush1.msra.mxu0 %v8882
    %9254 = vmatprep.subr.mxu0 %v8891
    %9255 = vmatpush1.msra.mxu0 %v8890
    %9256 = vmatprep.subr.mxu0 %v8899
    %9257 = vmatpush1.msra.mxu0 %v8898
    %9258 = vmatprep.subr.mxu0 %v8907
    %9259 = vmatpush1.msra.mxu0 %v8906
    %9260 = vmatprep.subr.mxu0 %v8915
    %9261 = vmatpush1.msra.mxu0 %v8914
    %9262 = vmatprep.subr.mxu0 %v8923
    %9263 = vmatpush1.msra.mxu0 %v8922
    %9264 = vmatprep.subr.mxu0 %v8931
    %9265 = vmatpush1.msra.mxu0 %v8930
    %9266 = vmatprep.subr.mxu0 %v8939
    %9267 = vmatpush1.msra.mxu0 %v8938
    %9268 = vmatprep.mubr.f32.mxu0 %v7409
    %9269 = vmatmul.mubr.f32.gmra.mrb[0].mxu0 %v7408
    %v9270 = vpop.f32.mrb[0].mxu0
    %v9271 = vadd.f32 %v9200, %v9270
    %v9272 = vpop.f32.mrb[0].mxu0
    %v9273 = vadd.f32 %v9202, %v9272
    %9274 = vdwg.mxu0
    %9275 = vmatprep.subr.mxu0 %v7925
    %9276 = vmatpush1.msra.mxu0 %v7924
    %9277 = vmatprep.subr.mxu0 %v7933
    %9278 = vmatpush1.msra.mxu0 %v7932
    %9279 = vmatprep.subr.mxu0 %v7941
    %9280 = vmatpush1.msra.mxu0 %v7940
    %9281 = vmatprep.subr.mxu0 %v7949
    %9282 = vmatpush1.msra.mxu0 %v7948
    %9283 = vmatprep.subr.mxu0 %v7957
    %9284 = vmatpush1.msra.mxu0 %v7956
    %9285 = vmatprep.subr.mxu0 %v7965
    %9286 = vmatpush1.msra.mxu0 %v7964
    %9287 = vmatprep.subr.mxu0 %v7973
    %9288 = vmatpush1.msra.mxu0 %v7972
    %9289 = vmatprep.subr.mxu0 %v7981
    %9290 = vmatpush1.msra.mxu0 %v7980
    %9291 = vmatprep.subr.mxu0 %v7989
    %9292 = vmatpush1.msra.mxu0 %v7988
    %9293 = vmatprep.subr.mxu0 %v7997
    %9294 = vmatpush1.msra.mxu0 %v7996
    %9295 = vmatprep.subr.mxu0 %v8005
    %9296 = vmatpush1.msra.mxu0 %v8004
    %9297 = vmatprep.subr.mxu0 %v8013
    %9298 = vmatpush1.msra.mxu0 %v8012
    %9299 = vmatprep.subr.mxu0 %v8021
    %9300 = vmatpush1.msra.mxu0 %v8020
    %9301 = vmatprep.subr.mxu0 %v8029
    %9302 = vmatpush1.msra.mxu0 %v8028
    %9303 = vmatprep.subr.mxu0 %v8037
    %9304 = vmatpush1.msra.mxu0 %v8036
    %9305 = vmatprep.subr.mxu0 %v8045
    %9306 = vmatpush1.msra.mxu0 %v8044
    %9307 = vmatprep.subr.mxu0 %v8053
    %9308 = vmatpush1.msra.mxu0 %v8052
    %9309 = vmatprep.subr.mxu0 %v8061
    %9310 = vmatpush1.msra.mxu0 %v8060
    %9311 = vmatprep.subr.mxu0 %v8069
    %9312 = vmatpush1.msra.mxu0 %v8068
    %9313 = vmatprep.subr.mxu0 %v8077
    %9314 = vmatpush1.msra.mxu0 %v8076
    %9315 = vmatprep.subr.mxu0 %v8085
    %9316 = vmatpush1.msra.mxu0 %v8084
    %9317 = vmatprep.subr.mxu0 %v8093
    %9318 = vmatpush1.msra.mxu0 %v8092
    %9319 = vmatprep.subr.mxu0 %v8101
    %9320 = vmatpush1.msra.mxu0 %v8100
    %9321 = vmatprep.subr.mxu0 %v8109
    %9322 = vmatpush1.msra.mxu0 %v8108
    %9323 = vmatprep.subr.mxu0 %v8117
    %9324 = vmatpush1.msra.mxu0 %v8116
    %9325 = vmatprep.subr.mxu0 %v8125
    %9326 = vmatpush1.msra.mxu0 %v8124
    %9327 = vmatprep.subr.mxu0 %v8133
    %9328 = vmatpush1.msra.mxu0 %v8132
    %9329 = vmatprep.subr.mxu0 %v8141
    %9330 = vmatpush1.msra.mxu0 %v8140
    %9331 = vmatprep.subr.mxu0 %v8149
    %9332 = vmatpush1.msra.mxu0 %v8148
    %9333 = vmatprep.subr.mxu0 %v8157
    %9334 = vmatpush1.msra.mxu0 %v8156
    %9335 = vmatprep.subr.mxu0 %v8165
    %9336 = vmatpush1.msra.mxu0 %v8164
    %9337 = vmatprep.subr.mxu0 %v8173
    %9338 = vmatpush1.msra.mxu0 %v8172
    %9339 = vmatprep.mubr.f32.mxu0 %v7403
    %9340 = vmatmul.mubr.f32.gmra.mrb[0].mxu0 %v7402
    %v9341 = vpop.f32.mrb[0].mxu0
    %v9342 = vadd.f32 %v8962, %v9341
    %v9343 = vpop.f32.mrb[0].mxu0
    %v9344 = vadd.f32 %v8966, %v9343
    %9345 = vdwg.mxu0
    %9346 = vmatprep.subr.mxu0 %v8181
    %9347 = vmatpush1.msra.mxu0 %v8180
    %9348 = vmatprep.subr.mxu0 %v8189
    %9349 = vmatpush1.msra.mxu0 %v8188
    %9350 = vmatprep.subr.mxu0 %v8197
    %9351 = vmatpush1.msra.mxu0 %v8196
    %9352 = vmatprep.subr.mxu0 %v8205
    %9353 = vmatpush1.msra.mxu0 %v8204
    %9354 = vmatprep.subr.mxu0 %v8213
    %9355 = vmatpush1.msra.mxu0 %v8212
    %9356 = vmatprep.subr.mxu0 %v8221
    %9357 = vmatpush1.msra.mxu0 %v8220
    %9358 = vmatprep.subr.mxu0 %v8229
    %9359 = vmatpush1.msra.mxu0 %v8228
    %9360 = vmatprep.subr.mxu0 %v8237
    %9361 = vmatpush1.msra.mxu0 %v8236
    %9362 = vmatprep.subr.mxu0 %v8245
    %9363 = vmatpush1.msra.mxu0 %v8244
    %9364 = vmatprep.subr.mxu0 %v8253
    %9365 = vmatpush1.msra.mxu0 %v8252
    %9366 = vmatprep.subr.mxu0 %v8261
    %9367 = vmatpush1.msra.mxu0 %v8260
    %9368 = vmatprep.subr.mxu0 %v8269
    %9369 = vmatpush1.msra.mxu0 %v8268
    %9370 = vmatprep.subr.mxu0 %v8277
    %9371 = vmatpush1.msra.mxu0 %v8276
    %9372 = vmatprep.subr.mxu0 %v8285
    %9373 = vmatpush1.msra.mxu0 %v8284
    %9374 = vmatprep.subr.mxu0 %v8293
    %9375 = vmatpush1.msra.mxu0 %v8292
    %9376 = vmatprep.subr.mxu0 %v8301
    %9377 = vmatpush1.msra.mxu0 %v8300
    %9378 = vmatprep.subr.mxu0 %v8309
    %9379 = vmatpush1.msra.mxu0 %v8308
    %9380 = vmatprep.subr.mxu0 %v8317
    %9381 = vmatpush1.msra.mxu0 %v8316
    %9382 = vmatprep.subr.mxu0 %v8325
    %9383 = vmatpush1.msra.mxu0 %v8324
    %9384 = vmatprep.subr.mxu0 %v8333
    %9385 = vmatpush1.msra.mxu0 %v8332
    %9386 = vmatprep.subr.mxu0 %v8341
    %9387 = vmatpush1.msra.mxu0 %v8340
    %9388 = vmatprep.subr.mxu0 %v8349
    %9389 = vmatpush1.msra.mxu0 %v8348
    %9390 = vmatprep.subr.mxu0 %v8357
    %9391 = vmatpush1.msra.mxu0 %v8356
    %9392 = vmatprep.subr.mxu0 %v8365
    %9393 = vmatpush1.msra.mxu0 %v8364
    %9394 = vmatprep.subr.mxu0 %v8373
    %9395 = vmatpush1.msra.mxu0 %v8372
    %9396 = vmatprep.subr.mxu0 %v8381
    %9397 = vmatpush1.msra.mxu0 %v8380
    %9398 = vmatprep.subr.mxu0 %v8389
    %9399 = vmatpush1.msra.mxu0 %v8388
    %9400 = vmatprep.subr.mxu0 %v8397
    %9401 = vmatpush1.msra.mxu0 %v8396
    %9402 = vmatprep.subr.mxu0 %v8405
    %9403 = vmatpush1.msra.mxu0 %v8404
    %9404 = vmatprep.subr.mxu0 %v8413
    %9405 = vmatpush1.msra.mxu0 %v8412
    %9406 = vmatprep.subr.mxu0 %v8421
    %9407 = vmatpush1.msra.mxu0 %v8420
    %9408 = vmatprep.subr.mxu0 %v8429
    %9409 = vmatpush1.msra.mxu0 %v8428
    %9410 = vmatprep.mubr.f32.mxu0 %v7405
    %9411 = vmatmul.mubr.f32.gmra.mrb[0].mxu0 %v7404
    %v9412 = vpop.f32.mrb[0].mxu0
    %v9413 = vadd.f32 %v9342, %v9412
    %v9414 = vpop.f32.mrb[0].mxu0
    %v9415 = vadd.f32 %v9344, %v9414
    %9416 = vdwg.mxu0
    %9417 = vmatprep.subr.mxu0 %v8437
    %9418 = vmatpush1.msra.mxu0 %v8436
    %9419 = vmatprep.subr.mxu0 %v8445
    %9420 = vmatpush1.msra.mxu0 %v8444
    %9421 = vmatprep.subr.mxu0 %v8453
    %9422 = vmatpush1.msra.mxu0 %v8452
    %9423 = vmatprep.subr.mxu0 %v8461
    %9424 = vmatpush1.msra.mxu0 %v8460
    %9425 = vmatprep.subr.mxu0 %v8469
    %9426 = vmatpush1.msra.mxu0 %v8468
    %9427 = vmatprep.subr.mxu0 %v8477
    %9428 = vmatpush1.msra.mxu0 %v8476
    %9429 = vmatprep.subr.mxu0 %v8485
    %9430 = vmatpush1.msra.mxu0 %v8484
    %9431 = vmatprep.subr.mxu0 %v8493
    %9432 = vmatpush1.msra.mxu0 %v8492
    %9433 = vmatprep.subr.mxu0 %v8501
    %9434 = vmatpush1.msra.mxu0 %v8500
    %9435 = vmatprep.subr.mxu0 %v8509
    %9436 = vmatpush1.msra.mxu0 %v8508
    %9437 = vmatprep.subr.mxu0 %v8517
    %9438 = vmatpush1.msra.mxu0 %v8516
    %9439 = vmatprep.subr.mxu0 %v8525
    %9440 = vmatpush1.msra.mxu0 %v8524
    %9441 = vmatprep.subr.mxu0 %v8533
    %9442 = vmatpush1.msra.mxu0 %v8532
    %9443 = vmatprep.subr.mxu0 %v8541
    %9444 = vmatpush1.msra.mxu0 %v8540
    %9445 = vmatprep.subr.mxu0 %v8549
    %9446 = vmatpush1.msra.mxu0 %v8548
    %9447 = vmatprep.subr.mxu0 %v8557
    %9448 = vmatpush1.msra.mxu0 %v8556
    %9449 = vmatprep.subr.mxu0 %v8565
    %9450 = vmatpush1.msra.mxu0 %v8564
    %9451 = vmatprep.subr.mxu0 %v8573
    %9452 = vmatpush1.msra.mxu0 %v8572
    %9453 = vmatprep.subr.mxu0 %v8581
    %9454 = vmatpush1.msra.mxu0 %v8580
    %9455 = vmatprep.subr.mxu0 %v8589
    %9456 = vmatpush1.msra.mxu0 %v8588
    %9457 = vmatprep.subr.mxu0 %v8597
    %9458 = vmatpush1.msra.mxu0 %v8596
    %9459 = vmatprep.subr.mxu0 %v8605
    %9460 = vmatpush1.msra.mxu0 %v8604
    %9461 = vmatprep.subr.mxu0 %v8613
    %9462 = vmatpush1.msra.mxu0 %v8612
    %9463 = vmatprep.subr.mxu0 %v8621
    %9464 = vmatpush1.msra.mxu0 %v8620
    %9465 = vmatprep.subr.mxu0 %v8629
    %9466 = vmatpush1.msra.mxu0 %v8628
    %9467 = vmatprep.subr.mxu0 %v8637
    %9468 = vmatpush1.msra.mxu0 %v8636
    %9469 = vmatprep.subr.mxu0 %v8645
    %9470 = vmatpush1.msra.mxu0 %v8644
    %9471 = vmatprep.subr.mxu0 %v8653
    %9472 = vmatpush1.msra.mxu0 %v8652
    %9473 = vmatprep.subr.mxu0 %v8661
    %9474 = vmatpush1.msra.mxu0 %v8660
    %9475 = vmatprep.subr.mxu0 %v8669
    %9476 = vmatpush1.msra.mxu0 %v8668
    %9477 = vmatprep.subr.mxu0 %v8677
    %9478 = vmatpush1.msra.mxu0 %v8676
    %9479 = vmatprep.subr.mxu0 %v8685
    %9480 = vmatpush1.msra.mxu0 %v8684
    %9481 = vmatprep.mubr.f32.mxu0 %v7407
    %9482 = vmatmul.mubr.f32.gmra.mrb[0].mxu0 %v7406
    %v9483 = vpop.f32.mrb[0].mxu0
    %v9484 = vadd.f32 %v9413, %v9483
    %v9485 = vpop.f32.mrb[0].mxu0
    %v9486 = vadd.f32 %v9415, %v9485
    %9487 = vdwg.mxu0
    %9488 = vmatprep.subr.mxu0 %v8693
    %9489 = vmatpush1.msra.mxu0 %v8692
    %9490 = vmatprep.subr.mxu0 %v8701
    %9491 = vmatpush1.msra.mxu0 %v8700
    %9492 = vmatprep.subr.mxu0 %v8709
    %9493 = vmatpush1.msra.mxu0 %v8708
    %9494 = vmatprep.subr.mxu0 %v8717
    %9495 = vmatpush1.msra.mxu0 %v8716
    %9496 = vmatprep.subr.mxu0 %v8725
    %9497 = vmatpush1.msra.mxu0 %v8724
    %9498 = vmatprep.subr.mxu0 %v8733
    %9499 = vmatpush1.msra.mxu0 %v8732
    %9500 = vmatprep.subr.mxu0 %v8741
    %9501 = vmatpush1.msra.mxu0 %v8740
    %9502 = vmatprep.subr.mxu0 %v8749
    %9503 = vmatpush1.msra.mxu0 %v8748
    %9504 = vmatprep.subr.mxu0 %v8757
    %9505 = vmatpush1.msra.mxu0 %v8756
    %9506 = vmatprep.subr.mxu0 %v8765
    %9507 = vmatpush1.msra.mxu0 %v8764
    %9508 = vmatprep.subr.mxu0 %v8773
    %9509 = vmatpush1.msra.mxu0 %v8772
    %9510 = vmatprep.subr.mxu0 %v8781
    %9511 = vmatpush1.msra.mxu0 %v8780
    %9512 = vmatprep.subr.mxu0 %v8789
    %9513 = vmatpush1.msra.mxu0 %v8788
    %9514 = vmatprep.subr.mxu0 %v8797
    %9515 = vmatpush1.msra.mxu0 %v8796
    %9516 = vmatprep.subr.mxu0 %v8805
    %9517 = vmatpush1.msra.mxu0 %v8804
    %9518 = vmatprep.subr.mxu0 %v8813
    %9519 = vmatpush1.msra.mxu0 %v8812
    %9520 = vmatprep.subr.mxu0 %v8821
    %9521 = vmatpush1.msra.mxu0 %v8820
    %9522 = vmatprep.subr.mxu0 %v8829
    %9523 = vmatpush1.msra.mxu0 %v8828
    %9524 = vmatprep.subr.mxu0 %v8837
    %9525 = vmatpush1.msra.mxu0 %v8836
    %9526 = vmatprep.subr.mxu0 %v8845
    %9527 = vmatpush1.msra.mxu0 %v8844
    %9528 = vmatprep.subr.mxu0 %v8853
    %9529 = vmatpush1.msra.mxu0 %v8852
    %9530 = vmatprep.subr.mxu0 %v8861
    %9531 = vmatpush1.msra.mxu0 %v8860
    %9532 = vmatprep.subr.mxu0 %v8869
    %9533 = vmatpush1.msra.mxu0 %v8868
    %9534 = vmatprep.subr.mxu0 %v8877
    %9535 = vmatpush1.msra.mxu0 %v8876
    %9536 = vmatprep.subr.mxu0 %v8885
    %9537 = vmatpush1.msra.mxu0 %v8884
    %9538 = vmatprep.subr.mxu0 %v8893
    %9539 = vmatpush1.msra.mxu0 %v8892
    %9540 = vmatprep.subr.mxu0 %v8901
    %9541 = vmatpush1.msra.mxu0 %v8900
    %9542 = vmatprep.subr.mxu0 %v8909
    %9543 = vmatpush1.msra.mxu0 %v8908
    %9544 = vmatprep.subr.mxu0 %v8917
    %9545 = vmatpush1.msra.mxu0 %v8916
    %9546 = vmatprep.subr.mxu0 %v8925
    %9547 = vmatpush1.msra.mxu0 %v8924
    %9548 = vmatprep.subr.mxu0 %v8933
    %9549 = vmatpush1.msra.mxu0 %v8932
    %9550 = vmatprep.subr.mxu0 %v8941
    %9551 = vmatpush1.msra.mxu0 %v8940
    %9552 = vmatprep.mubr.f32.mxu0 %v7409
    %9553 = vmatmul.mubr.f32.gmra.mrb[0].mxu0 %v7408
    %v9554 = vpop.f32.mrb[0].mxu0
    %v9555 = vadd.f32 %v9484, %v9554
    %v9556 = vpop.f32.mrb[0].mxu0
    %v9557 = vadd.f32 %v9486, %v9556
    %9558 = vdwg.mxu0
    %9559 = vmatprep.subr.mxu0 %v7927
    %9560 = vmatpush1.msra.mxu0 %v7926
    %9561 = vmatprep.subr.mxu0 %v7935
    %9562 = vmatpush1.msra.mxu0 %v7934
    %9563 = vmatprep.subr.mxu0 %v7943
    %9564 = vmatpush1.msra.mxu0 %v7942
    %9565 = vmatprep.subr.mxu0 %v7951
    %9566 = vmatpush1.msra.mxu0 %v7950
    %9567 = vmatprep.subr.mxu0 %v7959
    %9568 = vmatpush1.msra.mxu0 %v7958
    %9569 = vmatprep.subr.mxu0 %v7967
    %9570 = vmatpush1.msra.mxu0 %v7966
    %9571 = vmatprep.subr.mxu0 %v7975
    %9572 = vmatpush1.msra.mxu0 %v7974
    %9573 = vmatprep.subr.mxu0 %v7983
    %9574 = vmatpush1.msra.mxu0 %v7982
    %9575 = vmatprep.subr.mxu0 %v7991
    %9576 = vmatpush1.msra.mxu0 %v7990
    %9577 = vmatprep.subr.mxu0 %v7999
    %9578 = vmatpush1.msra.mxu0 %v7998
    %9579 = vmatprep.subr.mxu0 %v8007
    %9580 = vmatpush1.msra.mxu0 %v8006
    %9581 = vmatprep.subr.mxu0 %v8015
    %9582 = vmatpush1.msra.mxu0 %v8014
    %9583 = vmatprep.subr.mxu0 %v8023
    %9584 = vmatpush1.msra.mxu0 %v8022
    %9585 = vmatprep.subr.mxu0 %v8031
    %9586 = vmatpush1.msra.mxu0 %v8030
    %9587 = vmatprep.subr.mxu0 %v8039
    %9588 = vmatpush1.msra.mxu0 %v8038
    %9589 = vmatprep.subr.mxu0 %v8047
    %9590 = vmatpush1.msra.mxu0 %v8046
    %9591 = vmatprep.subr.mxu0 %v8055
    %9592 = vmatpush1.msra.mxu0 %v8054
    %9593 = vmatprep.subr.mxu0 %v8063
    %9594 = vmatpush1.msra.mxu0 %v8062
    %9595 = vmatprep.subr.mxu0 %v8071
    %9596 = vmatpush1.msra.mxu0 %v8070
    %9597 = vmatprep.subr.mxu0 %v8079
    %9598 = vmatpush1.msra.mxu0 %v8078
    %9599 = vmatprep.subr.mxu0 %v8087
    %9600 = vmatpush1.msra.mxu0 %v8086
    %9601 = vmatprep.subr.mxu0 %v8095
    %9602 = vmatpush1.msra.mxu0 %v8094
    %9603 = vmatprep.subr.mxu0 %v8103
    %9604 = vmatpush1.msra.mxu0 %v8102
    %9605 = vmatprep.subr.mxu0 %v8111
    %9606 = vmatpush1.msra.mxu0 %v8110
    %9607 = vmatprep.subr.mxu0 %v8119
    %9608 = vmatpush1.msra.mxu0 %v8118
    %9609 = vmatprep.subr.mxu0 %v8127
    %9610 = vmatpush1.msra.mxu0 %v8126
    %9611 = vmatprep.subr.mxu0 %v8135
    %9612 = vmatpush1.msra.mxu0 %v8134
    %9613 = vmatprep.subr.mxu0 %v8143
    %9614 = vmatpush1.msra.mxu0 %v8142
    %9615 = vmatprep.subr.mxu0 %v8151
    %9616 = vmatpush1.msra.mxu0 %v8150
    %9617 = vmatprep.subr.mxu0 %v8159
    %9618 = vmatpush1.msra.mxu0 %v8158
    %9619 = vmatprep.subr.mxu0 %v8167
    %9620 = vmatpush1.msra.mxu0 %v8166
    %9621 = vmatprep.subr.mxu0 %v8175
    %9622 = vmatpush1.msra.mxu0 %v8174
    %9623 = vmatprep.mubr.f32.mxu0 %v7403
    %9624 = vmatmul.mubr.f32.gmra.mrb[0].mxu0 %v7402
    %v9625 = vpop.f32.mrb[0].mxu0
    %v9626 = vadd.f32 %v8970, %v9625
    %v9627 = vpop.f32.mrb[0].mxu0
    %v9628 = vadd.f32 %v8974, %v9627
    %9629 = vdwg.mxu0
    %9630 = vmatprep.subr.mxu0 %v8183
    %9631 = vmatpush1.msra.mxu0 %v8182
    %9632 = vmatprep.subr.mxu0 %v8191
    %9633 = vmatpush1.msra.mxu0 %v8190
    %9634 = vmatprep.subr.mxu0 %v8199
    %9635 = vmatpush1.msra.mxu0 %v8198
    %9636 = vmatprep.subr.mxu0 %v8207
    %9637 = vmatpush1.msra.mxu0 %v8206
    %9638 = vmatprep.subr.mxu0 %v8215
    %9639 = vmatpush1.msra.mxu0 %v8214
    %9640 = vmatprep.subr.mxu0 %v8223
    %9641 = vmatpush1.msra.mxu0 %v8222
    %9642 = vmatprep.subr.mxu0 %v8231
    %9643 = vmatpush1.msra.mxu0 %v8230
    %9644 = vmatprep.subr.mxu0 %v8239
    %9645 = vmatpush1.msra.mxu0 %v8238
    %9646 = vmatprep.subr.mxu0 %v8247
    %9647 = vmatpush1.msra.mxu0 %v8246
    %9648 = vmatprep.subr.mxu0 %v8255
    %9649 = vmatpush1.msra.mxu0 %v8254
    %9650 = vmatprep.subr.mxu0 %v8263
    %9651 = vmatpush1.msra.mxu0 %v8262
    %9652 = vmatprep.subr.mxu0 %v8271
    %9653 = vmatpush1.msra.mxu0 %v8270
    %9654 = vmatprep.subr.mxu0 %v8279
    %9655 = vmatpush1.msra.mxu0 %v8278
    %9656 = vmatprep.subr.mxu0 %v8287
    %9657 = vmatpush1.msra.mxu0 %v8286
    %9658 = vmatprep.subr.mxu0 %v8295
    %9659 = vmatpush1.msra.mxu0 %v8294
    %9660 = vmatprep.subr.mxu0 %v8303
    %9661 = vmatpush1.msra.mxu0 %v8302
    %9662 = vmatprep.subr.mxu0 %v8311
    %9663 = vmatpush1.msra.mxu0 %v8310
    %9664 = vmatprep.subr.mxu0 %v8319
    %9665 = vmatpush1.msra.mxu0 %v8318
    %9666 = vmatprep.subr.mxu0 %v8327
    %9667 = vmatpush1.msra.mxu0 %v8326
    %9668 = vmatprep.subr.mxu0 %v8335
    %9669 = vmatpush1.msra.mxu0 %v8334
    %9670 = vmatprep.subr.mxu0 %v8343
    %9671 = vmatpush1.msra.mxu0 %v8342
    %9672 = vmatprep.subr.mxu0 %v8351
    %9673 = vmatpush1.msra.mxu0 %v8350
    %9674 = vmatprep.subr.mxu0 %v8359
    %9675 = vmatpush1.msra.mxu0 %v8358
    %9676 = vmatprep.subr.mxu0 %v8367
    %9677 = vmatpush1.msra.mxu0 %v8366
    %9678 = vmatprep.subr.mxu0 %v8375
    %9679 = vmatpush1.msra.mxu0 %v8374
    %9680 = vmatprep.subr.mxu0 %v8383
    %9681 = vmatpush1.msra.mxu0 %v8382
    %9682 = vmatprep.subr.mxu0 %v8391
    %9683 = vmatpush1.msra.mxu0 %v8390
    %9684 = vmatprep.subr.mxu0 %v8399
    %9685 = vmatpush1.msra.mxu0 %v8398
    %9686 = vmatprep.subr.mxu0 %v8407
    %9687 = vmatpush1.msra.mxu0 %v8406
    %9688 = vmatprep.subr.mxu0 %v8415
    %9689 = vmatpush1.msra.mxu0 %v8414
    %9690 = vmatprep.subr.mxu0 %v8423
    %9691 = vmatpush1.msra.mxu0 %v8422
    %9692 = vmatprep.subr.mxu0 %v8431
    %9693 = vmatpush1.msra.mxu0 %v8430
    %9694 = vmatprep.mubr.f32.mxu0 %v7405
    %9695 = vmatmul.mubr.f32.gmra.mrb[0].mxu0 %v7404
    %v9696 = vpop.f32.mrb[0].mxu0
    %v9697 = vadd.f32 %v9626, %v9696
    %v9698 = vpop.f32.mrb[0].mxu0
    %v9699 = vadd.f32 %v9628, %v9698
    %9700 = vdwg.mxu0
    %9701 = vmatprep.subr.mxu0 %v8439
    %9702 = vmatpush1.msra.mxu0 %v8438
    %9703 = vmatprep.subr.mxu0 %v8447
    %9704 = vmatpush1.msra.mxu0 %v8446
    %9705 = vmatprep.subr.mxu0 %v8455
    %9706 = vmatpush1.msra.mxu0 %v8454
    %9707 = vmatprep.subr.mxu0 %v8463
    %9708 = vmatpush1.msra.mxu0 %v8462
    %9709 = vmatprep.subr.mxu0 %v8471
    %9710 = vmatpush1.msra.mxu0 %v8470
    %9711 = vmatprep.subr.mxu0 %v8479
    %9712 = vmatpush1.msra.mxu0 %v8478
    %9713 = vmatprep.subr.mxu0 %v8487
    %9714 = vmatpush1.msra.mxu0 %v8486
    %9715 = vmatprep.subr.mxu0 %v8495
    %9716 = vmatpush1.msra.mxu0 %v8494
    %9717 = vmatprep.subr.mxu0 %v8503
    %9718 = vmatpush1.msra.mxu0 %v8502
    %9719 = vmatprep.subr.mxu0 %v8511
    %9720 = vmatpush1.msra.mxu0 %v8510
    %9721 = vmatprep.subr.mxu0 %v8519
    %9722 = vmatpush1.msra.mxu0 %v8518
    %9723 = vmatprep.subr.mxu0 %v8527
    %9724 = vmatpush1.msra.mxu0 %v8526
    %9725 = vmatprep.subr.mxu0 %v8535
    %9726 = vmatpush1.msra.mxu0 %v8534
    %9727 = vmatprep.subr.mxu0 %v8543
    %9728 = vmatpush1.msra.mxu0 %v8542
    %9729 = vmatprep.subr.mxu0 %v8551
    %9730 = vmatpush1.msra.mxu0 %v8550
    %9731 = vmatprep.subr.mxu0 %v8559
    %9732 = vmatpush1.msra.mxu0 %v8558
    %9733 = vmatprep.subr.mxu0 %v8567
    %9734 = vmatpush1.msra.mxu0 %v8566
    %9735 = vmatprep.subr.mxu0 %v8575
    %9736 = vmatpush1.msra.mxu0 %v8574
    %9737 = vmatprep.subr.mxu0 %v8583
    %9738 = vmatpush1.msra.mxu0 %v8582
    %9739 = vmatprep.subr.mxu0 %v8591
    %9740 = vmatpush1.msra.mxu0 %v8590
    %9741 = vmatprep.subr.mxu0 %v8599
    %9742 = vmatpush1.msra.mxu0 %v8598
    %9743 = vmatprep.subr.mxu0 %v8607
    %9744 = vmatpush1.msra.mxu0 %v8606
    %9745 = vmatprep.subr.mxu0 %v8615
    %9746 = vmatpush1.msra.mxu0 %v8614
    %9747 = vmatprep.subr.mxu0 %v8623
    %9748 = vmatpush1.msra.mxu0 %v8622
    %9749 = vmatprep.subr.mxu0 %v8631
    %9750 = vmatpush1.msra.mxu0 %v8630
    %9751 = vmatprep.subr.mxu0 %v8639
    %9752 = vmatpush1.msra.mxu0 %v8638
    %9753 = vmatprep.subr.mxu0 %v8647
    %9754 = vmatpush1.msra.mxu0 %v8646
    %9755 = vmatprep.subr.mxu0 %v8655
    %9756 = vmatpush1.msra.mxu0 %v8654
    %9757 = vmatprep.subr.mxu0 %v8663
    %9758 = vmatpush1.msra.mxu0 %v8662
    %9759 = vmatprep.subr.mxu0 %v8671
    %9760 = vmatpush1.msra.mxu0 %v8670
    %9761 = vmatprep.subr.mxu0 %v8679
    %9762 = vmatpush1.msra.mxu0 %v8678
    %9763 = vmatprep.subr.mxu0 %v8687
    %9764 = vmatpush1.msra.mxu0 %v8686
    %9765 = vmatprep.mubr.f32.mxu0 %v7407
    %9766 = vmatmul.mubr.f32.gmra.mrb[0].mxu0 %v7406
    %v9767 = vpop.f32.mrb[0].mxu0
    %v9768 = vadd.f32 %v9697, %v9767
    %v9769 = vpop.f32.mrb[0].mxu0
    %v9770 = vadd.f32 %v9699, %v9769
    %9771 = vdwg.mxu0
    %9772 = vmatprep.subr.mxu0 %v8695
    %9773 = vmatpush1.msra.mxu0 %v8694
    %9774 = vmatprep.subr.mxu0 %v8703
    %9775 = vmatpush1.msra.mxu0 %v8702
    %9776 = vmatprep.subr.mxu0 %v8711
    %9777 = vmatpush1.msra.mxu0 %v8710
    %9778 = vmatprep.subr.mxu0 %v8719
    %9779 = vmatpush1.msra.mxu0 %v8718
    %9780 = vmatprep.subr.mxu0 %v8727
    %9781 = vmatpush1.msra.mxu0 %v8726
    %9782 = vmatprep.subr.mxu0 %v8735
    %9783 = vmatpush1.msra.mxu0 %v8734
    %9784 = vmatprep.subr.mxu0 %v8743
    %9785 = vmatpush1.msra.mxu0 %v8742
    %9786 = vmatprep.subr.mxu0 %v8751
    %9787 = vmatpush1.msra.mxu0 %v8750
    %9788 = vmatprep.subr.mxu0 %v8759
    %9789 = vmatpush1.msra.mxu0 %v8758
    %9790 = vmatprep.subr.mxu0 %v8767
    %9791 = vmatpush1.msra.mxu0 %v8766
    %9792 = vmatprep.subr.mxu0 %v8775
    %9793 = vmatpush1.msra.mxu0 %v8774
    %9794 = vmatprep.subr.mxu0 %v8783
    %9795 = vmatpush1.msra.mxu0 %v8782
    %9796 = vmatprep.subr.mxu0 %v8791
    %9797 = vmatpush1.msra.mxu0 %v8790
    %9798 = vmatprep.subr.mxu0 %v8799
    %9799 = vmatpush1.msra.mxu0 %v8798
    %9800 = vmatprep.subr.mxu0 %v8807
    %9801 = vmatpush1.msra.mxu0 %v8806
    %9802 = vmatprep.subr.mxu0 %v8815
    %9803 = vmatpush1.msra.mxu0 %v8814
    %9804 = vmatprep.subr.mxu0 %v8823
    %9805 = vmatpush1.msra.mxu0 %v8822
    %9806 = vmatprep.subr.mxu0 %v8831
    %9807 = vmatpush1.msra.mxu0 %v8830
    %9808 = vmatprep.subr.mxu0 %v8839
    %9809 = vmatpush1.msra.mxu0 %v8838
    %9810 = vmatprep.subr.mxu0 %v8847
    %9811 = vmatpush1.msra.mxu0 %v8846
    %9812 = vmatprep.subr.mxu0 %v8855
    %9813 = vmatpush1.msra.mxu0 %v8854
    %9814 = vmatprep.subr.mxu0 %v8863
    %9815 = vmatpush1.msra.mxu0 %v8862
    %9816 = vmatprep.subr.mxu0 %v8871
    %9817 = vmatpush1.msra.mxu0 %v8870
    %9818 = vmatprep.subr.mxu0 %v8879
    %9819 = vmatpush1.msra.mxu0 %v8878
    %9820 = vmatprep.subr.mxu0 %v8887
    %9821 = vmatpush1.msra.mxu0 %v8886
    %9822 = vmatprep.subr.mxu0 %v8895
    %9823 = vmatpush1.msra.mxu0 %v8894
    %9824 = vmatprep.subr.mxu0 %v8903
    %9825 = vmatpush1.msra.mxu0 %v8902
    %9826 = vmatprep.subr.mxu0 %v8911
    %9827 = vmatpush1.msra.mxu0 %v8910
    %9828 = vmatprep.subr.mxu0 %v8919
    %9829 = vmatpush1.msra.mxu0 %v8918
    %9830 = vmatprep.subr.mxu0 %v8927
    %9831 = vmatpush1.msra.mxu0 %v8926
    %9832 = vmatprep.subr.mxu0 %v8935
    %9833 = vmatpush1.msra.mxu0 %v8934
    %9834 = vmatprep.subr.mxu0 %v8943
    %9835 = vmatpush1.msra.mxu0 %v8942
    %9836 = vmatprep.mubr.f32.mxu0 %v7409
    %9837 = vmatmul.mubr.f32.gmra.mrb[0].mxu0 %v7408
    %v9838 = vpop.f32.mrb[0].mxu0
    %v9839 = vadd.f32 %v9768, %v9838
    %v9840 = vpop.f32.mrb[0].mxu0
    %v9841 = vadd.f32 %v9770, %v9840
    %9842 = vdwg.mxu0
    %9843 = vmatprep.subr.mxu0 %v7929
    %9844 = vmatpush1.msra.mxu0 %v7928
    %9845 = vmatprep.subr.mxu0 %v7937
    %9846 = vmatpush1.msra.mxu0 %v7936
    %9847 = vmatprep.subr.mxu0 %v7945
    %9848 = vmatpush1.msra.mxu0 %v7944
    %9849 = vmatprep.subr.mxu0 %v7953
    %9850 = vmatpush1.msra.mxu0 %v7952
    %9851 = vmatprep.subr.mxu0 %v7961
    %9852 = vmatpush1.msra.mxu0 %v7960
    %9853 = vmatprep.subr.mxu0 %v7969
    %9854 = vmatpush1.msra.mxu0 %v7968
    %9855 = vmatprep.subr.mxu0 %v7977
    %9856 = vmatpush1.msra.mxu0 %v7976
    %9857 = vmatprep.subr.mxu0 %v7985
    %9858 = vmatpush1.msra.mxu0 %v7984
    %9859 = vmatprep.subr.mxu0 %v7993
    %9860 = vmatpush1.msra.mxu0 %v7992
    %9861 = vmatprep.subr.mxu0 %v8001
    %9862 = vmatpush1.msra.mxu0 %v8000
    %9863 = vmatprep.subr.mxu0 %v8009
    %9864 = vmatpush1.msra.mxu0 %v8008
    %9865 = vmatprep.subr.mxu0 %v8017
    %9866 = vmatpush1.msra.mxu0 %v8016
    %9867 = vmatprep.subr.mxu0 %v8025
    %9868 = vmatpush1.msra.mxu0 %v8024
    %9869 = vmatprep.subr.mxu0 %v8033
    %9870 = vmatpush1.msra.mxu0 %v8032
    %9871 = vmatprep.subr.mxu0 %v8041
    %9872 = vmatpush1.msra.mxu0 %v8040
    %9873 = vmatprep.subr.mxu0 %v8049
    %9874 = vmatpush1.msra.mxu0 %v8048
    %9875 = vmatprep.subr.mxu0 %v8057
    %9876 = vmatpush1.msra.mxu0 %v8056
    %9877 = vmatprep.subr.mxu0 %v8065
    %9878 = vmatpush1.msra.mxu0 %v8064
    %9879 = vmatprep.subr.mxu0 %v8073
    %9880 = vmatpush1.msra.mxu0 %v8072
    %9881 = vmatprep.subr.mxu0 %v8081
    %9882 = vmatpush1.msra.mxu0 %v8080
    %9883 = vmatprep.subr.mxu0 %v8089
    %9884 = vmatpush1.msra.mxu0 %v8088
    %9885 = vmatprep.subr.mxu0 %v8097
    %9886 = vmatpush1.msra.mxu0 %v8096
    %9887 = vmatprep.subr.mxu0 %v8105
    %9888 = vmatpush1.msra.mxu0 %v8104
    %9889 = vmatprep.subr.mxu0 %v8113
    %9890 = vmatpush1.msra.mxu0 %v8112
    %9891 = vmatprep.subr.mxu0 %v8121
    %9892 = vmatpush1.msra.mxu0 %v8120
    %9893 = vmatprep.subr.mxu0 %v8129
    %9894 = vmatpush1.msra.mxu0 %v8128
    %9895 = vmatprep.subr.mxu0 %v8137
    %9896 = vmatpush1.msra.mxu0 %v8136
    %9897 = vmatprep.subr.mxu0 %v8145
    %9898 = vmatpush1.msra.mxu0 %v8144
    %9899 = vmatprep.subr.mxu0 %v8153
    %9900 = vmatpush1.msra.mxu0 %v8152
    %9901 = vmatprep.subr.mxu0 %v8161
    %9902 = vmatpush1.msra.mxu0 %v8160
    %9903 = vmatprep.subr.mxu0 %v8169
    %9904 = vmatpush1.msra.mxu0 %v8168
    %9905 = vmatprep.subr.mxu0 %v8177
    %9906 = vmatpush1.msra.mxu0 %v8176
    %9907 = vmatprep.mubr.f32.mxu0 %v7403
    %9908 = vmatmul.mubr.f32.gmra.mrb[0].mxu0 %v7402
    %v9909 = vpop.f32.mrb[0].mxu0
    %v9910 = vadd.f32 %v8978, %v9909
    %v9911 = vpop.f32.mrb[0].mxu0
    %v9912 = vadd.f32 %v8982, %v9911
    %9913 = vdwg.mxu0
    %9914 = vmatprep.subr.mxu0 %v8185
    %9915 = vmatpush1.msra.mxu0 %v8184
    %9916 = vmatprep.subr.mxu0 %v8193
    %9917 = vmatpush1.msra.mxu0 %v8192
    %9918 = vmatprep.subr.mxu0 %v8201
    %9919 = vmatpush1.msra.mxu0 %v8200
    %9920 = vmatprep.subr.mxu0 %v8209
    %9921 = vmatpush1.msra.mxu0 %v8208
    %9922 = vmatprep.subr.mxu0 %v8217
    %9923 = vmatpush1.msra.mxu0 %v8216
    %9924 = vmatprep.subr.mxu0 %v8225
    %9925 = vmatpush1.msra.mxu0 %v8224
    %9926 = vmatprep.subr.mxu0 %v8233
    %9927 = vmatpush1.msra.mxu0 %v8232
    %9928 = vmatprep.subr.mxu0 %v8241
    %9929 = vmatpush1.msra.mxu0 %v8240
    %9930 = vmatprep.subr.mxu0 %v8249
    %9931 = vmatpush1.msra.mxu0 %v8248
    %9932 = vmatprep.subr.mxu0 %v8257
    %9933 = vmatpush1.msra.mxu0 %v8256
    %9934 = vmatprep.subr.mxu0 %v8265
    %9935 = vmatpush1.msra.mxu0 %v8264
    %9936 = vmatprep.subr.mxu0 %v8273
    %9937 = vmatpush1.msra.mxu0 %v8272
    %9938 = vmatprep.subr.mxu0 %v8281
    %9939 = vmatpush1.msra.mxu0 %v8280
    %9940 = vmatprep.subr.mxu0 %v8289
    %9941 = vmatpush1.msra.mxu0 %v8288
    %9942 = vmatprep.subr.mxu0 %v8297
    %9943 = vmatpush1.msra.mxu0 %v8296
    %9944 = vmatprep.subr.mxu0 %v8305
    %9945 = vmatpush1.msra.mxu0 %v8304
    %9946 = vmatprep.subr.mxu0 %v8313
    %9947 = vmatpush1.msra.mxu0 %v8312
    %9948 = vmatprep.subr.mxu0 %v8321
    %9949 = vmatpush1.msra.mxu0 %v8320
    %9950 = vmatprep.subr.mxu0 %v8329
    %9951 = vmatpush1.msra.mxu0 %v8328
    %9952 = vmatprep.subr.mxu0 %v8337
    %9953 = vmatpush1.msra.mxu0 %v8336
    %9954 = vmatprep.subr.mxu0 %v8345
    %9955 = vmatpush1.msra.mxu0 %v8344
    %9956 = vmatprep.subr.mxu0 %v8353
    %9957 = vmatpush1.msra.mxu0 %v8352
    %9958 = vmatprep.subr.mxu0 %v8361
    %9959 = vmatpush1.msra.mxu0 %v8360
    %9960 = vmatprep.subr.mxu0 %v8369
    %9961 = vmatpush1.msra.mxu0 %v8368
    %9962 = vmatprep.subr.mxu0 %v8377
    %9963 = vmatpush1.msra.mxu0 %v8376
    %9964 = vmatprep.subr.mxu0 %v8385
    %9965 = vmatpush1.msra.mxu0 %v8384
    %9966 = vmatprep.subr.mxu0 %v8393
    %9967 = vmatpush1.msra.mxu0 %v8392
    %9968 = vmatprep.subr.mxu0 %v8401
    %9969 = vmatpush1.msra.mxu0 %v8400
    %9970 = vmatprep.subr.mxu0 %v8409
    %9971 = vmatpush1.msra.mxu0 %v8408
    %9972 = vmatprep.subr.mxu0 %v8417
    %9973 = vmatpush1.msra.mxu0 %v8416
    %9974 = vmatprep.subr.mxu0 %v8425
    %9975 = vmatpush1.msra.mxu0 %v8424
    %9976 = vmatprep.subr.mxu0 %v8433
    %9977 = vmatpush1.msra.mxu0 %v8432
    %9978 = vmatprep.mubr.f32.mxu0 %v7405
    %9979 = vmatmul.mubr.f32.gmra.mrb[0].mxu0 %v7404
    %v9980 = vpop.f32.mrb[0].mxu0
    %v9981 = vadd.f32 %v9910, %v9980
    %v9982 = vpop.f32.mrb[0].mxu0
    %v9983 = vadd.f32 %v9912, %v9982
    %9984 = vdwg.mxu0
    %9985 = vmatprep.subr.mxu0 %v8441
    %9986 = vmatpush1.msra.mxu0 %v8440
    %9987 = vmatprep.subr.mxu0 %v8449
    %9988 = vmatpush1.msra.mxu0 %v8448
    %9989 = vmatprep.subr.mxu0 %v8457
    %9990 = vmatpush1.msra.mxu0 %v8456
    %9991 = vmatprep.subr.mxu0 %v8465
    %9992 = vmatpush1.msra.mxu0 %v8464
    %9993 = vmatprep.subr.mxu0 %v8473
    %9994 = vmatpush1.msra.mxu0 %v8472
    %9995 = vmatprep.subr.mxu0 %v8481
    %9996 = vmatpush1.msra.mxu0 %v8480
    %9997 = vmatprep.subr.mxu0 %v8489
    %9998 = vmatpush1.msra.mxu0 %v8488
    %9999 = vmatprep.subr.mxu0 %v8497
    %10000 = vmatpush1.msra.mxu0 %v8496
    %10001 = vmatprep.subr.mxu0 %v8505
    %10002 = vmatpush1.msra.mxu0 %v8504
    %10003 = vmatprep.subr.mxu0 %v8513
    %10004 = vmatpush1.msra.mxu0 %v8512
    %10005 = vmatprep.subr.mxu0 %v8521
    %10006 = vmatpush1.msra.mxu0 %v8520
    %10007 = vmatprep.subr.mxu0 %v8529
    %10008 = vmatpush1.msra.mxu0 %v8528
    %10009 = vmatprep.subr.mxu0 %v8537
    %10010 = vmatpush1.msra.mxu0 %v8536
    %10011 = vmatprep.subr.mxu0 %v8545
    %10012 = vmatpush1.msra.mxu0 %v8544
    %10013 = vmatprep.subr.mxu0 %v8553
    %10014 = vmatpush1.msra.mxu0 %v8552
    %10015 = vmatprep.subr.mxu0 %v8561
    %10016 = vmatpush1.msra.mxu0 %v8560
    %10017 = vmatprep.subr.mxu0 %v8569
    %10018 = vmatpush1.msra.mxu0 %v8568
    %10019 = vmatprep.subr.mxu0 %v8577
    %10020 = vmatpush1.msra.mxu0 %v8576
    %10021 = vmatprep.subr.mxu0 %v8585
    %10022 = vmatpush1.msra.mxu0 %v8584
    %10023 = vmatprep.subr.mxu0 %v8593
    %10024 = vmatpush1.msra.mxu0 %v8592
    %10025 = vmatprep.subr.mxu0 %v8601
    %10026 = vmatpush1.msra.mxu0 %v8600
    %10027 = vmatprep.subr.mxu0 %v8609
    %10028 = vmatpush1.msra.mxu0 %v8608
    %10029 = vmatprep.subr.mxu0 %v8617
    %10030 = vmatpush1.msra.mxu0 %v8616
    %10031 = vmatprep.subr.mxu0 %v8625
    %10032 = vmatpush1.msra.mxu0 %v8624
    %10033 = vmatprep.subr.mxu0 %v8633
    %10034 = vmatpush1.msra.mxu0 %v8632
    %10035 = vmatprep.subr.mxu0 %v8641
    %10036 = vmatpush1.msra.mxu0 %v8640
    %10037 = vmatprep.subr.mxu0 %v8649
    %10038 = vmatpush1.msra.mxu0 %v8648
    %10039 = vmatprep.subr.mxu0 %v8657
    %10040 = vmatpush1.msra.mxu0 %v8656
    %10041 = vmatprep.subr.mxu0 %v8665
    %10042 = vmatpush1.msra.mxu0 %v8664
    %10043 = vmatprep.subr.mxu0 %v8673
    %10044 = vmatpush1.msra.mxu0 %v8672
    %10045 = vmatprep.subr.mxu0 %v8681
    %10046 = vmatpush1.msra.mxu0 %v8680
    %10047 = vmatprep.subr.mxu0 %v8689
    %10048 = vmatpush1.msra.mxu0 %v8688
    %10049 = vmatprep.mubr.f32.mxu0 %v7407
    %10050 = vmatmul.mubr.f32.gmra.mrb[0].mxu0 %v7406
    %v10051 = vpop.f32.mrb[0].mxu0
    %v10052 = vadd.f32 %v9981, %v10051
    %v10053 = vpop.f32.mrb[0].mxu0
    %v10054 = vadd.f32 %v9983, %v10053
    %10055 = vdwg.mxu0
    %10056 = vmatprep.subr.mxu0 %v8697
    %10057 = vmatpush1.msra.mxu0 %v8696
    %10058 = vmatprep.subr.mxu0 %v8705
    %10059 = vmatpush1.msra.mxu0 %v8704
    %10060 = vmatprep.subr.mxu0 %v8713
    %10061 = vmatpush1.msra.mxu0 %v8712
    %10062 = vmatprep.subr.mxu0 %v8721
    %10063 = vmatpush1.msra.mxu0 %v8720
    %10064 = vmatprep.subr.mxu0 %v8729
    %10065 = vmatpush1.msra.mxu0 %v8728
    %10066 = vmatprep.subr.mxu0 %v8737
    %10067 = vmatpush1.msra.mxu0 %v8736
    %10068 = vmatprep.subr.mxu0 %v8745
    %10069 = vmatpush1.msra.mxu0 %v8744
    %10070 = vmatprep.subr.mxu0 %v8753
    %10071 = vmatpush1.msra.mxu0 %v8752
    %10072 = vmatprep.subr.mxu0 %v8761
    %10073 = vmatpush1.msra.mxu0 %v8760
    %10074 = vmatprep.subr.mxu0 %v8769
    %10075 = vmatpush1.msra.mxu0 %v8768
    %10076 = vmatprep.subr.mxu0 %v8777
    %10077 = vmatpush1.msra.mxu0 %v8776
    %10078 = vmatprep.subr.mxu0 %v8785
    %10079 = vmatpush1.msra.mxu0 %v8784
    %10080 = vmatprep.subr.mxu0 %v8793
    %10081 = vmatpush1.msra.mxu0 %v8792
    %10082 = vmatprep.subr.mxu0 %v8801
    %10083 = vmatpush1.msra.mxu0 %v8800
    %10084 = vmatprep.subr.mxu0 %v8809
    %10085 = vmatpush1.msra.mxu0 %v8808
    %10086 = vmatprep.subr.mxu0 %v8817
    %10087 = vmatpush1.msra.mxu0 %v8816
    %10088 = vmatprep.subr.mxu0 %v8825
    %10089 = vmatpush1.msra.mxu0 %v8824
    %10090 = vmatprep.subr.mxu0 %v8833
    %10091 = vmatpush1.msra.mxu0 %v8832
    %10092 = vmatprep.subr.mxu0 %v8841
    %10093 = vmatpush1.msra.mxu0 %v8840
    %10094 = vmatprep.subr.mxu0 %v8849
    %10095 = vmatpush1.msra.mxu0 %v8848
    %10096 = vmatprep.subr.mxu0 %v8857
    %10097 = vmatpush1.msra.mxu0 %v8856
    %10098 = vmatprep.subr.mxu0 %v8865
    %10099 = vmatpush1.msra.mxu0 %v8864
    %10100 = vmatprep.subr.mxu0 %v8873
    %10101 = vmatpush1.msra.mxu0 %v8872
    %10102 = vmatprep.subr.mxu0 %v8881
    %10103 = vmatpush1.msra.mxu0 %v8880
    %10104 = vmatprep.subr.mxu0 %v8889
    %10105 = vmatpush1.msra.mxu0 %v8888
    %10106 = vmatprep.subr.mxu0 %v8897
    %10107 = vmatpush1.msra.mxu0 %v8896
    %10108 = vmatprep.subr.mxu0 %v8905
    %10109 = vmatpush1.msra.mxu0 %v8904
    %10110 = vmatprep.subr.mxu0 %v8913
    %10111 = vmatpush1.msra.mxu0 %v8912
    %10112 = vmatprep.subr.mxu0 %v8921
    %10113 = vmatpush1.msra.mxu0 %v8920
    %10114 = vmatprep.subr.mxu0 %v8929
    %10115 = vmatpush1.msra.mxu0 %v8928
    %10116 = vmatprep.subr.mxu0 %v8937
    %10117 = vmatpush1.msra.mxu0 %v8936
    %10118 = vmatprep.subr.mxu0 %v8945
    %10119 = vmatpush1.msra.mxu0 %v8944
    %10120 = vmatprep.mubr.f32.mxu0 %v7409
    %10121 = vmatmul.mubr.f32.gmra.mrb[0].mxu0 %v7408
    %v10122 = vpop.f32.mrb[0].mxu0
    %v10123 = vadd.f32 %v10052, %v10122
    %v10124 = vpop.f32.mrb[0].mxu0
    %v10125 = vadd.f32 %v10054, %v10124
    %10126 = vdwg.mxu0
    %v10127 = vsub.f32 0.0, %v9271
    %v10128 = vsub.f32 0.0, %v9273
    %v10129 = vsub.f32 0.0, %v9555
    %v10130 = vsub.f32 0.0, %v9557
    %v10131 = vsub.f32 0.0, %v9839
    %v10132 = vsub.f32 0.0, %v9841
    %v10133 = vsub.f32 0.0, %v10123
    %v10134 = vsub.f32 0.0, %v10125
    %v10135 = vmul.f32 %v10127, 1.442695
    %v10136 = vpow.pop %v10135
    %v10137 = vmul.f32 %v10128, 1.442695
    %v10138 = vpow.pop %v10137
    %v10139 = vmul.f32 %v10129, 1.442695
    %v10140 = vpow.pop %v10139
    %v10141 = vmul.f32 %v10130, 1.442695
    %v10142 = vpow.pop %v10141
    %v10143 = vmul.f32 %v10131, 1.442695
    %v10144 = vpow.pop %v10143
    %v10145 = vmul.f32 %v10132, 1.442695
    %v10146 = vpow.pop %v10145
    %v10147 = vmul.f32 %v10133, 1.442695
    %v10148 = vpow.pop %v10147
    %v10149 = vmul.f32 %v10134, 1.442695
    %v10150 = vpow.pop %v10149
    %v10151 = vadd.f32 %v10136, 1.0
    %v10152 = vadd.f32 %v10138, 1.0
    %v10153 = vadd.f32 %v10140, 1.0
    %v10154 = vadd.f32 %v10142, 1.0
    %v10155 = vadd.f32 %v10144, 1.0
    %v10156 = vadd.f32 %v10146, 1.0
    %v10157 = vadd.f32 %v10148, 1.0
    %v10158 = vadd.f32 %v10150, 1.0
    %v10159 = vrcp.pop %v10151
    %v10160 = vrcp.pop %v10152
    %v10161 = vrcp.pop %v10153
    %v10162 = vrcp.pop %v10154
    %v10163 = vrcp.pop %v10155
    %v10164 = vrcp.pop %v10156
    %v10165 = vrcp.pop %v10157
    %v10166 = vrcp.pop %v10158
    %v10175 = vcombine.low %v10159, %v10160
    %v10176 = vcombine.low %v10161, %v10162
    %v10178 = vunpack.c.l.s4 1983009808
    %v10179 = vunpack.c.0.s8 %v10178
    %v10180 = vlaneseq
    %v10181 = vshrl.u32 %v10180, 7
    %v10182 = vsub.s32 %v10179, %v10181
    %v10183 = vrot.slane %v10175, %v10182
    %v10185 = vunpack.c.l.s4 1983009808
    %v10186 = vunpack.c.0.s8 %v10185
    %v10187 = vlaneseq
    %v10188 = vshrl.u32 %v10187, 7
    %v10189 = vsub.s32 %v10186, %v10188
    %v10190 = vrot.slane %v10176, %v10189
    %v10191 = vcombine.low %v10183, %v10190
    %v10192 = vcombine.low %v10163, %v10164
    %v10193 = vcombine.low %v10165, %v10166
    %v10195 = vunpack.c.l.s4 1983009808
    %v10196 = vunpack.c.0.s8 %v10195
    %v10197 = vlaneseq
    %v10198 = vshrl.u32 %v10197, 7
    %v10199 = vsub.s32 %v10196, %v10198
    %v10200 = vrot.slane %v10192, %v10199
    %v10202 = vunpack.c.l.s4 1983009808
    %v10203 = vunpack.c.0.s8 %v10202
    %v10204 = vlaneseq
    %v10205 = vshrl.u32 %v10204, 7
    %v10206 = vsub.s32 %v10203, %v10205
    %v10207 = vrot.slane %v10193, %v10206
    %v10208 = vcombine.low %v10200, %v10207
    %10211 = vst [vmem:[%s8] sm:$0xff] %v10191
    %10212 = vst [vmem:[%s8 + $0x8] sm:$0xff] %v10208
    // Predicated region
    $region62: #{autoencoder_forward.1} parent=1 // pred_check
      _
    $region63: #{autoencoder_forward.1} parent=1 // pred_check_branch
      %10214 = sbr.rel (0) target = $region65
    $region64: #{autoencoder_forward.1} parent=1 // pred_region
      _
    $region65: #{autoencoder_forward.1} parent=1 // pred_fallthru
      _
    // Predicated region
    $region66: #{autoencoder_forward.1} parent=1 // pred_check
      _
    $region67: #{autoencoder_forward.1} parent=1 // pred_check_branch
      %10216 = sbr.rel (0) target = $region69
    $region68: #{autoencoder_forward.1} parent=1 // pred_region
      _
    $region69: #{autoencoder_forward.1} parent=1 // pred_fallthru
      _
    %10217 = vsyncpa [#allocation3], 1
    %10218 = vsyncpa [#allocation5], 1
    %10219 = vsyncpa [#allocation8], 1
    %10220 = vsyncpa [#allocation11], 1

</llo_original>
